<compile_context>
chip_gen: v7x
topology: tpu7x:2x2x1
jax: 0.10.0
libtpu: 0.0.40
codegen_flags: <defaults>
</compile_context>

<pallas_src>
import functools

import numpy as np
import jax
import jax.numpy as jnp
from jax.experimental import pallas as pl
from jax.experimental.pallas import tpu as pltpu

CHANNELS = 4
FILTERS_ROOT = 8
MASK_CHANNELS = 1
SPATIAL = 16
BN_EPS = 1e-5
MXU_DTYPE = jnp.bfloat16   # dtype of all MXU-side weights (f32 accumulation)


# --------------------------------------------------------------------------
# The single fused kernel
# --------------------------------------------------------------------------
def _unet_kernel(plan, fold, x_ref, w_ref, b_ref, o_ref):
    f32 = jnp.float32

    def wpiece(meta):                       # (idx, rows, cols) -> bf16 (r, c)
        i, r, c = meta
        return w_ref[i][:r, :c]

    def brow(idx):                          # row idx -> f32 (1, 128)
        return b_ref[idx:idx + 1, :]

    def dotf(a, b):
        return jnp.dot(a, b, preferred_element_type=jnp.float32)

    # Edge masks for the ky row-shift: zero rows that would read across an
    # image boundary (batch fold) or the zero padding at the top/bottom.
    masks = {}
    hh = SPATIAL
    while hh > 1:
        m = fold * hh
        rows = jax.lax.broadcasted_iota(jnp.int32, (m, 1), 0) % hh
        masks[hh] = ((rows != 0).astype(f32), (rows != hh - 1).astype(f32))
        hh //= 2

    def band(x, taps, h):
        """Banded 3x3 conv: 3 bf16 matmuls off one cast + masked row rolls."""
        xb = x.astype(MXU_DTYPE)
        acc = dotf(xb, wpiece(taps[1]))                 # ky = 1 (center)
        if h > 1:
            mt, mb = masks[h]
            y0 = dotf(xb, wpiece(taps[0]))              # ky = 0 -> from row above
            y2 = dotf(xb, wpiece(taps[2]))              # ky = 2 -> from row below
            acc = (acc
                   + mt * jnp.roll(y0, 1, axis=0)
                   + mb * jnp.roll(y2, -1, axis=0))
        return acc

    def conv3x3(x, taps, s_idx, h, extra=None):
        acc = band(x, taps, h)
        if extra is not None:                           # skip-concat as split-K sum
            x2, taps2 = extra
            acc = acc + band(x2, taps2, h)
        return jnp.maximum(acc + brow(s_idx), 0.0)      # folded BN shift + ReLU

    def conv_block(x, blk, h, skip=None):
        if skip is None:
            y = conv3x3(x, blk["w1"], blk["s1"], h)
        else:                                           # torch.cat([skip, x], dim=1)
            y = conv3x3(skip, blk["w1e"], blk["s1"], h, extra=(x, blk["w1d"]))
        return conv3x3(y, blk["w2"], blk["s2"], h)

    def maxpool(x, pool):
        xb = x.astype(MXU_DTYPE)
        r = jnp.maximum(dotf(wpiece(pool["P0"]), xb),   # rows 2h / 2h+1
                        dotf(wpiece(pool["P1"]), xb))
        rb = r.astype(MXU_DTYPE)
        return jnp.maximum(dotf(rb, wpiece(pool["S0"])),   # cols 2w / 2w+1
                           dotf(rb, wpiece(pool["S1"])))

    def upsample(x, up):
        xb = x.astype(MXU_DTYPE)
        y0 = dotf(xb, wpiece(up["E0"])).astype(MXU_DTYPE)  # output rows 2h
        y1 = dotf(xb, wpiece(up["E1"])).astype(MXU_DTYPE)  # output rows 2h+1
        return (dotf(wpiece(up["R0"]), y0)
                + dotf(wpiece(up["R1"]), y1) + brow(up["b"]))

    s = SPATIAL
    x = x_ref[...]                                          # (fold*16, 16*C)
    e1 = conv_block(x, plan["enc1"], s)                     # (fold*16, 128)
    e2 = conv_block(maxpool(e1, plan["pool1"]), plan["enc2"], s // 2)
    e3 = conv_block(maxpool(e2, plan["pool2"]), plan["enc3"], s // 4)
    e4 = conv_block(maxpool(e3, plan["pool3"]), plan["enc4"], s // 8)
    b = conv_block(maxpool(e4, plan["pool4"]), plan["bott"], s // 16)

    d4 = conv_block(upsample(b, plan["up4"]), plan["dec4"], s // 8, skip=e4)
    d3 = conv_block(upsample(d4, plan["up3"]), plan["dec3"], s // 4, skip=e3)
    d2 = conv_block(upsample(d3, plan["up2"]), plan["dec2"], s // 2, skip=e2)
    d1 = conv_block(upsample(d2, plan["up1"]), plan["dec1"], s, skip=e1)

    # 1x1 out conv, weight padded to 128 output lanes -> lane-dense store.
    y = dotf(d1.astype(MXU_DTYPE), wpiece(plan["out"]["w"])) + brow(plan["out"]["b"])
    o_ref[...] = 1.0 / (1.0 + jnp.exp(-y))                  # sigmoid


# --------------------------------------------------------------------------
# Host-side (trace-time) packing into two slabs + a static plan
# --------------------------------------------------------------------------
class _SlabBuilder:
    """bf16 MXU-weight slab: each piece gets one (128,128) zero-padded slot."""

    def __init__(self):
        self.pieces = []

    def add(self, arr):
        arr = np.asarray(arr, np.float32)
        r, c = arr.shape
        assert r <= 128 and c <= 128, (r, c)
        idx = len(self.pieces)
        self.pieces.append(arr)
        return (idx, r, c)

    def build(self, dtype):
        slab = np.zeros((max(len(self.pieces), 1), 128, 128), np.float32)
        for i, p in enumerate(self.pieces):
            slab[i, :p.shape[0], :p.shape[1]] = p
        return jnp.asarray(slab, dtype)


class _RowBuilder:
    """f32 bias/shift slab: one 128-lane row per constant vector."""

    def __init__(self):
        self.rows = []

    def add(self, vec):
        vec = np.asarray(vec, np.float32).reshape(-1)
        assert vec.shape[0] <= 128, vec.shape
        row = np.zeros((128,), np.float32)
        row[:vec.shape[0]] = vec
        idx = len(self.rows)
        self.rows.append(row)
        return idx

    def build(self):
        n = max(len(self.rows), 1)
        n_pad = ((n + 7) // 8) * 8
        slab = np.zeros((n_pad, 128), np.float32)
        for i, r in enumerate(self.rows):
            slab[i] = r
        return jnp.asarray(slab)


def _fold_bn(b, g, be, rm, rv):
    inv = g / np.sqrt(rv + BN_EPS)
    return inv.astype(np.float32), ((b - rm) * inv + be).astype(np.float32)


def _band_taps(w, inv, width):
    """Torch (Cout, Cin, 3, 3) -> 3 block-banded (W*Cin, W*Cout) pieces (per ky)."""
    cout, cin = w.shape[0], w.shape[1]
    w_eff = np.transpose(w, (2, 3, 1, 0)) * inv[None, None, None, :]
    taps = []
    for ky in range(3):
        band = np.zeros((width * cin, width * cout), np.float32)
        for wo in range(width):
            for kx in range(3):
                wi = wo + kx - 1
                if 0 <= wi < width:
                    band[wi * cin:(wi + 1) * cin,
                         wo * cout:(wo + 1) * cout] = w_eff[ky, kx]
        taps.append(band)
    return taps


def _pack_convblock(blk, width, wb, bb, split_cin=None):
    f32 = lambda a: np.asarray(a, np.float32)
    inv1, sh1 = _fold_bn(f32(blk["b1"]), f32(blk["g1"]), f32(blk["be1"]),
                         f32(blk["rm1"]), f32(blk["rv1"]))
    inv2, sh2 = _fold_bn(f32(blk["b2"]), f32(blk["g2"]), f32(blk["be2"]),
                         f32(blk["rm2"]), f32(blk["rv2"]))
    w1, w2 = f32(blk["w1"]), f32(blk["w2"])
    out = {}
    if split_cin is None:
        out["w1"] = tuple(wb.add(t) for t in _band_taps(w1, inv1, width))
    else:  # decoder conv-1: split Cin (skip part / upsampled part), no concat
        out["w1e"] = tuple(wb.add(t) for t in _band_taps(w1[:, :split_cin], inv1, width))
        out["w1d"] = tuple(wb.add(t) for t in _band_taps(w1[:, split_cin:], inv1, width))
    out["s1"] = bb.add(np.tile(sh1, width))
    out["w2"] = tuple(wb.add(t) for t in _band_taps(w2, inv2, width))
    out["s2"] = bb.add(np.tile(sh2, width))
    return out


def _pack_pool(h, width, c, fold, wb):
    out = {}
    for j in range(2):                                   # row selection (batch block-diag)
        p = np.zeros((fold * (h // 2), fold * h), np.float32)
        for img in range(fold):
            for r in range(h // 2):
                p[img * (h // 2) + r, img * h + 2 * r + j] = 1.0
        out[f"P{j}"] = wb.add(p)
    for j in range(2):                                   # lane (width) selection
        sm = np.zeros((width * c, (width // 2) * c), np.float32)
        for k in range(width // 2):
            for cc in range(c):
                sm[(2 * k + j) * c + cc, k * c + cc] = 1.0
        out[f"S{j}"] = wb.add(sm)
    return out


def _pack_up(w, b, width, h, fold, wb, bb):
    w = np.asarray(w, np.float32)                        # torch (Cin, Cout, 2, 2)
    b = np.asarray(b, np.float32)
    cin, cout = w.shape[0], w.shape[1]
    out = {}
    for i in range(2):                                   # lane expansion (kw folded)
        e = np.zeros((width * cin, 2 * width * cout), np.float32)
        for wc in range(width):
            for j in range(2):
                e[wc * cin:(wc + 1) * cin,
                  (2 * wc + j) * cout:(2 * wc + j + 1) * cout] = w[:, :, i, j]
        out[f"E{i}"] = wb.add(e)
    for i in range(2):                                   # row interleave (batch block-diag)
        r = np.zeros((fold * 2 * h, fold * h), np.float32)
        for img in range(fold):
            for hh in range(h):
                r[img * 2 * h + 2 * hh + i, img * h + hh] = 1.0
        out[f"R{i}"] = wb.add(r)
    out["b"] = bb.add(np.tile(b, 2 * width))
    return out


def _pack_out(w, b, width, cin, wb, bb):
    w = np.asarray(w, np.float32).reshape(-1, cin)       # (Cmask, Cin)
    b = np.asarray(b, np.float32)
    cout = w.shape[0]
    o = np.zeros((width * cin, 128), np.float32)         # padded to 128 lanes (lane-dense store)
    for wc in range(width):
        o[wc * cin:(wc + 1) * cin, wc * cout:(wc + 1) * cout] = w.T
    return {"w": wb.add(o), "b": bb.add(np.tile(b, width))}


def pack_params(params, fold):
    wb, bb = _SlabBuilder(), _RowBuilder()
    s, fr = SPATIAL, FILTERS_ROOT
    plan = {
        "enc1": _pack_convblock(params["enc1"], s, wb, bb),
        "pool1": _pack_pool(s, s, fr, fold, wb),
        "enc2": _pack_convblock(params["enc2"], s // 2, wb, bb),
        "pool2": _pack_pool(s // 2, s // 2, fr * 2, fold, wb),
        "enc3": _pack_convblock(params["enc3"], s // 4, wb, bb),
        "pool3": _pack_pool(s // 4, s // 4, fr * 4, fold, wb),
        "enc4": _pack_convblock(params["enc4"], s // 8, wb, bb),
        "pool4": _pack_pool(s // 8, s // 8, fr * 8, fold, wb),
        "bott": _pack_convblock(params["bottleneck"], s // 16, wb, bb),
        "up4": _pack_up(params["up4_w"], params["up4_b"], s // 16, s // 16, fold, wb, bb),
        "dec4": _pack_convblock(params["dec4"], s // 8, wb, bb, split_cin=fr * 8),
        "up3": _pack_up(params["up3_w"], params["up3_b"], s // 8, s // 8, fold, wb, bb),
        "dec3": _pack_convblock(params["dec3"], s // 4, wb, bb, split_cin=fr * 4),
        "up2": _pack_up(params["up2_w"], params["up2_b"], s // 4, s // 4, fold, wb, bb),
        "dec2": _pack_convblock(params["dec2"], s // 2, wb, bb, split_cin=fr * 2),
        "up1": _pack_up(params["up1_w"], params["up1_b"], s // 2, s // 2, fold, wb, bb),
        "dec1": _pack_convblock(params["dec1"], s, wb, bb, split_cin=fr),
        "out": _pack_out(params["out_w"], params["out_b"], s, fr, wb, bb),
    }
    return wb.build(MXU_DTYPE), bb.build(), plan, fold


# --------------------------------------------------------------------------
# Forward pass: one fused pallas_call; whole (folded) batch per grid step
# --------------------------------------------------------------------------
def unet_forward(x_nchw, w_slab, b_slab, *, plan, fold):
    n, c, h, w = x_nchw.shape
    g = -(-n // fold)
    n_pad = g * fold

    xp = jnp.transpose(x_nchw, (0, 2, 3, 1)).reshape(n, h, w * c)
    if n_pad != n:
        xp = jnp.concatenate(
            [xp, jnp.zeros((n_pad - n, h, w * c), xp.dtype)], axis=0)
    xp = xp.reshape(n_pad * h, w * c)                    # batch folded into rows

    kernel = functools.partial(_unet_kernel, plan, fold)

    out = pl.pallas_call(
        kernel,
        out_shape=jax.ShapeDtypeStruct((n_pad * h, 128), jnp.float32),
        grid_spec=pltpu.PrefetchScalarGridSpec(
            num_scalar_prefetch=0,
            grid=(g,),
            in_specs=[
                pl.BlockSpec((fold * h, w * c), lambda i: (i, 0)),
                pl.BlockSpec(w_slab.shape, lambda i: (0, 0, 0)),
                pl.BlockSpec(b_slab.shape, lambda i: (0, 0)),
            ],
            out_specs=pl.BlockSpec((fold * h, 128), lambda i: (i, 0)),
        ),
        compiler_params=pltpu.CompilerParams(
            dimension_semantics=("parallel",),
            vmem_limit_bytes=32 * 1024 * 1024),
    )(xp, w_slab, b_slab)

    out = out[: n * h, : w * MASK_CHANNELS]
    out = out.reshape(n, h, w, MASK_CHANNELS)
    return jnp.transpose(out, (0, 3, 1, 2))              # -> NCHW


# --------------------------------------------------------------------------
# Deterministic synthetic parameters in the original torch layouts
# --------------------------------------------------------------------------
class ParamGen:
    def __init__(self, key):
        self.key = key

    def next(self, shape, scale=0.1):
        self.key, sub = jax.random.split(self.key)
        return scale * jax.random.normal(sub, shape, jnp.float32)


def init_convblock(pg, cin, cout):
    return dict(
        w1=pg.next((cout, cin, 3, 3)), b1=pg.next((cout,)),
        g1=1.0 + pg.next((cout,)), be1=pg.next((cout,)),
        rm1=jnp.zeros((cout,), jnp.float32), rv1=jnp.ones((cout,), jnp.float32),
        w2=pg.next((cout, cout, 3, 3)), b2=pg.next((cout,)),
        g2=1.0 + pg.next((cout,)), be2=pg.next((cout,)),
        rm2=jnp.zeros((cout,), jnp.float32), rv2=jnp.ones((cout,), jnp.float32),
    )


def init_unet_params(key):
    pg = ParamGen(key)
    fr = FILTERS_ROOT
    return {
        "enc1": init_convblock(pg, CHANNELS, fr),
        "enc2": init_convblock(pg, fr, fr * 2),
        "enc3": init_convblock(pg, fr * 2, fr * 4),
        "enc4": init_convblock(pg, fr * 4, fr * 8),
        "bottleneck": init_convblock(pg, fr * 8, fr * 16),
        "up4_w": pg.next((fr * 16, fr * 8, 2, 2)), "up4_b": pg.next((fr * 8,)),
        "dec4": init_convblock(pg, fr * 16, fr * 8),
        "up3_w": pg.next((fr * 8, fr * 4, 2, 2)), "up3_b": pg.next((fr * 4,)),
        "dec3": init_convblock(pg, fr * 8, fr * 4),
        "up2_w": pg.next((fr * 4, fr * 2, 2, 2)), "up2_b": pg.next((fr * 2,)),
        "dec2": init_convblock(pg, fr * 4, fr * 2),
        "up1_w": pg.next((fr * 2, fr, 2, 2)), "up1_b": pg.next((fr,)),
        "dec1": init_convblock(pg, fr * 2, fr),
        "out_w": pg.next((MASK_CHANNELS, fr, 1, 1)),
        "out_b": pg.next((MASK_CHANNELS,)),
    }


# TODO(synk): BatchNorm uses inference mode (running stats folded into the
# banded weights / shift vectors); PyTorch training-mode batch statistics are
# not reproduced.

if __name__ == "__main__":
    key = jax.random.PRNGKey(0)
    kx, kp = jax.random.split(key)
    x = jax.random.normal(kx, (2, CHANNELS, SPATIAL, SPATIAL), jnp.float32)
    params = init_unet_params(kp)

    w_slab, b_slab, plan, fold = pack_params(params, fold=2)
    fwd = jax.jit(functools.partial(unet_forward, plan=plan, fold=fold))

    out = jax.block_until_ready(fwd(x, w_slab, b_slab))

    assert out.shape == (2, MASK_CHANNELS, SPATIAL, SPATIAL), out.shape
    assert bool(jnp.all(jnp.isfinite(out)))
    assert bool(jnp.all((out >= 0.0) & (out <= 1.0)))   # sigmoid output range
    print("KERNEL_OK")
</pallas_src>

<mosaic_0001>
module attributes {stable_mosaic.version = 11 : i64} {
  func.func @_unet_kernel(%arg0: i32, %arg1: memref<32x64xf32, #tpu.memory_space<vmem>>, %arg2: memref<99x128x128xbf16, #tpu.memory_space<vmem>>, %arg3: memref<24x128xf32, #tpu.memory_space<vmem>>, %arg4: memref<32x128xf32, #tpu.memory_space<vmem>>) attributes {dimension_semantics = [#tpu.dimension_semantics<parallel>], iteration_bounds = array<i64: 1>, scalar_prefetch = 0 : i64, scratch_operands = 0 : i64, tpu.core_type = #tpu.core_type<tc>, window_params = [{transform_indices = @transform_0, window_bounds = array<i64: 32, 64>}, {pipeline_mode = #tpu.pipeline_mode<synchronous>, transform_indices = @transform_1, window_bounds = array<i64: 99, 128, 128>}, {pipeline_mode = #tpu.pipeline_mode<synchronous>, transform_indices = @transform_2, window_bounds = array<i64: 24, 128>}, {transform_indices = @transform_3, window_bounds = array<i64: 32, 128>}]} {
    %0 = tpu.iota {dimensions = array<i32: 0>} : vector<32x1xi32>
    %c16_i32 = arith.constant 16 : i32
    %c0_i32 = arith.constant 0 : i32
    %1 = arith.cmpi eq, %c16_i32, %c0_i32 : i32
    %c1_i32 = arith.constant 1 : i32
    %2 = arith.select %1, %c1_i32, %c16_i32 : i32
    %3 = vector.broadcast %2 : i32 to vector<32x1xi32>
    %4 = arith.remsi %0, %3 : vector<32x1xi32>
    %c0_i32_0 = arith.constant 0 : i32
    %5 = vector.broadcast %c0_i32_0 : i32 to vector<32x1xi32>
    %6 = arith.cmpi ne, %4, %5 : vector<32x1xi32>
    %c0_i32_1 = arith.constant 0 : i32
    %7 = vector.broadcast %c0_i32_1 : i32 to vector<32x1xi32>
    %8 = arith.cmpi slt, %4, %7 : vector<32x1xi32>
    %c0_i32_2 = arith.constant 0 : i32
    %9 = arith.cmpi slt, %2, %c0_i32_2 : i32
    %10 = vector.broadcast %9 : i1 to vector<32x1xi1>
    %11 = vector.broadcast %10 : vector<32x1xi1> to vector<32x1xi1>
    %12 = arith.xori %8, %11 : vector<32x1xi1>
    %13 = arith.andi %12, %6 : vector<32x1xi1>
    %14 = vector.broadcast %2 : i32 to vector<32x1xi32>
    %15 = arith.addi %4, %14 : vector<32x1xi32>
    %16 = arith.select %13, %15, %4 : vector<32x1xi1>, vector<32x1xi32>
    %c0_i32_3 = arith.constant 0 : i32
    %17 = vector.broadcast %c0_i32_3 : i32 to vector<32x1xi32>
    %18 = arith.cmpi ne, %16, %17 : vector<32x1xi32>
    %19 = arith.extui %18 : vector<32x1xi1> to vector<32x1xi32>
    %20 = arith.sitofp %19 : vector<32x1xi32> to vector<32x1xf32>
    %c15_i32 = arith.constant 15 : i32
    %21 = vector.broadcast %c15_i32 : i32 to vector<32x1xi32>
    %22 = arith.cmpi ne, %16, %21 : vector<32x1xi32>
    %23 = arith.extui %22 : vector<32x1xi1> to vector<32x1xi32>
    %24 = arith.sitofp %23 : vector<32x1xi32> to vector<32x1xf32>
    %25 = tpu.iota {dimensions = array<i32: 0>} : vector<16x1xi32>
    %c8_i32 = arith.constant 8 : i32
    %c0_i32_4 = arith.constant 0 : i32
    %26 = arith.cmpi eq, %c8_i32, %c0_i32_4 : i32
    %c1_i32_5 = arith.constant 1 : i32
    %27 = arith.select %26, %c1_i32_5, %c8_i32 : i32
    %28 = vector.broadcast %27 : i32 to vector<16x1xi32>
    %29 = arith.remsi %25, %28 : vector<16x1xi32>
    %c0_i32_6 = arith.constant 0 : i32
    %30 = vector.broadcast %c0_i32_6 : i32 to vector<16x1xi32>
    %31 = arith.cmpi ne, %29, %30 : vector<16x1xi32>
    %c0_i32_7 = arith.constant 0 : i32
    %32 = vector.broadcast %c0_i32_7 : i32 to vector<16x1xi32>
    %33 = arith.cmpi slt, %29, %32 : vector<16x1xi32>
    %c0_i32_8 = arith.constant 0 : i32
    %34 = arith.cmpi slt, %27, %c0_i32_8 : i32
    %35 = vector.broadcast %34 : i1 to vector<16x1xi1>
    %36 = vector.broadcast %35 : vector<16x1xi1> to vector<16x1xi1>
    %37 = arith.xori %33, %36 : vector<16x1xi1>
    %38 = arith.andi %37, %31 : vector<16x1xi1>
    %39 = vector.broadcast %27 : i32 to vector<16x1xi32>
    %40 = arith.addi %29, %39 : vector<16x1xi32>
    %41 = arith.select %38, %40, %29 : vector<16x1xi1>, vector<16x1xi32>
    %c0_i32_9 = arith.constant 0 : i32
    %42 = vector.broadcast %c0_i32_9 : i32 to vector<16x1xi32>
    %43 = arith.cmpi ne, %41, %42 : vector<16x1xi32>
    %44 = arith.extui %43 : vector<16x1xi1> to vector<16x1xi32>
    %45 = arith.sitofp %44 : vector<16x1xi32> to vector<16x1xf32>
    %c7_i32 = arith.constant 7 : i32
    %46 = vector.broadcast %c7_i32 : i32 to vector<16x1xi32>
    %47 = arith.cmpi ne, %41, %46 : vector<16x1xi32>
    %48 = arith.extui %47 : vector<16x1xi1> to vector<16x1xi32>
    %49 = arith.sitofp %48 : vector<16x1xi32> to vector<16x1xf32>
    %50 = tpu.iota {dimensions = array<i32: 0>} : vector<8x1xi32>
    %c4_i32 = arith.constant 4 : i32
    %c0_i32_10 = arith.constant 0 : i32
    %51 = arith.cmpi eq, %c4_i32, %c0_i32_10 : i32
    %c1_i32_11 = arith.constant 1 : i32
    %52 = arith.select %51, %c1_i32_11, %c4_i32 : i32
    %53 = vector.broadcast %52 : i32 to vector<8x1xi32>
    %54 = arith.remsi %50, %53 : vector<8x1xi32>
    %c0_i32_12 = arith.constant 0 : i32
    %55 = vector.broadcast %c0_i32_12 : i32 to vector<8x1xi32>
    %56 = arith.cmpi ne, %54, %55 : vector<8x1xi32>
    %c0_i32_13 = arith.constant 0 : i32
    %57 = vector.broadcast %c0_i32_13 : i32 to vector<8x1xi32>
    %58 = arith.cmpi slt, %54, %57 : vector<8x1xi32>
    %c0_i32_14 = arith.constant 0 : i32
    %59 = arith.cmpi slt, %52, %c0_i32_14 : i32
    %60 = vector.broadcast %59 : i1 to vector<8x1xi1>
    %61 = vector.broadcast %60 : vector<8x1xi1> to vector<8x1xi1>
    %62 = arith.xori %58, %61 : vector<8x1xi1>
    %63 = arith.andi %62, %56 : vector<8x1xi1>
    %64 = vector.broadcast %52 : i32 to vector<8x1xi32>
    %65 = arith.addi %54, %64 : vector<8x1xi32>
    %66 = arith.select %63, %65, %54 : vector<8x1xi1>, vector<8x1xi32>
    %c0_i32_15 = arith.constant 0 : i32
    %67 = vector.broadcast %c0_i32_15 : i32 to vector<8x1xi32>
    %68 = arith.cmpi ne, %66, %67 : vector<8x1xi32>
    %69 = arith.extui %68 : vector<8x1xi1> to vector<8x1xi32>
    %70 = arith.sitofp %69 : vector<8x1xi32> to vector<8x1xf32>
    %c3_i32 = arith.constant 3 : i32
    %71 = vector.broadcast %c3_i32 : i32 to vector<8x1xi32>
    %72 = arith.cmpi ne, %66, %71 : vector<8x1xi32>
    %73 = arith.extui %72 : vector<8x1xi1> to vector<8x1xi32>
    %74 = arith.sitofp %73 : vector<8x1xi32> to vector<8x1xf32>
    %75 = tpu.iota {dimensions = array<i32: 0>} : vector<4x1xi32>
    %c2_i32 = arith.constant 2 : i32
    %c0_i32_16 = arith.constant 0 : i32
    %76 = arith.cmpi eq, %c2_i32, %c0_i32_16 : i32
    %c1_i32_17 = arith.constant 1 : i32
    %77 = arith.select %76, %c1_i32_17, %c2_i32 : i32
    %78 = vector.broadcast %77 : i32 to vector<4x1xi32>
    %79 = arith.remsi %75, %78 : vector<4x1xi32>
    %c0_i32_18 = arith.constant 0 : i32
    %80 = vector.broadcast %c0_i32_18 : i32 to vector<4x1xi32>
    %81 = arith.cmpi ne, %79, %80 : vector<4x1xi32>
    %c0_i32_19 = arith.constant 0 : i32
    %82 = vector.broadcast %c0_i32_19 : i32 to vector<4x1xi32>
    %83 = arith.cmpi slt, %79, %82 : vector<4x1xi32>
    %c0_i32_20 = arith.constant 0 : i32
    %84 = arith.cmpi slt, %77, %c0_i32_20 : i32
    %85 = vector.broadcast %84 : i1 to vector<4x1xi1>
    %86 = vector.broadcast %85 : vector<4x1xi1> to vector<4x1xi1>
    %87 = arith.xori %83, %86 : vector<4x1xi1>
    %88 = arith.andi %87, %81 : vector<4x1xi1>
    %89 = vector.broadcast %77 : i32 to vector<4x1xi32>
    %90 = arith.addi %79, %89 : vector<4x1xi32>
    %91 = arith.select %88, %90, %79 : vector<4x1xi1>, vector<4x1xi32>
    %c0_i32_21 = arith.constant 0 : i32
    %92 = vector.broadcast %c0_i32_21 : i32 to vector<4x1xi32>
    %93 = arith.cmpi ne, %91, %92 : vector<4x1xi32>
    %94 = arith.extui %93 : vector<4x1xi1> to vector<4x1xi32>
    %95 = arith.sitofp %94 : vector<4x1xi32> to vector<4x1xf32>
    %c1_i32_22 = arith.constant 1 : i32
    %96 = vector.broadcast %c1_i32_22 : i32 to vector<4x1xi32>
    %97 = arith.cmpi ne, %91, %96 : vector<4x1xi32>
    %98 = arith.extui %97 : vector<4x1xi1> to vector<4x1xi32>
    %99 = arith.sitofp %98 : vector<4x1xi32> to vector<4x1xf32>
    %c0 = arith.constant 0 : index
    %c0_23 = arith.constant 0 : index
    %100 = vector.load %arg1[%c0, %c0_23] : memref<32x64xf32, #tpu.memory_space<vmem>>, vector<32x64xf32>
    %101 = arith.truncf %100 : vector<32x64xf32> to vector<32x64xbf16>
    %c1 = arith.constant 1 : index
    %c0_24 = arith.constant 0 : index
    %c0_25 = arith.constant 0 : index
    %102 = vector.load %arg2[%c1, %c0_24, %c0_25] : memref<99x128x128xbf16, #tpu.memory_space<vmem>>, vector<1x128x128xbf16>
    %103 = vector.shape_cast %102 : vector<1x128x128xbf16> to vector<128x128xbf16>
    %104 = vector.extract_strided_slice %103 {offsets = [0, 0], sizes = [64, 128], strides = [1, 1]} : vector<128x128xbf16> to vector<64x128xbf16>
    %cst = arith.constant dense<0.000000e+00> : vector<32x128xf32>
    %105 = tpu.matmul %101, %104, %cst {dimension_numbers = #tpu.dot_dimension_numbers<[1], [0], [0], [1], [0, 0, 1, 1], [], []>} : vector<32x64xbf16>, vector<64x128xbf16>, vector<32x128xf32> -> vector<32x128xf32>
    %c0_26 = arith.constant 0 : index
    %c0_27 = arith.constant 0 : index
    %c0_28 = arith.constant 0 : index
    %106 = vector.load %arg2[%c0_26, %c0_27, %c0_28] : memref<99x128x128xbf16, #tpu.memory_space<vmem>>, vector<1x128x128xbf16>
    %107 = vector.shape_cast %106 : vector<1x128x128xbf16> to vector<128x128xbf16>
    %108 = vector.extract_strided_slice %107 {offsets = [0, 0], sizes = [64, 128], strides = [1, 1]} : vector<128x128xbf16> to vector<64x128xbf16>
    %cst_29 = arith.constant dense<0.000000e+00> : vector<32x128xf32>
    %109 = tpu.matmul %101, %108, %cst_29 {dimension_numbers = #tpu.dot_dimension_numbers<[1], [0], [0], [1], [0, 0, 1, 1], [], []>} : vector<32x64xbf16>, vector<64x128xbf16>, vector<32x128xf32> -> vector<32x128xf32>
    %c2 = arith.constant 2 : index
    %c0_30 = arith.constant 0 : index
    %c0_31 = arith.constant 0 : index
    %110 = vector.load %arg2[%c2, %c0_30, %c0_31] : memref<99x128x128xbf16, #tpu.memory_space<vmem>>, vector<1x128x128xbf16>
    %111 = vector.shape_cast %110 : vector<1x128x128xbf16> to vector<128x128xbf16>
    %112 = vector.extract_strided_slice %111 {offsets = [0, 0], sizes = [64, 128], strides = [1, 1]} : vector<128x128xbf16> to vector<64x128xbf16>
    %cst_32 = arith.constant dense<0.000000e+00> : vector<32x128xf32>
    %113 = tpu.matmul %101, %112, %cst_32 {dimension_numbers = #tpu.dot_dimension_numbers<[1], [0], [0], [1], [0, 0, 1, 1], [], []>} : vector<32x64xbf16>, vector<64x128xbf16>, vector<32x128xf32> -> vector<32x128xf32>
    %114 = vector.extract_strided_slice %109 {offsets = [31, 0], sizes = [1, 128], strides = [1, 1]} : vector<32x128xf32> to vector<1x128xf32>
    %115 = vector.extract_strided_slice %109 {offsets = [0, 0], sizes = [31, 128], strides = [1, 1]} : vector<32x128xf32> to vector<31x128xf32>
    %116 = tpu.concatenate %114, %115 in 0 : vector<1x128xf32>, vector<31x128xf32> -> vector<32x128xf32>
    %117 = vector.broadcast %20 : vector<32x1xf32> to vector<32x128xf32>
    %118 = arith.mulf %117, %116 : vector<32x128xf32>
    %119 = arith.addf %105, %118 : vector<32x128xf32>
    %120 = vector.extract_strided_slice %113 {offsets = [1, 0], sizes = [31, 128], strides = [1, 1]} : vector<32x128xf32> to vector<31x128xf32>
    %121 = vector.extract_strided_slice %113 {offsets = [0, 0], sizes = [1, 128], strides = [1, 1]} : vector<32x128xf32> to vector<1x128xf32>
    %122 = tpu.concatenate %120, %121 in 0 : vector<31x128xf32>, vector<1x128xf32> -> vector<32x128xf32>
    %123 = vector.broadcast %24 : vector<32x1xf32> to vector<32x128xf32>
    %124 = arith.mulf %123, %122 : vector<32x128xf32>
    %125 = arith.addf %119, %124 : vector<32x128xf32>
    %c0_33 = arith.constant 0 : index
    %c0_34 = arith.constant 0 : index
    %126 = vector.load %arg3[%c0_33, %c0_34] : memref<24x128xf32, #tpu.memory_space<vmem>>, vector<1x128xf32>
    %127 = vector.broadcast %126 : vector<1x128xf32> to vector<32x128xf32>
    %128 = arith.addf %125, %127 : vector<32x128xf32>
    %cst_35 = arith.constant 0.000000e+00 : f32
    %129 = vector.broadcast %cst_35 : f32 to vector<32x128xf32>
    %130 = arith.maximumf %128, %129 : vector<32x128xf32>
    %131 = arith.truncf %130 : vector<32x128xf32> to vector<32x128xbf16>
    %c4 = arith.constant 4 : index
    %c0_36 = arith.constant 0 : index
    %c0_37 = arith.constant 0 : index
    %132 = vector.load %arg2[%c4, %c0_36, %c0_37] : memref<99x128x128xbf16, #tpu.memory_space<vmem>>, vector<1x128x128xbf16>
    %133 = vector.shape_cast %132 : vector<1x128x128xbf16> to vector<128x128xbf16>
    %cst_38 = arith.constant dense<0.000000e+00> : vector<32x128xf32>
    %134 = tpu.matmul %131, %133, %cst_38 {dimension_numbers = #tpu.dot_dimension_numbers<[1], [0], [0], [1], [0, 0, 1, 1], [], []>} : vector<32x128xbf16>, vector<128x128xbf16>, vector<32x128xf32> -> vector<32x128xf32>
    %c3 = arith.constant 3 : index
    %c0_39 = arith.constant 0 : index
    %c0_40 = arith.constant 0 : index
    %135 = vector.load %arg2[%c3, %c0_39, %c0_40] : memref<99x128x128xbf16, #tpu.memory_space<vmem>>, vector<1x128x128xbf16>
    %136 = vector.shape_cast %135 : vector<1x128x128xbf16> to vector<128x128xbf16>
    %cst_41 = arith.constant dense<0.000000e+00> : vector<32x128xf32>
    %137 = tpu.matmul %131, %136, %cst_41 {dimension_numbers = #tpu.dot_dimension_numbers<[1], [0], [0], [1], [0, 0, 1, 1], [], []>} : vector<32x128xbf16>, vector<128x128xbf16>, vector<32x128xf32> -> vector<32x128xf32>
    %c5 = arith.constant 5 : index
    %c0_42 = arith.constant 0 : index
    %c0_43 = arith.constant 0 : index
    %138 = vector.load %arg2[%c5, %c0_42, %c0_43] : memref<99x128x128xbf16, #tpu.memory_space<vmem>>, vector<1x128x128xbf16>
    %139 = vector.shape_cast %138 : vector<1x128x128xbf16> to vector<128x128xbf16>
    %cst_44 = arith.constant dense<0.000000e+00> : vector<32x128xf32>
    %140 = tpu.matmul %131, %139, %cst_44 {dimension_numbers = #tpu.dot_dimension_numbers<[1], [0], [0], [1], [0, 0, 1, 1], [], []>} : vector<32x128xbf16>, vector<128x128xbf16>, vector<32x128xf32> -> vector<32x128xf32>
    %141 = vector.extract_strided_slice %137 {offsets = [31, 0], sizes = [1, 128], strides = [1, 1]} : vector<32x128xf32> to vector<1x128xf32>
    %142 = vector.extract_strided_slice %137 {offsets = [0, 0], sizes = [31, 128], strides = [1, 1]} : vector<32x128xf32> to vector<31x128xf32>
    %143 = tpu.concatenate %141, %142 in 0 : vector<1x128xf32>, vector<31x128xf32> -> vector<32x128xf32>
    %144 = vector.broadcast %20 : vector<32x1xf32> to vector<32x128xf32>
    %145 = arith.mulf %144, %143 : vector<32x128xf32>
    %146 = arith.addf %134, %145 : vector<32x128xf32>
    %147 = vector.extract_strided_slice %140 {offsets = [1, 0], sizes = [31, 128], strides = [1, 1]} : vector<32x128xf32> to vector<31x128xf32>
    %148 = vector.extract_strided_slice %140 {offsets = [0, 0], sizes = [1, 128], strides = [1, 1]} : vector<32x128xf32> to vector<1x128xf32>
    %149 = tpu.concatenate %147, %148 in 0 : vector<31x128xf32>, vector<1x128xf32> -> vector<32x128xf32>
    %150 = vector.broadcast %24 : vector<32x1xf32> to vector<32x128xf32>
    %151 = arith.mulf %150, %149 : vector<32x128xf32>
    %152 = arith.addf %146, %151 : vector<32x128xf32>
    %c1_45 = arith.constant 1 : index
    %c0_46 = arith.constant 0 : index
    %153 = vector.load %arg3[%c1_45, %c0_46] : memref<24x128xf32, #tpu.memory_space<vmem>>, vector<1x128xf32>
    %154 = vector.broadcast %153 : vector<1x128xf32> to vector<32x128xf32>
    %155 = arith.addf %152, %154 : vector<32x128xf32>
    %cst_47 = arith.constant 0.000000e+00 : f32
    %156 = vector.broadcast %cst_47 : f32 to vector<32x128xf32>
    %157 = arith.maximumf %155, %156 : vector<32x128xf32>
    %158 = arith.truncf %157 : vector<32x128xf32> to vector<32x128xbf16>
    %c6 = arith.constant 6 : index
    %c0_48 = arith.constant 0 : index
    %c0_49 = arith.constant 0 : index
    %159 = vector.load %arg2[%c6, %c0_48, %c0_49] : memref<99x128x128xbf16, #tpu.memory_space<vmem>>, vector<1x128x128xbf16>
    %160 = vector.shape_cast %159 : vector<1x128x128xbf16> to vector<128x128xbf16>
    %161 = vector.extract_strided_slice %160 {offsets = [0, 0], sizes = [16, 32], strides = [1, 1]} : vector<128x128xbf16> to vector<16x32xbf16>
    %cst_50 = arith.constant dense<0.000000e+00> : vector<16x128xf32>
    %162 = tpu.matmul %161, %158, %cst_50 {dimension_numbers = #tpu.dot_dimension_numbers<[1], [0], [0], [1], [0, 0, 1, 1], [], []>} : vector<16x32xbf16>, vector<32x128xbf16>, vector<16x128xf32> -> vector<16x128xf32>
    %c7 = arith.constant 7 : index
    %c0_51 = arith.constant 0 : index
    %c0_52 = arith.constant 0 : index
    %163 = vector.load %arg2[%c7, %c0_51, %c0_52] : memref<99x128x128xbf16, #tpu.memory_space<vmem>>, vector<1x128x128xbf16>
    %164 = vector.shape_cast %163 : vector<1x128x128xbf16> to vector<128x128xbf16>
    %165 = vector.extract_strided_slice %164 {offsets = [0, 0], sizes = [16, 32], strides = [1, 1]} : vector<128x128xbf16> to vector<16x32xbf16>
    %cst_53 = arith.constant dense<0.000000e+00> : vector<16x128xf32>
    %166 = tpu.matmul %165, %158, %cst_53 {dimension_numbers = #tpu.dot_dimension_numbers<[1], [0], [0], [1], [0, 0, 1, 1], [], []>} : vector<16x32xbf16>, vector<32x128xbf16>, vector<16x128xf32> -> vector<16x128xf32>
    %167 = arith.maximumf %162, %166 : vector<16x128xf32>
    %168 = arith.truncf %167 : vector<16x128xf32> to vector<16x128xbf16>
    %c8 = arith.constant 8 : index
    %c0_54 = arith.constant 0 : index
    %c0_55 = arith.constant 0 : index
    %169 = vector.load %arg2[%c8, %c0_54, %c0_55] : memref<99x128x128xbf16, #tpu.memory_space<vmem>>, vector<1x128x128xbf16>
    %170 = vector.shape_cast %169 : vector<1x128x128xbf16> to vector<128x128xbf16>
    %171 = vector.extract_strided_slice %170 {offsets = [0, 0], sizes = [128, 64], strides = [1, 1]} : vector<128x128xbf16> to vector<128x64xbf16>
    %cst_56 = arith.constant dense<0.000000e+00> : vector<16x64xf32>
    %172 = tpu.matmul %168, %171, %cst_56 {dimension_numbers = #tpu.dot_dimension_numbers<[1], [0], [0], [1], [0, 0, 1, 1], [], []>} : vector<16x128xbf16>, vector<128x64xbf16>, vector<16x64xf32> -> vector<16x64xf32>
    %c9 = arith.constant 9 : index
    %c0_57 = arith.constant 0 : index
    %c0_58 = arith.constant 0 : index
    %173 = vector.load %arg2[%c9, %c0_57, %c0_58] : memref<99x128x128xbf16, #tpu.memory_space<vmem>>, vector<1x128x128xbf16>
    %174 = vector.shape_cast %173 : vector<1x128x128xbf16> to vector<128x128xbf16>
    %175 = vector.extract_strided_slice %174 {offsets = [0, 0], sizes = [128, 64], strides = [1, 1]} : vector<128x128xbf16> to vector<128x64xbf16>
    %cst_59 = arith.constant dense<0.000000e+00> : vector<16x64xf32>
    %176 = tpu.matmul %168, %175, %cst_59 {dimension_numbers = #tpu.dot_dimension_numbers<[1], [0], [0], [1], [0, 0, 1, 1], [], []>} : vector<16x128xbf16>, vector<128x64xbf16>, vector<16x64xf32> -> vector<16x64xf32>
    %177 = arith.maximumf %172, %176 : vector<16x64xf32>
    %178 = arith.truncf %177 : vector<16x64xf32> to vector<16x64xbf16>
    %c11 = arith.constant 11 : index
    %c0_60 = arith.constant 0 : index
    %c0_61 = arith.constant 0 : index
    %179 = vector.load %arg2[%c11, %c0_60, %c0_61] : memref<99x128x128xbf16, #tpu.memory_space<vmem>>, vector<1x128x128xbf16>
    %180 = vector.shape_cast %179 : vector<1x128x128xbf16> to vector<128x128xbf16>
    %181 = vector.extract_strided_slice %180 {offsets = [0, 0], sizes = [64, 128], strides = [1, 1]} : vector<128x128xbf16> to vector<64x128xbf16>
    %cst_62 = arith.constant dense<0.000000e+00> : vector<16x128xf32>
    %182 = tpu.matmul %178, %181, %cst_62 {dimension_numbers = #tpu.dot_dimension_numbers<[1], [0], [0], [1], [0, 0, 1, 1], [], []>} : vector<16x64xbf16>, vector<64x128xbf16>, vector<16x128xf32> -> vector<16x128xf32>
    %c10 = arith.constant 10 : index
    %c0_63 = arith.constant 0 : index
    %c0_64 = arith.constant 0 : index
    %183 = vector.load %arg2[%c10, %c0_63, %c0_64] : memref<99x128x128xbf16, #tpu.memory_space<vmem>>, vector<1x128x128xbf16>
    %184 = vector.shape_cast %183 : vector<1x128x128xbf16> to vector<128x128xbf16>
    %185 = vector.extract_strided_slice %184 {offsets = [0, 0], sizes = [64, 128], strides = [1, 1]} : vector<128x128xbf16> to vector<64x128xbf16>
    %cst_65 = arith.constant dense<0.000000e+00> : vector<16x128xf32>
    %186 = tpu.matmul %178, %185, %cst_65 {dimension_numbers = #tpu.dot_dimension_numbers<[1], [0], [0], [1], [0, 0, 1, 1], [], []>} : vector<16x64xbf16>, vector<64x128xbf16>, vector<16x128xf32> -> vector<16x128xf32>
    %c12 = arith.constant 12 : index
    %c0_66 = arith.constant 0 : index
    %c0_67 = arith.constant 0 : index
    %187 = vector.load %arg2[%c12, %c0_66, %c0_67] : memref<99x128x128xbf16, #tpu.memory_space<vmem>>, vector<1x128x128xbf16>
    %188 = vector.shape_cast %187 : vector<1x128x128xbf16> to vector<128x128xbf16>
    %189 = vector.extract_strided_slice %188 {offsets = [0, 0], sizes = [64, 128], strides = [1, 1]} : vector<128x128xbf16> to vector<64x128xbf16>
    %cst_68 = arith.constant dense<0.000000e+00> : vector<16x128xf32>
    %190 = tpu.matmul %178, %189, %cst_68 {dimension_numbers = #tpu.dot_dimension_numbers<[1], [0], [0], [1], [0, 0, 1, 1], [], []>} : vector<16x64xbf16>, vector<64x128xbf16>, vector<16x128xf32> -> vector<16x128xf32>
    %191 = vector.extract_strided_slice %186 {offsets = [15, 0], sizes = [1, 128], strides = [1, 1]} : vector<16x128xf32> to vector<1x128xf32>
    %192 = vector.extract_strided_slice %186 {offsets = [0, 0], sizes = [15, 128], strides = [1, 1]} : vector<16x128xf32> to vector<15x128xf32>
    %193 = tpu.concatenate %191, %192 in 0 : vector<1x128xf32>, vector<15x128xf32> -> vector<16x128xf32>
    %194 = vector.broadcast %45 : vector<16x1xf32> to vector<16x128xf32>
    %195 = arith.mulf %194, %193 : vector<16x128xf32>
    %196 = arith.addf %182, %195 : vector<16x128xf32>
    %197 = vector.extract_strided_slice %190 {offsets = [1, 0], sizes = [15, 128], strides = [1, 1]} : vector<16x128xf32> to vector<15x128xf32>
    %198 = vector.extract_strided_slice %190 {offsets = [0, 0], sizes = [1, 128], strides = [1, 1]} : vector<16x128xf32> to vector<1x128xf32>
    %199 = tpu.concatenate %197, %198 in 0 : vector<15x128xf32>, vector<1x128xf32> -> vector<16x128xf32>
    %200 = vector.broadcast %49 : vector<16x1xf32> to vector<16x128xf32>
    %201 = arith.mulf %200, %199 : vector<16x128xf32>
    %202 = arith.addf %196, %201 : vector<16x128xf32>
    %c2_69 = arith.constant 2 : index
    %c0_70 = arith.constant 0 : index
    %203 = vector.load %arg3[%c2_69, %c0_70] : memref<24x128xf32, #tpu.memory_space<vmem>>, vector<1x128xf32>
    %204 = vector.broadcast %203 : vector<1x128xf32> to vector<16x128xf32>
    %205 = arith.addf %202, %204 : vector<16x128xf32>
    %cst_71 = arith.constant 0.000000e+00 : f32
    %206 = vector.broadcast %cst_71 : f32 to vector<16x128xf32>
    %207 = arith.maximumf %205, %206 : vector<16x128xf32>
    %208 = arith.truncf %207 : vector<16x128xf32> to vector<16x128xbf16>
    %c14 = arith.constant 14 : index
    %c0_72 = arith.constant 0 : index
    %c0_73 = arith.constant 0 : index
    %209 = vector.load %arg2[%c14, %c0_72, %c0_73] : memref<99x128x128xbf16, #tpu.memory_space<vmem>>, vector<1x128x128xbf16>
    %210 = vector.shape_cast %209 : vector<1x128x128xbf16> to vector<128x128xbf16>
    %cst_74 = arith.constant dense<0.000000e+00> : vector<16x128xf32>
    %211 = tpu.matmul %208, %210, %cst_74 {dimension_numbers = #tpu.dot_dimension_numbers<[1], [0], [0], [1], [0, 0, 1, 1], [], []>} : vector<16x128xbf16>, vector<128x128xbf16>, vector<16x128xf32> -> vector<16x128xf32>
    %c13 = arith.constant 13 : index
    %c0_75 = arith.constant 0 : index
    %c0_76 = arith.constant 0 : index
    %212 = vector.load %arg2[%c13, %c0_75, %c0_76] : memref<99x128x128xbf16, #tpu.memory_space<vmem>>, vector<1x128x128xbf16>
    %213 = vector.shape_cast %212 : vector<1x128x128xbf16> to vector<128x128xbf16>
    %cst_77 = arith.constant dense<0.000000e+00> : vector<16x128xf32>
    %214 = tpu.matmul %208, %213, %cst_77 {dimension_numbers = #tpu.dot_dimension_numbers<[1], [0], [0], [1], [0, 0, 1, 1], [], []>} : vector<16x128xbf16>, vector<128x128xbf16>, vector<16x128xf32> -> vector<16x128xf32>
    %c15 = arith.constant 15 : index
    %c0_78 = arith.constant 0 : index
    %c0_79 = arith.constant 0 : index
    %215 = vector.load %arg2[%c15, %c0_78, %c0_79] : memref<99x128x128xbf16, #tpu.memory_space<vmem>>, vector<1x128x128xbf16>
    %216 = vector.shape_cast %215 : vector<1x128x128xbf16> to vector<128x128xbf16>
    %cst_80 = arith.constant dense<0.000000e+00> : vector<16x128xf32>
    %217 = tpu.matmul %208, %216, %cst_80 {dimension_numbers = #tpu.dot_dimension_numbers<[1], [0], [0], [1], [0, 0, 1, 1], [], []>} : vector<16x128xbf16>, vector<128x128xbf16>, vector<16x128xf32> -> vector<16x128xf32>
    %218 = vector.extract_strided_slice %214 {offsets = [15, 0], sizes = [1, 128], strides = [1, 1]} : vector<16x128xf32> to vector<1x128xf32>
    %219 = vector.extract_strided_slice %214 {offsets = [0, 0], sizes = [15, 128], strides = [1, 1]} : vector<16x128xf32> to vector<15x128xf32>
    %220 = tpu.concatenate %218, %219 in 0 : vector<1x128xf32>, vector<15x128xf32> -> vector<16x128xf32>
    %221 = vector.broadcast %45 : vector<16x1xf32> to vector<16x128xf32>
    %222 = arith.mulf %221, %220 : vector<16x128xf32>
    %223 = arith.addf %211, %222 : vector<16x128xf32>
    %224 = vector.extract_strided_slice %217 {offsets = [1, 0], sizes = [15, 128], strides = [1, 1]} : vector<16x128xf32> to vector<15x128xf32>
    %225 = vector.extract_strided_slice %217 {offsets = [0, 0], sizes = [1, 128], strides = [1, 1]} : vector<16x128xf32> to vector<1x128xf32>
    %226 = tpu.concatenate %224, %225 in 0 : vector<15x128xf32>, vector<1x128xf32> -> vector<16x128xf32>
    %227 = vector.broadcast %49 : vector<16x1xf32> to vector<16x128xf32>
    %228 = arith.mulf %227, %226 : vector<16x128xf32>
    %229 = arith.addf %223, %228 : vector<16x128xf32>
    %c3_81 = arith.constant 3 : index
    %c0_82 = arith.constant 0 : index
    %230 = vector.load %arg3[%c3_81, %c0_82] : memref<24x128xf32, #tpu.memory_space<vmem>>, vector<1x128xf32>
    %231 = vector.broadcast %230 : vector<1x128xf32> to vector<16x128xf32>
    %232 = arith.addf %229, %231 : vector<16x128xf32>
    %cst_83 = arith.constant 0.000000e+00 : f32
    %233 = vector.broadcast %cst_83 : f32 to vector<16x128xf32>
    %234 = arith.maximumf %232, %233 : vector<16x128xf32>
    %235 = arith.truncf %234 : vector<16x128xf32> to vector<16x128xbf16>
    %c16 = arith.constant 16 : index
    %c0_84 = arith.constant 0 : index
    %c0_85 = arith.constant 0 : index
    %236 = vector.load %arg2[%c16, %c0_84, %c0_85] : memref<99x128x128xbf16, #tpu.memory_space<vmem>>, vector<1x128x128xbf16>
    %237 = vector.shape_cast %236 : vector<1x128x128xbf16> to vector<128x128xbf16>
    %238 = vector.extract_strided_slice %237 {offsets = [0, 0], sizes = [8, 16], strides = [1, 1]} : vector<128x128xbf16> to vector<8x16xbf16>
    %cst_86 = arith.constant dense<0.000000e+00> : vector<8x128xf32>
    %239 = tpu.matmul %238, %235, %cst_86 {dimension_numbers = #tpu.dot_dimension_numbers<[1], [0], [0], [1], [0, 0, 1, 1], [], []>} : vector<8x16xbf16>, vector<16x128xbf16>, vector<8x128xf32> -> vector<8x128xf32>
    %c17 = arith.constant 17 : index
    %c0_87 = arith.constant 0 : index
    %c0_88 = arith.constant 0 : index
    %240 = vector.load %arg2[%c17, %c0_87, %c0_88] : memref<99x128x128xbf16, #tpu.memory_space<vmem>>, vector<1x128x128xbf16>
    %241 = vector.shape_cast %240 : vector<1x128x128xbf16> to vector<128x128xbf16>
    %242 = vector.extract_strided_slice %241 {offsets = [0, 0], sizes = [8, 16], strides = [1, 1]} : vector<128x128xbf16> to vector<8x16xbf16>
    %cst_89 = arith.constant dense<0.000000e+00> : vector<8x128xf32>
    %243 = tpu.matmul %242, %235, %cst_89 {dimension_numbers = #tpu.dot_dimension_numbers<[1], [0], [0], [1], [0, 0, 1, 1], [], []>} : vector<8x16xbf16>, vector<16x128xbf16>, vector<8x128xf32> -> vector<8x128xf32>
    %244 = arith.maximumf %239, %243 : vector<8x128xf32>
    %245 = arith.truncf %244 : vector<8x128xf32> to vector<8x128xbf16>
    %c18 = arith.constant 18 : index
    %c0_90 = arith.constant 0 : index
    %c0_91 = arith.constant 0 : index
    %246 = vector.load %arg2[%c18, %c0_90, %c0_91] : memref<99x128x128xbf16, #tpu.memory_space<vmem>>, vector<1x128x128xbf16>
    %247 = vector.shape_cast %246 : vector<1x128x128xbf16> to vector<128x128xbf16>
    %248 = vector.extract_strided_slice %247 {offsets = [0, 0], sizes = [128, 64], strides = [1, 1]} : vector<128x128xbf16> to vector<128x64xbf16>
    %cst_92 = arith.constant dense<0.000000e+00> : vector<8x64xf32>
    %249 = tpu.matmul %245, %248, %cst_92 {dimension_numbers = #tpu.dot_dimension_numbers<[1], [0], [0], [1], [0, 0, 1, 1], [], []>} : vector<8x128xbf16>, vector<128x64xbf16>, vector<8x64xf32> -> vector<8x64xf32>
    %c19 = arith.constant 19 : index
    %c0_93 = arith.constant 0 : index
    %c0_94 = arith.constant 0 : index
    %250 = vector.load %arg2[%c19, %c0_93, %c0_94] : memref<99x128x128xbf16, #tpu.memory_space<vmem>>, vector<1x128x128xbf16>
    %251 = vector.shape_cast %250 : vector<1x128x128xbf16> to vector<128x128xbf16>
    %252 = vector.extract_strided_slice %251 {offsets = [0, 0], sizes = [128, 64], strides = [1, 1]} : vector<128x128xbf16> to vector<128x64xbf16>
    %cst_95 = arith.constant dense<0.000000e+00> : vector<8x64xf32>
    %253 = tpu.matmul %245, %252, %cst_95 {dimension_numbers = #tpu.dot_dimension_numbers<[1], [0], [0], [1], [0, 0, 1, 1], [], []>} : vector<8x128xbf16>, vector<128x64xbf16>, vector<8x64xf32> -> vector<8x64xf32>
    %254 = arith.maximumf %249, %253 : vector<8x64xf32>
    %255 = arith.truncf %254 : vector<8x64xf32> to vector<8x64xbf16>
    %c21 = arith.constant 21 : index
    %c0_96 = arith.constant 0 : index
    %c0_97 = arith.constant 0 : index
    %256 = vector.load %arg2[%c21, %c0_96, %c0_97] : memref<99x128x128xbf16, #tpu.memory_space<vmem>>, vector<1x128x128xbf16>
    %257 = vector.shape_cast %256 : vector<1x128x128xbf16> to vector<128x128xbf16>
    %258 = vector.extract_strided_slice %257 {offsets = [0, 0], sizes = [64, 128], strides = [1, 1]} : vector<128x128xbf16> to vector<64x128xbf16>
    %cst_98 = arith.constant dense<0.000000e+00> : vector<8x128xf32>
    %259 = tpu.matmul %255, %258, %cst_98 {dimension_numbers = #tpu.dot_dimension_numbers<[1], [0], [0], [1], [0, 0, 1, 1], [], []>} : vector<8x64xbf16>, vector<64x128xbf16>, vector<8x128xf32> -> vector<8x128xf32>
    %c20 = arith.constant 20 : index
    %c0_99 = arith.constant 0 : index
    %c0_100 = arith.constant 0 : index
    %260 = vector.load %arg2[%c20, %c0_99, %c0_100] : memref<99x128x128xbf16, #tpu.memory_space<vmem>>, vector<1x128x128xbf16>
    %261 = vector.shape_cast %260 : vector<1x128x128xbf16> to vector<128x128xbf16>
    %262 = vector.extract_strided_slice %261 {offsets = [0, 0], sizes = [64, 128], strides = [1, 1]} : vector<128x128xbf16> to vector<64x128xbf16>
    %cst_101 = arith.constant dense<0.000000e+00> : vector<8x128xf32>
    %263 = tpu.matmul %255, %262, %cst_101 {dimension_numbers = #tpu.dot_dimension_numbers<[1], [0], [0], [1], [0, 0, 1, 1], [], []>} : vector<8x64xbf16>, vector<64x128xbf16>, vector<8x128xf32> -> vector<8x128xf32>
    %c22 = arith.constant 22 : index
    %c0_102 = arith.constant 0 : index
    %c0_103 = arith.constant 0 : index
    %264 = vector.load %arg2[%c22, %c0_102, %c0_103] : memref<99x128x128xbf16, #tpu.memory_space<vmem>>, vector<1x128x128xbf16>
    %265 = vector.shape_cast %264 : vector<1x128x128xbf16> to vector<128x128xbf16>
    %266 = vector.extract_strided_slice %265 {offsets = [0, 0], sizes = [64, 128], strides = [1, 1]} : vector<128x128xbf16> to vector<64x128xbf16>
    %cst_104 = arith.constant dense<0.000000e+00> : vector<8x128xf32>
    %267 = tpu.matmul %255, %266, %cst_104 {dimension_numbers = #tpu.dot_dimension_numbers<[1], [0], [0], [1], [0, 0, 1, 1], [], []>} : vector<8x64xbf16>, vector<64x128xbf16>, vector<8x128xf32> -> vector<8x128xf32>
    %268 = vector.extract_strided_slice %263 {offsets = [7, 0], sizes = [1, 128], strides = [1, 1]} : vector<8x128xf32> to vector<1x128xf32>
    %269 = vector.extract_strided_slice %263 {offsets = [0, 0], sizes = [7, 128], strides = [1, 1]} : vector<8x128xf32> to vector<7x128xf32>
    %270 = tpu.concatenate %268, %269 in 0 : vector<1x128xf32>, vector<7x128xf32> -> vector<8x128xf32>
    %271 = vector.broadcast %70 : vector<8x1xf32> to vector<8x128xf32>
    %272 = arith.mulf %271, %270 : vector<8x128xf32>
    %273 = arith.addf %259, %272 : vector<8x128xf32>
    %274 = vector.extract_strided_slice %267 {offsets = [1, 0], sizes = [7, 128], strides = [1, 1]} : vector<8x128xf32> to vector<7x128xf32>
    %275 = vector.extract_strided_slice %267 {offsets = [0, 0], sizes = [1, 128], strides = [1, 1]} : vector<8x128xf32> to vector<1x128xf32>
    %276 = tpu.concatenate %274, %275 in 0 : vector<7x128xf32>, vector<1x128xf32> -> vector<8x128xf32>
    %277 = vector.broadcast %74 : vector<8x1xf32> to vector<8x128xf32>
    %278 = arith.mulf %277, %276 : vector<8x128xf32>
    %279 = arith.addf %273, %278 : vector<8x128xf32>
    %c4_105 = arith.constant 4 : index
    %c0_106 = arith.constant 0 : index
    %280 = vector.load %arg3[%c4_105, %c0_106] : memref<24x128xf32, #tpu.memory_space<vmem>>, vector<1x128xf32>
    %281 = vector.broadcast %280 : vector<1x128xf32> to vector<8x128xf32>
    %282 = arith.addf %279, %281 : vector<8x128xf32>
    %cst_107 = arith.constant 0.000000e+00 : f32
    %283 = vector.broadcast %cst_107 : f32 to vector<8x128xf32>
    %284 = arith.maximumf %282, %283 : vector<8x128xf32>
    %285 = arith.truncf %284 : vector<8x128xf32> to vector<8x128xbf16>
    %c24 = arith.constant 24 : index
    %c0_108 = arith.constant 0 : index
    %c0_109 = arith.constant 0 : index
    %286 = vector.load %arg2[%c24, %c0_108, %c0_109] : memref<99x128x128xbf16, #tpu.memory_space<vmem>>, vector<1x128x128xbf16>
    %287 = vector.shape_cast %286 : vector<1x128x128xbf16> to vector<128x128xbf16>
    %cst_110 = arith.constant dense<0.000000e+00> : vector<8x128xf32>
    %288 = tpu.matmul %285, %287, %cst_110 {dimension_numbers = #tpu.dot_dimension_numbers<[1], [0], [0], [1], [0, 0, 1, 1], [], []>} : vector<8x128xbf16>, vector<128x128xbf16>, vector<8x128xf32> -> vector<8x128xf32>
    %c23 = arith.constant 23 : index
    %c0_111 = arith.constant 0 : index
    %c0_112 = arith.constant 0 : index
    %289 = vector.load %arg2[%c23, %c0_111, %c0_112] : memref<99x128x128xbf16, #tpu.memory_space<vmem>>, vector<1x128x128xbf16>
    %290 = vector.shape_cast %289 : vector<1x128x128xbf16> to vector<128x128xbf16>
    %cst_113 = arith.constant dense<0.000000e+00> : vector<8x128xf32>
    %291 = tpu.matmul %285, %290, %cst_113 {dimension_numbers = #tpu.dot_dimension_numbers<[1], [0], [0], [1], [0, 0, 1, 1], [], []>} : vector<8x128xbf16>, vector<128x128xbf16>, vector<8x128xf32> -> vector<8x128xf32>
    %c25 = arith.constant 25 : index
    %c0_114 = arith.constant 0 : index
    %c0_115 = arith.constant 0 : index
    %292 = vector.load %arg2[%c25, %c0_114, %c0_115] : memref<99x128x128xbf16, #tpu.memory_space<vmem>>, vector<1x128x128xbf16>
    %293 = vector.shape_cast %292 : vector<1x128x128xbf16> to vector<128x128xbf16>
    %cst_116 = arith.constant dense<0.000000e+00> : vector<8x128xf32>
    %294 = tpu.matmul %285, %293, %cst_116 {dimension_numbers = #tpu.dot_dimension_numbers<[1], [0], [0], [1], [0, 0, 1, 1], [], []>} : vector<8x128xbf16>, vector<128x128xbf16>, vector<8x128xf32> -> vector<8x128xf32>
    %295 = vector.extract_strided_slice %291 {offsets = [7, 0], sizes = [1, 128], strides = [1, 1]} : vector<8x128xf32> to vector<1x128xf32>
    %296 = vector.extract_strided_slice %291 {offsets = [0, 0], sizes = [7, 128], strides = [1, 1]} : vector<8x128xf32> to vector<7x128xf32>
    %297 = tpu.concatenate %295, %296 in 0 : vector<1x128xf32>, vector<7x128xf32> -> vector<8x128xf32>
    %298 = vector.broadcast %70 : vector<8x1xf32> to vector<8x128xf32>
    %299 = arith.mulf %298, %297 : vector<8x128xf32>
    %300 = arith.addf %288, %299 : vector<8x128xf32>
    %301 = vector.extract_strided_slice %294 {offsets = [1, 0], sizes = [7, 128], strides = [1, 1]} : vector<8x128xf32> to vector<7x128xf32>
    %302 = vector.extract_strided_slice %294 {offsets = [0, 0], sizes = [1, 128], strides = [1, 1]} : vector<8x128xf32> to vector<1x128xf32>
    %303 = tpu.concatenate %301, %302 in 0 : vector<7x128xf32>, vector<1x128xf32> -> vector<8x128xf32>
    %304 = vector.broadcast %74 : vector<8x1xf32> to vector<8x128xf32>
    %305 = arith.mulf %304, %303 : vector<8x128xf32>
    %306 = arith.addf %300, %305 : vector<8x128xf32>
    %c5_117 = arith.constant 5 : index
    %c0_118 = arith.constant 0 : index
    %307 = vector.load %arg3[%c5_117, %c0_118] : memref<24x128xf32, #tpu.memory_space<vmem>>, vector<1x128xf32>
    %308 = vector.broadcast %307 : vector<1x128xf32> to vector<8x128xf32>
    %309 = arith.addf %306, %308 : vector<8x128xf32>
    %cst_119 = arith.constant 0.000000e+00 : f32
    %310 = vector.broadcast %cst_119 : f32 to vector<8x128xf32>
    %311 = arith.maximumf %309, %310 : vector<8x128xf32>
    %312 = arith.truncf %311 : vector<8x128xf32> to vector<8x128xbf16>
    %c26 = arith.constant 26 : index
    %c0_120 = arith.constant 0 : index
    %c0_121 = arith.constant 0 : index
    %313 = vector.load %arg2[%c26, %c0_120, %c0_121] : memref<99x128x128xbf16, #tpu.memory_space<vmem>>, vector<1x128x128xbf16>
    %314 = vector.shape_cast %313 : vector<1x128x128xbf16> to vector<128x128xbf16>
    %315 = vector.extract_strided_slice %314 {offsets = [0, 0], sizes = [4, 8], strides = [1, 1]} : vector<128x128xbf16> to vector<4x8xbf16>
    %cst_122 = arith.constant dense<0.000000e+00> : vector<4x128xf32>
    %316 = tpu.matmul %315, %312, %cst_122 {dimension_numbers = #tpu.dot_dimension_numbers<[1], [0], [0], [1], [0, 0, 1, 1], [], []>} : vector<4x8xbf16>, vector<8x128xbf16>, vector<4x128xf32> -> vector<4x128xf32>
    %c27 = arith.constant 27 : index
    %c0_123 = arith.constant 0 : index
    %c0_124 = arith.constant 0 : index
    %317 = vector.load %arg2[%c27, %c0_123, %c0_124] : memref<99x128x128xbf16, #tpu.memory_space<vmem>>, vector<1x128x128xbf16>
    %318 = vector.shape_cast %317 : vector<1x128x128xbf16> to vector<128x128xbf16>
    %319 = vector.extract_strided_slice %318 {offsets = [0, 0], sizes = [4, 8], strides = [1, 1]} : vector<128x128xbf16> to vector<4x8xbf16>
    %cst_125 = arith.constant dense<0.000000e+00> : vector<4x128xf32>
    %320 = tpu.matmul %319, %312, %cst_125 {dimension_numbers = #tpu.dot_dimension_numbers<[1], [0], [0], [1], [0, 0, 1, 1], [], []>} : vector<4x8xbf16>, vector<8x128xbf16>, vector<4x128xf32> -> vector<4x128xf32>
    %321 = arith.maximumf %316, %320 : vector<4x128xf32>
    %322 = arith.truncf %321 : vector<4x128xf32> to vector<4x128xbf16>
    %c28 = arith.constant 28 : index
    %c0_126 = arith.constant 0 : index
    %c0_127 = arith.constant 0 : index
    %323 = vector.load %arg2[%c28, %c0_126, %c0_127] : memref<99x128x128xbf16, #tpu.memory_space<vmem>>, vector<1x128x128xbf16>
    %324 = vector.shape_cast %323 : vector<1x128x128xbf16> to vector<128x128xbf16>
    %325 = vector.extract_strided_slice %324 {offsets = [0, 0], sizes = [128, 64], strides = [1, 1]} : vector<128x128xbf16> to vector<128x64xbf16>
    %cst_128 = arith.constant dense<0.000000e+00> : vector<4x64xf32>
    %326 = tpu.matmul %322, %325, %cst_128 {dimension_numbers = #tpu.dot_dimension_numbers<[1], [0], [0], [1], [0, 0, 1, 1], [], []>} : vector<4x128xbf16>, vector<128x64xbf16>, vector<4x64xf32> -> vector<4x64xf32>
    %c29 = arith.constant 29 : index
    %c0_129 = arith.constant 0 : index
    %c0_130 = arith.constant 0 : index
    %327 = vector.load %arg2[%c29, %c0_129, %c0_130] : memref<99x128x128xbf16, #tpu.memory_space<vmem>>, vector<1x128x128xbf16>
    %328 = vector.shape_cast %327 : vector<1x128x128xbf16> to vector<128x128xbf16>
    %329 = vector.extract_strided_slice %328 {offsets = [0, 0], sizes = [128, 64], strides = [1, 1]} : vector<128x128xbf16> to vector<128x64xbf16>
    %cst_131 = arith.constant dense<0.000000e+00> : vector<4x64xf32>
    %330 = tpu.matmul %322, %329, %cst_131 {dimension_numbers = #tpu.dot_dimension_numbers<[1], [0], [0], [1], [0, 0, 1, 1], [], []>} : vector<4x128xbf16>, vector<128x64xbf16>, vector<4x64xf32> -> vector<4x64xf32>
    %331 = arith.maximumf %326, %330 : vector<4x64xf32>
    %332 = arith.truncf %331 : vector<4x64xf32> to vector<4x64xbf16>
    %c31 = arith.constant 31 : index
    %c0_132 = arith.constant 0 : index
    %c0_133 = arith.constant 0 : index
    %333 = vector.load %arg2[%c31, %c0_132, %c0_133] : memref<99x128x128xbf16, #tpu.memory_space<vmem>>, vector<1x128x128xbf16>
    %334 = vector.shape_cast %333 : vector<1x128x128xbf16> to vector<128x128xbf16>
    %335 = vector.extract_strided_slice %334 {offsets = [0, 0], sizes = [64, 128], strides = [1, 1]} : vector<128x128xbf16> to vector<64x128xbf16>
    %cst_134 = arith.constant dense<0.000000e+00> : vector<4x128xf32>
    %336 = tpu.matmul %332, %335, %cst_134 {dimension_numbers = #tpu.dot_dimension_numbers<[1], [0], [0], [1], [0, 0, 1, 1], [], []>} : vector<4x64xbf16>, vector<64x128xbf16>, vector<4x128xf32> -> vector<4x128xf32>
    %c30 = arith.constant 30 : index
    %c0_135 = arith.constant 0 : index
    %c0_136 = arith.constant 0 : index
    %337 = vector.load %arg2[%c30, %c0_135, %c0_136] : memref<99x128x128xbf16, #tpu.memory_space<vmem>>, vector<1x128x128xbf16>
    %338 = vector.shape_cast %337 : vector<1x128x128xbf16> to vector<128x128xbf16>
    %339 = vector.extract_strided_slice %338 {offsets = [0, 0], sizes = [64, 128], strides = [1, 1]} : vector<128x128xbf16> to vector<64x128xbf16>
    %cst_137 = arith.constant dense<0.000000e+00> : vector<4x128xf32>
    %340 = tpu.matmul %332, %339, %cst_137 {dimension_numbers = #tpu.dot_dimension_numbers<[1], [0], [0], [1], [0, 0, 1, 1], [], []>} : vector<4x64xbf16>, vector<64x128xbf16>, vector<4x128xf32> -> vector<4x128xf32>
    %c32 = arith.constant 32 : index
    %c0_138 = arith.constant 0 : index
    %c0_139 = arith.constant 0 : index
    %341 = vector.load %arg2[%c32, %c0_138, %c0_139] : memref<99x128x128xbf16, #tpu.memory_space<vmem>>, vector<1x128x128xbf16>
    %342 = vector.shape_cast %341 : vector<1x128x128xbf16> to vector<128x128xbf16>
    %343 = vector.extract_strided_slice %342 {offsets = [0, 0], sizes = [64, 128], strides = [1, 1]} : vector<128x128xbf16> to vector<64x128xbf16>
    %cst_140 = arith.constant dense<0.000000e+00> : vector<4x128xf32>
    %344 = tpu.matmul %332, %343, %cst_140 {dimension_numbers = #tpu.dot_dimension_numbers<[1], [0], [0], [1], [0, 0, 1, 1], [], []>} : vector<4x64xbf16>, vector<64x128xbf16>, vector<4x128xf32> -> vector<4x128xf32>
    %345 = vector.extract_strided_slice %340 {offsets = [3, 0], sizes = [1, 128], strides = [1, 1]} : vector<4x128xf32> to vector<1x128xf32>
    %346 = vector.extract_strided_slice %340 {offsets = [0, 0], sizes = [3, 128], strides = [1, 1]} : vector<4x128xf32> to vector<3x128xf32>
    %347 = tpu.concatenate %345, %346 in 0 : vector<1x128xf32>, vector<3x128xf32> -> vector<4x128xf32>
    %348 = vector.broadcast %95 : vector<4x1xf32> to vector<4x128xf32>
    %349 = arith.mulf %348, %347 : vector<4x128xf32>
    %350 = arith.addf %336, %349 : vector<4x128xf32>
    %351 = vector.extract_strided_slice %344 {offsets = [1, 0], sizes = [3, 128], strides = [1, 1]} : vector<4x128xf32> to vector<3x128xf32>
    %352 = vector.extract_strided_slice %344 {offsets = [0, 0], sizes = [1, 128], strides = [1, 1]} : vector<4x128xf32> to vector<1x128xf32>
    %353 = tpu.concatenate %351, %352 in 0 : vector<3x128xf32>, vector<1x128xf32> -> vector<4x128xf32>
    %354 = vector.broadcast %99 : vector<4x1xf32> to vector<4x128xf32>
    %355 = arith.mulf %354, %353 : vector<4x128xf32>
    %356 = arith.addf %350, %355 : vector<4x128xf32>
    %c6_141 = arith.constant 6 : index
    %c0_142 = arith.constant 0 : index
    %357 = vector.load %arg3[%c6_141, %c0_142] : memref<24x128xf32, #tpu.memory_space<vmem>>, vector<1x128xf32>
    %358 = vector.broadcast %357 : vector<1x128xf32> to vector<4x128xf32>
    %359 = arith.addf %356, %358 : vector<4x128xf32>
    %cst_143 = arith.constant 0.000000e+00 : f32
    %360 = vector.broadcast %cst_143 : f32 to vector<4x128xf32>
    %361 = arith.maximumf %359, %360 : vector<4x128xf32>
    %362 = arith.truncf %361 : vector<4x128xf32> to vector<4x128xbf16>
    %c34 = arith.constant 34 : index
    %c0_144 = arith.constant 0 : index
    %c0_145 = arith.constant 0 : index
    %363 = vector.load %arg2[%c34, %c0_144, %c0_145] : memref<99x128x128xbf16, #tpu.memory_space<vmem>>, vector<1x128x128xbf16>
    %364 = vector.shape_cast %363 : vector<1x128x128xbf16> to vector<128x128xbf16>
    %cst_146 = arith.constant dense<0.000000e+00> : vector<4x128xf32>
    %365 = tpu.matmul %362, %364, %cst_146 {dimension_numbers = #tpu.dot_dimension_numbers<[1], [0], [0], [1], [0, 0, 1, 1], [], []>} : vector<4x128xbf16>, vector<128x128xbf16>, vector<4x128xf32> -> vector<4x128xf32>
    %c33 = arith.constant 33 : index
    %c0_147 = arith.constant 0 : index
    %c0_148 = arith.constant 0 : index
    %366 = vector.load %arg2[%c33, %c0_147, %c0_148] : memref<99x128x128xbf16, #tpu.memory_space<vmem>>, vector<1x128x128xbf16>
    %367 = vector.shape_cast %366 : vector<1x128x128xbf16> to vector<128x128xbf16>
    %cst_149 = arith.constant dense<0.000000e+00> : vector<4x128xf32>
    %368 = tpu.matmul %362, %367, %cst_149 {dimension_numbers = #tpu.dot_dimension_numbers<[1], [0], [0], [1], [0, 0, 1, 1], [], []>} : vector<4x128xbf16>, vector<128x128xbf16>, vector<4x128xf32> -> vector<4x128xf32>
    %c35 = arith.constant 35 : index
    %c0_150 = arith.constant 0 : index
    %c0_151 = arith.constant 0 : index
    %369 = vector.load %arg2[%c35, %c0_150, %c0_151] : memref<99x128x128xbf16, #tpu.memory_space<vmem>>, vector<1x128x128xbf16>
    %370 = vector.shape_cast %369 : vector<1x128x128xbf16> to vector<128x128xbf16>
    %cst_152 = arith.constant dense<0.000000e+00> : vector<4x128xf32>
    %371 = tpu.matmul %362, %370, %cst_152 {dimension_numbers = #tpu.dot_dimension_numbers<[1], [0], [0], [1], [0, 0, 1, 1], [], []>} : vector<4x128xbf16>, vector<128x128xbf16>, vector<4x128xf32> -> vector<4x128xf32>
    %372 = vector.extract_strided_slice %368 {offsets = [3, 0], sizes = [1, 128], strides = [1, 1]} : vector<4x128xf32> to vector<1x128xf32>
    %373 = vector.extract_strided_slice %368 {offsets = [0, 0], sizes = [3, 128], strides = [1, 1]} : vector<4x128xf32> to vector<3x128xf32>
    %374 = tpu.concatenate %372, %373 in 0 : vector<1x128xf32>, vector<3x128xf32> -> vector<4x128xf32>
    %375 = vector.broadcast %95 : vector<4x1xf32> to vector<4x128xf32>
    %376 = arith.mulf %375, %374 : vector<4x128xf32>
    %377 = arith.addf %365, %376 : vector<4x128xf32>
    %378 = vector.extract_strided_slice %371 {offsets = [1, 0], sizes = [3, 128], strides = [1, 1]} : vector<4x128xf32> to vector<3x128xf32>
    %379 = vector.extract_strided_slice %371 {offsets = [0, 0], sizes = [1, 128], strides = [1, 1]} : vector<4x128xf32> to vector<1x128xf32>
    %380 = tpu.concatenate %378, %379 in 0 : vector<3x128xf32>, vector<1x128xf32> -> vector<4x128xf32>
    %381 = vector.broadcast %99 : vector<4x1xf32> to vector<4x128xf32>
    %382 = arith.mulf %381, %380 : vector<4x128xf32>
    %383 = arith.addf %377, %382 : vector<4x128xf32>
    %c7_153 = arith.constant 7 : index
    %c0_154 = arith.constant 0 : index
    %384 = vector.load %arg3[%c7_153, %c0_154] : memref<24x128xf32, #tpu.memory_space<vmem>>, vector<1x128xf32>
    %385 = vector.broadcast %384 : vector<1x128xf32> to vector<4x128xf32>
    %386 = arith.addf %383, %385 : vector<4x128xf32>
    %cst_155 = arith.constant 0.000000e+00 : f32
    %387 = vector.broadcast %cst_155 : f32 to vector<4x128xf32>
    %388 = arith.maximumf %386, %387 : vector<4x128xf32>
    %389 = arith.truncf %388 : vector<4x128xf32> to vector<4x128xbf16>
    %c36 = arith.constant 36 : index
    %c0_156 = arith.constant 0 : index
    %c0_157 = arith.constant 0 : index
    %390 = vector.load %arg2[%c36, %c0_156, %c0_157] : memref<99x128x128xbf16, #tpu.memory_space<vmem>>, vector<1x128x128xbf16>
    %391 = vector.shape_cast %390 : vector<1x128x128xbf16> to vector<128x128xbf16>
    %392 = vector.extract_strided_slice %391 {offsets = [0, 0], sizes = [2, 4], strides = [1, 1]} : vector<128x128xbf16> to vector<2x4xbf16>
    %cst_158 = arith.constant dense<0.000000e+00> : vector<2x128xf32>
    %393 = tpu.matmul %392, %389, %cst_158 {dimension_numbers = #tpu.dot_dimension_numbers<[1], [0], [0], [1], [0, 0, 1, 1], [], []>} : vector<2x4xbf16>, vector<4x128xbf16>, vector<2x128xf32> -> vector<2x128xf32>
    %c37 = arith.constant 37 : index
    %c0_159 = arith.constant 0 : index
    %c0_160 = arith.constant 0 : index
    %394 = vector.load %arg2[%c37, %c0_159, %c0_160] : memref<99x128x128xbf16, #tpu.memory_space<vmem>>, vector<1x128x128xbf16>
    %395 = vector.shape_cast %394 : vector<1x128x128xbf16> to vector<128x128xbf16>
    %396 = vector.extract_strided_slice %395 {offsets = [0, 0], sizes = [2, 4], strides = [1, 1]} : vector<128x128xbf16> to vector<2x4xbf16>
    %cst_161 = arith.constant dense<0.000000e+00> : vector<2x128xf32>
    %397 = tpu.matmul %396, %389, %cst_161 {dimension_numbers = #tpu.dot_dimension_numbers<[1], [0], [0], [1], [0, 0, 1, 1], [], []>} : vector<2x4xbf16>, vector<4x128xbf16>, vector<2x128xf32> -> vector<2x128xf32>
    %398 = arith.maximumf %393, %397 : vector<2x128xf32>
    %399 = arith.truncf %398 : vector<2x128xf32> to vector<2x128xbf16>
    %c38 = arith.constant 38 : index
    %c0_162 = arith.constant 0 : index
    %c0_163 = arith.constant 0 : index
    %400 = vector.load %arg2[%c38, %c0_162, %c0_163] : memref<99x128x128xbf16, #tpu.memory_space<vmem>>, vector<1x128x128xbf16>
    %401 = vector.shape_cast %400 : vector<1x128x128xbf16> to vector<128x128xbf16>
    %402 = vector.extract_strided_slice %401 {offsets = [0, 0], sizes = [128, 64], strides = [1, 1]} : vector<128x128xbf16> to vector<128x64xbf16>
    %cst_164 = arith.constant dense<0.000000e+00> : vector<2x64xf32>
    %403 = tpu.matmul %399, %402, %cst_164 {dimension_numbers = #tpu.dot_dimension_numbers<[1], [0], [0], [1], [0, 0, 1, 1], [], []>} : vector<2x128xbf16>, vector<128x64xbf16>, vector<2x64xf32> -> vector<2x64xf32>
    %c39 = arith.constant 39 : index
    %c0_165 = arith.constant 0 : index
    %c0_166 = arith.constant 0 : index
    %404 = vector.load %arg2[%c39, %c0_165, %c0_166] : memref<99x128x128xbf16, #tpu.memory_space<vmem>>, vector<1x128x128xbf16>
    %405 = vector.shape_cast %404 : vector<1x128x128xbf16> to vector<128x128xbf16>
    %406 = vector.extract_strided_slice %405 {offsets = [0, 0], sizes = [128, 64], strides = [1, 1]} : vector<128x128xbf16> to vector<128x64xbf16>
    %cst_167 = arith.constant dense<0.000000e+00> : vector<2x64xf32>
    %407 = tpu.matmul %399, %406, %cst_167 {dimension_numbers = #tpu.dot_dimension_numbers<[1], [0], [0], [1], [0, 0, 1, 1], [], []>} : vector<2x128xbf16>, vector<128x64xbf16>, vector<2x64xf32> -> vector<2x64xf32>
    %408 = arith.maximumf %403, %407 : vector<2x64xf32>
    %409 = arith.truncf %408 : vector<2x64xf32> to vector<2x64xbf16>
    %c41 = arith.constant 41 : index
    %c0_168 = arith.constant 0 : index
    %c0_169 = arith.constant 0 : index
    %410 = vector.load %arg2[%c41, %c0_168, %c0_169] : memref<99x128x128xbf16, #tpu.memory_space<vmem>>, vector<1x128x128xbf16>
    %411 = vector.shape_cast %410 : vector<1x128x128xbf16> to vector<128x128xbf16>
    %412 = vector.extract_strided_slice %411 {offsets = [0, 0], sizes = [64, 128], strides = [1, 1]} : vector<128x128xbf16> to vector<64x128xbf16>
    %cst_170 = arith.constant dense<0.000000e+00> : vector<2x128xf32>
    %413 = tpu.matmul %409, %412, %cst_170 {dimension_numbers = #tpu.dot_dimension_numbers<[1], [0], [0], [1], [0, 0, 1, 1], [], []>} : vector<2x64xbf16>, vector<64x128xbf16>, vector<2x128xf32> -> vector<2x128xf32>
    %c8_171 = arith.constant 8 : index
    %c0_172 = arith.constant 0 : index
    %414 = vector.load %arg3[%c8_171, %c0_172] : memref<24x128xf32, #tpu.memory_space<vmem>>, vector<1x128xf32>
    %415 = vector.broadcast %414 : vector<1x128xf32> to vector<2x128xf32>
    %416 = arith.addf %413, %415 : vector<2x128xf32>
    %cst_173 = arith.constant 0.000000e+00 : f32
    %417 = vector.broadcast %cst_173 : f32 to vector<2x128xf32>
    %418 = arith.maximumf %416, %417 : vector<2x128xf32>
    %419 = arith.truncf %418 : vector<2x128xf32> to vector<2x128xbf16>
    %c44 = arith.constant 44 : index
    %c0_174 = arith.constant 0 : index
    %c0_175 = arith.constant 0 : index
    %420 = vector.load %arg2[%c44, %c0_174, %c0_175] : memref<99x128x128xbf16, #tpu.memory_space<vmem>>, vector<1x128x128xbf16>
    %421 = vector.shape_cast %420 : vector<1x128x128xbf16> to vector<128x128xbf16>
    %cst_176 = arith.constant dense<0.000000e+00> : vector<2x128xf32>
    %422 = tpu.matmul %419, %421, %cst_176 {dimension_numbers = #tpu.dot_dimension_numbers<[1], [0], [0], [1], [0, 0, 1, 1], [], []>} : vector<2x128xbf16>, vector<128x128xbf16>, vector<2x128xf32> -> vector<2x128xf32>
    %c9_177 = arith.constant 9 : index
    %c0_178 = arith.constant 0 : index
    %423 = vector.load %arg3[%c9_177, %c0_178] : memref<24x128xf32, #tpu.memory_space<vmem>>, vector<1x128xf32>
    %424 = vector.broadcast %423 : vector<1x128xf32> to vector<2x128xf32>
    %425 = arith.addf %422, %424 : vector<2x128xf32>
    %cst_179 = arith.constant 0.000000e+00 : f32
    %426 = vector.broadcast %cst_179 : f32 to vector<2x128xf32>
    %427 = arith.maximumf %425, %426 : vector<2x128xf32>
    %428 = arith.truncf %427 : vector<2x128xf32> to vector<2x128xbf16>
    %c46 = arith.constant 46 : index
    %c0_180 = arith.constant 0 : index
    %c0_181 = arith.constant 0 : index
    %429 = vector.load %arg2[%c46, %c0_180, %c0_181] : memref<99x128x128xbf16, #tpu.memory_space<vmem>>, vector<1x128x128xbf16>
    %430 = vector.shape_cast %429 : vector<1x128x128xbf16> to vector<128x128xbf16>
    %cst_182 = arith.constant dense<0.000000e+00> : vector<2x128xf32>
    %431 = tpu.matmul %428, %430, %cst_182 {dimension_numbers = #tpu.dot_dimension_numbers<[1], [0], [0], [1], [0, 0, 1, 1], [], []>} : vector<2x128xbf16>, vector<128x128xbf16>, vector<2x128xf32> -> vector<2x128xf32>
    %432 = arith.truncf %431 : vector<2x128xf32> to vector<2x128xbf16>
    %c47 = arith.constant 47 : index
    %c0_183 = arith.constant 0 : index
    %c0_184 = arith.constant 0 : index
    %433 = vector.load %arg2[%c47, %c0_183, %c0_184] : memref<99x128x128xbf16, #tpu.memory_space<vmem>>, vector<1x128x128xbf16>
    %434 = vector.shape_cast %433 : vector<1x128x128xbf16> to vector<128x128xbf16>
    %cst_185 = arith.constant dense<0.000000e+00> : vector<2x128xf32>
    %435 = tpu.matmul %428, %434, %cst_185 {dimension_numbers = #tpu.dot_dimension_numbers<[1], [0], [0], [1], [0, 0, 1, 1], [], []>} : vector<2x128xbf16>, vector<128x128xbf16>, vector<2x128xf32> -> vector<2x128xf32>
    %436 = arith.truncf %435 : vector<2x128xf32> to vector<2x128xbf16>
    %c48 = arith.constant 48 : index
    %c0_186 = arith.constant 0 : index
    %c0_187 = arith.constant 0 : index
    %437 = vector.load %arg2[%c48, %c0_186, %c0_187] : memref<99x128x128xbf16, #tpu.memory_space<vmem>>, vector<1x128x128xbf16>
    %438 = vector.shape_cast %437 : vector<1x128x128xbf16> to vector<128x128xbf16>
    %439 = vector.extract_strided_slice %438 {offsets = [0, 0], sizes = [4, 2], strides = [1, 1]} : vector<128x128xbf16> to vector<4x2xbf16>
    %cst_188 = arith.constant dense<0.000000e+00> : vector<4x128xf32>
    %440 = tpu.matmul %439, %432, %cst_188 {dimension_numbers = #tpu.dot_dimension_numbers<[1], [0], [0], [1], [0, 0, 1, 1], [], []>} : vector<4x2xbf16>, vector<2x128xbf16>, vector<4x128xf32> -> vector<4x128xf32>
    %c49 = arith.constant 49 : index
    %c0_189 = arith.constant 0 : index
    %c0_190 = arith.constant 0 : index
    %441 = vector.load %arg2[%c49, %c0_189, %c0_190] : memref<99x128x128xbf16, #tpu.memory_space<vmem>>, vector<1x128x128xbf16>
    %442 = vector.shape_cast %441 : vector<1x128x128xbf16> to vector<128x128xbf16>
    %443 = vector.extract_strided_slice %442 {offsets = [0, 0], sizes = [4, 2], strides = [1, 1]} : vector<128x128xbf16> to vector<4x2xbf16>
    %cst_191 = arith.constant dense<0.000000e+00> : vector<4x128xf32>
    %444 = tpu.matmul %443, %436, %cst_191 {dimension_numbers = #tpu.dot_dimension_numbers<[1], [0], [0], [1], [0, 0, 1, 1], [], []>} : vector<4x2xbf16>, vector<2x128xbf16>, vector<4x128xf32> -> vector<4x128xf32>
    %445 = arith.addf %440, %444 : vector<4x128xf32>
    %c10_192 = arith.constant 10 : index
    %c0_193 = arith.constant 0 : index
    %446 = vector.load %arg3[%c10_192, %c0_193] : memref<24x128xf32, #tpu.memory_space<vmem>>, vector<1x128xf32>
    %447 = vector.broadcast %446 : vector<1x128xf32> to vector<4x128xf32>
    %448 = arith.addf %445, %447 : vector<4x128xf32>
    %449 = arith.truncf %388 : vector<4x128xf32> to vector<4x128xbf16>
    %c51 = arith.constant 51 : index
    %c0_194 = arith.constant 0 : index
    %c0_195 = arith.constant 0 : index
    %450 = vector.load %arg2[%c51, %c0_194, %c0_195] : memref<99x128x128xbf16, #tpu.memory_space<vmem>>, vector<1x128x128xbf16>
    %451 = vector.shape_cast %450 : vector<1x128x128xbf16> to vector<128x128xbf16>
    %cst_196 = arith.constant dense<0.000000e+00> : vector<4x128xf32>
    %452 = tpu.matmul %449, %451, %cst_196 {dimension_numbers = #tpu.dot_dimension_numbers<[1], [0], [0], [1], [0, 0, 1, 1], [], []>} : vector<4x128xbf16>, vector<128x128xbf16>, vector<4x128xf32> -> vector<4x128xf32>
    %c50 = arith.constant 50 : index
    %c0_197 = arith.constant 0 : index
    %c0_198 = arith.constant 0 : index
    %453 = vector.load %arg2[%c50, %c0_197, %c0_198] : memref<99x128x128xbf16, #tpu.memory_space<vmem>>, vector<1x128x128xbf16>
    %454 = vector.shape_cast %453 : vector<1x128x128xbf16> to vector<128x128xbf16>
    %cst_199 = arith.constant dense<0.000000e+00> : vector<4x128xf32>
    %455 = tpu.matmul %449, %454, %cst_199 {dimension_numbers = #tpu.dot_dimension_numbers<[1], [0], [0], [1], [0, 0, 1, 1], [], []>} : vector<4x128xbf16>, vector<128x128xbf16>, vector<4x128xf32> -> vector<4x128xf32>
    %c52 = arith.constant 52 : index
    %c0_200 = arith.constant 0 : index
    %c0_201 = arith.constant 0 : index
    %456 = vector.load %arg2[%c52, %c0_200, %c0_201] : memref<99x128x128xbf16, #tpu.memory_space<vmem>>, vector<1x128x128xbf16>
    %457 = vector.shape_cast %456 : vector<1x128x128xbf16> to vector<128x128xbf16>
    %cst_202 = arith.constant dense<0.000000e+00> : vector<4x128xf32>
    %458 = tpu.matmul %449, %457, %cst_202 {dimension_numbers = #tpu.dot_dimension_numbers<[1], [0], [0], [1], [0, 0, 1, 1], [], []>} : vector<4x128xbf16>, vector<128x128xbf16>, vector<4x128xf32> -> vector<4x128xf32>
    %459 = vector.extract_strided_slice %455 {offsets = [3, 0], sizes = [1, 128], strides = [1, 1]} : vector<4x128xf32> to vector<1x128xf32>
    %460 = vector.extract_strided_slice %455 {offsets = [0, 0], sizes = [3, 128], strides = [1, 1]} : vector<4x128xf32> to vector<3x128xf32>
    %461 = tpu.concatenate %459, %460 in 0 : vector<1x128xf32>, vector<3x128xf32> -> vector<4x128xf32>
    %462 = vector.broadcast %95 : vector<4x1xf32> to vector<4x128xf32>
    %463 = arith.mulf %462, %461 : vector<4x128xf32>
    %464 = arith.addf %452, %463 : vector<4x128xf32>
    %465 = vector.extract_strided_slice %458 {offsets = [1, 0], sizes = [3, 128], strides = [1, 1]} : vector<4x128xf32> to vector<3x128xf32>
    %466 = vector.extract_strided_slice %458 {offsets = [0, 0], sizes = [1, 128], strides = [1, 1]} : vector<4x128xf32> to vector<1x128xf32>
    %467 = tpu.concatenate %465, %466 in 0 : vector<3x128xf32>, vector<1x128xf32> -> vector<4x128xf32>
    %468 = vector.broadcast %99 : vector<4x1xf32> to vector<4x128xf32>
    %469 = arith.mulf %468, %467 : vector<4x128xf32>
    %470 = arith.addf %464, %469 : vector<4x128xf32>
    %471 = arith.truncf %448 : vector<4x128xf32> to vector<4x128xbf16>
    %c54 = arith.constant 54 : index
    %c0_203 = arith.constant 0 : index
    %c0_204 = arith.constant 0 : index
    %472 = vector.load %arg2[%c54, %c0_203, %c0_204] : memref<99x128x128xbf16, #tpu.memory_space<vmem>>, vector<1x128x128xbf16>
    %473 = vector.shape_cast %472 : vector<1x128x128xbf16> to vector<128x128xbf16>
    %cst_205 = arith.constant dense<0.000000e+00> : vector<4x128xf32>
    %474 = tpu.matmul %471, %473, %cst_205 {dimension_numbers = #tpu.dot_dimension_numbers<[1], [0], [0], [1], [0, 0, 1, 1], [], []>} : vector<4x128xbf16>, vector<128x128xbf16>, vector<4x128xf32> -> vector<4x128xf32>
    %c53 = arith.constant 53 : index
    %c0_206 = arith.constant 0 : index
    %c0_207 = arith.constant 0 : index
    %475 = vector.load %arg2[%c53, %c0_206, %c0_207] : memref<99x128x128xbf16, #tpu.memory_space<vmem>>, vector<1x128x128xbf16>
    %476 = vector.shape_cast %475 : vector<1x128x128xbf16> to vector<128x128xbf16>
    %cst_208 = arith.constant dense<0.000000e+00> : vector<4x128xf32>
    %477 = tpu.matmul %471, %476, %cst_208 {dimension_numbers = #tpu.dot_dimension_numbers<[1], [0], [0], [1], [0, 0, 1, 1], [], []>} : vector<4x128xbf16>, vector<128x128xbf16>, vector<4x128xf32> -> vector<4x128xf32>
    %c55 = arith.constant 55 : index
    %c0_209 = arith.constant 0 : index
    %c0_210 = arith.constant 0 : index
    %478 = vector.load %arg2[%c55, %c0_209, %c0_210] : memref<99x128x128xbf16, #tpu.memory_space<vmem>>, vector<1x128x128xbf16>
    %479 = vector.shape_cast %478 : vector<1x128x128xbf16> to vector<128x128xbf16>
    %cst_211 = arith.constant dense<0.000000e+00> : vector<4x128xf32>
    %480 = tpu.matmul %471, %479, %cst_211 {dimension_numbers = #tpu.dot_dimension_numbers<[1], [0], [0], [1], [0, 0, 1, 1], [], []>} : vector<4x128xbf16>, vector<128x128xbf16>, vector<4x128xf32> -> vector<4x128xf32>
    %481 = vector.extract_strided_slice %477 {offsets = [3, 0], sizes = [1, 128], strides = [1, 1]} : vector<4x128xf32> to vector<1x128xf32>
    %482 = vector.extract_strided_slice %477 {offsets = [0, 0], sizes = [3, 128], strides = [1, 1]} : vector<4x128xf32> to vector<3x128xf32>
    %483 = tpu.concatenate %481, %482 in 0 : vector<1x128xf32>, vector<3x128xf32> -> vector<4x128xf32>
    %484 = vector.broadcast %95 : vector<4x1xf32> to vector<4x128xf32>
    %485 = arith.mulf %484, %483 : vector<4x128xf32>
    %486 = arith.addf %474, %485 : vector<4x128xf32>
    %487 = vector.extract_strided_slice %480 {offsets = [1, 0], sizes = [3, 128], strides = [1, 1]} : vector<4x128xf32> to vector<3x128xf32>
    %488 = vector.extract_strided_slice %480 {offsets = [0, 0], sizes = [1, 128], strides = [1, 1]} : vector<4x128xf32> to vector<1x128xf32>
    %489 = tpu.concatenate %487, %488 in 0 : vector<3x128xf32>, vector<1x128xf32> -> vector<4x128xf32>
    %490 = vector.broadcast %99 : vector<4x1xf32> to vector<4x128xf32>
    %491 = arith.mulf %490, %489 : vector<4x128xf32>
    %492 = arith.addf %486, %491 : vector<4x128xf32>
    %493 = arith.addf %470, %492 : vector<4x128xf32>
    %c11_212 = arith.constant 11 : index
    %c0_213 = arith.constant 0 : index
    %494 = vector.load %arg3[%c11_212, %c0_213] : memref<24x128xf32, #tpu.memory_space<vmem>>, vector<1x128xf32>
    %495 = vector.broadcast %494 : vector<1x128xf32> to vector<4x128xf32>
    %496 = arith.addf %493, %495 : vector<4x128xf32>
    %cst_214 = arith.constant 0.000000e+00 : f32
    %497 = vector.broadcast %cst_214 : f32 to vector<4x128xf32>
    %498 = arith.maximumf %496, %497 : vector<4x128xf32>
    %499 = arith.truncf %498 : vector<4x128xf32> to vector<4x128xbf16>
    %c57 = arith.constant 57 : index
    %c0_215 = arith.constant 0 : index
    %c0_216 = arith.constant 0 : index
    %500 = vector.load %arg2[%c57, %c0_215, %c0_216] : memref<99x128x128xbf16, #tpu.memory_space<vmem>>, vector<1x128x128xbf16>
    %501 = vector.shape_cast %500 : vector<1x128x128xbf16> to vector<128x128xbf16>
    %cst_217 = arith.constant dense<0.000000e+00> : vector<4x128xf32>
    %502 = tpu.matmul %499, %501, %cst_217 {dimension_numbers = #tpu.dot_dimension_numbers<[1], [0], [0], [1], [0, 0, 1, 1], [], []>} : vector<4x128xbf16>, vector<128x128xbf16>, vector<4x128xf32> -> vector<4x128xf32>
    %c56 = arith.constant 56 : index
    %c0_218 = arith.constant 0 : index
    %c0_219 = arith.constant 0 : index
    %503 = vector.load %arg2[%c56, %c0_218, %c0_219] : memref<99x128x128xbf16, #tpu.memory_space<vmem>>, vector<1x128x128xbf16>
    %504 = vector.shape_cast %503 : vector<1x128x128xbf16> to vector<128x128xbf16>
    %cst_220 = arith.constant dense<0.000000e+00> : vector<4x128xf32>
    %505 = tpu.matmul %499, %504, %cst_220 {dimension_numbers = #tpu.dot_dimension_numbers<[1], [0], [0], [1], [0, 0, 1, 1], [], []>} : vector<4x128xbf16>, vector<128x128xbf16>, vector<4x128xf32> -> vector<4x128xf32>
    %c58 = arith.constant 58 : index
    %c0_221 = arith.constant 0 : index
    %c0_222 = arith.constant 0 : index
    %506 = vector.load %arg2[%c58, %c0_221, %c0_222] : memref<99x128x128xbf16, #tpu.memory_space<vmem>>, vector<1x128x128xbf16>
    %507 = vector.shape_cast %506 : vector<1x128x128xbf16> to vector<128x128xbf16>
    %cst_223 = arith.constant dense<0.000000e+00> : vector<4x128xf32>
    %508 = tpu.matmul %499, %507, %cst_223 {dimension_numbers = #tpu.dot_dimension_numbers<[1], [0], [0], [1], [0, 0, 1, 1], [], []>} : vector<4x128xbf16>, vector<128x128xbf16>, vector<4x128xf32> -> vector<4x128xf32>
    %509 = vector.extract_strided_slice %505 {offsets = [3, 0], sizes = [1, 128], strides = [1, 1]} : vector<4x128xf32> to vector<1x128xf32>
    %510 = vector.extract_strided_slice %505 {offsets = [0, 0], sizes = [3, 128], strides = [1, 1]} : vector<4x128xf32> to vector<3x128xf32>
    %511 = tpu.concatenate %509, %510 in 0 : vector<1x128xf32>, vector<3x128xf32> -> vector<4x128xf32>
    %512 = vector.broadcast %95 : vector<4x1xf32> to vector<4x128xf32>
    %513 = arith.mulf %512, %511 : vector<4x128xf32>
    %514 = arith.addf %502, %513 : vector<4x128xf32>
    %515 = vector.extract_strided_slice %508 {offsets = [1, 0], sizes = [3, 128], strides = [1, 1]} : vector<4x128xf32> to vector<3x128xf32>
    %516 = vector.extract_strided_slice %508 {offsets = [0, 0], sizes = [1, 128], strides = [1, 1]} : vector<4x128xf32> to vector<1x128xf32>
    %517 = tpu.concatenate %515, %516 in 0 : vector<3x128xf32>, vector<1x128xf32> -> vector<4x128xf32>
    %518 = vector.broadcast %99 : vector<4x1xf32> to vector<4x128xf32>
    %519 = arith.mulf %518, %517 : vector<4x128xf32>
    %520 = arith.addf %514, %519 : vector<4x128xf32>
    %c12_224 = arith.constant 12 : index
    %c0_225 = arith.constant 0 : index
    %521 = vector.load %arg3[%c12_224, %c0_225] : memref<24x128xf32, #tpu.memory_space<vmem>>, vector<1x128xf32>
    %522 = vector.broadcast %521 : vector<1x128xf32> to vector<4x128xf32>
    %523 = arith.addf %520, %522 : vector<4x128xf32>
    %cst_226 = arith.constant 0.000000e+00 : f32
    %524 = vector.broadcast %cst_226 : f32 to vector<4x128xf32>
    %525 = arith.maximumf %523, %524 : vector<4x128xf32>
    %526 = arith.truncf %525 : vector<4x128xf32> to vector<4x128xbf16>
    %c59 = arith.constant 59 : index
    %c0_227 = arith.constant 0 : index
    %c0_228 = arith.constant 0 : index
    %527 = vector.load %arg2[%c59, %c0_227, %c0_228] : memref<99x128x128xbf16, #tpu.memory_space<vmem>>, vector<1x128x128xbf16>
    %528 = vector.shape_cast %527 : vector<1x128x128xbf16> to vector<128x128xbf16>
    %cst_229 = arith.constant dense<0.000000e+00> : vector<4x128xf32>
    %529 = tpu.matmul %526, %528, %cst_229 {dimension_numbers = #tpu.dot_dimension_numbers<[1], [0], [0], [1], [0, 0, 1, 1], [], []>} : vector<4x128xbf16>, vector<128x128xbf16>, vector<4x128xf32> -> vector<4x128xf32>
    %530 = arith.truncf %529 : vector<4x128xf32> to vector<4x128xbf16>
    %c60 = arith.constant 60 : index
    %c0_230 = arith.constant 0 : index
    %c0_231 = arith.constant 0 : index
    %531 = vector.load %arg2[%c60, %c0_230, %c0_231] : memref<99x128x128xbf16, #tpu.memory_space<vmem>>, vector<1x128x128xbf16>
    %532 = vector.shape_cast %531 : vector<1x128x128xbf16> to vector<128x128xbf16>
    %cst_232 = arith.constant dense<0.000000e+00> : vector<4x128xf32>
    %533 = tpu.matmul %526, %532, %cst_232 {dimension_numbers = #tpu.dot_dimension_numbers<[1], [0], [0], [1], [0, 0, 1, 1], [], []>} : vector<4x128xbf16>, vector<128x128xbf16>, vector<4x128xf32> -> vector<4x128xf32>
    %534 = arith.truncf %533 : vector<4x128xf32> to vector<4x128xbf16>
    %c61 = arith.constant 61 : index
    %c0_233 = arith.constant 0 : index
    %c0_234 = arith.constant 0 : index
    %535 = vector.load %arg2[%c61, %c0_233, %c0_234] : memref<99x128x128xbf16, #tpu.memory_space<vmem>>, vector<1x128x128xbf16>
    %536 = vector.shape_cast %535 : vector<1x128x128xbf16> to vector<128x128xbf16>
    %537 = vector.extract_strided_slice %536 {offsets = [0, 0], sizes = [8, 4], strides = [1, 1]} : vector<128x128xbf16> to vector<8x4xbf16>
    %cst_235 = arith.constant dense<0.000000e+00> : vector<8x128xf32>
    %538 = tpu.matmul %537, %530, %cst_235 {dimension_numbers = #tpu.dot_dimension_numbers<[1], [0], [0], [1], [0, 0, 1, 1], [], []>} : vector<8x4xbf16>, vector<4x128xbf16>, vector<8x128xf32> -> vector<8x128xf32>
    %c62 = arith.constant 62 : index
    %c0_236 = arith.constant 0 : index
    %c0_237 = arith.constant 0 : index
    %539 = vector.load %arg2[%c62, %c0_236, %c0_237] : memref<99x128x128xbf16, #tpu.memory_space<vmem>>, vector<1x128x128xbf16>
    %540 = vector.shape_cast %539 : vector<1x128x128xbf16> to vector<128x128xbf16>
    %541 = vector.extract_strided_slice %540 {offsets = [0, 0], sizes = [8, 4], strides = [1, 1]} : vector<128x128xbf16> to vector<8x4xbf16>
    %cst_238 = arith.constant dense<0.000000e+00> : vector<8x128xf32>
    %542 = tpu.matmul %541, %534, %cst_238 {dimension_numbers = #tpu.dot_dimension_numbers<[1], [0], [0], [1], [0, 0, 1, 1], [], []>} : vector<8x4xbf16>, vector<4x128xbf16>, vector<8x128xf32> -> vector<8x128xf32>
    %543 = arith.addf %538, %542 : vector<8x128xf32>
    %c13_239 = arith.constant 13 : index
    %c0_240 = arith.constant 0 : index
    %544 = vector.load %arg3[%c13_239, %c0_240] : memref<24x128xf32, #tpu.memory_space<vmem>>, vector<1x128xf32>
    %545 = vector.broadcast %544 : vector<1x128xf32> to vector<8x128xf32>
    %546 = arith.addf %543, %545 : vector<8x128xf32>
    %547 = arith.truncf %311 : vector<8x128xf32> to vector<8x128xbf16>
    %c64 = arith.constant 64 : index
    %c0_241 = arith.constant 0 : index
    %c0_242 = arith.constant 0 : index
    %548 = vector.load %arg2[%c64, %c0_241, %c0_242] : memref<99x128x128xbf16, #tpu.memory_space<vmem>>, vector<1x128x128xbf16>
    %549 = vector.shape_cast %548 : vector<1x128x128xbf16> to vector<128x128xbf16>
    %cst_243 = arith.constant dense<0.000000e+00> : vector<8x128xf32>
    %550 = tpu.matmul %547, %549, %cst_243 {dimension_numbers = #tpu.dot_dimension_numbers<[1], [0], [0], [1], [0, 0, 1, 1], [], []>} : vector<8x128xbf16>, vector<128x128xbf16>, vector<8x128xf32> -> vector<8x128xf32>
    %c63 = arith.constant 63 : index
    %c0_244 = arith.constant 0 : index
    %c0_245 = arith.constant 0 : index
    %551 = vector.load %arg2[%c63, %c0_244, %c0_245] : memref<99x128x128xbf16, #tpu.memory_space<vmem>>, vector<1x128x128xbf16>
    %552 = vector.shape_cast %551 : vector<1x128x128xbf16> to vector<128x128xbf16>
    %cst_246 = arith.constant dense<0.000000e+00> : vector<8x128xf32>
    %553 = tpu.matmul %547, %552, %cst_246 {dimension_numbers = #tpu.dot_dimension_numbers<[1], [0], [0], [1], [0, 0, 1, 1], [], []>} : vector<8x128xbf16>, vector<128x128xbf16>, vector<8x128xf32> -> vector<8x128xf32>
    %c65 = arith.constant 65 : index
    %c0_247 = arith.constant 0 : index
    %c0_248 = arith.constant 0 : index
    %554 = vector.load %arg2[%c65, %c0_247, %c0_248] : memref<99x128x128xbf16, #tpu.memory_space<vmem>>, vector<1x128x128xbf16>
    %555 = vector.shape_cast %554 : vector<1x128x128xbf16> to vector<128x128xbf16>
    %cst_249 = arith.constant dense<0.000000e+00> : vector<8x128xf32>
    %556 = tpu.matmul %547, %555, %cst_249 {dimension_numbers = #tpu.dot_dimension_numbers<[1], [0], [0], [1], [0, 0, 1, 1], [], []>} : vector<8x128xbf16>, vector<128x128xbf16>, vector<8x128xf32> -> vector<8x128xf32>
    %557 = vector.extract_strided_slice %553 {offsets = [7, 0], sizes = [1, 128], strides = [1, 1]} : vector<8x128xf32> to vector<1x128xf32>
    %558 = vector.extract_strided_slice %553 {offsets = [0, 0], sizes = [7, 128], strides = [1, 1]} : vector<8x128xf32> to vector<7x128xf32>
    %559 = tpu.concatenate %557, %558 in 0 : vector<1x128xf32>, vector<7x128xf32> -> vector<8x128xf32>
    %560 = vector.broadcast %70 : vector<8x1xf32> to vector<8x128xf32>
    %561 = arith.mulf %560, %559 : vector<8x128xf32>
    %562 = arith.addf %550, %561 : vector<8x128xf32>
    %563 = vector.extract_strided_slice %556 {offsets = [1, 0], sizes = [7, 128], strides = [1, 1]} : vector<8x128xf32> to vector<7x128xf32>
    %564 = vector.extract_strided_slice %556 {offsets = [0, 0], sizes = [1, 128], strides = [1, 1]} : vector<8x128xf32> to vector<1x128xf32>
    %565 = tpu.concatenate %563, %564 in 0 : vector<7x128xf32>, vector<1x128xf32> -> vector<8x128xf32>
    %566 = vector.broadcast %74 : vector<8x1xf32> to vector<8x128xf32>
    %567 = arith.mulf %566, %565 : vector<8x128xf32>
    %568 = arith.addf %562, %567 : vector<8x128xf32>
    %569 = arith.truncf %546 : vector<8x128xf32> to vector<8x128xbf16>
    %c67 = arith.constant 67 : index
    %c0_250 = arith.constant 0 : index
    %c0_251 = arith.constant 0 : index
    %570 = vector.load %arg2[%c67, %c0_250, %c0_251] : memref<99x128x128xbf16, #tpu.memory_space<vmem>>, vector<1x128x128xbf16>
    %571 = vector.shape_cast %570 : vector<1x128x128xbf16> to vector<128x128xbf16>
    %cst_252 = arith.constant dense<0.000000e+00> : vector<8x128xf32>
    %572 = tpu.matmul %569, %571, %cst_252 {dimension_numbers = #tpu.dot_dimension_numbers<[1], [0], [0], [1], [0, 0, 1, 1], [], []>} : vector<8x128xbf16>, vector<128x128xbf16>, vector<8x128xf32> -> vector<8x128xf32>
    %c66 = arith.constant 66 : index
    %c0_253 = arith.constant 0 : index
    %c0_254 = arith.constant 0 : index
    %573 = vector.load %arg2[%c66, %c0_253, %c0_254] : memref<99x128x128xbf16, #tpu.memory_space<vmem>>, vector<1x128x128xbf16>
    %574 = vector.shape_cast %573 : vector<1x128x128xbf16> to vector<128x128xbf16>
    %cst_255 = arith.constant dense<0.000000e+00> : vector<8x128xf32>
    %575 = tpu.matmul %569, %574, %cst_255 {dimension_numbers = #tpu.dot_dimension_numbers<[1], [0], [0], [1], [0, 0, 1, 1], [], []>} : vector<8x128xbf16>, vector<128x128xbf16>, vector<8x128xf32> -> vector<8x128xf32>
    %c68 = arith.constant 68 : index
    %c0_256 = arith.constant 0 : index
    %c0_257 = arith.constant 0 : index
    %576 = vector.load %arg2[%c68, %c0_256, %c0_257] : memref<99x128x128xbf16, #tpu.memory_space<vmem>>, vector<1x128x128xbf16>
    %577 = vector.shape_cast %576 : vector<1x128x128xbf16> to vector<128x128xbf16>
    %cst_258 = arith.constant dense<0.000000e+00> : vector<8x128xf32>
    %578 = tpu.matmul %569, %577, %cst_258 {dimension_numbers = #tpu.dot_dimension_numbers<[1], [0], [0], [1], [0, 0, 1, 1], [], []>} : vector<8x128xbf16>, vector<128x128xbf16>, vector<8x128xf32> -> vector<8x128xf32>
    %579 = vector.extract_strided_slice %575 {offsets = [7, 0], sizes = [1, 128], strides = [1, 1]} : vector<8x128xf32> to vector<1x128xf32>
    %580 = vector.extract_strided_slice %575 {offsets = [0, 0], sizes = [7, 128], strides = [1, 1]} : vector<8x128xf32> to vector<7x128xf32>
    %581 = tpu.concatenate %579, %580 in 0 : vector<1x128xf32>, vector<7x128xf32> -> vector<8x128xf32>
    %582 = vector.broadcast %70 : vector<8x1xf32> to vector<8x128xf32>
    %583 = arith.mulf %582, %581 : vector<8x128xf32>
    %584 = arith.addf %572, %583 : vector<8x128xf32>
    %585 = vector.extract_strided_slice %578 {offsets = [1, 0], sizes = [7, 128], strides = [1, 1]} : vector<8x128xf32> to vector<7x128xf32>
    %586 = vector.extract_strided_slice %578 {offsets = [0, 0], sizes = [1, 128], strides = [1, 1]} : vector<8x128xf32> to vector<1x128xf32>
    %587 = tpu.concatenate %585, %586 in 0 : vector<7x128xf32>, vector<1x128xf32> -> vector<8x128xf32>
    %588 = vector.broadcast %74 : vector<8x1xf32> to vector<8x128xf32>
    %589 = arith.mulf %588, %587 : vector<8x128xf32>
    %590 = arith.addf %584, %589 : vector<8x128xf32>
    %591 = arith.addf %568, %590 : vector<8x128xf32>
    %c14_259 = arith.constant 14 : index
    %c0_260 = arith.constant 0 : index
    %592 = vector.load %arg3[%c14_259, %c0_260] : memref<24x128xf32, #tpu.memory_space<vmem>>, vector<1x128xf32>
    %593 = vector.broadcast %592 : vector<1x128xf32> to vector<8x128xf32>
    %594 = arith.addf %591, %593 : vector<8x128xf32>
    %cst_261 = arith.constant 0.000000e+00 : f32
    %595 = vector.broadcast %cst_261 : f32 to vector<8x128xf32>
    %596 = arith.maximumf %594, %595 : vector<8x128xf32>
    %597 = arith.truncf %596 : vector<8x128xf32> to vector<8x128xbf16>
    %c70 = arith.constant 70 : index
    %c0_262 = arith.constant 0 : index
    %c0_263 = arith.constant 0 : index
    %598 = vector.load %arg2[%c70, %c0_262, %c0_263] : memref<99x128x128xbf16, #tpu.memory_space<vmem>>, vector<1x128x128xbf16>
    %599 = vector.shape_cast %598 : vector<1x128x128xbf16> to vector<128x128xbf16>
    %cst_264 = arith.constant dense<0.000000e+00> : vector<8x128xf32>
    %600 = tpu.matmul %597, %599, %cst_264 {dimension_numbers = #tpu.dot_dimension_numbers<[1], [0], [0], [1], [0, 0, 1, 1], [], []>} : vector<8x128xbf16>, vector<128x128xbf16>, vector<8x128xf32> -> vector<8x128xf32>
    %c69 = arith.constant 69 : index
    %c0_265 = arith.constant 0 : index
    %c0_266 = arith.constant 0 : index
    %601 = vector.load %arg2[%c69, %c0_265, %c0_266] : memref<99x128x128xbf16, #tpu.memory_space<vmem>>, vector<1x128x128xbf16>
    %602 = vector.shape_cast %601 : vector<1x128x128xbf16> to vector<128x128xbf16>
    %cst_267 = arith.constant dense<0.000000e+00> : vector<8x128xf32>
    %603 = tpu.matmul %597, %602, %cst_267 {dimension_numbers = #tpu.dot_dimension_numbers<[1], [0], [0], [1], [0, 0, 1, 1], [], []>} : vector<8x128xbf16>, vector<128x128xbf16>, vector<8x128xf32> -> vector<8x128xf32>
    %c71 = arith.constant 71 : index
    %c0_268 = arith.constant 0 : index
    %c0_269 = arith.constant 0 : index
    %604 = vector.load %arg2[%c71, %c0_268, %c0_269] : memref<99x128x128xbf16, #tpu.memory_space<vmem>>, vector<1x128x128xbf16>
    %605 = vector.shape_cast %604 : vector<1x128x128xbf16> to vector<128x128xbf16>
    %cst_270 = arith.constant dense<0.000000e+00> : vector<8x128xf32>
    %606 = tpu.matmul %597, %605, %cst_270 {dimension_numbers = #tpu.dot_dimension_numbers<[1], [0], [0], [1], [0, 0, 1, 1], [], []>} : vector<8x128xbf16>, vector<128x128xbf16>, vector<8x128xf32> -> vector<8x128xf32>
    %607 = vector.extract_strided_slice %603 {offsets = [7, 0], sizes = [1, 128], strides = [1, 1]} : vector<8x128xf32> to vector<1x128xf32>
    %608 = vector.extract_strided_slice %603 {offsets = [0, 0], sizes = [7, 128], strides = [1, 1]} : vector<8x128xf32> to vector<7x128xf32>
    %609 = tpu.concatenate %607, %608 in 0 : vector<1x128xf32>, vector<7x128xf32> -> vector<8x128xf32>
    %610 = vector.broadcast %70 : vector<8x1xf32> to vector<8x128xf32>
    %611 = arith.mulf %610, %609 : vector<8x128xf32>
    %612 = arith.addf %600, %611 : vector<8x128xf32>
    %613 = vector.extract_strided_slice %606 {offsets = [1, 0], sizes = [7, 128], strides = [1, 1]} : vector<8x128xf32> to vector<7x128xf32>
    %614 = vector.extract_strided_slice %606 {offsets = [0, 0], sizes = [1, 128], strides = [1, 1]} : vector<8x128xf32> to vector<1x128xf32>
    %615 = tpu.concatenate %613, %614 in 0 : vector<7x128xf32>, vector<1x128xf32> -> vector<8x128xf32>
    %616 = vector.broadcast %74 : vector<8x1xf32> to vector<8x128xf32>
    %617 = arith.mulf %616, %615 : vector<8x128xf32>
    %618 = arith.addf %612, %617 : vector<8x128xf32>
    %c15_271 = arith.constant 15 : index
    %c0_272 = arith.constant 0 : index
    %619 = vector.load %arg3[%c15_271, %c0_272] : memref<24x128xf32, #tpu.memory_space<vmem>>, vector<1x128xf32>
    %620 = vector.broadcast %619 : vector<1x128xf32> to vector<8x128xf32>
    %621 = arith.addf %618, %620 : vector<8x128xf32>
    %cst_273 = arith.constant 0.000000e+00 : f32
    %622 = vector.broadcast %cst_273 : f32 to vector<8x128xf32>
    %623 = arith.maximumf %621, %622 : vector<8x128xf32>
    %624 = arith.truncf %623 : vector<8x128xf32> to vector<8x128xbf16>
    %c72 = arith.constant 72 : index
    %c0_274 = arith.constant 0 : index
    %c0_275 = arith.constant 0 : index
    %625 = vector.load %arg2[%c72, %c0_274, %c0_275] : memref<99x128x128xbf16, #tpu.memory_space<vmem>>, vector<1x128x128xbf16>
    %626 = vector.shape_cast %625 : vector<1x128x128xbf16> to vector<128x128xbf16>
    %cst_276 = arith.constant dense<0.000000e+00> : vector<8x128xf32>
    %627 = tpu.matmul %624, %626, %cst_276 {dimension_numbers = #tpu.dot_dimension_numbers<[1], [0], [0], [1], [0, 0, 1, 1], [], []>} : vector<8x128xbf16>, vector<128x128xbf16>, vector<8x128xf32> -> vector<8x128xf32>
    %628 = arith.truncf %627 : vector<8x128xf32> to vector<8x128xbf16>
    %c73 = arith.constant 73 : index
    %c0_277 = arith.constant 0 : index
    %c0_278 = arith.constant 0 : index
    %629 = vector.load %arg2[%c73, %c0_277, %c0_278] : memref<99x128x128xbf16, #tpu.memory_space<vmem>>, vector<1x128x128xbf16>
    %630 = vector.shape_cast %629 : vector<1x128x128xbf16> to vector<128x128xbf16>
    %cst_279 = arith.constant dense<0.000000e+00> : vector<8x128xf32>
    %631 = tpu.matmul %624, %630, %cst_279 {dimension_numbers = #tpu.dot_dimension_numbers<[1], [0], [0], [1], [0, 0, 1, 1], [], []>} : vector<8x128xbf16>, vector<128x128xbf16>, vector<8x128xf32> -> vector<8x128xf32>
    %632 = arith.truncf %631 : vector<8x128xf32> to vector<8x128xbf16>
    %c74 = arith.constant 74 : index
    %c0_280 = arith.constant 0 : index
    %c0_281 = arith.constant 0 : index
    %633 = vector.load %arg2[%c74, %c0_280, %c0_281] : memref<99x128x128xbf16, #tpu.memory_space<vmem>>, vector<1x128x128xbf16>
    %634 = vector.shape_cast %633 : vector<1x128x128xbf16> to vector<128x128xbf16>
    %635 = vector.extract_strided_slice %634 {offsets = [0, 0], sizes = [16, 8], strides = [1, 1]} : vector<128x128xbf16> to vector<16x8xbf16>
    %cst_282 = arith.constant dense<0.000000e+00> : vector<16x128xf32>
    %636 = tpu.matmul %635, %628, %cst_282 {dimension_numbers = #tpu.dot_dimension_numbers<[1], [0], [0], [1], [0, 0, 1, 1], [], []>} : vector<16x8xbf16>, vector<8x128xbf16>, vector<16x128xf32> -> vector<16x128xf32>
    %c75 = arith.constant 75 : index
    %c0_283 = arith.constant 0 : index
    %c0_284 = arith.constant 0 : index
    %637 = vector.load %arg2[%c75, %c0_283, %c0_284] : memref<99x128x128xbf16, #tpu.memory_space<vmem>>, vector<1x128x128xbf16>
    %638 = vector.shape_cast %637 : vector<1x128x128xbf16> to vector<128x128xbf16>
    %639 = vector.extract_strided_slice %638 {offsets = [0, 0], sizes = [16, 8], strides = [1, 1]} : vector<128x128xbf16> to vector<16x8xbf16>
    %cst_285 = arith.constant dense<0.000000e+00> : vector<16x128xf32>
    %640 = tpu.matmul %639, %632, %cst_285 {dimension_numbers = #tpu.dot_dimension_numbers<[1], [0], [0], [1], [0, 0, 1, 1], [], []>} : vector<16x8xbf16>, vector<8x128xbf16>, vector<16x128xf32> -> vector<16x128xf32>
    %641 = arith.addf %636, %640 : vector<16x128xf32>
    %c16_286 = arith.constant 16 : index
    %c0_287 = arith.constant 0 : index
    %642 = vector.load %arg3[%c16_286, %c0_287] : memref<24x128xf32, #tpu.memory_space<vmem>>, vector<1x128xf32>
    %643 = vector.broadcast %642 : vector<1x128xf32> to vector<16x128xf32>
    %644 = arith.addf %641, %643 : vector<16x128xf32>
    %645 = arith.truncf %234 : vector<16x128xf32> to vector<16x128xbf16>
    %c77 = arith.constant 77 : index
    %c0_288 = arith.constant 0 : index
    %c0_289 = arith.constant 0 : index
    %646 = vector.load %arg2[%c77, %c0_288, %c0_289] : memref<99x128x128xbf16, #tpu.memory_space<vmem>>, vector<1x128x128xbf16>
    %647 = vector.shape_cast %646 : vector<1x128x128xbf16> to vector<128x128xbf16>
    %cst_290 = arith.constant dense<0.000000e+00> : vector<16x128xf32>
    %648 = tpu.matmul %645, %647, %cst_290 {dimension_numbers = #tpu.dot_dimension_numbers<[1], [0], [0], [1], [0, 0, 1, 1], [], []>} : vector<16x128xbf16>, vector<128x128xbf16>, vector<16x128xf32> -> vector<16x128xf32>
    %c76 = arith.constant 76 : index
    %c0_291 = arith.constant 0 : index
    %c0_292 = arith.constant 0 : index
    %649 = vector.load %arg2[%c76, %c0_291, %c0_292] : memref<99x128x128xbf16, #tpu.memory_space<vmem>>, vector<1x128x128xbf16>
    %650 = vector.shape_cast %649 : vector<1x128x128xbf16> to vector<128x128xbf16>
    %cst_293 = arith.constant dense<0.000000e+00> : vector<16x128xf32>
    %651 = tpu.matmul %645, %650, %cst_293 {dimension_numbers = #tpu.dot_dimension_numbers<[1], [0], [0], [1], [0, 0, 1, 1], [], []>} : vector<16x128xbf16>, vector<128x128xbf16>, vector<16x128xf32> -> vector<16x128xf32>
    %c78 = arith.constant 78 : index
    %c0_294 = arith.constant 0 : index
    %c0_295 = arith.constant 0 : index
    %652 = vector.load %arg2[%c78, %c0_294, %c0_295] : memref<99x128x128xbf16, #tpu.memory_space<vmem>>, vector<1x128x128xbf16>
    %653 = vector.shape_cast %652 : vector<1x128x128xbf16> to vector<128x128xbf16>
    %cst_296 = arith.constant dense<0.000000e+00> : vector<16x128xf32>
    %654 = tpu.matmul %645, %653, %cst_296 {dimension_numbers = #tpu.dot_dimension_numbers<[1], [0], [0], [1], [0, 0, 1, 1], [], []>} : vector<16x128xbf16>, vector<128x128xbf16>, vector<16x128xf32> -> vector<16x128xf32>
    %655 = vector.extract_strided_slice %651 {offsets = [15, 0], sizes = [1, 128], strides = [1, 1]} : vector<16x128xf32> to vector<1x128xf32>
    %656 = vector.extract_strided_slice %651 {offsets = [0, 0], sizes = [15, 128], strides = [1, 1]} : vector<16x128xf32> to vector<15x128xf32>
    %657 = tpu.concatenate %655, %656 in 0 : vector<1x128xf32>, vector<15x128xf32> -> vector<16x128xf32>
    %658 = vector.broadcast %45 : vector<16x1xf32> to vector<16x128xf32>
    %659 = arith.mulf %658, %657 : vector<16x128xf32>
    %660 = arith.addf %648, %659 : vector<16x128xf32>
    %661 = vector.extract_strided_slice %654 {offsets = [1, 0], sizes = [15, 128], strides = [1, 1]} : vector<16x128xf32> to vector<15x128xf32>
    %662 = vector.extract_strided_slice %654 {offsets = [0, 0], sizes = [1, 128], strides = [1, 1]} : vector<16x128xf32> to vector<1x128xf32>
    %663 = tpu.concatenate %661, %662 in 0 : vector<15x128xf32>, vector<1x128xf32> -> vector<16x128xf32>
    %664 = vector.broadcast %49 : vector<16x1xf32> to vector<16x128xf32>
    %665 = arith.mulf %664, %663 : vector<16x128xf32>
    %666 = arith.addf %660, %665 : vector<16x128xf32>
    %667 = arith.truncf %644 : vector<16x128xf32> to vector<16x128xbf16>
    %c80 = arith.constant 80 : index
    %c0_297 = arith.constant 0 : index
    %c0_298 = arith.constant 0 : index
    %668 = vector.load %arg2[%c80, %c0_297, %c0_298] : memref<99x128x128xbf16, #tpu.memory_space<vmem>>, vector<1x128x128xbf16>
    %669 = vector.shape_cast %668 : vector<1x128x128xbf16> to vector<128x128xbf16>
    %cst_299 = arith.constant dense<0.000000e+00> : vector<16x128xf32>
    %670 = tpu.matmul %667, %669, %cst_299 {dimension_numbers = #tpu.dot_dimension_numbers<[1], [0], [0], [1], [0, 0, 1, 1], [], []>} : vector<16x128xbf16>, vector<128x128xbf16>, vector<16x128xf32> -> vector<16x128xf32>
    %c79 = arith.constant 79 : index
    %c0_300 = arith.constant 0 : index
    %c0_301 = arith.constant 0 : index
    %671 = vector.load %arg2[%c79, %c0_300, %c0_301] : memref<99x128x128xbf16, #tpu.memory_space<vmem>>, vector<1x128x128xbf16>
    %672 = vector.shape_cast %671 : vector<1x128x128xbf16> to vector<128x128xbf16>
    %cst_302 = arith.constant dense<0.000000e+00> : vector<16x128xf32>
    %673 = tpu.matmul %667, %672, %cst_302 {dimension_numbers = #tpu.dot_dimension_numbers<[1], [0], [0], [1], [0, 0, 1, 1], [], []>} : vector<16x128xbf16>, vector<128x128xbf16>, vector<16x128xf32> -> vector<16x128xf32>
    %c81 = arith.constant 81 : index
    %c0_303 = arith.constant 0 : index
    %c0_304 = arith.constant 0 : index
    %674 = vector.load %arg2[%c81, %c0_303, %c0_304] : memref<99x128x128xbf16, #tpu.memory_space<vmem>>, vector<1x128x128xbf16>
    %675 = vector.shape_cast %674 : vector<1x128x128xbf16> to vector<128x128xbf16>
    %cst_305 = arith.constant dense<0.000000e+00> : vector<16x128xf32>
    %676 = tpu.matmul %667, %675, %cst_305 {dimension_numbers = #tpu.dot_dimension_numbers<[1], [0], [0], [1], [0, 0, 1, 1], [], []>} : vector<16x128xbf16>, vector<128x128xbf16>, vector<16x128xf32> -> vector<16x128xf32>
    %677 = vector.extract_strided_slice %673 {offsets = [15, 0], sizes = [1, 128], strides = [1, 1]} : vector<16x128xf32> to vector<1x128xf32>
    %678 = vector.extract_strided_slice %673 {offsets = [0, 0], sizes = [15, 128], strides = [1, 1]} : vector<16x128xf32> to vector<15x128xf32>
    %679 = tpu.concatenate %677, %678 in 0 : vector<1x128xf32>, vector<15x128xf32> -> vector<16x128xf32>
    %680 = vector.broadcast %45 : vector<16x1xf32> to vector<16x128xf32>
    %681 = arith.mulf %680, %679 : vector<16x128xf32>
    %682 = arith.addf %670, %681 : vector<16x128xf32>
    %683 = vector.extract_strided_slice %676 {offsets = [1, 0], sizes = [15, 128], strides = [1, 1]} : vector<16x128xf32> to vector<15x128xf32>
    %684 = vector.extract_strided_slice %676 {offsets = [0, 0], sizes = [1, 128], strides = [1, 1]} : vector<16x128xf32> to vector<1x128xf32>
    %685 = tpu.concatenate %683, %684 in 0 : vector<15x128xf32>, vector<1x128xf32> -> vector<16x128xf32>
    %686 = vector.broadcast %49 : vector<16x1xf32> to vector<16x128xf32>
    %687 = arith.mulf %686, %685 : vector<16x128xf32>
    %688 = arith.addf %682, %687 : vector<16x128xf32>
    %689 = arith.addf %666, %688 : vector<16x128xf32>
    %c17_306 = arith.constant 17 : index
    %c0_307 = arith.constant 0 : index
    %690 = vector.load %arg3[%c17_306, %c0_307] : memref<24x128xf32, #tpu.memory_space<vmem>>, vector<1x128xf32>
    %691 = vector.broadcast %690 : vector<1x128xf32> to vector<16x128xf32>
    %692 = arith.addf %689, %691 : vector<16x128xf32>
    %cst_308 = arith.constant 0.000000e+00 : f32
    %693 = vector.broadcast %cst_308 : f32 to vector<16x128xf32>
    %694 = arith.maximumf %692, %693 : vector<16x128xf32>
    %695 = arith.truncf %694 : vector<16x128xf32> to vector<16x128xbf16>
    %c83 = arith.constant 83 : index
    %c0_309 = arith.constant 0 : index
    %c0_310 = arith.constant 0 : index
    %696 = vector.load %arg2[%c83, %c0_309, %c0_310] : memref<99x128x128xbf16, #tpu.memory_space<vmem>>, vector<1x128x128xbf16>
    %697 = vector.shape_cast %696 : vector<1x128x128xbf16> to vector<128x128xbf16>
    %cst_311 = arith.constant dense<0.000000e+00> : vector<16x128xf32>
    %698 = tpu.matmul %695, %697, %cst_311 {dimension_numbers = #tpu.dot_dimension_numbers<[1], [0], [0], [1], [0, 0, 1, 1], [], []>} : vector<16x128xbf16>, vector<128x128xbf16>, vector<16x128xf32> -> vector<16x128xf32>
    %c82 = arith.constant 82 : index
    %c0_312 = arith.constant 0 : index
    %c0_313 = arith.constant 0 : index
    %699 = vector.load %arg2[%c82, %c0_312, %c0_313] : memref<99x128x128xbf16, #tpu.memory_space<vmem>>, vector<1x128x128xbf16>
    %700 = vector.shape_cast %699 : vector<1x128x128xbf16> to vector<128x128xbf16>
    %cst_314 = arith.constant dense<0.000000e+00> : vector<16x128xf32>
    %701 = tpu.matmul %695, %700, %cst_314 {dimension_numbers = #tpu.dot_dimension_numbers<[1], [0], [0], [1], [0, 0, 1, 1], [], []>} : vector<16x128xbf16>, vector<128x128xbf16>, vector<16x128xf32> -> vector<16x128xf32>
    %c84 = arith.constant 84 : index
    %c0_315 = arith.constant 0 : index
    %c0_316 = arith.constant 0 : index
    %702 = vector.load %arg2[%c84, %c0_315, %c0_316] : memref<99x128x128xbf16, #tpu.memory_space<vmem>>, vector<1x128x128xbf16>
    %703 = vector.shape_cast %702 : vector<1x128x128xbf16> to vector<128x128xbf16>
    %cst_317 = arith.constant dense<0.000000e+00> : vector<16x128xf32>
    %704 = tpu.matmul %695, %703, %cst_317 {dimension_numbers = #tpu.dot_dimension_numbers<[1], [0], [0], [1], [0, 0, 1, 1], [], []>} : vector<16x128xbf16>, vector<128x128xbf16>, vector<16x128xf32> -> vector<16x128xf32>
    %705 = vector.extract_strided_slice %701 {offsets = [15, 0], sizes = [1, 128], strides = [1, 1]} : vector<16x128xf32> to vector<1x128xf32>
    %706 = vector.extract_strided_slice %701 {offsets = [0, 0], sizes = [15, 128], strides = [1, 1]} : vector<16x128xf32> to vector<15x128xf32>
    %707 = tpu.concatenate %705, %706 in 0 : vector<1x128xf32>, vector<15x128xf32> -> vector<16x128xf32>
    %708 = vector.broadcast %45 : vector<16x1xf32> to vector<16x128xf32>
    %709 = arith.mulf %708, %707 : vector<16x128xf32>
    %710 = arith.addf %698, %709 : vector<16x128xf32>
    %711 = vector.extract_strided_slice %704 {offsets = [1, 0], sizes = [15, 128], strides = [1, 1]} : vector<16x128xf32> to vector<15x128xf32>
    %712 = vector.extract_strided_slice %704 {offsets = [0, 0], sizes = [1, 128], strides = [1, 1]} : vector<16x128xf32> to vector<1x128xf32>
    %713 = tpu.concatenate %711, %712 in 0 : vector<15x128xf32>, vector<1x128xf32> -> vector<16x128xf32>
    %714 = vector.broadcast %49 : vector<16x1xf32> to vector<16x128xf32>
    %715 = arith.mulf %714, %713 : vector<16x128xf32>
    %716 = arith.addf %710, %715 : vector<16x128xf32>
    %c18_318 = arith.constant 18 : index
    %c0_319 = arith.constant 0 : index
    %717 = vector.load %arg3[%c18_318, %c0_319] : memref<24x128xf32, #tpu.memory_space<vmem>>, vector<1x128xf32>
    %718 = vector.broadcast %717 : vector<1x128xf32> to vector<16x128xf32>
    %719 = arith.addf %716, %718 : vector<16x128xf32>
    %cst_320 = arith.constant 0.000000e+00 : f32
    %720 = vector.broadcast %cst_320 : f32 to vector<16x128xf32>
    %721 = arith.maximumf %719, %720 : vector<16x128xf32>
    %722 = arith.truncf %721 : vector<16x128xf32> to vector<16x128xbf16>
    %c85 = arith.constant 85 : index
    %c0_321 = arith.constant 0 : index
    %c0_322 = arith.constant 0 : index
    %723 = vector.load %arg2[%c85, %c0_321, %c0_322] : memref<99x128x128xbf16, #tpu.memory_space<vmem>>, vector<1x128x128xbf16>
    %724 = vector.shape_cast %723 : vector<1x128x128xbf16> to vector<128x128xbf16>
    %cst_323 = arith.constant dense<0.000000e+00> : vector<16x128xf32>
    %725 = tpu.matmul %722, %724, %cst_323 {dimension_numbers = #tpu.dot_dimension_numbers<[1], [0], [0], [1], [0, 0, 1, 1], [], []>} : vector<16x128xbf16>, vector<128x128xbf16>, vector<16x128xf32> -> vector<16x128xf32>
    %726 = arith.truncf %725 : vector<16x128xf32> to vector<16x128xbf16>
    %c86 = arith.constant 86 : index
    %c0_324 = arith.constant 0 : index
    %c0_325 = arith.constant 0 : index
    %727 = vector.load %arg2[%c86, %c0_324, %c0_325] : memref<99x128x128xbf16, #tpu.memory_space<vmem>>, vector<1x128x128xbf16>
    %728 = vector.shape_cast %727 : vector<1x128x128xbf16> to vector<128x128xbf16>
    %cst_326 = arith.constant dense<0.000000e+00> : vector<16x128xf32>
    %729 = tpu.matmul %722, %728, %cst_326 {dimension_numbers = #tpu.dot_dimension_numbers<[1], [0], [0], [1], [0, 0, 1, 1], [], []>} : vector<16x128xbf16>, vector<128x128xbf16>, vector<16x128xf32> -> vector<16x128xf32>
    %730 = arith.truncf %729 : vector<16x128xf32> to vector<16x128xbf16>
    %c87 = arith.constant 87 : index
    %c0_327 = arith.constant 0 : index
    %c0_328 = arith.constant 0 : index
    %731 = vector.load %arg2[%c87, %c0_327, %c0_328] : memref<99x128x128xbf16, #tpu.memory_space<vmem>>, vector<1x128x128xbf16>
    %732 = vector.shape_cast %731 : vector<1x128x128xbf16> to vector<128x128xbf16>
    %733 = vector.extract_strided_slice %732 {offsets = [0, 0], sizes = [32, 16], strides = [1, 1]} : vector<128x128xbf16> to vector<32x16xbf16>
    %cst_329 = arith.constant dense<0.000000e+00> : vector<32x128xf32>
    %734 = tpu.matmul %733, %726, %cst_329 {dimension_numbers = #tpu.dot_dimension_numbers<[1], [0], [0], [1], [0, 0, 1, 1], [], []>} : vector<32x16xbf16>, vector<16x128xbf16>, vector<32x128xf32> -> vector<32x128xf32>
    %c88 = arith.constant 88 : index
    %c0_330 = arith.constant 0 : index
    %c0_331 = arith.constant 0 : index
    %735 = vector.load %arg2[%c88, %c0_330, %c0_331] : memref<99x128x128xbf16, #tpu.memory_space<vmem>>, vector<1x128x128xbf16>
    %736 = vector.shape_cast %735 : vector<1x128x128xbf16> to vector<128x128xbf16>
    %737 = vector.extract_strided_slice %736 {offsets = [0, 0], sizes = [32, 16], strides = [1, 1]} : vector<128x128xbf16> to vector<32x16xbf16>
    %cst_332 = arith.constant dense<0.000000e+00> : vector<32x128xf32>
    %738 = tpu.matmul %737, %730, %cst_332 {dimension_numbers = #tpu.dot_dimension_numbers<[1], [0], [0], [1], [0, 0, 1, 1], [], []>} : vector<32x16xbf16>, vector<16x128xbf16>, vector<32x128xf32> -> vector<32x128xf32>
    %739 = arith.addf %734, %738 : vector<32x128xf32>
    %c19_333 = arith.constant 19 : index
    %c0_334 = arith.constant 0 : index
    %740 = vector.load %arg3[%c19_333, %c0_334] : memref<24x128xf32, #tpu.memory_space<vmem>>, vector<1x128xf32>
    %741 = vector.broadcast %740 : vector<1x128xf32> to vector<32x128xf32>
    %742 = arith.addf %739, %741 : vector<32x128xf32>
    %743 = arith.truncf %157 : vector<32x128xf32> to vector<32x128xbf16>
    %c90 = arith.constant 90 : index
    %c0_335 = arith.constant 0 : index
    %c0_336 = arith.constant 0 : index
    %744 = vector.load %arg2[%c90, %c0_335, %c0_336] : memref<99x128x128xbf16, #tpu.memory_space<vmem>>, vector<1x128x128xbf16>
    %745 = vector.shape_cast %744 : vector<1x128x128xbf16> to vector<128x128xbf16>
    %cst_337 = arith.constant dense<0.000000e+00> : vector<32x128xf32>
    %746 = tpu.matmul %743, %745, %cst_337 {dimension_numbers = #tpu.dot_dimension_numbers<[1], [0], [0], [1], [0, 0, 1, 1], [], []>} : vector<32x128xbf16>, vector<128x128xbf16>, vector<32x128xf32> -> vector<32x128xf32>
    %c89 = arith.constant 89 : index
    %c0_338 = arith.constant 0 : index
    %c0_339 = arith.constant 0 : index
    %747 = vector.load %arg2[%c89, %c0_338, %c0_339] : memref<99x128x128xbf16, #tpu.memory_space<vmem>>, vector<1x128x128xbf16>
    %748 = vector.shape_cast %747 : vector<1x128x128xbf16> to vector<128x128xbf16>
    %cst_340 = arith.constant dense<0.000000e+00> : vector<32x128xf32>
    %749 = tpu.matmul %743, %748, %cst_340 {dimension_numbers = #tpu.dot_dimension_numbers<[1], [0], [0], [1], [0, 0, 1, 1], [], []>} : vector<32x128xbf16>, vector<128x128xbf16>, vector<32x128xf32> -> vector<32x128xf32>
    %c91 = arith.constant 91 : index
    %c0_341 = arith.constant 0 : index
    %c0_342 = arith.constant 0 : index
    %750 = vector.load %arg2[%c91, %c0_341, %c0_342] : memref<99x128x128xbf16, #tpu.memory_space<vmem>>, vector<1x128x128xbf16>
    %751 = vector.shape_cast %750 : vector<1x128x128xbf16> to vector<128x128xbf16>
    %cst_343 = arith.constant dense<0.000000e+00> : vector<32x128xf32>
    %752 = tpu.matmul %743, %751, %cst_343 {dimension_numbers = #tpu.dot_dimension_numbers<[1], [0], [0], [1], [0, 0, 1, 1], [], []>} : vector<32x128xbf16>, vector<128x128xbf16>, vector<32x128xf32> -> vector<32x128xf32>
    %753 = vector.extract_strided_slice %749 {offsets = [31, 0], sizes = [1, 128], strides = [1, 1]} : vector<32x128xf32> to vector<1x128xf32>
    %754 = vector.extract_strided_slice %749 {offsets = [0, 0], sizes = [31, 128], strides = [1, 1]} : vector<32x128xf32> to vector<31x128xf32>
    %755 = tpu.concatenate %753, %754 in 0 : vector<1x128xf32>, vector<31x128xf32> -> vector<32x128xf32>
    %756 = vector.broadcast %20 : vector<32x1xf32> to vector<32x128xf32>
    %757 = arith.mulf %756, %755 : vector<32x128xf32>
    %758 = arith.addf %746, %757 : vector<32x128xf32>
    %759 = vector.extract_strided_slice %752 {offsets = [1, 0], sizes = [31, 128], strides = [1, 1]} : vector<32x128xf32> to vector<31x128xf32>
    %760 = vector.extract_strided_slice %752 {offsets = [0, 0], sizes = [1, 128], strides = [1, 1]} : vector<32x128xf32> to vector<1x128xf32>
    %761 = tpu.concatenate %759, %760 in 0 : vector<31x128xf32>, vector<1x128xf32> -> vector<32x128xf32>
    %762 = vector.broadcast %24 : vector<32x1xf32> to vector<32x128xf32>
    %763 = arith.mulf %762, %761 : vector<32x128xf32>
    %764 = arith.addf %758, %763 : vector<32x128xf32>
    %765 = arith.truncf %742 : vector<32x128xf32> to vector<32x128xbf16>
    %c93 = arith.constant 93 : index
    %c0_344 = arith.constant 0 : index
    %c0_345 = arith.constant 0 : index
    %766 = vector.load %arg2[%c93, %c0_344, %c0_345] : memref<99x128x128xbf16, #tpu.memory_space<vmem>>, vector<1x128x128xbf16>
    %767 = vector.shape_cast %766 : vector<1x128x128xbf16> to vector<128x128xbf16>
    %cst_346 = arith.constant dense<0.000000e+00> : vector<32x128xf32>
    %768 = tpu.matmul %765, %767, %cst_346 {dimension_numbers = #tpu.dot_dimension_numbers<[1], [0], [0], [1], [0, 0, 1, 1], [], []>} : vector<32x128xbf16>, vector<128x128xbf16>, vector<32x128xf32> -> vector<32x128xf32>
    %c92 = arith.constant 92 : index
    %c0_347 = arith.constant 0 : index
    %c0_348 = arith.constant 0 : index
    %769 = vector.load %arg2[%c92, %c0_347, %c0_348] : memref<99x128x128xbf16, #tpu.memory_space<vmem>>, vector<1x128x128xbf16>
    %770 = vector.shape_cast %769 : vector<1x128x128xbf16> to vector<128x128xbf16>
    %cst_349 = arith.constant dense<0.000000e+00> : vector<32x128xf32>
    %771 = tpu.matmul %765, %770, %cst_349 {dimension_numbers = #tpu.dot_dimension_numbers<[1], [0], [0], [1], [0, 0, 1, 1], [], []>} : vector<32x128xbf16>, vector<128x128xbf16>, vector<32x128xf32> -> vector<32x128xf32>
    %c94 = arith.constant 94 : index
    %c0_350 = arith.constant 0 : index
    %c0_351 = arith.constant 0 : index
    %772 = vector.load %arg2[%c94, %c0_350, %c0_351] : memref<99x128x128xbf16, #tpu.memory_space<vmem>>, vector<1x128x128xbf16>
    %773 = vector.shape_cast %772 : vector<1x128x128xbf16> to vector<128x128xbf16>
    %cst_352 = arith.constant dense<0.000000e+00> : vector<32x128xf32>
    %774 = tpu.matmul %765, %773, %cst_352 {dimension_numbers = #tpu.dot_dimension_numbers<[1], [0], [0], [1], [0, 0, 1, 1], [], []>} : vector<32x128xbf16>, vector<128x128xbf16>, vector<32x128xf32> -> vector<32x128xf32>
    %775 = vector.extract_strided_slice %771 {offsets = [31, 0], sizes = [1, 128], strides = [1, 1]} : vector<32x128xf32> to vector<1x128xf32>
    %776 = vector.extract_strided_slice %771 {offsets = [0, 0], sizes = [31, 128], strides = [1, 1]} : vector<32x128xf32> to vector<31x128xf32>
    %777 = tpu.concatenate %775, %776 in 0 : vector<1x128xf32>, vector<31x128xf32> -> vector<32x128xf32>
    %778 = vector.broadcast %20 : vector<32x1xf32> to vector<32x128xf32>
    %779 = arith.mulf %778, %777 : vector<32x128xf32>
    %780 = arith.addf %768, %779 : vector<32x128xf32>
    %781 = vector.extract_strided_slice %774 {offsets = [1, 0], sizes = [31, 128], strides = [1, 1]} : vector<32x128xf32> to vector<31x128xf32>
    %782 = vector.extract_strided_slice %774 {offsets = [0, 0], sizes = [1, 128], strides = [1, 1]} : vector<32x128xf32> to vector<1x128xf32>
    %783 = tpu.concatenate %781, %782 in 0 : vector<31x128xf32>, vector<1x128xf32> -> vector<32x128xf32>
    %784 = vector.broadcast %24 : vector<32x1xf32> to vector<32x128xf32>
    %785 = arith.mulf %784, %783 : vector<32x128xf32>
    %786 = arith.addf %780, %785 : vector<32x128xf32>
    %787 = arith.addf %764, %786 : vector<32x128xf32>
    %c20_353 = arith.constant 20 : index
    %c0_354 = arith.constant 0 : index
    %788 = vector.load %arg3[%c20_353, %c0_354] : memref<24x128xf32, #tpu.memory_space<vmem>>, vector<1x128xf32>
    %789 = vector.broadcast %788 : vector<1x128xf32> to vector<32x128xf32>
    %790 = arith.addf %787, %789 : vector<32x128xf32>
    %cst_355 = arith.constant 0.000000e+00 : f32
    %791 = vector.broadcast %cst_355 : f32 to vector<32x128xf32>
    %792 = arith.maximumf %790, %791 : vector<32x128xf32>
    %793 = arith.truncf %792 : vector<32x128xf32> to vector<32x128xbf16>
    %c96 = arith.constant 96 : index
    %c0_356 = arith.constant 0 : index
    %c0_357 = arith.constant 0 : index
    %794 = vector.load %arg2[%c96, %c0_356, %c0_357] : memref<99x128x128xbf16, #tpu.memory_space<vmem>>, vector<1x128x128xbf16>
    %795 = vector.shape_cast %794 : vector<1x128x128xbf16> to vector<128x128xbf16>
    %cst_358 = arith.constant dense<0.000000e+00> : vector<32x128xf32>
    %796 = tpu.matmul %793, %795, %cst_358 {dimension_numbers = #tpu.dot_dimension_numbers<[1], [0], [0], [1], [0, 0, 1, 1], [], []>} : vector<32x128xbf16>, vector<128x128xbf16>, vector<32x128xf32> -> vector<32x128xf32>
    %c95 = arith.constant 95 : index
    %c0_359 = arith.constant 0 : index
    %c0_360 = arith.constant 0 : index
    %797 = vector.load %arg2[%c95, %c0_359, %c0_360] : memref<99x128x128xbf16, #tpu.memory_space<vmem>>, vector<1x128x128xbf16>
    %798 = vector.shape_cast %797 : vector<1x128x128xbf16> to vector<128x128xbf16>
    %cst_361 = arith.constant dense<0.000000e+00> : vector<32x128xf32>
    %799 = tpu.matmul %793, %798, %cst_361 {dimension_numbers = #tpu.dot_dimension_numbers<[1], [0], [0], [1], [0, 0, 1, 1], [], []>} : vector<32x128xbf16>, vector<128x128xbf16>, vector<32x128xf32> -> vector<32x128xf32>
    %c97 = arith.constant 97 : index
    %c0_362 = arith.constant 0 : index
    %c0_363 = arith.constant 0 : index
    %800 = vector.load %arg2[%c97, %c0_362, %c0_363] : memref<99x128x128xbf16, #tpu.memory_space<vmem>>, vector<1x128x128xbf16>
    %801 = vector.shape_cast %800 : vector<1x128x128xbf16> to vector<128x128xbf16>
    %cst_364 = arith.constant dense<0.000000e+00> : vector<32x128xf32>
    %802 = tpu.matmul %793, %801, %cst_364 {dimension_numbers = #tpu.dot_dimension_numbers<[1], [0], [0], [1], [0, 0, 1, 1], [], []>} : vector<32x128xbf16>, vector<128x128xbf16>, vector<32x128xf32> -> vector<32x128xf32>
    %803 = vector.extract_strided_slice %799 {offsets = [31, 0], sizes = [1, 128], strides = [1, 1]} : vector<32x128xf32> to vector<1x128xf32>
    %804 = vector.extract_strided_slice %799 {offsets = [0, 0], sizes = [31, 128], strides = [1, 1]} : vector<32x128xf32> to vector<31x128xf32>
    %805 = tpu.concatenate %803, %804 in 0 : vector<1x128xf32>, vector<31x128xf32> -> vector<32x128xf32>
    %806 = vector.broadcast %20 : vector<32x1xf32> to vector<32x128xf32>
    %807 = arith.mulf %806, %805 : vector<32x128xf32>
    %808 = arith.addf %796, %807 : vector<32x128xf32>
    %809 = vector.extract_strided_slice %802 {offsets = [1, 0], sizes = [31, 128], strides = [1, 1]} : vector<32x128xf32> to vector<31x128xf32>
    %810 = vector.extract_strided_slice %802 {offsets = [0, 0], sizes = [1, 128], strides = [1, 1]} : vector<32x128xf32> to vector<1x128xf32>
    %811 = tpu.concatenate %809, %810 in 0 : vector<31x128xf32>, vector<1x128xf32> -> vector<32x128xf32>
    %812 = vector.broadcast %24 : vector<32x1xf32> to vector<32x128xf32>
    %813 = arith.mulf %812, %811 : vector<32x128xf32>
    %814 = arith.addf %808, %813 : vector<32x128xf32>
    %c21_365 = arith.constant 21 : index
    %c0_366 = arith.constant 0 : index
    %815 = vector.load %arg3[%c21_365, %c0_366] : memref<24x128xf32, #tpu.memory_space<vmem>>, vector<1x128xf32>
    %816 = vector.broadcast %815 : vector<1x128xf32> to vector<32x128xf32>
    %817 = arith.addf %814, %816 : vector<32x128xf32>
    %cst_367 = arith.constant 0.000000e+00 : f32
    %818 = vector.broadcast %cst_367 : f32 to vector<32x128xf32>
    %819 = arith.maximumf %817, %818 : vector<32x128xf32>
    %820 = arith.truncf %819 : vector<32x128xf32> to vector<32x128xbf16>
    %c98 = arith.constant 98 : index
    %c0_368 = arith.constant 0 : index
    %c0_369 = arith.constant 0 : index
    %821 = vector.load %arg2[%c98, %c0_368, %c0_369] : memref<99x128x128xbf16, #tpu.memory_space<vmem>>, vector<1x128x128xbf16>
    %822 = vector.shape_cast %821 : vector<1x128x128xbf16> to vector<128x128xbf16>
    %cst_370 = arith.constant dense<0.000000e+00> : vector<32x128xf32>
    %823 = tpu.matmul %820, %822, %cst_370 {dimension_numbers = #tpu.dot_dimension_numbers<[1], [0], [0], [1], [0, 0, 1, 1], [], []>} : vector<32x128xbf16>, vector<128x128xbf16>, vector<32x128xf32> -> vector<32x128xf32>
    %c22_371 = arith.constant 22 : index
    %c0_372 = arith.constant 0 : index
    %824 = vector.load %arg3[%c22_371, %c0_372] : memref<24x128xf32, #tpu.memory_space<vmem>>, vector<1x128xf32>
    %825 = vector.broadcast %824 : vector<1x128xf32> to vector<32x128xf32>
    %826 = arith.addf %823, %825 : vector<32x128xf32>
    %cst_373 = arith.constant 0.000000e+00 : f32
    %827 = vector.broadcast %cst_373 : f32 to vector<32x128xf32>
    %828 = arith.subf %827, %826 : vector<32x128xf32>
    %829 = math.exp %828 : vector<32x128xf32>
    %cst_374 = arith.constant 1.000000e+00 : f32
    %830 = vector.broadcast %cst_374 : f32 to vector<32x128xf32>
    %831 = arith.addf %830, %829 : vector<32x128xf32>
    %cst_375 = arith.constant 1.000000e+00 : f32
    %832 = vector.broadcast %cst_375 : f32 to vector<32x128xf32>
    %833 = arith.divf %832, %831 : vector<32x128xf32>
    %c0_376 = arith.constant 0 : index
    %c0_377 = arith.constant 0 : index
    %834 = vector.load %arg4[%c0_376, %c0_377] : memref<32x128xf32, #tpu.memory_space<vmem>>, vector<32x128xf32>
    tpu.vector_store %arg4[%c0_376, %c0_377], %833 {strides = array<i32>} : memref<32x128xf32, #tpu.memory_space<vmem>>, vector<32x128xf32>,
    return
  }
  func.func @transform_0(%arg0: i32) -> (i32, i32) {
    %c0_i32 = arith.constant 0 : i32
    %c0_i32_0 = arith.constant 0 : i32
    return %arg0, %c0_i32 : i32, i32
  }
  func.func @transform_1(%arg0: i32) -> (i32, i32, i32) {
    %c0_i32 = arith.constant 0 : i32
    %c0_i32_0 = arith.constant 0 : i32
    %c0_i32_1 = arith.constant 0 : i32
    %c0_i32_2 = arith.constant 0 : i32
    return %c0_i32, %c0_i32_0, %c0_i32_1 : i32, i32, i32
  }
  func.func @transform_2(%arg0: i32) -> (i32, i32) {
    %c0_i32 = arith.constant 0 : i32
    %c0_i32_0 = arith.constant 0 : i32
    %c0_i32_1 = arith.constant 0 : i32
    return %c0_i32, %c0_i32_0 : i32, i32
  }
  func.func @transform_3(%arg0: i32) -> (i32, i32) {
    %c0_i32 = arith.constant 0 : i32
    %c0_i32_0 = arith.constant 0 : i32
    return %arg0, %c0_i32 : i32, i32
  }
}

</mosaic_0001>

<llo_original>
// kernel: unet_forward.1
$region0: #{unet_forward.1}
  #allocation0 [shape = 'u32[]', space=smem, size = 0x4, offset = 0x4, fixed_abs, tag = 'smem constant byte address 0x4 - core index']
  #allocation1 [shape = 'u32[144,128]{1,0:T(1,128)}', space=vmem, size = 0x12000, scoped, tag = 'internal scratch']
  %s0 = inlined_call_operand.vmem [shape: f32[32,64], index: 0, kind: input, shape index: {}]
  %s1 = inlined_call_operand.hbm [shape: bf16[99,128,128], index: 1, kind: input, shape index: {}]
  %s2 = inlined_call_operand.hbm [shape: f32[24,128], index: 2, kind: input, shape index: {}]
  %s3 = inlined_call_operand.hbm [shape: f32[32,128], index: 3, kind: output, shape index: {}]
  %s4 = sld [smem:[#allocation0]]
  $region30: #{unet_forward.1} parent=0
    _
  %s6 = ssub.s32 1, %s4
  %s7 = scalar_select 0, %s6, %s4
  $region1: #{unet_forward.1} parent=0
    #allocation2 [shape = 'u8[3244032]{0}', space=vmem, size = 0x318000, scoped, tag = 'input window, operand 1, single buffered']
    #allocation3 [shape = 's32[1]{0}', space=sflag, size = 0x4, scoped, tag = 'scoped memory for unet_forward.1']
    #allocation4 [shape = 's32[1]{0}', space=sflag, size = 0x4, scoped, tag = 'scoped memory for unet_forward.1']
    #allocation5 [shape = 'u8[12288]{0}', space=vmem, size = 0x3000, scoped, tag = 'input window, operand 2, single buffered']
    #allocation6 [shape = 's32[1]{0}', space=sflag, size = 0x4, scoped, tag = 'scoped memory for unet_forward.1']
    #allocation7 [shape = 'u8[16384]{0}', space=vmem, size = 0x4000, scoped, tag = 'output window, operand 0, single buffered']
    %8 = vsyncpa [#allocation3], 0
    %9 = vsyncpa [#allocation6], 0
    %10 = vsyncpa [#allocation4], 0
    // Predicated region
    $region2: #{unet_forward.1} parent=1 // pred_check
      _
    $region3: #{unet_forward.1} parent=1 // pred_check_branch
      %12 = sbr.rel (0) target = $region5
    $region4: #{unet_forward.1} parent=1 // pred_region
      _
    $region5: #{unet_forward.1} parent=1 // pred_fallthru
      _
    // Predicated region
    $region6: #{unet_forward.1} parent=1 // pred_check
      _
    $region7: #{unet_forward.1} parent=1 // pred_check_branch
      %14 = sbr.rel (0) target = $region9
    $region8: #{unet_forward.1} parent=1 // pred_region
      %s16 = ssub.s32 101376, 101376
      %17 = vsyncadd [#allocation3], %s16
      %s18 = sshll.u32 [#allocation2], 4
      %s19 = int_to_ptr.vmem [resolvable:$true] %s18
      %24 = dma.hbm_to_vmem [thread:$0]  %s1, 101376, %s19, [#allocation3], 64, 64, 4
    $region9: #{unet_forward.1} parent=1 // pred_fallthru
      _
    // Predicated region
    $region10: #{unet_forward.1} parent=1 // pred_check
      _
    $region11: #{unet_forward.1} parent=1 // pred_check_branch
      %26 = sbr.rel (0) target = $region13
    $region12: #{unet_forward.1} parent=1 // pred_region
      %s28 = ssub.s32 384, 384
      %29 = vsyncadd [#allocation6], %s28
      %s30 = sshll.u32 [#allocation5], 4
      %s31 = int_to_ptr.vmem [resolvable:$true] %s30
      %36 = dma.hbm_to_vmem [thread:$0]  %s2, 384, %s31, [#allocation6], 128, 128, 8
    $region13: #{unet_forward.1} parent=1 // pred_fallthru
      _
    // Predicated region
    $region14: #{unet_forward.1} parent=1 // pred_check
      _
    $region15: #{unet_forward.1} parent=1 // pred_check_branch
      %38 = sbr.rel (0) target = $region17
    $region16: #{unet_forward.1} parent=1 // pred_region
      %39 = dma.done [#allocation3], 101376
    $region17: #{unet_forward.1} parent=1 // pred_fallthru
      _
    // Predicated region
    $region18: #{unet_forward.1} parent=1 // pred_check
      _
    $region19: #{unet_forward.1} parent=1 // pred_check_branch
      %41 = sbr.rel (0) target = $region21
    $region20: #{unet_forward.1} parent=1 // pred_region
      %42 = dma.done [#allocation6], 384
    $region21: #{unet_forward.1} parent=1 // pred_fallthru
      _
    %v44 = vlaneseq
    %v45 = vshrl.u32 %v44, 7
    %v46 = vadd.s32 %v45, 8
    %v47 = vadd.s32 %v45, 16
    %v48 = vadd.s32 %v45, 24
    %vm49 = vcmp.lt.s32.totalorder %v45, 0
    %v50 = vsub.s32 0, %v45
    %v51 = vsel %vm49, %v50, %v45
    %v52 = vshrl.u32 %v51, 4
    %v53 = vand.u32 %v51, 15
    %v54 = vsub.s32 0, %v53
    %v55 = vsel %vm49, %v54, %v53
    %vm56 = vcmp.lt.s32.totalorder %v46, 0
    %v57 = vsub.s32 0, %v46
    %v58 = vsel %vm56, %v57, %v46
    %v59 = vshrl.u32 %v58, 4
    %v60 = vand.u32 %v58, 15
    %v61 = vsub.s32 0, %v60
    %v62 = vsel %vm56, %v61, %v60
    %vm63 = vcmp.lt.s32.totalorder %v47, 0
    %v64 = vsub.s32 0, %v47
    %v65 = vsel %vm63, %v64, %v47
    %v66 = vshrl.u32 %v65, 4
    %v67 = vand.u32 %v65, 15
    %v68 = vsub.s32 0, %v67
    %v69 = vsel %vm63, %v68, %v67
    %vm70 = vcmp.lt.s32.totalorder %v48, 0
    %v71 = vsub.s32 0, %v48
    %v72 = vsel %vm70, %v71, %v48
    %v73 = vshrl.u32 %v72, 4
    %v74 = vand.u32 %v72, 15
    %v75 = vsub.s32 0, %v74
    %v76 = vsel %vm70, %v75, %v74
    %vm77 = vcmp.ne.s32.totalorder %v55, 0
    %vm78 = vcmp.ne.s32.totalorder %v62, 0
    %vm79 = vcmp.ne.s32.totalorder %v69, 0
    %vm80 = vcmp.ne.s32.totalorder %v76, 0
    %vm81 = vcmp.lt.s32.totalorder %v55, 0
    %vm82 = vcmp.lt.s32.totalorder %v62, 0
    %vm83 = vcmp.lt.s32.totalorder %v69, 0
    %vm84 = vcmp.lt.s32.totalorder %v76, 0
    %vm85 = vmand %vm81, %vm77
    %vm86 = vmand %vm82, %vm78
    %vm87 = vmand %vm83, %vm79
    %vm88 = vmand %vm84, %vm80
    %v89 = vadd.s32 %v55, 16
    %v90 = vadd.s32 %v62, 16
    %v91 = vadd.s32 %v69, 16
    %v92 = vadd.s32 %v76, 16
    %v93 = vsel %vm85, %v89, %v55
    %v94 = vsel %vm86, %v90, %v62
    %v95 = vsel %vm87, %v91, %v69
    %v96 = vsel %vm88, %v92, %v76
    %vm97 = vcmp.ne.s32.totalorder %v93, 0
    %vm98 = vcmp.ne.s32.totalorder %v94, 0
    %vm99 = vcmp.ne.s32.totalorder %v95, 0
    %vm100 = vcmp.ne.s32.totalorder %v96, 0
    %v101 = vsel %vm97, 1, 0
    %v102 = vsel %vm98, 1, 0
    %v103 = vsel %vm99, 1, 0
    %v104 = vsel %vm100, 1, 0
    %v105 = vcvt.s32.f32 %v101
    %v106 = vcvt.s32.f32 %v102
    %v107 = vcvt.s32.f32 %v103
    %v108 = vcvt.s32.f32 %v104
    %vm109 = vcmp.ne.s32.totalorder %v93, 15
    %vm110 = vcmp.ne.s32.totalorder %v94, 15
    %vm111 = vcmp.ne.s32.totalorder %v95, 15
    %vm112 = vcmp.ne.s32.totalorder %v96, 15
    %v113 = vsel %vm109, 1, 0
    %v114 = vsel %vm110, 1, 0
    %v115 = vsel %vm111, 1, 0
    %v116 = vsel %vm112, 1, 0
    %v117 = vcvt.s32.f32 %v113
    %v118 = vcvt.s32.f32 %v114
    %v119 = vcvt.s32.f32 %v115
    %v120 = vcvt.s32.f32 %v116
    %vm121 = vcmp.lt.s32.totalorder %v45, 0
    %v122 = vsub.s32 0, %v45
    %v123 = vsel %vm121, %v122, %v45
    %v124 = vshrl.u32 %v123, 3
    %v125 = vand.u32 %v123, 7
    %v126 = vsub.s32 0, %v125
    %v127 = vsel %vm121, %v126, %v125
    %vm128 = vcmp.lt.s32.totalorder %v46, 0
    %v129 = vsub.s32 0, %v46
    %v130 = vsel %vm128, %v129, %v46
    %v131 = vshrl.u32 %v130, 3
    %v132 = vand.u32 %v130, 7
    %v133 = vsub.s32 0, %v132
    %v134 = vsel %vm128, %v133, %v132
    %vm135 = vcmp.ne.s32.totalorder %v127, 0
    %vm136 = vcmp.ne.s32.totalorder %v134, 0
    %vm137 = vcmp.lt.s32.totalorder %v127, 0
    %vm138 = vcmp.lt.s32.totalorder %v134, 0
    %vm139 = vmand %vm137, %vm135
    %vm140 = vmand %vm138, %vm136
    %v141 = vadd.s32 %v127, 8
    %v142 = vadd.s32 %v134, 8
    %v143 = vsel %vm139, %v141, %v127
    %v144 = vsel %vm140, %v142, %v134
    %vm145 = vcmp.ne.s32.totalorder %v143, 0
    %vm146 = vcmp.ne.s32.totalorder %v144, 0
    %v147 = vsel %vm145, 1, 0
    %v148 = vsel %vm146, 1, 0
    %v149 = vcvt.s32.f32 %v147
    %v150 = vcvt.s32.f32 %v148
    %vm151 = vcmp.ne.s32.totalorder %v143, 7
    %vm152 = vcmp.ne.s32.totalorder %v144, 7
    %v153 = vsel %vm151, 1, 0
    %v154 = vsel %vm152, 1, 0
    %v155 = vcvt.s32.f32 %v153
    %v156 = vcvt.s32.f32 %v154
    %vm157 = vcmp.lt.s32.totalorder %v45, 0
    %v158 = vsub.s32 0, %v45
    %v159 = vsel %vm157, %v158, %v45
    %v160 = vshrl.u32 %v159, 2
    %v161 = vand.u32 %v159, 3
    %v162 = vsub.s32 0, %v161
    %v163 = vsel %vm157, %v162, %v161
    %vm164 = vcmp.ne.s32.totalorder %v163, 0
    %vm165 = vcmp.lt.s32.totalorder %v163, 0
    %vm166 = vmand %vm165, %vm164
    %v167 = vadd.s32 %v163, 4
    %v168 = vsel %vm166, %v167, %v163
    %vm169 = vcmp.ne.s32.totalorder %v168, 0
    %v170 = vsel %vm169, 1, 0
    %v171 = vcvt.s32.f32 %v170
    %vm172 = vcmp.ne.s32.totalorder %v168, 3
    %v173 = vsel %vm172, 1, 0
    %v174 = vcvt.s32.f32 %v173
    %vm175 = vcmp.lt.s32.totalorder %v45, 0
    %v176 = vsub.s32 0, %v45
    %v177 = vsel %vm175, %v176, %v45
    %v178 = vshrl.u32 %v177, 1
    %v179 = vand.u32 %v177, 1
    %v180 = vsub.s32 0, %v179
    %v181 = vsel %vm175, %v180, %v179
    %vm182 = vcmp.ne.s32.totalorder %v181, 0
    %vm183 = vcmp.lt.s32.totalorder %v181, 0
    %vm184 = vmand %vm183, %vm182
    %v185 = vadd.s32 %v181, 2
    %v186 = vsel %vm184, %v185, %v181
    %vm187 = vcmp.ne.s32.totalorder %v186, 0
    %v188 = vsel %vm187, 1, 0
    %v189 = vcvt.s32.f32 %v188
    %vm190 = vcmp.ne.s32.totalorder %v186, 1
    %v191 = vsel %vm190, 1, 0
    %v192 = vcvt.s32.f32 %v191
    %v193 = vld [vmem:[%s0] sm:$0xff]
    %v194 = vld [vmem:[%s0 + $0x8] sm:$0xff]
    %v195 = vld [vmem:[%s0 + $0x10] sm:$0xff]
    %v196 = vld [vmem:[%s0 + $0x18] sm:$0xff]
    %v197 = vpack.c.bf16 %v194, %v193
    %v198 = vpack.c.bf16 %v196, %v195
    %s199 = scalar_lea.vmem [#allocation2], 64
    %v200 = vld [vmem:[%s199] sm:$0xf]
    %v201 = vld [vmem:[%s199 + $0x4] sm:$0xf]
    %v202 = vld [vmem:[%s199 + $0x8] sm:$0xf]
    %v203 = vld [vmem:[%s199 + $0xc] sm:$0xf]
    %v204 = vld [vmem:[%s199 + $0x10] sm:$0xf]
    %v205 = vld [vmem:[%s199 + $0x14] sm:$0xf]
    %v206 = vld [vmem:[%s199 + $0x18] sm:$0xf]
    %v207 = vld [vmem:[%s199 + $0x1c] sm:$0xf]
    %v208 = vld [vmem:[#allocation2] sm:$0xf]
    %v209 = vld [vmem:[#allocation2 + $0x4] sm:$0xf]
    %v210 = vld [vmem:[#allocation2 + $0x8] sm:$0xf]
    %v211 = vld [vmem:[#allocation2 + $0xc] sm:$0xf]
    %v212 = vld [vmem:[#allocation2 + $0x10] sm:$0xf]
    %v213 = vld [vmem:[#allocation2 + $0x14] sm:$0xf]
    %v214 = vld [vmem:[#allocation2 + $0x18] sm:$0xf]
    %v215 = vld [vmem:[#allocation2 + $0x1c] sm:$0xf]
    %v224 = vunpack.c.l.b16 %v208
    %v225 = vunpack.c.l.b16 %v209
    %v226 = vunpack.c.l.b16 %v210
    %v227 = vunpack.c.l.b16 %v211
    %v228 = vunpack.c.l.b16 %v212
    %v229 = vunpack.c.l.b16 %v213
    %v230 = vunpack.c.l.b16 %v214
    %v231 = vunpack.c.l.b16 %v215
    %v232 = vpack.c.b16 %v225, %v224
    %v233 = vpack.c.b16 %v227, %v226
    %v234 = vpack.c.b16 %v229, %v228
    %v235 = vpack.c.b16 %v231, %v230
    %vm240 = vcmask 523264
    %v242 = vsel %vm240, %v197, 0
    %v245 = vsel %vm240, %v198, 0
    %247 = vmatprep.subr.bf16.mxu0 0
    %248 = vmatpush1.bf16.msra.mxu0 %v232
    %249 = vmatprep.subr.bf16.mxu0 0
    %250 = vmatpush1.bf16.msra.mxu0 %v233
    %251 = vmatprep.subr.bf16.mxu0 0
    %252 = vmatpush1.bf16.msra.mxu0 %v234
    %253 = vmatprep.subr.bf16.mxu0 0
    %254 = vmatpush1.bf16.msra.mxu0 %v235
    %255 = vmatprep.subr.bf16.mxu0 0
    %256 = vmatpush1.bf16.msra.mxu0 0
    %257 = vmatprep.subr.bf16.mxu0 0
    %258 = vmatpush1.bf16.msra.mxu0 0
    %259 = vmatprep.subr.bf16.mxu0 0
    %260 = vmatpush1.bf16.msra.mxu0 0
    %261 = vmatprep.subr.bf16.mxu0 0
    %262 = vmatpush1.bf16.msra.mxu0 0
    %263 = vmatprep.subr.bf16.mxu0 0
    %264 = vmatpush1.bf16.msra.mxu0 0
    %265 = vmatprep.subr.bf16.mxu0 0
    %266 = vmatpush1.bf16.msra.mxu0 0
    %267 = vmatprep.subr.bf16.mxu0 0
    %268 = vmatpush1.bf16.msra.mxu0 0
    %269 = vmatprep.subr.bf16.mxu0 0
    %270 = vmatpush1.bf16.msra.mxu0 0
    %271 = vmatprep.subr.bf16.mxu0 0
    %272 = vmatpush1.bf16.msra.mxu0 0
    %273 = vmatprep.subr.bf16.mxu0 0
    %274 = vmatpush1.bf16.msra.mxu0 0
    %275 = vmatprep.subr.bf16.mxu0 0
    %276 = vmatpush1.bf16.msra.mxu0 0
    %277 = vmatprep.subr.bf16.mxu0 0
    %278 = vmatpush1.bf16.msra.mxu0 0
    %279 = vmatprep.mubr.bf16.mxu0 0
    %280 = vmatmul.mubr.bf16.gmra.mrb[0].mxu0 %v242
    %v281 = vpop.f32.mrb[0].mxu0
    %v282 = vadd.f32 0.0, %v281
    %v283 = vpop.f32.mrb[0].mxu0
    %v284 = vpop.f32.mrb[0].mxu0
    %v285 = vadd.f32 0.0, %v284
    %v286 = vpop.f32.mrb[0].mxu0
    %287 = vmatprep.mubr.bf16.mxu0 0
    %288 = vmatmul.mubr.bf16.gmra.mrb[0].mxu0 %v245
    %v289 = vpop.f32.mrb[0].mxu0
    %v290 = vadd.f32 0.0, %v289
    %v291 = vpop.f32.mrb[0].mxu0
    %v292 = vpop.f32.mrb[0].mxu0
    %v293 = vadd.f32 0.0, %v292
    %v294 = vpop.f32.mrb[0].mxu0
    %295 = vdwg.mxu0
    %s296 = scalar_lea.vmem [#allocation2], 128
    %v297 = vld [vmem:[%s296] sm:$0xf]
    %v298 = vld [vmem:[%s296 + $0x4] sm:$0xf]
    %v299 = vld [vmem:[%s296 + $0x8] sm:$0xf]
    %v300 = vld [vmem:[%s296 + $0xc] sm:$0xf]
    %v301 = vld [vmem:[%s296 + $0x10] sm:$0xf]
    %v302 = vld [vmem:[%s296 + $0x14] sm:$0xf]
    %v303 = vld [vmem:[%s296 + $0x18] sm:$0xf]
    %v304 = vld [vmem:[%s296 + $0x1c] sm:$0xf]
    %v313 = vunpack.c.l.b16 %v297
    %v314 = vunpack.c.l.b16 %v298
    %v315 = vunpack.c.l.b16 %v299
    %v316 = vunpack.c.l.b16 %v300
    %v317 = vunpack.c.l.b16 %v301
    %v318 = vunpack.c.l.b16 %v302
    %v319 = vunpack.c.l.b16 %v303
    %v320 = vunpack.c.l.b16 %v304
    %v321 = vpack.c.b16 %v314, %v313
    %v322 = vpack.c.b16 %v316, %v315
    %v323 = vpack.c.b16 %v318, %v317
    %v324 = vpack.c.b16 %v320, %v319
    %329 = vmatprep.subr.bf16.mxu0 0
    %330 = vmatpush1.bf16.msra.mxu0 %v321
    %331 = vmatprep.subr.bf16.mxu0 0
    %332 = vmatpush1.bf16.msra.mxu0 %v322
    %333 = vmatprep.subr.bf16.mxu0 0
    %334 = vmatpush1.bf16.msra.mxu0 %v323
    %335 = vmatprep.subr.bf16.mxu0 0
    %336 = vmatpush1.bf16.msra.mxu0 %v324
    %337 = vmatprep.subr.bf16.mxu0 0
    %338 = vmatpush1.bf16.msra.mxu0 0
    %339 = vmatprep.subr.bf16.mxu0 0
    %340 = vmatpush1.bf16.msra.mxu0 0
    %341 = vmatprep.subr.bf16.mxu0 0
    %342 = vmatpush1.bf16.msra.mxu0 0
    %343 = vmatprep.subr.bf16.mxu0 0
    %344 = vmatpush1.bf16.msra.mxu0 0
    %345 = vmatprep.subr.bf16.mxu0 0
    %346 = vmatpush1.bf16.msra.mxu0 0
    %347 = vmatprep.subr.bf16.mxu0 0
    %348 = vmatpush1.bf16.msra.mxu0 0
    %349 = vmatprep.subr.bf16.mxu0 0
    %350 = vmatpush1.bf16.msra.mxu0 0
    %351 = vmatprep.subr.bf16.mxu0 0
    %352 = vmatpush1.bf16.msra.mxu0 0
    %353 = vmatprep.subr.bf16.mxu0 0
    %354 = vmatpush1.bf16.msra.mxu0 0
    %355 = vmatprep.subr.bf16.mxu0 0
    %356 = vmatpush1.bf16.msra.mxu0 0
    %357 = vmatprep.subr.bf16.mxu0 0
    %358 = vmatpush1.bf16.msra.mxu0 0
    %359 = vmatprep.subr.bf16.mxu0 0
    %360 = vmatpush1.bf16.msra.mxu0 0
    %361 = vmatprep.mubr.bf16.mxu0 0
    %362 = vmatmul.mubr.bf16.gmra.mrb[0].mxu0 %v242
    %v363 = vpop.f32.mrb[0].mxu0
    %v364 = vadd.f32 0.0, %v363
    %v365 = vpop.f32.mrb[0].mxu0
    %v366 = vpop.f32.mrb[0].mxu0
    %v367 = vadd.f32 0.0, %v366
    %v368 = vpop.f32.mrb[0].mxu0
    %369 = vmatprep.mubr.bf16.mxu0 0
    %370 = vmatmul.mubr.bf16.gmra.mrb[0].mxu0 %v245
    %v371 = vpop.f32.mrb[0].mxu0
    %v372 = vadd.f32 0.0, %v371
    %v373 = vpop.f32.mrb[0].mxu0
    %v374 = vpop.f32.mrb[0].mxu0
    %v375 = vadd.f32 0.0, %v374
    %v376 = vpop.f32.mrb[0].mxu0
    %377 = vdwg.mxu0
    %v379 = vrot.slane %v293, 7
    %vm384 = vcmask 1040384
    %v385 = vrot.slane %v282, 7
    %v386 = vrot.slane %v285, 7
    %v387 = vsel %vm384, %v385, %v386
    %v388 = vrot.slane %v290, 7
    %v389 = vsel %vm384, %v386, %v388
    %v390 = vsel %vm384, %v388, %v379
    %v395 = vsel %vm384, %v379, %v385
    %v396 = vmul.f32 %v105, %v395
    %v397 = vmul.f32 %v106, %v387
    %v398 = vmul.f32 %v107, %v389
    %v399 = vmul.f32 %v108, %v390
    %v408 = vunpack.c.l.b16 %v200
    %v409 = vunpack.c.l.b16 %v201
    %v410 = vunpack.c.l.b16 %v202
    %v411 = vunpack.c.l.b16 %v203
    %v412 = vunpack.c.l.b16 %v204
    %v413 = vunpack.c.l.b16 %v205
    %v414 = vunpack.c.l.b16 %v206
    %v415 = vunpack.c.l.b16 %v207
    %v416 = vpack.c.b16 %v409, %v408
    %v417 = vpack.c.b16 %v411, %v410
    %v418 = vpack.c.b16 %v413, %v412
    %v419 = vpack.c.b16 %v415, %v414
    %424 = vmatprep.subr.bf16.mxu0 0
    %425 = vmatpush1.bf16.msra.mxu0 %v416
    %426 = vmatprep.subr.bf16.mxu0 0
    %427 = vmatpush1.bf16.msra.mxu0 %v417
    %428 = vmatprep.subr.bf16.mxu0 0
    %429 = vmatpush1.bf16.msra.mxu0 %v418
    %430 = vmatprep.subr.bf16.mxu0 0
    %431 = vmatpush1.bf16.msra.mxu0 %v419
    %432 = vmatprep.subr.bf16.mxu0 0
    %433 = vmatpush1.bf16.msra.mxu0 0
    %434 = vmatprep.subr.bf16.mxu0 0
    %435 = vmatpush1.bf16.msra.mxu0 0
    %436 = vmatprep.subr.bf16.mxu0 0
    %437 = vmatpush1.bf16.msra.mxu0 0
    %438 = vmatprep.subr.bf16.mxu0 0
    %439 = vmatpush1.bf16.msra.mxu0 0
    %440 = vmatprep.subr.bf16.mxu0 0
    %441 = vmatpush1.bf16.msra.mxu0 0
    %442 = vmatprep.subr.bf16.mxu0 0
    %443 = vmatpush1.bf16.msra.mxu0 0
    %444 = vmatprep.subr.bf16.mxu0 0
    %445 = vmatpush1.bf16.msra.mxu0 0
    %446 = vmatprep.subr.bf16.mxu0 0
    %447 = vmatpush1.bf16.msra.mxu0 0
    %448 = vmatprep.subr.bf16.mxu0 0
    %449 = vmatpush1.bf16.msra.mxu0 0
    %450 = vmatprep.subr.bf16.mxu0 0
    %451 = vmatpush1.bf16.msra.mxu0 0
    %452 = vmatprep.subr.bf16.mxu0 0
    %453 = vmatpush1.bf16.msra.mxu0 0
    %454 = vmatprep.subr.bf16.mxu0 0
    %455 = vmatpush1.bf16.msra.mxu0 0
    %456 = vmatprep.mubr.bf16.mxu0 0
    %457 = vmatmul.mubr.bf16.gmra.mrb[0].mxu0 %v242
    %v458 = vpop.f32.mrb[0].mxu0
    %v459 = vadd.f32 %v396, %v458
    %v460 = vpop.f32.mrb[0].mxu0
    %v461 = vpop.f32.mrb[0].mxu0
    %v462 = vadd.f32 %v397, %v461
    %v463 = vpop.f32.mrb[0].mxu0
    %464 = vmatprep.mubr.bf16.mxu0 0
    %465 = vmatmul.mubr.bf16.gmra.mrb[0].mxu0 %v245
    %v466 = vpop.f32.mrb[0].mxu0
    %v467 = vadd.f32 %v398, %v466
    %v468 = vpop.f32.mrb[0].mxu0
    %v469 = vpop.f32.mrb[0].mxu0
    %v470 = vadd.f32 %v399, %v469
    %v471 = vpop.f32.mrb[0].mxu0
    %472 = vdwg.mxu0
    %vm477 = vcmask 1046528
    %v478 = vrot.slane %v364, 1
    %v479 = vrot.slane %v367, 1
    %v480 = vsel %vm477, %v478, %v479
    %v481 = vrot.slane %v372, 1
    %v482 = vsel %vm477, %v479, %v481
    %v483 = vrot.slane %v375, 1
    %v484 = vsel %vm477, %v481, %v483
    %v490 = vsel %vm477, %v483, %v478
    %v491 = vmul.f32 %v117, %v480
    %v492 = vmul.f32 %v118, %v482
    %v493 = vmul.f32 %v119, %v484
    %v494 = vmul.f32 %v120, %v490
    %v495 = vadd.f32 %v459, %v491
    %v496 = vadd.f32 %v462, %v492
    %v497 = vadd.f32 %v467, %v493
    %v498 = vadd.f32 %v470, %v494
    %v499 = vld [vmem:[#allocation5] sm:$0x1]
    %v500 = vlaneseq
    %v501 = vshrl.u32 %v500, 7
    %v502 = vsub.s32 0, %v501
    %v503 = vrot.slane %v499, %v502
    %v504 = vadd.f32 %v495, %v503
    %v505 = vadd.f32 %v496, %v503
    %v506 = vadd.f32 %v497, %v503
    %v507 = vadd.f32 %v498, %v503
    %v508 = vmax.f32 %v504, 0.0
    %v509 = vmax.f32 %v505, 0.0
    %v510 = vmax.f32 %v506, 0.0
    %v511 = vmax.f32 %v507, 0.0
    %v512 = vpack.c.bf16 %v509, %v508
    %v513 = vpack.c.bf16 %v511, %v510
    %s514 = scalar_lea.vmem [#allocation2], 256
    %v515 = vld [vmem:[%s514] sm:$0xf]
    %v516 = vld [vmem:[%s514 + $0x4] sm:$0xf]
    %v517 = vld [vmem:[%s514 + $0x8] sm:$0xf]
    %v518 = vld [vmem:[%s514 + $0xc] sm:$0xf]
    %v519 = vld [vmem:[%s514 + $0x10] sm:$0xf]
    %v520 = vld [vmem:[%s514 + $0x14] sm:$0xf]
    %v521 = vld [vmem:[%s514 + $0x18] sm:$0xf]
    %v522 = vld [vmem:[%s514 + $0x1c] sm:$0xf]
    %v523 = vld [vmem:[%s514 + $0x20] sm:$0xf]
    %v524 = vld [vmem:[%s514 + $0x24] sm:$0xf]
    %v525 = vld [vmem:[%s514 + $0x28] sm:$0xf]
    %v526 = vld [vmem:[%s514 + $0x2c] sm:$0xf]
    %v527 = vld [vmem:[%s514 + $0x30] sm:$0xf]
    %v528 = vld [vmem:[%s514 + $0x34] sm:$0xf]
    %v529 = vld [vmem:[%s514 + $0x38] sm:$0xf]
    %v530 = vld [vmem:[%s514 + $0x3c] sm:$0xf]
    %s531 = scalar_lea.vmem [#allocation2], 192
    %v532 = vld [vmem:[%s531] sm:$0xf]
    %v533 = vld [vmem:[%s531 + $0x4] sm:$0xf]
    %v534 = vld [vmem:[%s531 + $0x8] sm:$0xf]
    %v535 = vld [vmem:[%s531 + $0xc] sm:$0xf]
    %v536 = vld [vmem:[%s531 + $0x10] sm:$0xf]
    %v537 = vld [vmem:[%s531 + $0x14] sm:$0xf]
    %v538 = vld [vmem:[%s531 + $0x18] sm:$0xf]
    %v539 = vld [vmem:[%s531 + $0x1c] sm:$0xf]
    %v540 = vld [vmem:[%s531 + $0x20] sm:$0xf]
    %v541 = vld [vmem:[%s531 + $0x24] sm:$0xf]
    %v542 = vld [vmem:[%s531 + $0x28] sm:$0xf]
    %v543 = vld [vmem:[%s531 + $0x2c] sm:$0xf]
    %v544 = vld [vmem:[%s531 + $0x30] sm:$0xf]
    %v545 = vld [vmem:[%s531 + $0x34] sm:$0xf]
    %v546 = vld [vmem:[%s531 + $0x38] sm:$0xf]
    %v547 = vld [vmem:[%s531 + $0x3c] sm:$0xf]
    %v564 = vunpack.c.l.b16 %v532
    %v565 = vunpack.c.l.b16 %v533
    %v566 = vunpack.c.l.b16 %v534
    %v567 = vunpack.c.l.b16 %v535
    %v568 = vunpack.c.l.b16 %v536
    %v569 = vunpack.c.l.b16 %v537
    %v570 = vunpack.c.l.b16 %v538
    %v571 = vunpack.c.l.b16 %v539
    %v572 = vunpack.c.l.b16 %v540
    %v573 = vunpack.c.l.b16 %v541
    %v574 = vunpack.c.l.b16 %v542
    %v575 = vunpack.c.l.b16 %v543
    %v576 = vunpack.c.l.b16 %v544
    %v577 = vunpack.c.l.b16 %v545
    %v578 = vunpack.c.l.b16 %v546
    %v579 = vunpack.c.l.b16 %v547
    %v580 = vpack.c.b16 %v565, %v564
    %v581 = vpack.c.b16 %v567, %v566
    %v582 = vpack.c.b16 %v569, %v568
    %v583 = vpack.c.b16 %v571, %v570
    %v584 = vpack.c.b16 %v573, %v572
    %v585 = vpack.c.b16 %v575, %v574
    %v586 = vpack.c.b16 %v577, %v576
    %v587 = vpack.c.b16 %v579, %v578
    %596 = vmatprep.subr.bf16.mxu0 0
    %597 = vmatpush1.bf16.msra.mxu0 %v580
    %598 = vmatprep.subr.bf16.mxu0 0
    %599 = vmatpush1.bf16.msra.mxu0 %v581
    %600 = vmatprep.subr.bf16.mxu0 0
    %601 = vmatpush1.bf16.msra.mxu0 %v582
    %602 = vmatprep.subr.bf16.mxu0 0
    %603 = vmatpush1.bf16.msra.mxu0 %v583
    %604 = vmatprep.subr.bf16.mxu0 0
    %605 = vmatpush1.bf16.msra.mxu0 %v584
    %606 = vmatprep.subr.bf16.mxu0 0
    %607 = vmatpush1.bf16.msra.mxu0 %v585
    %608 = vmatprep.subr.bf16.mxu0 0
    %609 = vmatpush1.bf16.msra.mxu0 %v586
    %610 = vmatprep.subr.bf16.mxu0 0
    %611 = vmatpush1.bf16.msra.mxu0 %v587
    %612 = vmatprep.subr.bf16.mxu0 0
    %613 = vmatpush1.bf16.msra.mxu0 0
    %614 = vmatprep.subr.bf16.mxu0 0
    %615 = vmatpush1.bf16.msra.mxu0 0
    %616 = vmatprep.subr.bf16.mxu0 0
    %617 = vmatpush1.bf16.msra.mxu0 0
    %618 = vmatprep.subr.bf16.mxu0 0
    %619 = vmatpush1.bf16.msra.mxu0 0
    %620 = vmatprep.subr.bf16.mxu0 0
    %621 = vmatpush1.bf16.msra.mxu0 0
    %622 = vmatprep.subr.bf16.mxu0 0
    %623 = vmatpush1.bf16.msra.mxu0 0
    %624 = vmatprep.subr.bf16.mxu0 0
    %625 = vmatpush1.bf16.msra.mxu0 0
    %626 = vmatprep.subr.bf16.mxu0 0
    %627 = vmatpush1.bf16.msra.mxu0 0
    %628 = vmatprep.mubr.bf16.mxu0 0
    %629 = vmatmul.mubr.bf16.gmra.mrb[0].mxu0 %v512
    %v630 = vpop.f32.mrb[0].mxu0
    %v631 = vadd.f32 0.0, %v630
    %v632 = vpop.f32.mrb[0].mxu0
    %v633 = vpop.f32.mrb[0].mxu0
    %v634 = vadd.f32 0.0, %v633
    %v635 = vpop.f32.mrb[0].mxu0
    %636 = vmatprep.mubr.bf16.mxu0 0
    %637 = vmatmul.mubr.bf16.gmra.mrb[0].mxu0 %v513
    %v638 = vpop.f32.mrb[0].mxu0
    %v639 = vadd.f32 0.0, %v638
    %v640 = vpop.f32.mrb[0].mxu0
    %v641 = vpop.f32.mrb[0].mxu0
    %v642 = vadd.f32 0.0, %v641
    %v643 = vpop.f32.mrb[0].mxu0
    %644 = vdwg.mxu0
    %s645 = scalar_lea.vmem [#allocation2], 320
    %v646 = vld [vmem:[%s645] sm:$0xf]
    %v647 = vld [vmem:[%s645 + $0x4] sm:$0xf]
    %v648 = vld [vmem:[%s645 + $0x8] sm:$0xf]
    %v649 = vld [vmem:[%s645 + $0xc] sm:$0xf]
    %v650 = vld [vmem:[%s645 + $0x10] sm:$0xf]
    %v651 = vld [vmem:[%s645 + $0x14] sm:$0xf]
    %v652 = vld [vmem:[%s645 + $0x18] sm:$0xf]
    %v653 = vld [vmem:[%s645 + $0x1c] sm:$0xf]
    %v654 = vld [vmem:[%s645 + $0x20] sm:$0xf]
    %v655 = vld [vmem:[%s645 + $0x24] sm:$0xf]
    %v656 = vld [vmem:[%s645 + $0x28] sm:$0xf]
    %v657 = vld [vmem:[%s645 + $0x2c] sm:$0xf]
    %v658 = vld [vmem:[%s645 + $0x30] sm:$0xf]
    %v659 = vld [vmem:[%s645 + $0x34] sm:$0xf]
    %v660 = vld [vmem:[%s645 + $0x38] sm:$0xf]
    %v661 = vld [vmem:[%s645 + $0x3c] sm:$0xf]
    %v678 = vunpack.c.l.b16 %v646
    %v679 = vunpack.c.l.b16 %v647
    %v680 = vunpack.c.l.b16 %v648
    %v681 = vunpack.c.l.b16 %v649
    %v682 = vunpack.c.l.b16 %v650
    %v683 = vunpack.c.l.b16 %v651
    %v684 = vunpack.c.l.b16 %v652
    %v685 = vunpack.c.l.b16 %v653
    %v686 = vunpack.c.l.b16 %v654
    %v687 = vunpack.c.l.b16 %v655
    %v688 = vunpack.c.l.b16 %v656
    %v689 = vunpack.c.l.b16 %v657
    %v690 = vunpack.c.l.b16 %v658
    %v691 = vunpack.c.l.b16 %v659
    %v692 = vunpack.c.l.b16 %v660
    %v693 = vunpack.c.l.b16 %v661
    %v694 = vpack.c.b16 %v679, %v678
    %v695 = vpack.c.b16 %v681, %v680
    %v696 = vpack.c.b16 %v683, %v682
    %v697 = vpack.c.b16 %v685, %v684
    %v698 = vpack.c.b16 %v687, %v686
    %v699 = vpack.c.b16 %v689, %v688
    %v700 = vpack.c.b16 %v691, %v690
    %v701 = vpack.c.b16 %v693, %v692
    %710 = vmatprep.subr.bf16.mxu0 0
    %711 = vmatpush1.bf16.msra.mxu0 %v694
    %712 = vmatprep.subr.bf16.mxu0 0
    %713 = vmatpush1.bf16.msra.mxu0 %v695
    %714 = vmatprep.subr.bf16.mxu0 0
    %715 = vmatpush1.bf16.msra.mxu0 %v696
    %716 = vmatprep.subr.bf16.mxu0 0
    %717 = vmatpush1.bf16.msra.mxu0 %v697
    %718 = vmatprep.subr.bf16.mxu0 0
    %719 = vmatpush1.bf16.msra.mxu0 %v698
    %720 = vmatprep.subr.bf16.mxu0 0
    %721 = vmatpush1.bf16.msra.mxu0 %v699
    %722 = vmatprep.subr.bf16.mxu0 0
    %723 = vmatpush1.bf16.msra.mxu0 %v700
    %724 = vmatprep.subr.bf16.mxu0 0
    %725 = vmatpush1.bf16.msra.mxu0 %v701
    %726 = vmatprep.subr.bf16.mxu0 0
    %727 = vmatpush1.bf16.msra.mxu0 0
    %728 = vmatprep.subr.bf16.mxu0 0
    %729 = vmatpush1.bf16.msra.mxu0 0
    %730 = vmatprep.subr.bf16.mxu0 0
    %731 = vmatpush1.bf16.msra.mxu0 0
    %732 = vmatprep.subr.bf16.mxu0 0
    %733 = vmatpush1.bf16.msra.mxu0 0
    %734 = vmatprep.subr.bf16.mxu0 0
    %735 = vmatpush1.bf16.msra.mxu0 0
    %736 = vmatprep.subr.bf16.mxu0 0
    %737 = vmatpush1.bf16.msra.mxu0 0
    %738 = vmatprep.subr.bf16.mxu0 0
    %739 = vmatpush1.bf16.msra.mxu0 0
    %740 = vmatprep.subr.bf16.mxu0 0
    %741 = vmatpush1.bf16.msra.mxu0 0
    %742 = vmatprep.mubr.bf16.mxu0 0
    %743 = vmatmul.mubr.bf16.gmra.mrb[0].mxu0 %v512
    %v744 = vpop.f32.mrb[0].mxu0
    %v745 = vadd.f32 0.0, %v744
    %v746 = vpop.f32.mrb[0].mxu0
    %v747 = vpop.f32.mrb[0].mxu0
    %v748 = vadd.f32 0.0, %v747
    %v749 = vpop.f32.mrb[0].mxu0
    %750 = vmatprep.mubr.bf16.mxu0 0
    %751 = vmatmul.mubr.bf16.gmra.mrb[0].mxu0 %v513
    %v752 = vpop.f32.mrb[0].mxu0
    %v753 = vadd.f32 0.0, %v752
    %v754 = vpop.f32.mrb[0].mxu0
    %v755 = vpop.f32.mrb[0].mxu0
    %v756 = vadd.f32 0.0, %v755
    %v757 = vpop.f32.mrb[0].mxu0
    %758 = vdwg.mxu0
    %v760 = vrot.slane %v642, 7
    %v765 = vrot.slane %v631, 7
    %v766 = vrot.slane %v634, 7
    %v767 = vsel %vm384, %v765, %v766
    %v768 = vrot.slane %v639, 7
    %v769 = vsel %vm384, %v766, %v768
    %v770 = vsel %vm384, %v768, %v760
    %v775 = vsel %vm384, %v760, %v765
    %v776 = vmul.f32 %v105, %v775
    %v777 = vmul.f32 %v106, %v767
    %v778 = vmul.f32 %v107, %v769
    %v779 = vmul.f32 %v108, %v770
    %v796 = vunpack.c.l.b16 %v515
    %v797 = vunpack.c.l.b16 %v516
    %v798 = vunpack.c.l.b16 %v517
    %v799 = vunpack.c.l.b16 %v518
    %v800 = vunpack.c.l.b16 %v519
    %v801 = vunpack.c.l.b16 %v520
    %v802 = vunpack.c.l.b16 %v521
    %v803 = vunpack.c.l.b16 %v522
    %v804 = vunpack.c.l.b16 %v523
    %v805 = vunpack.c.l.b16 %v524
    %v806 = vunpack.c.l.b16 %v525
    %v807 = vunpack.c.l.b16 %v526
    %v808 = vunpack.c.l.b16 %v527
    %v809 = vunpack.c.l.b16 %v528
    %v810 = vunpack.c.l.b16 %v529
    %v811 = vunpack.c.l.b16 %v530
    %v812 = vpack.c.b16 %v797, %v796
    %v813 = vpack.c.b16 %v799, %v798
    %v814 = vpack.c.b16 %v801, %v800
    %v815 = vpack.c.b16 %v803, %v802
    %v816 = vpack.c.b16 %v805, %v804
    %v817 = vpack.c.b16 %v807, %v806
    %v818 = vpack.c.b16 %v809, %v808
    %v819 = vpack.c.b16 %v811, %v810
    %828 = vmatprep.subr.bf16.mxu0 0
    %829 = vmatpush1.bf16.msra.mxu0 %v812
    %830 = vmatprep.subr.bf16.mxu0 0
    %831 = vmatpush1.bf16.msra.mxu0 %v813
    %832 = vmatprep.subr.bf16.mxu0 0
    %833 = vmatpush1.bf16.msra.mxu0 %v814
    %834 = vmatprep.subr.bf16.mxu0 0
    %835 = vmatpush1.bf16.msra.mxu0 %v815
    %836 = vmatprep.subr.bf16.mxu0 0
    %837 = vmatpush1.bf16.msra.mxu0 %v816
    %838 = vmatprep.subr.bf16.mxu0 0
    %839 = vmatpush1.bf16.msra.mxu0 %v817
    %840 = vmatprep.subr.bf16.mxu0 0
    %841 = vmatpush1.bf16.msra.mxu0 %v818
    %842 = vmatprep.subr.bf16.mxu0 0
    %843 = vmatpush1.bf16.msra.mxu0 %v819
    %844 = vmatprep.subr.bf16.mxu0 0
    %845 = vmatpush1.bf16.msra.mxu0 0
    %846 = vmatprep.subr.bf16.mxu0 0
    %847 = vmatpush1.bf16.msra.mxu0 0
    %848 = vmatprep.subr.bf16.mxu0 0
    %849 = vmatpush1.bf16.msra.mxu0 0
    %850 = vmatprep.subr.bf16.mxu0 0
    %851 = vmatpush1.bf16.msra.mxu0 0
    %852 = vmatprep.subr.bf16.mxu0 0
    %853 = vmatpush1.bf16.msra.mxu0 0
    %854 = vmatprep.subr.bf16.mxu0 0
    %855 = vmatpush1.bf16.msra.mxu0 0
    %856 = vmatprep.subr.bf16.mxu0 0
    %857 = vmatpush1.bf16.msra.mxu0 0
    %858 = vmatprep.subr.bf16.mxu0 0
    %859 = vmatpush1.bf16.msra.mxu0 0
    %860 = vmatprep.mubr.bf16.mxu0 0
    %861 = vmatmul.mubr.bf16.gmra.mrb[0].mxu0 %v512
    %v862 = vpop.f32.mrb[0].mxu0
    %v863 = vadd.f32 %v776, %v862
    %v864 = vpop.f32.mrb[0].mxu0
    %v865 = vpop.f32.mrb[0].mxu0
    %v866 = vadd.f32 %v777, %v865
    %v867 = vpop.f32.mrb[0].mxu0
    %868 = vmatprep.mubr.bf16.mxu0 0
    %869 = vmatmul.mubr.bf16.gmra.mrb[0].mxu0 %v513
    %v870 = vpop.f32.mrb[0].mxu0
    %v871 = vadd.f32 %v778, %v870
    %v872 = vpop.f32.mrb[0].mxu0
    %v873 = vpop.f32.mrb[0].mxu0
    %v874 = vadd.f32 %v779, %v873
    %v875 = vpop.f32.mrb[0].mxu0
    %876 = vdwg.mxu0
    %v881 = vrot.slane %v745, 1
    %v882 = vrot.slane %v748, 1
    %v883 = vsel %vm477, %v881, %v882
    %v884 = vrot.slane %v753, 1
    %v885 = vsel %vm477, %v882, %v884
    %v886 = vrot.slane %v756, 1
    %v887 = vsel %vm477, %v884, %v886
    %v893 = vsel %vm477, %v886, %v881
    %v894 = vmul.f32 %v117, %v883
    %v895 = vmul.f32 %v118, %v885
    %v896 = vmul.f32 %v119, %v887
    %v897 = vmul.f32 %v120, %v893
    %v898 = vadd.f32 %v863, %v894
    %v899 = vadd.f32 %v866, %v895
    %v900 = vadd.f32 %v871, %v896
    %v901 = vadd.f32 %v874, %v897
    %v902 = vld [vmem:[#allocation5 + $0x1] sm:$0x1]
    %v903 = vlaneseq
    %v904 = vshrl.u32 %v903, 7
    %v905 = vsub.s32 0, %v904
    %v906 = vrot.slane %v902, %v905
    %v907 = vadd.f32 %v898, %v906
    %v908 = vadd.f32 %v899, %v906
    %v909 = vadd.f32 %v900, %v906
    %v910 = vadd.f32 %v901, %v906
    %v911 = vmax.f32 %v907, 0.0
    %v912 = vmax.f32 %v908, 0.0
    %v913 = vmax.f32 %v909, 0.0
    %v914 = vmax.f32 %v910, 0.0
    %v915 = vpack.c.bf16 %v912, %v911
    %v916 = vpack.c.bf16 %v914, %v913
    %s917 = scalar_lea.vmem [#allocation2], 384
    %v918 = vld [vmem:[%s917] sm:$0xf]
    %v919 = vld [vmem:[%s917 + $0x4] sm:$0xf]
    %v922 = vunpack.c.l.b16 %v918
    %v923 = vunpack.c.l.b16 %v919
    %v924 = vpack.c.b16 %v923, %v922
    %vm925 = vcmask 261120
    %v927 = vsel %vm925, %v924, 0
    %929 = vmatprep.subr.bf16.mxu0 0
    %930 = vmatpush1.bf16.msra.mxu0 %v915
    %931 = vmatprep.subr.bf16.mxu0 0
    %932 = vmatpush1.bf16.msra.mxu0 %v916
    %933 = vmatprep.subr.bf16.mxu0 0
    %934 = vmatpush1.bf16.msra.mxu0 0
    %935 = vmatprep.subr.bf16.mxu0 0
    %936 = vmatpush1.bf16.msra.mxu0 0
    %937 = vmatprep.subr.bf16.mxu0 0
    %938 = vmatpush1.bf16.msra.mxu0 0
    %939 = vmatprep.subr.bf16.mxu0 0
    %940 = vmatpush1.bf16.msra.mxu0 0
    %941 = vmatprep.subr.bf16.mxu0 0
    %942 = vmatpush1.bf16.msra.mxu0 0
    %943 = vmatprep.subr.bf16.mxu0 0
    %944 = vmatpush1.bf16.msra.mxu0 0
    %945 = vmatprep.subr.bf16.mxu0 0
    %946 = vmatpush1.bf16.msra.mxu0 0
    %947 = vmatprep.subr.bf16.mxu0 0
    %948 = vmatpush1.bf16.msra.mxu0 0
    %949 = vmatprep.subr.bf16.mxu0 0
    %950 = vmatpush1.bf16.msra.mxu0 0
    %951 = vmatprep.subr.bf16.mxu0 0
    %952 = vmatpush1.bf16.msra.mxu0 0
    %953 = vmatprep.subr.bf16.mxu0 0
    %954 = vmatpush1.bf16.msra.mxu0 0
    %955 = vmatprep.subr.bf16.mxu0 0
    %956 = vmatpush1.bf16.msra.mxu0 0
    %957 = vmatprep.subr.bf16.mxu0 0
    %958 = vmatpush1.bf16.msra.mxu0 0
    %959 = vmatprep.subr.bf16.mxu0 0
    %960 = vmatpush1.bf16.msra.mxu0 0
    %961 = vmatprep.mubr.bf16.mxu0 0
    %962 = vmatmul.mubr.bf16.gmra.mrb[0].mxu0 %v927
    %v963 = vpop.f32.mrb[0].mxu0
    %v964 = vadd.f32 0.0, %v963
    %v965 = vpop.f32.mrb[0].mxu0
    %v966 = vpop.f32.mrb[0].mxu0
    %v967 = vadd.f32 0.0, %v966
    %v968 = vpop.f32.mrb[0].mxu0
    %969 = vdwg.mxu0
    %s970 = scalar_lea.vmem [#allocation2], 448
    %v971 = vld [vmem:[%s970] sm:$0xf]
    %v972 = vld [vmem:[%s970 + $0x4] sm:$0xf]
    %v975 = vunpack.c.l.b16 %v971
    %v976 = vunpack.c.l.b16 %v972
    %v977 = vpack.c.b16 %v976, %v975
    %v979 = vsel %vm925, %v977, 0
    %981 = vmatprep.subr.bf16.mxu0 0
    %982 = vmatpush1.bf16.msra.mxu0 %v915
    %983 = vmatprep.subr.bf16.mxu0 0
    %984 = vmatpush1.bf16.msra.mxu0 %v916
    %985 = vmatprep.subr.bf16.mxu0 0
    %986 = vmatpush1.bf16.msra.mxu0 0
    %987 = vmatprep.subr.bf16.mxu0 0
    %988 = vmatpush1.bf16.msra.mxu0 0
    %989 = vmatprep.subr.bf16.mxu0 0
    %990 = vmatpush1.bf16.msra.mxu0 0
    %991 = vmatprep.subr.bf16.mxu0 0
    %992 = vmatpush1.bf16.msra.mxu0 0
    %993 = vmatprep.subr.bf16.mxu0 0
    %994 = vmatpush1.bf16.msra.mxu0 0
    %995 = vmatprep.subr.bf16.mxu0 0
    %996 = vmatpush1.bf16.msra.mxu0 0
    %997 = vmatprep.subr.bf16.mxu0 0
    %998 = vmatpush1.bf16.msra.mxu0 0
    %999 = vmatprep.subr.bf16.mxu0 0
    %1000 = vmatpush1.bf16.msra.mxu0 0
    %1001 = vmatprep.subr.bf16.mxu0 0
    %1002 = vmatpush1.bf16.msra.mxu0 0
    %1003 = vmatprep.subr.bf16.mxu0 0
    %1004 = vmatpush1.bf16.msra.mxu0 0
    %1005 = vmatprep.subr.bf16.mxu0 0
    %1006 = vmatpush1.bf16.msra.mxu0 0
    %1007 = vmatprep.subr.bf16.mxu0 0
    %1008 = vmatpush1.bf16.msra.mxu0 0
    %1009 = vmatprep.subr.bf16.mxu0 0
    %1010 = vmatpush1.bf16.msra.mxu0 0
    %1011 = vmatprep.subr.bf16.mxu0 0
    %1012 = vmatpush1.bf16.msra.mxu0 0
    %1013 = vmatprep.mubr.bf16.mxu0 0
    %1014 = vmatmul.mubr.bf16.gmra.mrb[0].mxu0 %v979
    %v1015 = vpop.f32.mrb[0].mxu0
    %v1016 = vadd.f32 0.0, %v1015
    %v1017 = vpop.f32.mrb[0].mxu0
    %v1018 = vpop.f32.mrb[0].mxu0
    %v1019 = vadd.f32 0.0, %v1018
    %v1020 = vpop.f32.mrb[0].mxu0
    %1021 = vdwg.mxu0
    %v1022 = vmax.f32 %v964, %v1016
    %v1023 = vmax.f32 %v967, %v1019
    %v1024 = vpack.c.bf16 %v1023, %v1022
    %s1025 = scalar_lea.vmem [#allocation2], 512
    %v1026 = vld [vmem:[%s1025] sm:$0xf]
    %v1027 = vld [vmem:[%s1025 + $0x4] sm:$0xf]
    %v1028 = vld [vmem:[%s1025 + $0x8] sm:$0xf]
    %v1029 = vld [vmem:[%s1025 + $0xc] sm:$0xf]
    %v1030 = vld [vmem:[%s1025 + $0x10] sm:$0xf]
    %v1031 = vld [vmem:[%s1025 + $0x14] sm:$0xf]
    %v1032 = vld [vmem:[%s1025 + $0x18] sm:$0xf]
    %v1033 = vld [vmem:[%s1025 + $0x1c] sm:$0xf]
    %v1034 = vld [vmem:[%s1025 + $0x20] sm:$0xf]
    %v1035 = vld [vmem:[%s1025 + $0x24] sm:$0xf]
    %v1036 = vld [vmem:[%s1025 + $0x28] sm:$0xf]
    %v1037 = vld [vmem:[%s1025 + $0x2c] sm:$0xf]
    %v1038 = vld [vmem:[%s1025 + $0x30] sm:$0xf]
    %v1039 = vld [vmem:[%s1025 + $0x34] sm:$0xf]
    %v1040 = vld [vmem:[%s1025 + $0x38] sm:$0xf]
    %v1041 = vld [vmem:[%s1025 + $0x3c] sm:$0xf]
    %v1058 = vunpack.c.l.b16 %v1026
    %v1059 = vunpack.c.l.b16 %v1027
    %v1060 = vunpack.c.l.b16 %v1028
    %v1061 = vunpack.c.l.b16 %v1029
    %v1062 = vunpack.c.l.b16 %v1030
    %v1063 = vunpack.c.l.b16 %v1031
    %v1064 = vunpack.c.l.b16 %v1032
    %v1065 = vunpack.c.l.b16 %v1033
    %v1066 = vunpack.c.l.b16 %v1034
    %v1067 = vunpack.c.l.b16 %v1035
    %v1068 = vunpack.c.l.b16 %v1036
    %v1069 = vunpack.c.l.b16 %v1037
    %v1070 = vunpack.c.l.b16 %v1038
    %v1071 = vunpack.c.l.b16 %v1039
    %v1072 = vunpack.c.l.b16 %v1040
    %v1073 = vunpack.c.l.b16 %v1041
    %v1074 = vpack.c.b16 %v1059, %v1058
    %v1075 = vpack.c.b16 %v1061, %v1060
    %v1076 = vpack.c.b16 %v1063, %v1062
    %v1077 = vpack.c.b16 %v1065, %v1064
    %v1078 = vpack.c.b16 %v1067, %v1066
    %v1079 = vpack.c.b16 %v1069, %v1068
    %v1080 = vpack.c.b16 %v1071, %v1070
    %v1081 = vpack.c.b16 %v1073, %v1072
    %1090 = vmatprep.subr.bf16.mxu0 0
    %1091 = vmatpush1.bf16.msra.mxu0 %v1074
    %1092 = vmatprep.subr.bf16.mxu0 0
    %1093 = vmatpush1.bf16.msra.mxu0 %v1075
    %1094 = vmatprep.subr.bf16.mxu0 0
    %1095 = vmatpush1.bf16.msra.mxu0 %v1076
    %1096 = vmatprep.subr.bf16.mxu0 0
    %1097 = vmatpush1.bf16.msra.mxu0 %v1077
    %1098 = vmatprep.subr.bf16.mxu0 0
    %1099 = vmatpush1.bf16.msra.mxu0 %v1078
    %1100 = vmatprep.subr.bf16.mxu0 0
    %1101 = vmatpush1.bf16.msra.mxu0 %v1079
    %1102 = vmatprep.subr.bf16.mxu0 0
    %1103 = vmatpush1.bf16.msra.mxu0 %v1080
    %1104 = vmatprep.subr.bf16.mxu0 0
    %1105 = vmatpush1.bf16.msra.mxu0 %v1081
    %1106 = vmatprep.subr.bf16.mxu0 0
    %1107 = vmatpush1.bf16.msra.mxu0 0
    %1108 = vmatprep.subr.bf16.mxu0 0
    %1109 = vmatpush1.bf16.msra.mxu0 0
    %1110 = vmatprep.subr.bf16.mxu0 0
    %1111 = vmatpush1.bf16.msra.mxu0 0
    %1112 = vmatprep.subr.bf16.mxu0 0
    %1113 = vmatpush1.bf16.msra.mxu0 0
    %1114 = vmatprep.subr.bf16.mxu0 0
    %1115 = vmatpush1.bf16.msra.mxu0 0
    %1116 = vmatprep.subr.bf16.mxu0 0
    %1117 = vmatpush1.bf16.msra.mxu0 0
    %1118 = vmatprep.subr.bf16.mxu0 0
    %1119 = vmatpush1.bf16.msra.mxu0 0
    %1120 = vmatprep.subr.bf16.mxu0 0
    %1121 = vmatpush1.bf16.msra.mxu0 0
    %1122 = vmatprep.mubr.bf16.mxu0 0
    %1123 = vmatmul.mubr.bf16.gmra.mrb[0].mxu0 %v1024
    %v1124 = vpop.f32.mrb[0].mxu0
    %v1125 = vadd.f32 0.0, %v1124
    %v1126 = vpop.f32.mrb[0].mxu0
    %v1127 = vpop.f32.mrb[0].mxu0
    %v1128 = vadd.f32 0.0, %v1127
    %v1129 = vpop.f32.mrb[0].mxu0
    %1130 = vdwg.mxu0
    %s1131 = scalar_lea.vmem [#allocation2], 576
    %v1132 = vld [vmem:[%s1131] sm:$0xf]
    %v1133 = vld [vmem:[%s1131 + $0x4] sm:$0xf]
    %v1134 = vld [vmem:[%s1131 + $0x8] sm:$0xf]
    %v1135 = vld [vmem:[%s1131 + $0xc] sm:$0xf]
    %v1136 = vld [vmem:[%s1131 + $0x10] sm:$0xf]
    %v1137 = vld [vmem:[%s1131 + $0x14] sm:$0xf]
    %v1138 = vld [vmem:[%s1131 + $0x18] sm:$0xf]
    %v1139 = vld [vmem:[%s1131 + $0x1c] sm:$0xf]
    %v1140 = vld [vmem:[%s1131 + $0x20] sm:$0xf]
    %v1141 = vld [vmem:[%s1131 + $0x24] sm:$0xf]
    %v1142 = vld [vmem:[%s1131 + $0x28] sm:$0xf]
    %v1143 = vld [vmem:[%s1131 + $0x2c] sm:$0xf]
    %v1144 = vld [vmem:[%s1131 + $0x30] sm:$0xf]
    %v1145 = vld [vmem:[%s1131 + $0x34] sm:$0xf]
    %v1146 = vld [vmem:[%s1131 + $0x38] sm:$0xf]
    %v1147 = vld [vmem:[%s1131 + $0x3c] sm:$0xf]
    %v1164 = vunpack.c.l.b16 %v1132
    %v1165 = vunpack.c.l.b16 %v1133
    %v1166 = vunpack.c.l.b16 %v1134
    %v1167 = vunpack.c.l.b16 %v1135
    %v1168 = vunpack.c.l.b16 %v1136
    %v1169 = vunpack.c.l.b16 %v1137
    %v1170 = vunpack.c.l.b16 %v1138
    %v1171 = vunpack.c.l.b16 %v1139
    %v1172 = vunpack.c.l.b16 %v1140
    %v1173 = vunpack.c.l.b16 %v1141
    %v1174 = vunpack.c.l.b16 %v1142
    %v1175 = vunpack.c.l.b16 %v1143
    %v1176 = vunpack.c.l.b16 %v1144
    %v1177 = vunpack.c.l.b16 %v1145
    %v1178 = vunpack.c.l.b16 %v1146
    %v1179 = vunpack.c.l.b16 %v1147
    %v1180 = vpack.c.b16 %v1165, %v1164
    %v1181 = vpack.c.b16 %v1167, %v1166
    %v1182 = vpack.c.b16 %v1169, %v1168
    %v1183 = vpack.c.b16 %v1171, %v1170
    %v1184 = vpack.c.b16 %v1173, %v1172
    %v1185 = vpack.c.b16 %v1175, %v1174
    %v1186 = vpack.c.b16 %v1177, %v1176
    %v1187 = vpack.c.b16 %v1179, %v1178
    %1196 = vmatprep.subr.bf16.mxu0 0
    %1197 = vmatpush1.bf16.msra.mxu0 %v1180
    %1198 = vmatprep.subr.bf16.mxu0 0
    %1199 = vmatpush1.bf16.msra.mxu0 %v1181
    %1200 = vmatprep.subr.bf16.mxu0 0
    %1201 = vmatpush1.bf16.msra.mxu0 %v1182
    %1202 = vmatprep.subr.bf16.mxu0 0
    %1203 = vmatpush1.bf16.msra.mxu0 %v1183
    %1204 = vmatprep.subr.bf16.mxu0 0
    %1205 = vmatpush1.bf16.msra.mxu0 %v1184
    %1206 = vmatprep.subr.bf16.mxu0 0
    %1207 = vmatpush1.bf16.msra.mxu0 %v1185
    %1208 = vmatprep.subr.bf16.mxu0 0
    %1209 = vmatpush1.bf16.msra.mxu0 %v1186
    %1210 = vmatprep.subr.bf16.mxu0 0
    %1211 = vmatpush1.bf16.msra.mxu0 %v1187
    %1212 = vmatprep.subr.bf16.mxu0 0
    %1213 = vmatpush1.bf16.msra.mxu0 0
    %1214 = vmatprep.subr.bf16.mxu0 0
    %1215 = vmatpush1.bf16.msra.mxu0 0
    %1216 = vmatprep.subr.bf16.mxu0 0
    %1217 = vmatpush1.bf16.msra.mxu0 0
    %1218 = vmatprep.subr.bf16.mxu0 0
    %1219 = vmatpush1.bf16.msra.mxu0 0
    %1220 = vmatprep.subr.bf16.mxu0 0
    %1221 = vmatpush1.bf16.msra.mxu0 0
    %1222 = vmatprep.subr.bf16.mxu0 0
    %1223 = vmatpush1.bf16.msra.mxu0 0
    %1224 = vmatprep.subr.bf16.mxu0 0
    %1225 = vmatpush1.bf16.msra.mxu0 0
    %1226 = vmatprep.subr.bf16.mxu0 0
    %1227 = vmatpush1.bf16.msra.mxu0 0
    %1228 = vmatprep.mubr.bf16.mxu0 0
    %1229 = vmatmul.mubr.bf16.gmra.mrb[0].mxu0 %v1024
    %v1230 = vpop.f32.mrb[0].mxu0
    %v1231 = vadd.f32 0.0, %v1230
    %v1232 = vpop.f32.mrb[0].mxu0
    %v1233 = vpop.f32.mrb[0].mxu0
    %v1234 = vadd.f32 0.0, %v1233
    %v1235 = vpop.f32.mrb[0].mxu0
    %1236 = vdwg.mxu0
    %v1237 = vmax.f32 %v1125, %v1231
    %v1238 = vmax.f32 %v1128, %v1234
    %v1239 = vpack.c.bf16 %v1238, %v1237
    %s1240 = scalar_lea.vmem [#allocation2], 704
    %v1241 = vld [vmem:[%s1240] sm:$0xf]
    %v1242 = vld [vmem:[%s1240 + $0x4] sm:$0xf]
    %v1243 = vld [vmem:[%s1240 + $0x8] sm:$0xf]
    %v1244 = vld [vmem:[%s1240 + $0xc] sm:$0xf]
    %v1245 = vld [vmem:[%s1240 + $0x10] sm:$0xf]
    %v1246 = vld [vmem:[%s1240 + $0x14] sm:$0xf]
    %v1247 = vld [vmem:[%s1240 + $0x18] sm:$0xf]
    %v1248 = vld [vmem:[%s1240 + $0x1c] sm:$0xf]
    %s1249 = scalar_lea.vmem [#allocation2], 640
    %v1250 = vld [vmem:[%s1249] sm:$0xf]
    %v1251 = vld [vmem:[%s1249 + $0x4] sm:$0xf]
    %v1252 = vld [vmem:[%s1249 + $0x8] sm:$0xf]
    %v1253 = vld [vmem:[%s1249 + $0xc] sm:$0xf]
    %v1254 = vld [vmem:[%s1249 + $0x10] sm:$0xf]
    %v1255 = vld [vmem:[%s1249 + $0x14] sm:$0xf]
    %v1256 = vld [vmem:[%s1249 + $0x18] sm:$0xf]
    %v1257 = vld [vmem:[%s1249 + $0x1c] sm:$0xf]
    %v1266 = vunpack.c.l.b16 %v1250
    %v1267 = vunpack.c.l.b16 %v1251
    %v1268 = vunpack.c.l.b16 %v1252
    %v1269 = vunpack.c.l.b16 %v1253
    %v1270 = vunpack.c.l.b16 %v1254
    %v1271 = vunpack.c.l.b16 %v1255
    %v1272 = vunpack.c.l.b16 %v1256
    %v1273 = vunpack.c.l.b16 %v1257
    %v1274 = vpack.c.b16 %v1267, %v1266
    %v1275 = vpack.c.b16 %v1269, %v1268
    %v1276 = vpack.c.b16 %v1271, %v1270
    %v1277 = vpack.c.b16 %v1273, %v1272
    %v1283 = vsel %vm240, %v1239, 0
    %1285 = vmatprep.subr.bf16.mxu0 0
    %1286 = vmatpush1.bf16.msra.mxu0 %v1274
    %1287 = vmatprep.subr.bf16.mxu0 0
    %1288 = vmatpush1.bf16.msra.mxu0 %v1275
    %1289 = vmatprep.subr.bf16.mxu0 0
    %1290 = vmatpush1.bf16.msra.mxu0 %v1276
    %1291 = vmatprep.subr.bf16.mxu0 0
    %1292 = vmatpush1.bf16.msra.mxu0 %v1277
    %1293 = vmatprep.subr.bf16.mxu0 0
    %1294 = vmatpush1.bf16.msra.mxu0 0
    %1295 = vmatprep.subr.bf16.mxu0 0
    %1296 = vmatpush1.bf16.msra.mxu0 0
    %1297 = vmatprep.subr.bf16.mxu0 0
    %1298 = vmatpush1.bf16.msra.mxu0 0
    %1299 = vmatprep.subr.bf16.mxu0 0
    %1300 = vmatpush1.bf16.msra.mxu0 0
    %1301 = vmatprep.subr.bf16.mxu0 0
    %1302 = vmatpush1.bf16.msra.mxu0 0
    %1303 = vmatprep.subr.bf16.mxu0 0
    %1304 = vmatpush1.bf16.msra.mxu0 0
    %1305 = vmatprep.subr.bf16.mxu0 0
    %1306 = vmatpush1.bf16.msra.mxu0 0
    %1307 = vmatprep.subr.bf16.mxu0 0
    %1308 = vmatpush1.bf16.msra.mxu0 0
    %1309 = vmatprep.subr.bf16.mxu0 0
    %1310 = vmatpush1.bf16.msra.mxu0 0
    %1311 = vmatprep.subr.bf16.mxu0 0
    %1312 = vmatpush1.bf16.msra.mxu0 0
    %1313 = vmatprep.subr.bf16.mxu0 0
    %1314 = vmatpush1.bf16.msra.mxu0 0
    %1315 = vmatprep.subr.bf16.mxu0 0
    %1316 = vmatpush1.bf16.msra.mxu0 0
    %1317 = vmatprep.mubr.bf16.mxu0 0
    %1318 = vmatmul.mubr.bf16.gmra.mrb[0].mxu0 %v1283
    %v1319 = vpop.f32.mrb[0].mxu0
    %v1320 = vadd.f32 0.0, %v1319
    %v1321 = vpop.f32.mrb[0].mxu0
    %v1322 = vpop.f32.mrb[0].mxu0
    %v1323 = vadd.f32 0.0, %v1322
    %v1324 = vpop.f32.mrb[0].mxu0
    %1325 = vdwg.mxu0
    %s1326 = scalar_lea.vmem [#allocation2], 768
    %v1327 = vld [vmem:[%s1326] sm:$0xf]
    %v1328 = vld [vmem:[%s1326 + $0x4] sm:$0xf]
    %v1329 = vld [vmem:[%s1326 + $0x8] sm:$0xf]
    %v1330 = vld [vmem:[%s1326 + $0xc] sm:$0xf]
    %v1331 = vld [vmem:[%s1326 + $0x10] sm:$0xf]
    %v1332 = vld [vmem:[%s1326 + $0x14] sm:$0xf]
    %v1333 = vld [vmem:[%s1326 + $0x18] sm:$0xf]
    %v1334 = vld [vmem:[%s1326 + $0x1c] sm:$0xf]
    %v1343 = vunpack.c.l.b16 %v1327
    %v1344 = vunpack.c.l.b16 %v1328
    %v1345 = vunpack.c.l.b16 %v1329
    %v1346 = vunpack.c.l.b16 %v1330
    %v1347 = vunpack.c.l.b16 %v1331
    %v1348 = vunpack.c.l.b16 %v1332
    %v1349 = vunpack.c.l.b16 %v1333
    %v1350 = vunpack.c.l.b16 %v1334
    %v1351 = vpack.c.b16 %v1344, %v1343
    %v1352 = vpack.c.b16 %v1346, %v1345
    %v1353 = vpack.c.b16 %v1348, %v1347
    %v1354 = vpack.c.b16 %v1350, %v1349
    %1359 = vmatprep.subr.bf16.mxu0 0
    %1360 = vmatpush1.bf16.msra.mxu0 %v1351
    %1361 = vmatprep.subr.bf16.mxu0 0
    %1362 = vmatpush1.bf16.msra.mxu0 %v1352
    %1363 = vmatprep.subr.bf16.mxu0 0
    %1364 = vmatpush1.bf16.msra.mxu0 %v1353
    %1365 = vmatprep.subr.bf16.mxu0 0
    %1366 = vmatpush1.bf16.msra.mxu0 %v1354
    %1367 = vmatprep.subr.bf16.mxu0 0
    %1368 = vmatpush1.bf16.msra.mxu0 0
    %1369 = vmatprep.subr.bf16.mxu0 0
    %1370 = vmatpush1.bf16.msra.mxu0 0
    %1371 = vmatprep.subr.bf16.mxu0 0
    %1372 = vmatpush1.bf16.msra.mxu0 0
    %1373 = vmatprep.subr.bf16.mxu0 0
    %1374 = vmatpush1.bf16.msra.mxu0 0
    %1375 = vmatprep.subr.bf16.mxu0 0
    %1376 = vmatpush1.bf16.msra.mxu0 0
    %1377 = vmatprep.subr.bf16.mxu0 0
    %1378 = vmatpush1.bf16.msra.mxu0 0
    %1379 = vmatprep.subr.bf16.mxu0 0
    %1380 = vmatpush1.bf16.msra.mxu0 0
    %1381 = vmatprep.subr.bf16.mxu0 0
    %1382 = vmatpush1.bf16.msra.mxu0 0
    %1383 = vmatprep.subr.bf16.mxu0 0
    %1384 = vmatpush1.bf16.msra.mxu0 0
    %1385 = vmatprep.subr.bf16.mxu0 0
    %1386 = vmatpush1.bf16.msra.mxu0 0
    %1387 = vmatprep.subr.bf16.mxu0 0
    %1388 = vmatpush1.bf16.msra.mxu0 0
    %1389 = vmatprep.subr.bf16.mxu0 0
    %1390 = vmatpush1.bf16.msra.mxu0 0
    %1391 = vmatprep.mubr.bf16.mxu0 0
    %1392 = vmatmul.mubr.bf16.gmra.mrb[0].mxu0 %v1283
    %v1393 = vpop.f32.mrb[0].mxu0
    %v1394 = vadd.f32 0.0, %v1393
    %v1395 = vpop.f32.mrb[0].mxu0
    %v1396 = vpop.f32.mrb[0].mxu0
    %v1397 = vadd.f32 0.0, %v1396
    %v1398 = vpop.f32.mrb[0].mxu0
    %1399 = vdwg.mxu0
    %v1401 = vrot.slane %v1323, 7
    %v1404 = vrot.slane %v1320, 7
    %v1405 = vsel %vm384, %v1404, %v1401
    %v1408 = vsel %vm384, %v1401, %v1404
    %v1409 = vmul.f32 %v149, %v1408
    %v1410 = vmul.f32 %v150, %v1405
    %v1419 = vunpack.c.l.b16 %v1241
    %v1420 = vunpack.c.l.b16 %v1242
    %v1421 = vunpack.c.l.b16 %v1243
    %v1422 = vunpack.c.l.b16 %v1244
    %v1423 = vunpack.c.l.b16 %v1245
    %v1424 = vunpack.c.l.b16 %v1246
    %v1425 = vunpack.c.l.b16 %v1247
    %v1426 = vunpack.c.l.b16 %v1248
    %v1427 = vpack.c.b16 %v1420, %v1419
    %v1428 = vpack.c.b16 %v1422, %v1421
    %v1429 = vpack.c.b16 %v1424, %v1423
    %v1430 = vpack.c.b16 %v1426, %v1425
    %1435 = vmatprep.subr.bf16.mxu0 0
    %1436 = vmatpush1.bf16.msra.mxu0 %v1427
    %1437 = vmatprep.subr.bf16.mxu0 0
    %1438 = vmatpush1.bf16.msra.mxu0 %v1428
    %1439 = vmatprep.subr.bf16.mxu0 0
    %1440 = vmatpush1.bf16.msra.mxu0 %v1429
    %1441 = vmatprep.subr.bf16.mxu0 0
    %1442 = vmatpush1.bf16.msra.mxu0 %v1430
    %1443 = vmatprep.subr.bf16.mxu0 0
    %1444 = vmatpush1.bf16.msra.mxu0 0
    %1445 = vmatprep.subr.bf16.mxu0 0
    %1446 = vmatpush1.bf16.msra.mxu0 0
    %1447 = vmatprep.subr.bf16.mxu0 0
    %1448 = vmatpush1.bf16.msra.mxu0 0
    %1449 = vmatprep.subr.bf16.mxu0 0
    %1450 = vmatpush1.bf16.msra.mxu0 0
    %1451 = vmatprep.subr.bf16.mxu0 0
    %1452 = vmatpush1.bf16.msra.mxu0 0
    %1453 = vmatprep.subr.bf16.mxu0 0
    %1454 = vmatpush1.bf16.msra.mxu0 0
    %1455 = vmatprep.subr.bf16.mxu0 0
    %1456 = vmatpush1.bf16.msra.mxu0 0
    %1457 = vmatprep.subr.bf16.mxu0 0
    %1458 = vmatpush1.bf16.msra.mxu0 0
    %1459 = vmatprep.subr.bf16.mxu0 0
    %1460 = vmatpush1.bf16.msra.mxu0 0
    %1461 = vmatprep.subr.bf16.mxu0 0
    %1462 = vmatpush1.bf16.msra.mxu0 0
    %1463 = vmatprep.subr.bf16.mxu0 0
    %1464 = vmatpush1.bf16.msra.mxu0 0
    %1465 = vmatprep.subr.bf16.mxu0 0
    %1466 = vmatpush1.bf16.msra.mxu0 0
    %1467 = vmatprep.mubr.bf16.mxu0 0
    %1468 = vmatmul.mubr.bf16.gmra.mrb[0].mxu0 %v1283
    %v1469 = vpop.f32.mrb[0].mxu0
    %v1470 = vadd.f32 %v1409, %v1469
    %v1471 = vpop.f32.mrb[0].mxu0
    %v1472 = vpop.f32.mrb[0].mxu0
    %v1473 = vadd.f32 %v1410, %v1472
    %v1474 = vpop.f32.mrb[0].mxu0
    %1475 = vdwg.mxu0
    %v1478 = vrot.slane %v1394, 1
    %v1479 = vrot.slane %v1397, 1
    %v1480 = vsel %vm477, %v1478, %v1479
    %v1484 = vsel %vm477, %v1479, %v1478
    %v1485 = vmul.f32 %v155, %v1480
    %v1486 = vmul.f32 %v156, %v1484
    %v1487 = vadd.f32 %v1470, %v1485
    %v1488 = vadd.f32 %v1473, %v1486
    %v1489 = vld [vmem:[#allocation5 + $0x2] sm:$0x1]
    %v1490 = vlaneseq
    %v1491 = vshrl.u32 %v1490, 7
    %v1492 = vsub.s32 0, %v1491
    %v1493 = vrot.slane %v1489, %v1492
    %v1494 = vadd.f32 %v1487, %v1493
    %v1495 = vadd.f32 %v1488, %v1493
    %v1496 = vmax.f32 %v1494, 0.0
    %v1497 = vmax.f32 %v1495, 0.0
    %v1498 = vpack.c.bf16 %v1497, %v1496
    %s1499 = scalar_lea.vmem [#allocation2], 896
    %v1500 = vld [vmem:[%s1499] sm:$0xf]
    %v1501 = vld [vmem:[%s1499 + $0x4] sm:$0xf]
    %v1502 = vld [vmem:[%s1499 + $0x8] sm:$0xf]
    %v1503 = vld [vmem:[%s1499 + $0xc] sm:$0xf]
    %v1504 = vld [vmem:[%s1499 + $0x10] sm:$0xf]
    %v1505 = vld [vmem:[%s1499 + $0x14] sm:$0xf]
    %v1506 = vld [vmem:[%s1499 + $0x18] sm:$0xf]
    %v1507 = vld [vmem:[%s1499 + $0x1c] sm:$0xf]
    %v1508 = vld [vmem:[%s1499 + $0x20] sm:$0xf]
    %v1509 = vld [vmem:[%s1499 + $0x24] sm:$0xf]
    %v1510 = vld [vmem:[%s1499 + $0x28] sm:$0xf]
    %v1511 = vld [vmem:[%s1499 + $0x2c] sm:$0xf]
    %v1512 = vld [vmem:[%s1499 + $0x30] sm:$0xf]
    %v1513 = vld [vmem:[%s1499 + $0x34] sm:$0xf]
    %v1514 = vld [vmem:[%s1499 + $0x38] sm:$0xf]
    %v1515 = vld [vmem:[%s1499 + $0x3c] sm:$0xf]
    %s1516 = scalar_lea.vmem [#allocation2], 832
    %v1517 = vld [vmem:[%s1516] sm:$0xf]
    %v1518 = vld [vmem:[%s1516 + $0x4] sm:$0xf]
    %v1519 = vld [vmem:[%s1516 + $0x8] sm:$0xf]
    %v1520 = vld [vmem:[%s1516 + $0xc] sm:$0xf]
    %v1521 = vld [vmem:[%s1516 + $0x10] sm:$0xf]
    %v1522 = vld [vmem:[%s1516 + $0x14] sm:$0xf]
    %v1523 = vld [vmem:[%s1516 + $0x18] sm:$0xf]
    %v1524 = vld [vmem:[%s1516 + $0x1c] sm:$0xf]
    %v1525 = vld [vmem:[%s1516 + $0x20] sm:$0xf]
    %v1526 = vld [vmem:[%s1516 + $0x24] sm:$0xf]
    %v1527 = vld [vmem:[%s1516 + $0x28] sm:$0xf]
    %v1528 = vld [vmem:[%s1516 + $0x2c] sm:$0xf]
    %v1529 = vld [vmem:[%s1516 + $0x30] sm:$0xf]
    %v1530 = vld [vmem:[%s1516 + $0x34] sm:$0xf]
    %v1531 = vld [vmem:[%s1516 + $0x38] sm:$0xf]
    %v1532 = vld [vmem:[%s1516 + $0x3c] sm:$0xf]
    %v1549 = vunpack.c.l.b16 %v1517
    %v1550 = vunpack.c.l.b16 %v1518
    %v1551 = vunpack.c.l.b16 %v1519
    %v1552 = vunpack.c.l.b16 %v1520
    %v1553 = vunpack.c.l.b16 %v1521
    %v1554 = vunpack.c.l.b16 %v1522
    %v1555 = vunpack.c.l.b16 %v1523
    %v1556 = vunpack.c.l.b16 %v1524
    %v1557 = vunpack.c.l.b16 %v1525
    %v1558 = vunpack.c.l.b16 %v1526
    %v1559 = vunpack.c.l.b16 %v1527
    %v1560 = vunpack.c.l.b16 %v1528
    %v1561 = vunpack.c.l.b16 %v1529
    %v1562 = vunpack.c.l.b16 %v1530
    %v1563 = vunpack.c.l.b16 %v1531
    %v1564 = vunpack.c.l.b16 %v1532
    %v1565 = vpack.c.b16 %v1550, %v1549
    %v1566 = vpack.c.b16 %v1552, %v1551
    %v1567 = vpack.c.b16 %v1554, %v1553
    %v1568 = vpack.c.b16 %v1556, %v1555
    %v1569 = vpack.c.b16 %v1558, %v1557
    %v1570 = vpack.c.b16 %v1560, %v1559
    %v1571 = vpack.c.b16 %v1562, %v1561
    %v1572 = vpack.c.b16 %v1564, %v1563
    %1581 = vmatprep.subr.bf16.mxu0 0
    %1582 = vmatpush1.bf16.msra.mxu0 %v1565
    %1583 = vmatprep.subr.bf16.mxu0 0
    %1584 = vmatpush1.bf16.msra.mxu0 %v1566
    %1585 = vmatprep.subr.bf16.mxu0 0
    %1586 = vmatpush1.bf16.msra.mxu0 %v1567
    %1587 = vmatprep.subr.bf16.mxu0 0
    %1588 = vmatpush1.bf16.msra.mxu0 %v1568
    %1589 = vmatprep.subr.bf16.mxu0 0
    %1590 = vmatpush1.bf16.msra.mxu0 %v1569
    %1591 = vmatprep.subr.bf16.mxu0 0
    %1592 = vmatpush1.bf16.msra.mxu0 %v1570
    %1593 = vmatprep.subr.bf16.mxu0 0
    %1594 = vmatpush1.bf16.msra.mxu0 %v1571
    %1595 = vmatprep.subr.bf16.mxu0 0
    %1596 = vmatpush1.bf16.msra.mxu0 %v1572
    %1597 = vmatprep.subr.bf16.mxu0 0
    %1598 = vmatpush1.bf16.msra.mxu0 0
    %1599 = vmatprep.subr.bf16.mxu0 0
    %1600 = vmatpush1.bf16.msra.mxu0 0
    %1601 = vmatprep.subr.bf16.mxu0 0
    %1602 = vmatpush1.bf16.msra.mxu0 0
    %1603 = vmatprep.subr.bf16.mxu0 0
    %1604 = vmatpush1.bf16.msra.mxu0 0
    %1605 = vmatprep.subr.bf16.mxu0 0
    %1606 = vmatpush1.bf16.msra.mxu0 0
    %1607 = vmatprep.subr.bf16.mxu0 0
    %1608 = vmatpush1.bf16.msra.mxu0 0
    %1609 = vmatprep.subr.bf16.mxu0 0
    %1610 = vmatpush1.bf16.msra.mxu0 0
    %1611 = vmatprep.subr.bf16.mxu0 0
    %1612 = vmatpush1.bf16.msra.mxu0 0
    %1613 = vmatprep.mubr.bf16.mxu0 0
    %1614 = vmatmul.mubr.bf16.gmra.mrb[0].mxu0 %v1498
    %v1615 = vpop.f32.mrb[0].mxu0
    %v1616 = vadd.f32 0.0, %v1615
    %v1617 = vpop.f32.mrb[0].mxu0
    %v1618 = vpop.f32.mrb[0].mxu0
    %v1619 = vadd.f32 0.0, %v1618
    %v1620 = vpop.f32.mrb[0].mxu0
    %1621 = vdwg.mxu0
    %s1622 = scalar_lea.vmem [#allocation2], 960
    %v1623 = vld [vmem:[%s1622] sm:$0xf]
    %v1624 = vld [vmem:[%s1622 + $0x4] sm:$0xf]
    %v1625 = vld [vmem:[%s1622 + $0x8] sm:$0xf]
    %v1626 = vld [vmem:[%s1622 + $0xc] sm:$0xf]
    %v1627 = vld [vmem:[%s1622 + $0x10] sm:$0xf]
    %v1628 = vld [vmem:[%s1622 + $0x14] sm:$0xf]
    %v1629 = vld [vmem:[%s1622 + $0x18] sm:$0xf]
    %v1630 = vld [vmem:[%s1622 + $0x1c] sm:$0xf]
    %v1631 = vld [vmem:[%s1622 + $0x20] sm:$0xf]
    %v1632 = vld [vmem:[%s1622 + $0x24] sm:$0xf]
    %v1633 = vld [vmem:[%s1622 + $0x28] sm:$0xf]
    %v1634 = vld [vmem:[%s1622 + $0x2c] sm:$0xf]
    %v1635 = vld [vmem:[%s1622 + $0x30] sm:$0xf]
    %v1636 = vld [vmem:[%s1622 + $0x34] sm:$0xf]
    %v1637 = vld [vmem:[%s1622 + $0x38] sm:$0xf]
    %v1638 = vld [vmem:[%s1622 + $0x3c] sm:$0xf]
    %v1655 = vunpack.c.l.b16 %v1623
    %v1656 = vunpack.c.l.b16 %v1624
    %v1657 = vunpack.c.l.b16 %v1625
    %v1658 = vunpack.c.l.b16 %v1626
    %v1659 = vunpack.c.l.b16 %v1627
    %v1660 = vunpack.c.l.b16 %v1628
    %v1661 = vunpack.c.l.b16 %v1629
    %v1662 = vunpack.c.l.b16 %v1630
    %v1663 = vunpack.c.l.b16 %v1631
    %v1664 = vunpack.c.l.b16 %v1632
    %v1665 = vunpack.c.l.b16 %v1633
    %v1666 = vunpack.c.l.b16 %v1634
    %v1667 = vunpack.c.l.b16 %v1635
    %v1668 = vunpack.c.l.b16 %v1636
    %v1669 = vunpack.c.l.b16 %v1637
    %v1670 = vunpack.c.l.b16 %v1638
    %v1671 = vpack.c.b16 %v1656, %v1655
    %v1672 = vpack.c.b16 %v1658, %v1657
    %v1673 = vpack.c.b16 %v1660, %v1659
    %v1674 = vpack.c.b16 %v1662, %v1661
    %v1675 = vpack.c.b16 %v1664, %v1663
    %v1676 = vpack.c.b16 %v1666, %v1665
    %v1677 = vpack.c.b16 %v1668, %v1667
    %v1678 = vpack.c.b16 %v1670, %v1669
    %1687 = vmatprep.subr.bf16.mxu0 0
    %1688 = vmatpush1.bf16.msra.mxu0 %v1671
    %1689 = vmatprep.subr.bf16.mxu0 0
    %1690 = vmatpush1.bf16.msra.mxu0 %v1672
    %1691 = vmatprep.subr.bf16.mxu0 0
    %1692 = vmatpush1.bf16.msra.mxu0 %v1673
    %1693 = vmatprep.subr.bf16.mxu0 0
    %1694 = vmatpush1.bf16.msra.mxu0 %v1674
    %1695 = vmatprep.subr.bf16.mxu0 0
    %1696 = vmatpush1.bf16.msra.mxu0 %v1675
    %1697 = vmatprep.subr.bf16.mxu0 0
    %1698 = vmatpush1.bf16.msra.mxu0 %v1676
    %1699 = vmatprep.subr.bf16.mxu0 0
    %1700 = vmatpush1.bf16.msra.mxu0 %v1677
    %1701 = vmatprep.subr.bf16.mxu0 0
    %1702 = vmatpush1.bf16.msra.mxu0 %v1678
    %1703 = vmatprep.subr.bf16.mxu0 0
    %1704 = vmatpush1.bf16.msra.mxu0 0
    %1705 = vmatprep.subr.bf16.mxu0 0
    %1706 = vmatpush1.bf16.msra.mxu0 0
    %1707 = vmatprep.subr.bf16.mxu0 0
    %1708 = vmatpush1.bf16.msra.mxu0 0
    %1709 = vmatprep.subr.bf16.mxu0 0
    %1710 = vmatpush1.bf16.msra.mxu0 0
    %1711 = vmatprep.subr.bf16.mxu0 0
    %1712 = vmatpush1.bf16.msra.mxu0 0
    %1713 = vmatprep.subr.bf16.mxu0 0
    %1714 = vmatpush1.bf16.msra.mxu0 0
    %1715 = vmatprep.subr.bf16.mxu0 0
    %1716 = vmatpush1.bf16.msra.mxu0 0
    %1717 = vmatprep.subr.bf16.mxu0 0
    %1718 = vmatpush1.bf16.msra.mxu0 0
    %1719 = vmatprep.mubr.bf16.mxu0 0
    %1720 = vmatmul.mubr.bf16.gmra.mrb[0].mxu0 %v1498
    %v1721 = vpop.f32.mrb[0].mxu0
    %v1722 = vadd.f32 0.0, %v1721
    %v1723 = vpop.f32.mrb[0].mxu0
    %v1724 = vpop.f32.mrb[0].mxu0
    %v1725 = vadd.f32 0.0, %v1724
    %v1726 = vpop.f32.mrb[0].mxu0
    %1727 = vdwg.mxu0
    %v1729 = vrot.slane %v1619, 7
    %v1732 = vrot.slane %v1616, 7
    %v1733 = vsel %vm384, %v1732, %v1729
    %v1736 = vsel %vm384, %v1729, %v1732
    %v1737 = vmul.f32 %v149, %v1736
    %v1738 = vmul.f32 %v150, %v1733
    %v1755 = vunpack.c.l.b16 %v1500
    %v1756 = vunpack.c.l.b16 %v1501
    %v1757 = vunpack.c.l.b16 %v1502
    %v1758 = vunpack.c.l.b16 %v1503
    %v1759 = vunpack.c.l.b16 %v1504
    %v1760 = vunpack.c.l.b16 %v1505
    %v1761 = vunpack.c.l.b16 %v1506
    %v1762 = vunpack.c.l.b16 %v1507
    %v1763 = vunpack.c.l.b16 %v1508
    %v1764 = vunpack.c.l.b16 %v1509
    %v1765 = vunpack.c.l.b16 %v1510
    %v1766 = vunpack.c.l.b16 %v1511
    %v1767 = vunpack.c.l.b16 %v1512
    %v1768 = vunpack.c.l.b16 %v1513
    %v1769 = vunpack.c.l.b16 %v1514
    %v1770 = vunpack.c.l.b16 %v1515
    %v1771 = vpack.c.b16 %v1756, %v1755
    %v1772 = vpack.c.b16 %v1758, %v1757
    %v1773 = vpack.c.b16 %v1760, %v1759
    %v1774 = vpack.c.b16 %v1762, %v1761
    %v1775 = vpack.c.b16 %v1764, %v1763
    %v1776 = vpack.c.b16 %v1766, %v1765
    %v1777 = vpack.c.b16 %v1768, %v1767
    %v1778 = vpack.c.b16 %v1770, %v1769
    %1787 = vmatprep.subr.bf16.mxu0 0
    %1788 = vmatpush1.bf16.msra.mxu0 %v1771
    %1789 = vmatprep.subr.bf16.mxu0 0
    %1790 = vmatpush1.bf16.msra.mxu0 %v1772
    %1791 = vmatprep.subr.bf16.mxu0 0
    %1792 = vmatpush1.bf16.msra.mxu0 %v1773
    %1793 = vmatprep.subr.bf16.mxu0 0
    %1794 = vmatpush1.bf16.msra.mxu0 %v1774
    %1795 = vmatprep.subr.bf16.mxu0 0
    %1796 = vmatpush1.bf16.msra.mxu0 %v1775
    %1797 = vmatprep.subr.bf16.mxu0 0
    %1798 = vmatpush1.bf16.msra.mxu0 %v1776
    %1799 = vmatprep.subr.bf16.mxu0 0
    %1800 = vmatpush1.bf16.msra.mxu0 %v1777
    %1801 = vmatprep.subr.bf16.mxu0 0
    %1802 = vmatpush1.bf16.msra.mxu0 %v1778
    %1803 = vmatprep.subr.bf16.mxu0 0
    %1804 = vmatpush1.bf16.msra.mxu0 0
    %1805 = vmatprep.subr.bf16.mxu0 0
    %1806 = vmatpush1.bf16.msra.mxu0 0
    %1807 = vmatprep.subr.bf16.mxu0 0
    %1808 = vmatpush1.bf16.msra.mxu0 0
    %1809 = vmatprep.subr.bf16.mxu0 0
    %1810 = vmatpush1.bf16.msra.mxu0 0
    %1811 = vmatprep.subr.bf16.mxu0 0
    %1812 = vmatpush1.bf16.msra.mxu0 0
    %1813 = vmatprep.subr.bf16.mxu0 0
    %1814 = vmatpush1.bf16.msra.mxu0 0
    %1815 = vmatprep.subr.bf16.mxu0 0
    %1816 = vmatpush1.bf16.msra.mxu0 0
    %1817 = vmatprep.subr.bf16.mxu0 0
    %1818 = vmatpush1.bf16.msra.mxu0 0
    %1819 = vmatprep.mubr.bf16.mxu0 0
    %1820 = vmatmul.mubr.bf16.gmra.mrb[0].mxu0 %v1498
    %v1821 = vpop.f32.mrb[0].mxu0
    %v1822 = vadd.f32 %v1737, %v1821
    %v1823 = vpop.f32.mrb[0].mxu0
    %v1824 = vpop.f32.mrb[0].mxu0
    %v1825 = vadd.f32 %v1738, %v1824
    %v1826 = vpop.f32.mrb[0].mxu0
    %1827 = vdwg.mxu0
    %v1830 = vrot.slane %v1722, 1
    %v1831 = vrot.slane %v1725, 1
    %v1832 = vsel %vm477, %v1830, %v1831
    %v1836 = vsel %vm477, %v1831, %v1830
    %v1837 = vmul.f32 %v155, %v1832
    %v1838 = vmul.f32 %v156, %v1836
    %v1839 = vadd.f32 %v1822, %v1837
    %v1840 = vadd.f32 %v1825, %v1838
    %v1841 = vld [vmem:[#allocation5 + $0x3] sm:$0x1]
    %v1842 = vlaneseq
    %v1843 = vshrl.u32 %v1842, 7
    %v1844 = vsub.s32 0, %v1843
    %v1845 = vrot.slane %v1841, %v1844
    %v1846 = vadd.f32 %v1839, %v1845
    %v1847 = vadd.f32 %v1840, %v1845
    %v1848 = vmax.f32 %v1846, 0.0
    %v1849 = vmax.f32 %v1847, 0.0
    %v1850 = vpack.c.bf16 %v1849, %v1848
    %s1851 = scalar_lea.vmem [#allocation2], 1024
    %v1852 = vld [vmem:[%s1851] sm:$0xf]
    %vm1853 = vcmask 130048
    %v1855 = vsel %vm1853, %v1852, 0
    %1857 = vmatprep.subr.bf16.mxu0 0
    %1858 = vmatpush1.bf16.msra.mxu0 %v1850
    %1859 = vmatprep.subr.bf16.mxu0 0
    %1860 = vmatpush1.bf16.msra.mxu0 0
    %1861 = vmatprep.subr.bf16.mxu0 0
    %1862 = vmatpush1.bf16.msra.mxu0 0
    %1863 = vmatprep.subr.bf16.mxu0 0
    %1864 = vmatpush1.bf16.msra.mxu0 0
    %1865 = vmatprep.subr.bf16.mxu0 0
    %1866 = vmatpush1.bf16.msra.mxu0 0
    %1867 = vmatprep.subr.bf16.mxu0 0
    %1868 = vmatpush1.bf16.msra.mxu0 0
    %1869 = vmatprep.subr.bf16.mxu0 0
    %1870 = vmatpush1.bf16.msra.mxu0 0
    %1871 = vmatprep.subr.bf16.mxu0 0
    %1872 = vmatpush1.bf16.msra.mxu0 0
    %1873 = vmatprep.subr.bf16.mxu0 0
    %1874 = vmatpush1.bf16.msra.mxu0 0
    %1875 = vmatprep.subr.bf16.mxu0 0
    %1876 = vmatpush1.bf16.msra.mxu0 0
    %1877 = vmatprep.subr.bf16.mxu0 0
    %1878 = vmatpush1.bf16.msra.mxu0 0
    %1879 = vmatprep.subr.bf16.mxu0 0
    %1880 = vmatpush1.bf16.msra.mxu0 0
    %1881 = vmatprep.subr.bf16.mxu0 0
    %1882 = vmatpush1.bf16.msra.mxu0 0
    %1883 = vmatprep.subr.bf16.mxu0 0
    %1884 = vmatpush1.bf16.msra.mxu0 0
    %1885 = vmatprep.subr.bf16.mxu0 0
    %1886 = vmatpush1.bf16.msra.mxu0 0
    %1887 = vmatprep.subr.bf16.mxu0 0
    %1888 = vmatpush1.bf16.msra.mxu0 0
    %1889 = vmatprep.mubr.bf16.mxu0 0
    %1890 = vmatmul.mubr.bf16.gmra.mrb[0].mxu0 %v1855
    %v1891 = vpop.f32.mrb[0].mxu0
    %v1892 = vadd.f32 0.0, %v1891
    %v1893 = vpop.f32.mrb[0].mxu0
    %v1894 = vpop.f32.mrb[0].mxu0
    %v1895 = vpop.f32.mrb[0].mxu0
    %1896 = vdwg.mxu0
    %s1897 = scalar_lea.vmem [#allocation2], 1088
    %v1898 = vld [vmem:[%s1897] sm:$0xf]
    %v1900 = vsel %vm1853, %v1898, 0
    %1902 = vmatprep.subr.bf16.mxu0 0
    %1903 = vmatpush1.bf16.msra.mxu0 %v1850
    %1904 = vmatprep.subr.bf16.mxu0 0
    %1905 = vmatpush1.bf16.msra.mxu0 0
    %1906 = vmatprep.subr.bf16.mxu0 0
    %1907 = vmatpush1.bf16.msra.mxu0 0
    %1908 = vmatprep.subr.bf16.mxu0 0
    %1909 = vmatpush1.bf16.msra.mxu0 0
    %1910 = vmatprep.subr.bf16.mxu0 0
    %1911 = vmatpush1.bf16.msra.mxu0 0
    %1912 = vmatprep.subr.bf16.mxu0 0
    %1913 = vmatpush1.bf16.msra.mxu0 0
    %1914 = vmatprep.subr.bf16.mxu0 0
    %1915 = vmatpush1.bf16.msra.mxu0 0
    %1916 = vmatprep.subr.bf16.mxu0 0
    %1917 = vmatpush1.bf16.msra.mxu0 0
    %1918 = vmatprep.subr.bf16.mxu0 0
    %1919 = vmatpush1.bf16.msra.mxu0 0
    %1920 = vmatprep.subr.bf16.mxu0 0
    %1921 = vmatpush1.bf16.msra.mxu0 0
    %1922 = vmatprep.subr.bf16.mxu0 0
    %1923 = vmatpush1.bf16.msra.mxu0 0
    %1924 = vmatprep.subr.bf16.mxu0 0
    %1925 = vmatpush1.bf16.msra.mxu0 0
    %1926 = vmatprep.subr.bf16.mxu0 0
    %1927 = vmatpush1.bf16.msra.mxu0 0
    %1928 = vmatprep.subr.bf16.mxu0 0
    %1929 = vmatpush1.bf16.msra.mxu0 0
    %1930 = vmatprep.subr.bf16.mxu0 0
    %1931 = vmatpush1.bf16.msra.mxu0 0
    %1932 = vmatprep.subr.bf16.mxu0 0
    %1933 = vmatpush1.bf16.msra.mxu0 0
    %1934 = vmatprep.mubr.bf16.mxu0 0
    %1935 = vmatmul.mubr.bf16.gmra.mrb[0].mxu0 %v1900
    %v1936 = vpop.f32.mrb[0].mxu0
    %v1937 = vadd.f32 0.0, %v1936
    %v1938 = vpop.f32.mrb[0].mxu0
    %v1939 = vpop.f32.mrb[0].mxu0
    %v1940 = vpop.f32.mrb[0].mxu0
    %1941 = vdwg.mxu0
    %v1942 = vmax.f32 %v1892, %v1937
    %v1943 = vpack.c.bf16 %v1942, %v1942
    %s1944 = scalar_lea.vmem [#allocation2], 1152
    %v1945 = vld [vmem:[%s1944] sm:$0xf]
    %v1946 = vld [vmem:[%s1944 + $0x4] sm:$0xf]
    %v1947 = vld [vmem:[%s1944 + $0x8] sm:$0xf]
    %v1948 = vld [vmem:[%s1944 + $0xc] sm:$0xf]
    %v1949 = vld [vmem:[%s1944 + $0x10] sm:$0xf]
    %v1950 = vld [vmem:[%s1944 + $0x14] sm:$0xf]
    %v1951 = vld [vmem:[%s1944 + $0x18] sm:$0xf]
    %v1952 = vld [vmem:[%s1944 + $0x1c] sm:$0xf]
    %v1953 = vld [vmem:[%s1944 + $0x20] sm:$0xf]
    %v1954 = vld [vmem:[%s1944 + $0x24] sm:$0xf]
    %v1955 = vld [vmem:[%s1944 + $0x28] sm:$0xf]
    %v1956 = vld [vmem:[%s1944 + $0x2c] sm:$0xf]
    %v1957 = vld [vmem:[%s1944 + $0x30] sm:$0xf]
    %v1958 = vld [vmem:[%s1944 + $0x34] sm:$0xf]
    %v1959 = vld [vmem:[%s1944 + $0x38] sm:$0xf]
    %v1960 = vld [vmem:[%s1944 + $0x3c] sm:$0xf]
    %v1977 = vunpack.c.l.b16 %v1945
    %v1978 = vunpack.c.l.b16 %v1946
    %v1979 = vunpack.c.l.b16 %v1947
    %v1980 = vunpack.c.l.b16 %v1948
    %v1981 = vunpack.c.l.b16 %v1949
    %v1982 = vunpack.c.l.b16 %v1950
    %v1983 = vunpack.c.l.b16 %v1951
    %v1984 = vunpack.c.l.b16 %v1952
    %v1985 = vunpack.c.l.b16 %v1953
    %v1986 = vunpack.c.l.b16 %v1954
    %v1987 = vunpack.c.l.b16 %v1955
    %v1988 = vunpack.c.l.b16 %v1956
    %v1989 = vunpack.c.l.b16 %v1957
    %v1990 = vunpack.c.l.b16 %v1958
    %v1991 = vunpack.c.l.b16 %v1959
    %v1992 = vunpack.c.l.b16 %v1960
    %v1993 = vpack.c.b16 %v1978, %v1977
    %v1994 = vpack.c.b16 %v1980, %v1979
    %v1995 = vpack.c.b16 %v1982, %v1981
    %v1996 = vpack.c.b16 %v1984, %v1983
    %v1997 = vpack.c.b16 %v1986, %v1985
    %v1998 = vpack.c.b16 %v1988, %v1987
    %v1999 = vpack.c.b16 %v1990, %v1989
    %v2000 = vpack.c.b16 %v1992, %v1991
    %2009 = vmatprep.subr.bf16.mxu0 0
    %2010 = vmatpush1.bf16.msra.mxu0 %v1993
    %2011 = vmatprep.subr.bf16.mxu0 0
    %2012 = vmatpush1.bf16.msra.mxu0 %v1994
    %2013 = vmatprep.subr.bf16.mxu0 0
    %2014 = vmatpush1.bf16.msra.mxu0 %v1995
    %2015 = vmatprep.subr.bf16.mxu0 0
    %2016 = vmatpush1.bf16.msra.mxu0 %v1996
    %2017 = vmatprep.subr.bf16.mxu0 0
    %2018 = vmatpush1.bf16.msra.mxu0 %v1997
    %2019 = vmatprep.subr.bf16.mxu0 0
    %2020 = vmatpush1.bf16.msra.mxu0 %v1998
    %2021 = vmatprep.subr.bf16.mxu0 0
    %2022 = vmatpush1.bf16.msra.mxu0 %v1999
    %2023 = vmatprep.subr.bf16.mxu0 0
    %2024 = vmatpush1.bf16.msra.mxu0 %v2000
    %2025 = vmatprep.subr.bf16.mxu0 0
    %2026 = vmatpush1.bf16.msra.mxu0 0
    %2027 = vmatprep.subr.bf16.mxu0 0
    %2028 = vmatpush1.bf16.msra.mxu0 0
    %2029 = vmatprep.subr.bf16.mxu0 0
    %2030 = vmatpush1.bf16.msra.mxu0 0
    %2031 = vmatprep.subr.bf16.mxu0 0
    %2032 = vmatpush1.bf16.msra.mxu0 0
    %2033 = vmatprep.subr.bf16.mxu0 0
    %2034 = vmatpush1.bf16.msra.mxu0 0
    %2035 = vmatprep.subr.bf16.mxu0 0
    %2036 = vmatpush1.bf16.msra.mxu0 0
    %2037 = vmatprep.subr.bf16.mxu0 0
    %2038 = vmatpush1.bf16.msra.mxu0 0
    %2039 = vmatprep.subr.bf16.mxu0 0
    %2040 = vmatpush1.bf16.msra.mxu0 0
    %2041 = vmatprep.mubr.bf16.mxu0 0
    %2042 = vmatmul.mubr.bf16.gmra.mrb[0].mxu0 %v1943
    %v2043 = vpop.f32.mrb[0].mxu0
    %v2044 = vadd.f32 0.0, %v2043
    %v2045 = vpop.f32.mrb[0].mxu0
    %v2046 = vpop.f32.mrb[0].mxu0
    %v2047 = vpop.f32.mrb[0].mxu0
    %2048 = vdwg.mxu0
    %s2049 = scalar_lea.vmem [#allocation2], 1216
    %v2050 = vld [vmem:[%s2049] sm:$0xf]
    %v2051 = vld [vmem:[%s2049 + $0x4] sm:$0xf]
    %v2052 = vld [vmem:[%s2049 + $0x8] sm:$0xf]
    %v2053 = vld [vmem:[%s2049 + $0xc] sm:$0xf]
    %v2054 = vld [vmem:[%s2049 + $0x10] sm:$0xf]
    %v2055 = vld [vmem:[%s2049 + $0x14] sm:$0xf]
    %v2056 = vld [vmem:[%s2049 + $0x18] sm:$0xf]
    %v2057 = vld [vmem:[%s2049 + $0x1c] sm:$0xf]
    %v2058 = vld [vmem:[%s2049 + $0x20] sm:$0xf]
    %v2059 = vld [vmem:[%s2049 + $0x24] sm:$0xf]
    %v2060 = vld [vmem:[%s2049 + $0x28] sm:$0xf]
    %v2061 = vld [vmem:[%s2049 + $0x2c] sm:$0xf]
    %v2062 = vld [vmem:[%s2049 + $0x30] sm:$0xf]
    %v2063 = vld [vmem:[%s2049 + $0x34] sm:$0xf]
    %v2064 = vld [vmem:[%s2049 + $0x38] sm:$0xf]
    %v2065 = vld [vmem:[%s2049 + $0x3c] sm:$0xf]
    %v2082 = vunpack.c.l.b16 %v2050
    %v2083 = vunpack.c.l.b16 %v2051
    %v2084 = vunpack.c.l.b16 %v2052
    %v2085 = vunpack.c.l.b16 %v2053
    %v2086 = vunpack.c.l.b16 %v2054
    %v2087 = vunpack.c.l.b16 %v2055
    %v2088 = vunpack.c.l.b16 %v2056
    %v2089 = vunpack.c.l.b16 %v2057
    %v2090 = vunpack.c.l.b16 %v2058
    %v2091 = vunpack.c.l.b16 %v2059
    %v2092 = vunpack.c.l.b16 %v2060
    %v2093 = vunpack.c.l.b16 %v2061
    %v2094 = vunpack.c.l.b16 %v2062
    %v2095 = vunpack.c.l.b16 %v2063
    %v2096 = vunpack.c.l.b16 %v2064
    %v2097 = vunpack.c.l.b16 %v2065
    %v2098 = vpack.c.b16 %v2083, %v2082
    %v2099 = vpack.c.b16 %v2085, %v2084
    %v2100 = vpack.c.b16 %v2087, %v2086
    %v2101 = vpack.c.b16 %v2089, %v2088
    %v2102 = vpack.c.b16 %v2091, %v2090
    %v2103 = vpack.c.b16 %v2093, %v2092
    %v2104 = vpack.c.b16 %v2095, %v2094
    %v2105 = vpack.c.b16 %v2097, %v2096
    %2114 = vmatprep.subr.bf16.mxu0 0
    %2115 = vmatpush1.bf16.msra.mxu0 %v2098
    %2116 = vmatprep.subr.bf16.mxu0 0
    %2117 = vmatpush1.bf16.msra.mxu0 %v2099
    %2118 = vmatprep.subr.bf16.mxu0 0
    %2119 = vmatpush1.bf16.msra.mxu0 %v2100
    %2120 = vmatprep.subr.bf16.mxu0 0
    %2121 = vmatpush1.bf16.msra.mxu0 %v2101
    %2122 = vmatprep.subr.bf16.mxu0 0
    %2123 = vmatpush1.bf16.msra.mxu0 %v2102
    %2124 = vmatprep.subr.bf16.mxu0 0
    %2125 = vmatpush1.bf16.msra.mxu0 %v2103
    %2126 = vmatprep.subr.bf16.mxu0 0
    %2127 = vmatpush1.bf16.msra.mxu0 %v2104
    %2128 = vmatprep.subr.bf16.mxu0 0
    %2129 = vmatpush1.bf16.msra.mxu0 %v2105
    %2130 = vmatprep.subr.bf16.mxu0 0
    %2131 = vmatpush1.bf16.msra.mxu0 0
    %2132 = vmatprep.subr.bf16.mxu0 0
    %2133 = vmatpush1.bf16.msra.mxu0 0
    %2134 = vmatprep.subr.bf16.mxu0 0
    %2135 = vmatpush1.bf16.msra.mxu0 0
    %2136 = vmatprep.subr.bf16.mxu0 0
    %2137 = vmatpush1.bf16.msra.mxu0 0
    %2138 = vmatprep.subr.bf16.mxu0 0
    %2139 = vmatpush1.bf16.msra.mxu0 0
    %2140 = vmatprep.subr.bf16.mxu0 0
    %2141 = vmatpush1.bf16.msra.mxu0 0
    %2142 = vmatprep.subr.bf16.mxu0 0
    %2143 = vmatpush1.bf16.msra.mxu0 0
    %2144 = vmatprep.subr.bf16.mxu0 0
    %2145 = vmatpush1.bf16.msra.mxu0 0
    %2146 = vmatprep.mubr.bf16.mxu0 0
    %2147 = vmatmul.mubr.bf16.gmra.mrb[0].mxu0 %v1943
    %v2148 = vpop.f32.mrb[0].mxu0
    %v2149 = vadd.f32 0.0, %v2148
    %v2150 = vpop.f32.mrb[0].mxu0
    %v2151 = vpop.f32.mrb[0].mxu0
    %v2152 = vpop.f32.mrb[0].mxu0
    %2153 = vdwg.mxu0
    %v2154 = vmax.f32 %v2044, %v2149
    %v2155 = vpack.c.bf16 %v2154, %v2154
    %s2156 = scalar_lea.vmem [#allocation2], 1344
    %v2157 = vld [vmem:[%s2156] sm:$0xf]
    %v2158 = vld [vmem:[%s2156 + $0x4] sm:$0xf]
    %v2159 = vld [vmem:[%s2156 + $0x8] sm:$0xf]
    %v2160 = vld [vmem:[%s2156 + $0xc] sm:$0xf]
    %v2161 = vld [vmem:[%s2156 + $0x10] sm:$0xf]
    %v2162 = vld [vmem:[%s2156 + $0x14] sm:$0xf]
    %v2163 = vld [vmem:[%s2156 + $0x18] sm:$0xf]
    %v2164 = vld [vmem:[%s2156 + $0x1c] sm:$0xf]
    %s2165 = scalar_lea.vmem [#allocation2], 1280
    %v2166 = vld [vmem:[%s2165] sm:$0xf]
    %v2167 = vld [vmem:[%s2165 + $0x4] sm:$0xf]
    %v2168 = vld [vmem:[%s2165 + $0x8] sm:$0xf]
    %v2169 = vld [vmem:[%s2165 + $0xc] sm:$0xf]
    %v2170 = vld [vmem:[%s2165 + $0x10] sm:$0xf]
    %v2171 = vld [vmem:[%s2165 + $0x14] sm:$0xf]
    %v2172 = vld [vmem:[%s2165 + $0x18] sm:$0xf]
    %v2173 = vld [vmem:[%s2165 + $0x1c] sm:$0xf]
    %v2182 = vunpack.c.l.b16 %v2166
    %v2183 = vunpack.c.l.b16 %v2167
    %v2184 = vunpack.c.l.b16 %v2168
    %v2185 = vunpack.c.l.b16 %v2169
    %v2186 = vunpack.c.l.b16 %v2170
    %v2187 = vunpack.c.l.b16 %v2171
    %v2188 = vunpack.c.l.b16 %v2172
    %v2189 = vunpack.c.l.b16 %v2173
    %v2190 = vpack.c.b16 %v2183, %v2182
    %v2191 = vpack.c.b16 %v2185, %v2184
    %v2192 = vpack.c.b16 %v2187, %v2186
    %v2193 = vpack.c.b16 %v2189, %v2188
    %v2199 = vsel %vm240, %v2155, 0
    %2201 = vmatprep.subr.bf16.mxu0 0
    %2202 = vmatpush1.bf16.msra.mxu0 %v2190
    %2203 = vmatprep.subr.bf16.mxu0 0
    %2204 = vmatpush1.bf16.msra.mxu0 %v2191
    %2205 = vmatprep.subr.bf16.mxu0 0
    %2206 = vmatpush1.bf16.msra.mxu0 %v2192
    %2207 = vmatprep.subr.bf16.mxu0 0
    %2208 = vmatpush1.bf16.msra.mxu0 %v2193
    %2209 = vmatprep.subr.bf16.mxu0 0
    %2210 = vmatpush1.bf16.msra.mxu0 0
    %2211 = vmatprep.subr.bf16.mxu0 0
    %2212 = vmatpush1.bf16.msra.mxu0 0
    %2213 = vmatprep.subr.bf16.mxu0 0
    %2214 = vmatpush1.bf16.msra.mxu0 0
    %2215 = vmatprep.subr.bf16.mxu0 0
    %2216 = vmatpush1.bf16.msra.mxu0 0
    %2217 = vmatprep.subr.bf16.mxu0 0
    %2218 = vmatpush1.bf16.msra.mxu0 0
    %2219 = vmatprep.subr.bf16.mxu0 0
    %2220 = vmatpush1.bf16.msra.mxu0 0
    %2221 = vmatprep.subr.bf16.mxu0 0
    %2222 = vmatpush1.bf16.msra.mxu0 0
    %2223 = vmatprep.subr.bf16.mxu0 0
    %2224 = vmatpush1.bf16.msra.mxu0 0
    %2225 = vmatprep.subr.bf16.mxu0 0
    %2226 = vmatpush1.bf16.msra.mxu0 0
    %2227 = vmatprep.subr.bf16.mxu0 0
    %2228 = vmatpush1.bf16.msra.mxu0 0
    %2229 = vmatprep.subr.bf16.mxu0 0
    %2230 = vmatpush1.bf16.msra.mxu0 0
    %2231 = vmatprep.subr.bf16.mxu0 0
    %2232 = vmatpush1.bf16.msra.mxu0 0
    %2233 = vmatprep.mubr.bf16.mxu0 0
    %2234 = vmatmul.mubr.bf16.gmra.mrb[0].mxu0 %v2199
    %v2235 = vpop.f32.mrb[0].mxu0
    %v2236 = vadd.f32 0.0, %v2235
    %v2237 = vpop.f32.mrb[0].mxu0
    %v2238 = vpop.f32.mrb[0].mxu0
    %v2239 = vpop.f32.mrb[0].mxu0
    %2240 = vdwg.mxu0
    %s2241 = scalar_lea.vmem [#allocation2], 1408
    %v2242 = vld [vmem:[%s2241] sm:$0xf]
    %v2243 = vld [vmem:[%s2241 + $0x4] sm:$0xf]
    %v2244 = vld [vmem:[%s2241 + $0x8] sm:$0xf]
    %v2245 = vld [vmem:[%s2241 + $0xc] sm:$0xf]
    %v2246 = vld [vmem:[%s2241 + $0x10] sm:$0xf]
    %v2247 = vld [vmem:[%s2241 + $0x14] sm:$0xf]
    %v2248 = vld [vmem:[%s2241 + $0x18] sm:$0xf]
    %v2249 = vld [vmem:[%s2241 + $0x1c] sm:$0xf]
    %v2258 = vunpack.c.l.b16 %v2242
    %v2259 = vunpack.c.l.b16 %v2243
    %v2260 = vunpack.c.l.b16 %v2244
    %v2261 = vunpack.c.l.b16 %v2245
    %v2262 = vunpack.c.l.b16 %v2246
    %v2263 = vunpack.c.l.b16 %v2247
    %v2264 = vunpack.c.l.b16 %v2248
    %v2265 = vunpack.c.l.b16 %v2249
    %v2266 = vpack.c.b16 %v2259, %v2258
    %v2267 = vpack.c.b16 %v2261, %v2260
    %v2268 = vpack.c.b16 %v2263, %v2262
    %v2269 = vpack.c.b16 %v2265, %v2264
    %2274 = vmatprep.subr.bf16.mxu0 0
    %2275 = vmatpush1.bf16.msra.mxu0 %v2266
    %2276 = vmatprep.subr.bf16.mxu0 0
    %2277 = vmatpush1.bf16.msra.mxu0 %v2267
    %2278 = vmatprep.subr.bf16.mxu0 0
    %2279 = vmatpush1.bf16.msra.mxu0 %v2268
    %2280 = vmatprep.subr.bf16.mxu0 0
    %2281 = vmatpush1.bf16.msra.mxu0 %v2269
    %2282 = vmatprep.subr.bf16.mxu0 0
    %2283 = vmatpush1.bf16.msra.mxu0 0
    %2284 = vmatprep.subr.bf16.mxu0 0
    %2285 = vmatpush1.bf16.msra.mxu0 0
    %2286 = vmatprep.subr.bf16.mxu0 0
    %2287 = vmatpush1.bf16.msra.mxu0 0
    %2288 = vmatprep.subr.bf16.mxu0 0
    %2289 = vmatpush1.bf16.msra.mxu0 0
    %2290 = vmatprep.subr.bf16.mxu0 0
    %2291 = vmatpush1.bf16.msra.mxu0 0
    %2292 = vmatprep.subr.bf16.mxu0 0
    %2293 = vmatpush1.bf16.msra.mxu0 0
    %2294 = vmatprep.subr.bf16.mxu0 0
    %2295 = vmatpush1.bf16.msra.mxu0 0
    %2296 = vmatprep.subr.bf16.mxu0 0
    %2297 = vmatpush1.bf16.msra.mxu0 0
    %2298 = vmatprep.subr.bf16.mxu0 0
    %2299 = vmatpush1.bf16.msra.mxu0 0
    %2300 = vmatprep.subr.bf16.mxu0 0
    %2301 = vmatpush1.bf16.msra.mxu0 0
    %2302 = vmatprep.subr.bf16.mxu0 0
    %2303 = vmatpush1.bf16.msra.mxu0 0
    %2304 = vmatprep.subr.bf16.mxu0 0
    %2305 = vmatpush1.bf16.msra.mxu0 0
    %2306 = vmatprep.mubr.bf16.mxu0 0
    %2307 = vmatmul.mubr.bf16.gmra.mrb[0].mxu0 %v2199
    %v2308 = vpop.f32.mrb[0].mxu0
    %v2309 = vadd.f32 0.0, %v2308
    %v2310 = vpop.f32.mrb[0].mxu0
    %v2311 = vpop.f32.mrb[0].mxu0
    %v2312 = vpop.f32.mrb[0].mxu0
    %2313 = vdwg.mxu0
    %v2315 = vrot.slane %v2236, 7
    %v2317 = vsel %vm384, %v2315, %v2315
    %v2318 = vmul.f32 %v171, %v2317
    %v2327 = vunpack.c.l.b16 %v2157
    %v2328 = vunpack.c.l.b16 %v2158
    %v2329 = vunpack.c.l.b16 %v2159
    %v2330 = vunpack.c.l.b16 %v2160
    %v2331 = vunpack.c.l.b16 %v2161
    %v2332 = vunpack.c.l.b16 %v2162
    %v2333 = vunpack.c.l.b16 %v2163
    %v2334 = vunpack.c.l.b16 %v2164
    %v2335 = vpack.c.b16 %v2328, %v2327
    %v2336 = vpack.c.b16 %v2330, %v2329
    %v2337 = vpack.c.b16 %v2332, %v2331
    %v2338 = vpack.c.b16 %v2334, %v2333
    %2343 = vmatprep.subr.bf16.mxu0 0
    %2344 = vmatpush1.bf16.msra.mxu0 %v2335
    %2345 = vmatprep.subr.bf16.mxu0 0
    %2346 = vmatpush1.bf16.msra.mxu0 %v2336
    %2347 = vmatprep.subr.bf16.mxu0 0
    %2348 = vmatpush1.bf16.msra.mxu0 %v2337
    %2349 = vmatprep.subr.bf16.mxu0 0
    %2350 = vmatpush1.bf16.msra.mxu0 %v2338
    %2351 = vmatprep.subr.bf16.mxu0 0
    %2352 = vmatpush1.bf16.msra.mxu0 0
    %2353 = vmatprep.subr.bf16.mxu0 0
    %2354 = vmatpush1.bf16.msra.mxu0 0
    %2355 = vmatprep.subr.bf16.mxu0 0
    %2356 = vmatpush1.bf16.msra.mxu0 0
    %2357 = vmatprep.subr.bf16.mxu0 0
    %2358 = vmatpush1.bf16.msra.mxu0 0
    %2359 = vmatprep.subr.bf16.mxu0 0
    %2360 = vmatpush1.bf16.msra.mxu0 0
    %2361 = vmatprep.subr.bf16.mxu0 0
    %2362 = vmatpush1.bf16.msra.mxu0 0
    %2363 = vmatprep.subr.bf16.mxu0 0
    %2364 = vmatpush1.bf16.msra.mxu0 0
    %2365 = vmatprep.subr.bf16.mxu0 0
    %2366 = vmatpush1.bf16.msra.mxu0 0
    %2367 = vmatprep.subr.bf16.mxu0 0
    %2368 = vmatpush1.bf16.msra.mxu0 0
    %2369 = vmatprep.subr.bf16.mxu0 0
    %2370 = vmatpush1.bf16.msra.mxu0 0
    %2371 = vmatprep.subr.bf16.mxu0 0
    %2372 = vmatpush1.bf16.msra.mxu0 0
    %2373 = vmatprep.subr.bf16.mxu0 0
    %2374 = vmatpush1.bf16.msra.mxu0 0
    %2375 = vmatprep.mubr.bf16.mxu0 0
    %2376 = vmatmul.mubr.bf16.gmra.mrb[0].mxu0 %v2199
    %v2377 = vpop.f32.mrb[0].mxu0
    %v2378 = vadd.f32 %v2318, %v2377
    %v2379 = vpop.f32.mrb[0].mxu0
    %v2380 = vpop.f32.mrb[0].mxu0
    %v2381 = vpop.f32.mrb[0].mxu0
    %2382 = vdwg.mxu0
    %v2384 = vrot.slane %v2309, 1
    %v2386 = vsel %vm477, %v2384, %v2384
    %v2387 = vmul.f32 %v174, %v2386
    %v2388 = vadd.f32 %v2378, %v2387
    %v2389 = vld [vmem:[#allocation5 + $0x4] sm:$0x1]
    %v2390 = vlaneseq
    %v2391 = vshrl.u32 %v2390, 7
    %v2392 = vsub.s32 0, %v2391
    %v2393 = vrot.slane %v2389, %v2392
    %v2394 = vadd.f32 %v2388, %v2393
    %v2395 = vmax.f32 %v2394, 0.0
    %v2396 = vpack.c.bf16 %v2395, %v2395
    %s2397 = scalar_lea.vmem [#allocation2], 1536
    %v2398 = vld [vmem:[%s2397] sm:$0xf]
    %v2399 = vld [vmem:[%s2397 + $0x4] sm:$0xf]
    %v2400 = vld [vmem:[%s2397 + $0x8] sm:$0xf]
    %v2401 = vld [vmem:[%s2397 + $0xc] sm:$0xf]
    %v2402 = vld [vmem:[%s2397 + $0x10] sm:$0xf]
    %v2403 = vld [vmem:[%s2397 + $0x14] sm:$0xf]
    %v2404 = vld [vmem:[%s2397 + $0x18] sm:$0xf]
    %v2405 = vld [vmem:[%s2397 + $0x1c] sm:$0xf]
    %v2406 = vld [vmem:[%s2397 + $0x20] sm:$0xf]
    %v2407 = vld [vmem:[%s2397 + $0x24] sm:$0xf]
    %v2408 = vld [vmem:[%s2397 + $0x28] sm:$0xf]
    %v2409 = vld [vmem:[%s2397 + $0x2c] sm:$0xf]
    %v2410 = vld [vmem:[%s2397 + $0x30] sm:$0xf]
    %v2411 = vld [vmem:[%s2397 + $0x34] sm:$0xf]
    %v2412 = vld [vmem:[%s2397 + $0x38] sm:$0xf]
    %v2413 = vld [vmem:[%s2397 + $0x3c] sm:$0xf]
    %s2414 = scalar_lea.vmem [#allocation2], 1472
    %v2415 = vld [vmem:[%s2414] sm:$0xf]
    %v2416 = vld [vmem:[%s2414 + $0x4] sm:$0xf]
    %v2417 = vld [vmem:[%s2414 + $0x8] sm:$0xf]
    %v2418 = vld [vmem:[%s2414 + $0xc] sm:$0xf]
    %v2419 = vld [vmem:[%s2414 + $0x10] sm:$0xf]
    %v2420 = vld [vmem:[%s2414 + $0x14] sm:$0xf]
    %v2421 = vld [vmem:[%s2414 + $0x18] sm:$0xf]
    %v2422 = vld [vmem:[%s2414 + $0x1c] sm:$0xf]
    %v2423 = vld [vmem:[%s2414 + $0x20] sm:$0xf]
    %v2424 = vld [vmem:[%s2414 + $0x24] sm:$0xf]
    %v2425 = vld [vmem:[%s2414 + $0x28] sm:$0xf]
    %v2426 = vld [vmem:[%s2414 + $0x2c] sm:$0xf]
    %v2427 = vld [vmem:[%s2414 + $0x30] sm:$0xf]
    %v2428 = vld [vmem:[%s2414 + $0x34] sm:$0xf]
    %v2429 = vld [vmem:[%s2414 + $0x38] sm:$0xf]
    %v2430 = vld [vmem:[%s2414 + $0x3c] sm:$0xf]
    %v2447 = vunpack.c.l.b16 %v2415
    %v2448 = vunpack.c.l.b16 %v2416
    %v2449 = vunpack.c.l.b16 %v2417
    %v2450 = vunpack.c.l.b16 %v2418
    %v2451 = vunpack.c.l.b16 %v2419
    %v2452 = vunpack.c.l.b16 %v2420
    %v2453 = vunpack.c.l.b16 %v2421
    %v2454 = vunpack.c.l.b16 %v2422
    %v2455 = vunpack.c.l.b16 %v2423
    %v2456 = vunpack.c.l.b16 %v2424
    %v2457 = vunpack.c.l.b16 %v2425
    %v2458 = vunpack.c.l.b16 %v2426
    %v2459 = vunpack.c.l.b16 %v2427
    %v2460 = vunpack.c.l.b16 %v2428
    %v2461 = vunpack.c.l.b16 %v2429
    %v2462 = vunpack.c.l.b16 %v2430
    %v2463 = vpack.c.b16 %v2448, %v2447
    %v2464 = vpack.c.b16 %v2450, %v2449
    %v2465 = vpack.c.b16 %v2452, %v2451
    %v2466 = vpack.c.b16 %v2454, %v2453
    %v2467 = vpack.c.b16 %v2456, %v2455
    %v2468 = vpack.c.b16 %v2458, %v2457
    %v2469 = vpack.c.b16 %v2460, %v2459
    %v2470 = vpack.c.b16 %v2462, %v2461
    %2479 = vmatprep.subr.bf16.mxu0 0
    %2480 = vmatpush1.bf16.msra.mxu0 %v2463
    %2481 = vmatprep.subr.bf16.mxu0 0
    %2482 = vmatpush1.bf16.msra.mxu0 %v2464
    %2483 = vmatprep.subr.bf16.mxu0 0
    %2484 = vmatpush1.bf16.msra.mxu0 %v2465
    %2485 = vmatprep.subr.bf16.mxu0 0
    %2486 = vmatpush1.bf16.msra.mxu0 %v2466
    %2487 = vmatprep.subr.bf16.mxu0 0
    %2488 = vmatpush1.bf16.msra.mxu0 %v2467
    %2489 = vmatprep.subr.bf16.mxu0 0
    %2490 = vmatpush1.bf16.msra.mxu0 %v2468
    %2491 = vmatprep.subr.bf16.mxu0 0
    %2492 = vmatpush1.bf16.msra.mxu0 %v2469
    %2493 = vmatprep.subr.bf16.mxu0 0
    %2494 = vmatpush1.bf16.msra.mxu0 %v2470
    %2495 = vmatprep.subr.bf16.mxu0 0
    %2496 = vmatpush1.bf16.msra.mxu0 0
    %2497 = vmatprep.subr.bf16.mxu0 0
    %2498 = vmatpush1.bf16.msra.mxu0 0
    %2499 = vmatprep.subr.bf16.mxu0 0
    %2500 = vmatpush1.bf16.msra.mxu0 0
    %2501 = vmatprep.subr.bf16.mxu0 0
    %2502 = vmatpush1.bf16.msra.mxu0 0
    %2503 = vmatprep.subr.bf16.mxu0 0
    %2504 = vmatpush1.bf16.msra.mxu0 0
    %2505 = vmatprep.subr.bf16.mxu0 0
    %2506 = vmatpush1.bf16.msra.mxu0 0
    %2507 = vmatprep.subr.bf16.mxu0 0
    %2508 = vmatpush1.bf16.msra.mxu0 0
    %2509 = vmatprep.subr.bf16.mxu0 0
    %2510 = vmatpush1.bf16.msra.mxu0 0
    %2511 = vmatprep.mubr.bf16.mxu0 0
    %2512 = vmatmul.mubr.bf16.gmra.mrb[0].mxu0 %v2396
    %v2513 = vpop.f32.mrb[0].mxu0
    %v2514 = vadd.f32 0.0, %v2513
    %v2515 = vpop.f32.mrb[0].mxu0
    %v2516 = vpop.f32.mrb[0].mxu0
    %v2517 = vpop.f32.mrb[0].mxu0
    %2518 = vdwg.mxu0
    %s2519 = scalar_lea.vmem [#allocation2], 1600
    %v2520 = vld [vmem:[%s2519] sm:$0xf]
    %v2521 = vld [vmem:[%s2519 + $0x4] sm:$0xf]
    %v2522 = vld [vmem:[%s2519 + $0x8] sm:$0xf]
    %v2523 = vld [vmem:[%s2519 + $0xc] sm:$0xf]
    %v2524 = vld [vmem:[%s2519 + $0x10] sm:$0xf]
    %v2525 = vld [vmem:[%s2519 + $0x14] sm:$0xf]
    %v2526 = vld [vmem:[%s2519 + $0x18] sm:$0xf]
    %v2527 = vld [vmem:[%s2519 + $0x1c] sm:$0xf]
    %v2528 = vld [vmem:[%s2519 + $0x20] sm:$0xf]
    %v2529 = vld [vmem:[%s2519 + $0x24] sm:$0xf]
    %v2530 = vld [vmem:[%s2519 + $0x28] sm:$0xf]
    %v2531 = vld [vmem:[%s2519 + $0x2c] sm:$0xf]
    %v2532 = vld [vmem:[%s2519 + $0x30] sm:$0xf]
    %v2533 = vld [vmem:[%s2519 + $0x34] sm:$0xf]
    %v2534 = vld [vmem:[%s2519 + $0x38] sm:$0xf]
    %v2535 = vld [vmem:[%s2519 + $0x3c] sm:$0xf]
    %v2552 = vunpack.c.l.b16 %v2520
    %v2553 = vunpack.c.l.b16 %v2521
    %v2554 = vunpack.c.l.b16 %v2522
    %v2555 = vunpack.c.l.b16 %v2523
    %v2556 = vunpack.c.l.b16 %v2524
    %v2557 = vunpack.c.l.b16 %v2525
    %v2558 = vunpack.c.l.b16 %v2526
    %v2559 = vunpack.c.l.b16 %v2527
    %v2560 = vunpack.c.l.b16 %v2528
    %v2561 = vunpack.c.l.b16 %v2529
    %v2562 = vunpack.c.l.b16 %v2530
    %v2563 = vunpack.c.l.b16 %v2531
    %v2564 = vunpack.c.l.b16 %v2532
    %v2565 = vunpack.c.l.b16 %v2533
    %v2566 = vunpack.c.l.b16 %v2534
    %v2567 = vunpack.c.l.b16 %v2535
    %v2568 = vpack.c.b16 %v2553, %v2552
    %v2569 = vpack.c.b16 %v2555, %v2554
    %v2570 = vpack.c.b16 %v2557, %v2556
    %v2571 = vpack.c.b16 %v2559, %v2558
    %v2572 = vpack.c.b16 %v2561, %v2560
    %v2573 = vpack.c.b16 %v2563, %v2562
    %v2574 = vpack.c.b16 %v2565, %v2564
    %v2575 = vpack.c.b16 %v2567, %v2566
    %2584 = vmatprep.subr.bf16.mxu0 0
    %2585 = vmatpush1.bf16.msra.mxu0 %v2568
    %2586 = vmatprep.subr.bf16.mxu0 0
    %2587 = vmatpush1.bf16.msra.mxu0 %v2569
    %2588 = vmatprep.subr.bf16.mxu0 0
    %2589 = vmatpush1.bf16.msra.mxu0 %v2570
    %2590 = vmatprep.subr.bf16.mxu0 0
    %2591 = vmatpush1.bf16.msra.mxu0 %v2571
    %2592 = vmatprep.subr.bf16.mxu0 0
    %2593 = vmatpush1.bf16.msra.mxu0 %v2572
    %2594 = vmatprep.subr.bf16.mxu0 0
    %2595 = vmatpush1.bf16.msra.mxu0 %v2573
    %2596 = vmatprep.subr.bf16.mxu0 0
    %2597 = vmatpush1.bf16.msra.mxu0 %v2574
    %2598 = vmatprep.subr.bf16.mxu0 0
    %2599 = vmatpush1.bf16.msra.mxu0 %v2575
    %2600 = vmatprep.subr.bf16.mxu0 0
    %2601 = vmatpush1.bf16.msra.mxu0 0
    %2602 = vmatprep.subr.bf16.mxu0 0
    %2603 = vmatpush1.bf16.msra.mxu0 0
    %2604 = vmatprep.subr.bf16.mxu0 0
    %2605 = vmatpush1.bf16.msra.mxu0 0
    %2606 = vmatprep.subr.bf16.mxu0 0
    %2607 = vmatpush1.bf16.msra.mxu0 0
    %2608 = vmatprep.subr.bf16.mxu0 0
    %2609 = vmatpush1.bf16.msra.mxu0 0
    %2610 = vmatprep.subr.bf16.mxu0 0
    %2611 = vmatpush1.bf16.msra.mxu0 0
    %2612 = vmatprep.subr.bf16.mxu0 0
    %2613 = vmatpush1.bf16.msra.mxu0 0
    %2614 = vmatprep.subr.bf16.mxu0 0
    %2615 = vmatpush1.bf16.msra.mxu0 0
    %2616 = vmatprep.mubr.bf16.mxu0 0
    %2617 = vmatmul.mubr.bf16.gmra.mrb[0].mxu0 %v2396
    %v2618 = vpop.f32.mrb[0].mxu0
    %v2619 = vadd.f32 0.0, %v2618
    %v2620 = vpop.f32.mrb[0].mxu0
    %v2621 = vpop.f32.mrb[0].mxu0
    %v2622 = vpop.f32.mrb[0].mxu0
    %2623 = vdwg.mxu0
    %v2625 = vrot.slane %v2514, 7
    %v2627 = vsel %vm384, %v2625, %v2625
    %v2628 = vmul.f32 %v171, %v2627
    %v2645 = vunpack.c.l.b16 %v2398
    %v2646 = vunpack.c.l.b16 %v2399
    %v2647 = vunpack.c.l.b16 %v2400
    %v2648 = vunpack.c.l.b16 %v2401
    %v2649 = vunpack.c.l.b16 %v2402
    %v2650 = vunpack.c.l.b16 %v2403
    %v2651 = vunpack.c.l.b16 %v2404
    %v2652 = vunpack.c.l.b16 %v2405
    %v2653 = vunpack.c.l.b16 %v2406
    %v2654 = vunpack.c.l.b16 %v2407
    %v2655 = vunpack.c.l.b16 %v2408
    %v2656 = vunpack.c.l.b16 %v2409
    %v2657 = vunpack.c.l.b16 %v2410
    %v2658 = vunpack.c.l.b16 %v2411
    %v2659 = vunpack.c.l.b16 %v2412
    %v2660 = vunpack.c.l.b16 %v2413
    %v2661 = vpack.c.b16 %v2646, %v2645
    %v2662 = vpack.c.b16 %v2648, %v2647
    %v2663 = vpack.c.b16 %v2650, %v2649
    %v2664 = vpack.c.b16 %v2652, %v2651
    %v2665 = vpack.c.b16 %v2654, %v2653
    %v2666 = vpack.c.b16 %v2656, %v2655
    %v2667 = vpack.c.b16 %v2658, %v2657
    %v2668 = vpack.c.b16 %v2660, %v2659
    %2677 = vmatprep.subr.bf16.mxu0 0
    %2678 = vmatpush1.bf16.msra.mxu0 %v2661
    %2679 = vmatprep.subr.bf16.mxu0 0
    %2680 = vmatpush1.bf16.msra.mxu0 %v2662
    %2681 = vmatprep.subr.bf16.mxu0 0
    %2682 = vmatpush1.bf16.msra.mxu0 %v2663
    %2683 = vmatprep.subr.bf16.mxu0 0
    %2684 = vmatpush1.bf16.msra.mxu0 %v2664
    %2685 = vmatprep.subr.bf16.mxu0 0
    %2686 = vmatpush1.bf16.msra.mxu0 %v2665
    %2687 = vmatprep.subr.bf16.mxu0 0
    %2688 = vmatpush1.bf16.msra.mxu0 %v2666
    %2689 = vmatprep.subr.bf16.mxu0 0
    %2690 = vmatpush1.bf16.msra.mxu0 %v2667
    %2691 = vmatprep.subr.bf16.mxu0 0
    %2692 = vmatpush1.bf16.msra.mxu0 %v2668
    %2693 = vmatprep.subr.bf16.mxu0 0
    %2694 = vmatpush1.bf16.msra.mxu0 0
    %2695 = vmatprep.subr.bf16.mxu0 0
    %2696 = vmatpush1.bf16.msra.mxu0 0
    %2697 = vmatprep.subr.bf16.mxu0 0
    %2698 = vmatpush1.bf16.msra.mxu0 0
    %2699 = vmatprep.subr.bf16.mxu0 0
    %2700 = vmatpush1.bf16.msra.mxu0 0
    %2701 = vmatprep.subr.bf16.mxu0 0
    %2702 = vmatpush1.bf16.msra.mxu0 0
    %2703 = vmatprep.subr.bf16.mxu0 0
    %2704 = vmatpush1.bf16.msra.mxu0 0
    %2705 = vmatprep.subr.bf16.mxu0 0
    %2706 = vmatpush1.bf16.msra.mxu0 0
    %2707 = vmatprep.subr.bf16.mxu0 0
    %2708 = vmatpush1.bf16.msra.mxu0 0
    %2709 = vmatprep.mubr.bf16.mxu0 0
    %2710 = vmatmul.mubr.bf16.gmra.mrb[0].mxu0 %v2396
    %v2711 = vpop.f32.mrb[0].mxu0
    %v2712 = vadd.f32 %v2628, %v2711
    %v2713 = vpop.f32.mrb[0].mxu0
    %v2714 = vpop.f32.mrb[0].mxu0
    %v2715 = vpop.f32.mrb[0].mxu0
    %2716 = vdwg.mxu0
    %v2718 = vrot.slane %v2619, 1
    %v2720 = vsel %vm477, %v2718, %v2718
    %v2721 = vmul.f32 %v174, %v2720
    %v2722 = vadd.f32 %v2712, %v2721
    %v2723 = vld [vmem:[#allocation5 + $0x5] sm:$0x1]
    %v2724 = vlaneseq
    %v2725 = vshrl.u32 %v2724, 7
    %v2726 = vsub.s32 0, %v2725
    %v2727 = vrot.slane %v2723, %v2726
    %v2728 = vadd.f32 %v2722, %v2727
    %v2729 = vmax.f32 %v2728, 0.0
    %v2730 = vpack.c.bf16 %v2729, %v2729
    %s2731 = scalar_lea.vmem [#allocation2], 1664
    %v2732 = vld [vmem:[%s2731] sm:$0xf]
    %vm2733 = vcmask 64512
    %v2735 = vsel %vm2733, %v2732, 0
    %vm2737 = vcmask 1043456
    %v2739 = vsel %vm2737, %v2730, 0
    %2741 = vmatprep.subr.bf16.mxu0 0
    %2742 = vmatpush1.bf16.msra.mxu0 %v2739
    %2743 = vmatprep.subr.bf16.mxu0 0
    %2744 = vmatpush1.bf16.msra.mxu0 0
    %2745 = vmatprep.subr.bf16.mxu0 0
    %2746 = vmatpush1.bf16.msra.mxu0 0
    %2747 = vmatprep.subr.bf16.mxu0 0
    %2748 = vmatpush1.bf16.msra.mxu0 0
    %2749 = vmatprep.subr.bf16.mxu0 0
    %2750 = vmatpush1.bf16.msra.mxu0 0
    %2751 = vmatprep.subr.bf16.mxu0 0
    %2752 = vmatpush1.bf16.msra.mxu0 0
    %2753 = vmatprep.subr.bf16.mxu0 0
    %2754 = vmatpush1.bf16.msra.mxu0 0
    %2755 = vmatprep.subr.bf16.mxu0 0
    %2756 = vmatpush1.bf16.msra.mxu0 0
    %2757 = vmatprep.subr.bf16.mxu0 0
    %2758 = vmatpush1.bf16.msra.mxu0 0
    %2759 = vmatprep.subr.bf16.mxu0 0
    %2760 = vmatpush1.bf16.msra.mxu0 0
    %2761 = vmatprep.subr.bf16.mxu0 0
    %2762 = vmatpush1.bf16.msra.mxu0 0
    %2763 = vmatprep.subr.bf16.mxu0 0
    %2764 = vmatpush1.bf16.msra.mxu0 0
    %2765 = vmatprep.subr.bf16.mxu0 0
    %2766 = vmatpush1.bf16.msra.mxu0 0
    %2767 = vmatprep.subr.bf16.mxu0 0
    %2768 = vmatpush1.bf16.msra.mxu0 0
    %2769 = vmatprep.subr.bf16.mxu0 0
    %2770 = vmatpush1.bf16.msra.mxu0 0
    %2771 = vmatprep.subr.bf16.mxu0 0
    %2772 = vmatpush1.bf16.msra.mxu0 0
    %2773 = vmatprep.mubr.bf16.mxu0 0
    %2774 = vmatmul.mubr.bf16.gmra.mrb[0].mxu0 %v2735
    %v2775 = vpop.f32.mrb[0].mxu0
    %v2776 = vadd.f32 0.0, %v2775
    %v2777 = vpop.f32.mrb[0].mxu0
    %v2778 = vpop.f32.mrb[0].mxu0
    %v2779 = vpop.f32.mrb[0].mxu0
    %2780 = vdwg.mxu0
    %s2781 = scalar_lea.vmem [#allocation2], 1728
    %v2782 = vld [vmem:[%s2781] sm:$0xf]
    %v2784 = vsel %vm2733, %v2782, 0
    %2786 = vmatprep.subr.bf16.mxu0 0
    %2787 = vmatpush1.bf16.msra.mxu0 %v2739
    %2788 = vmatprep.subr.bf16.mxu0 0
    %2789 = vmatpush1.bf16.msra.mxu0 0
    %2790 = vmatprep.subr.bf16.mxu0 0
    %2791 = vmatpush1.bf16.msra.mxu0 0
    %2792 = vmatprep.subr.bf16.mxu0 0
    %2793 = vmatpush1.bf16.msra.mxu0 0
    %2794 = vmatprep.subr.bf16.mxu0 0
    %2795 = vmatpush1.bf16.msra.mxu0 0
    %2796 = vmatprep.subr.bf16.mxu0 0
    %2797 = vmatpush1.bf16.msra.mxu0 0
    %2798 = vmatprep.subr.bf16.mxu0 0
    %2799 = vmatpush1.bf16.msra.mxu0 0
    %2800 = vmatprep.subr.bf16.mxu0 0
    %2801 = vmatpush1.bf16.msra.mxu0 0
    %2802 = vmatprep.subr.bf16.mxu0 0
    %2803 = vmatpush1.bf16.msra.mxu0 0
    %2804 = vmatprep.subr.bf16.mxu0 0
    %2805 = vmatpush1.bf16.msra.mxu0 0
    %2806 = vmatprep.subr.bf16.mxu0 0
    %2807 = vmatpush1.bf16.msra.mxu0 0
    %2808 = vmatprep.subr.bf16.mxu0 0
    %2809 = vmatpush1.bf16.msra.mxu0 0
    %2810 = vmatprep.subr.bf16.mxu0 0
    %2811 = vmatpush1.bf16.msra.mxu0 0
    %2812 = vmatprep.subr.bf16.mxu0 0
    %2813 = vmatpush1.bf16.msra.mxu0 0
    %2814 = vmatprep.subr.bf16.mxu0 0
    %2815 = vmatpush1.bf16.msra.mxu0 0
    %2816 = vmatprep.subr.bf16.mxu0 0
    %2817 = vmatpush1.bf16.msra.mxu0 0
    %2818 = vmatprep.mubr.bf16.mxu0 0
    %2819 = vmatmul.mubr.bf16.gmra.mrb[0].mxu0 %v2784
    %v2820 = vpop.f32.mrb[0].mxu0
    %v2821 = vadd.f32 0.0, %v2820
    %v2822 = vpop.f32.mrb[0].mxu0
    %v2823 = vpop.f32.mrb[0].mxu0
    %v2824 = vpop.f32.mrb[0].mxu0
    %2825 = vdwg.mxu0
    %v2826 = vmax.f32 %v2776, %v2821
    %v2827 = vpack.c.bf16 %v2826, %v2826
    %s2828 = scalar_lea.vmem [#allocation2], 1792
    %v2829 = vld [vmem:[%s2828] sm:$0xf]
    %v2830 = vld [vmem:[%s2828 + $0x4] sm:$0xf]
    %v2831 = vld [vmem:[%s2828 + $0x8] sm:$0xf]
    %v2832 = vld [vmem:[%s2828 + $0xc] sm:$0xf]
    %v2833 = vld [vmem:[%s2828 + $0x10] sm:$0xf]
    %v2834 = vld [vmem:[%s2828 + $0x14] sm:$0xf]
    %v2835 = vld [vmem:[%s2828 + $0x18] sm:$0xf]
    %v2836 = vld [vmem:[%s2828 + $0x1c] sm:$0xf]
    %v2837 = vld [vmem:[%s2828 + $0x20] sm:$0xf]
    %v2838 = vld [vmem:[%s2828 + $0x24] sm:$0xf]
    %v2839 = vld [vmem:[%s2828 + $0x28] sm:$0xf]
    %v2840 = vld [vmem:[%s2828 + $0x2c] sm:$0xf]
    %v2841 = vld [vmem:[%s2828 + $0x30] sm:$0xf]
    %v2842 = vld [vmem:[%s2828 + $0x34] sm:$0xf]
    %v2843 = vld [vmem:[%s2828 + $0x38] sm:$0xf]
    %v2844 = vld [vmem:[%s2828 + $0x3c] sm:$0xf]
    %v2861 = vunpack.c.l.b16 %v2829
    %v2862 = vunpack.c.l.b16 %v2830
    %v2863 = vunpack.c.l.b16 %v2831
    %v2864 = vunpack.c.l.b16 %v2832
    %v2865 = vunpack.c.l.b16 %v2833
    %v2866 = vunpack.c.l.b16 %v2834
    %v2867 = vunpack.c.l.b16 %v2835
    %v2868 = vunpack.c.l.b16 %v2836
    %v2869 = vunpack.c.l.b16 %v2837
    %v2870 = vunpack.c.l.b16 %v2838
    %v2871 = vunpack.c.l.b16 %v2839
    %v2872 = vunpack.c.l.b16 %v2840
    %v2873 = vunpack.c.l.b16 %v2841
    %v2874 = vunpack.c.l.b16 %v2842
    %v2875 = vunpack.c.l.b16 %v2843
    %v2876 = vunpack.c.l.b16 %v2844
    %v2877 = vpack.c.b16 %v2862, %v2861
    %v2878 = vpack.c.b16 %v2864, %v2863
    %v2879 = vpack.c.b16 %v2866, %v2865
    %v2880 = vpack.c.b16 %v2868, %v2867
    %v2881 = vpack.c.b16 %v2870, %v2869
    %v2882 = vpack.c.b16 %v2872, %v2871
    %v2883 = vpack.c.b16 %v2874, %v2873
    %v2884 = vpack.c.b16 %v2876, %v2875
    %2893 = vmatprep.subr.bf16.mxu0 0
    %2894 = vmatpush1.bf16.msra.mxu0 %v2877
    %2895 = vmatprep.subr.bf16.mxu0 0
    %2896 = vmatpush1.bf16.msra.mxu0 %v2878
    %2897 = vmatprep.subr.bf16.mxu0 0
    %2898 = vmatpush1.bf16.msra.mxu0 %v2879
    %2899 = vmatprep.subr.bf16.mxu0 0
    %2900 = vmatpush1.bf16.msra.mxu0 %v2880
    %2901 = vmatprep.subr.bf16.mxu0 0
    %2902 = vmatpush1.bf16.msra.mxu0 %v2881
    %2903 = vmatprep.subr.bf16.mxu0 0
    %2904 = vmatpush1.bf16.msra.mxu0 %v2882
    %2905 = vmatprep.subr.bf16.mxu0 0
    %2906 = vmatpush1.bf16.msra.mxu0 %v2883
    %2907 = vmatprep.subr.bf16.mxu0 0
    %2908 = vmatpush1.bf16.msra.mxu0 %v2884
    %2909 = vmatprep.subr.bf16.mxu0 0
    %2910 = vmatpush1.bf16.msra.mxu0 0
    %2911 = vmatprep.subr.bf16.mxu0 0
    %2912 = vmatpush1.bf16.msra.mxu0 0
    %2913 = vmatprep.subr.bf16.mxu0 0
    %2914 = vmatpush1.bf16.msra.mxu0 0
    %2915 = vmatprep.subr.bf16.mxu0 0
    %2916 = vmatpush1.bf16.msra.mxu0 0
    %2917 = vmatprep.subr.bf16.mxu0 0
    %2918 = vmatpush1.bf16.msra.mxu0 0
    %2919 = vmatprep.subr.bf16.mxu0 0
    %2920 = vmatpush1.bf16.msra.mxu0 0
    %2921 = vmatprep.subr.bf16.mxu0 0
    %2922 = vmatpush1.bf16.msra.mxu0 0
    %2923 = vmatprep.subr.bf16.mxu0 0
    %2924 = vmatpush1.bf16.msra.mxu0 0
    %2925 = vmatprep.mubr.bf16.mxu0 0
    %2926 = vmatmul.mubr.bf16.gmra.mrb[0].mxu0 %v2827
    %v2927 = vpop.f32.mrb[0].mxu0
    %v2928 = vadd.f32 0.0, %v2927
    %v2929 = vpop.f32.mrb[0].mxu0
    %v2930 = vpop.f32.mrb[0].mxu0
    %v2931 = vpop.f32.mrb[0].mxu0
    %2932 = vdwg.mxu0
    %s2933 = scalar_lea.vmem [#allocation2], 1856
    %v2934 = vld [vmem:[%s2933] sm:$0xf]
    %v2935 = vld [vmem:[%s2933 + $0x4] sm:$0xf]
    %v2936 = vld [vmem:[%s2933 + $0x8] sm:$0xf]
    %v2937 = vld [vmem:[%s2933 + $0xc] sm:$0xf]
    %v2938 = vld [vmem:[%s2933 + $0x10] sm:$0xf]
    %v2939 = vld [vmem:[%s2933 + $0x14] sm:$0xf]
    %v2940 = vld [vmem:[%s2933 + $0x18] sm:$0xf]
    %v2941 = vld [vmem:[%s2933 + $0x1c] sm:$0xf]
    %v2942 = vld [vmem:[%s2933 + $0x20] sm:$0xf]
    %v2943 = vld [vmem:[%s2933 + $0x24] sm:$0xf]
    %v2944 = vld [vmem:[%s2933 + $0x28] sm:$0xf]
    %v2945 = vld [vmem:[%s2933 + $0x2c] sm:$0xf]
    %v2946 = vld [vmem:[%s2933 + $0x30] sm:$0xf]
    %v2947 = vld [vmem:[%s2933 + $0x34] sm:$0xf]
    %v2948 = vld [vmem:[%s2933 + $0x38] sm:$0xf]
    %v2949 = vld [vmem:[%s2933 + $0x3c] sm:$0xf]
    %v2966 = vunpack.c.l.b16 %v2934
    %v2967 = vunpack.c.l.b16 %v2935
    %v2968 = vunpack.c.l.b16 %v2936
    %v2969 = vunpack.c.l.b16 %v2937
    %v2970 = vunpack.c.l.b16 %v2938
    %v2971 = vunpack.c.l.b16 %v2939
    %v2972 = vunpack.c.l.b16 %v2940
    %v2973 = vunpack.c.l.b16 %v2941
    %v2974 = vunpack.c.l.b16 %v2942
    %v2975 = vunpack.c.l.b16 %v2943
    %v2976 = vunpack.c.l.b16 %v2944
    %v2977 = vunpack.c.l.b16 %v2945
    %v2978 = vunpack.c.l.b16 %v2946
    %v2979 = vunpack.c.l.b16 %v2947
    %v2980 = vunpack.c.l.b16 %v2948
    %v2981 = vunpack.c.l.b16 %v2949
    %v2982 = vpack.c.b16 %v2967, %v2966
    %v2983 = vpack.c.b16 %v2969, %v2968
    %v2984 = vpack.c.b16 %v2971, %v2970
    %v2985 = vpack.c.b16 %v2973, %v2972
    %v2986 = vpack.c.b16 %v2975, %v2974
    %v2987 = vpack.c.b16 %v2977, %v2976
    %v2988 = vpack.c.b16 %v2979, %v2978
    %v2989 = vpack.c.b16 %v2981, %v2980
    %2998 = vmatprep.subr.bf16.mxu0 0
    %2999 = vmatpush1.bf16.msra.mxu0 %v2982
    %3000 = vmatprep.subr.bf16.mxu0 0
    %3001 = vmatpush1.bf16.msra.mxu0 %v2983
    %3002 = vmatprep.subr.bf16.mxu0 0
    %3003 = vmatpush1.bf16.msra.mxu0 %v2984
    %3004 = vmatprep.subr.bf16.mxu0 0
    %3005 = vmatpush1.bf16.msra.mxu0 %v2985
    %3006 = vmatprep.subr.bf16.mxu0 0
    %3007 = vmatpush1.bf16.msra.mxu0 %v2986
    %3008 = vmatprep.subr.bf16.mxu0 0
    %3009 = vmatpush1.bf16.msra.mxu0 %v2987
    %3010 = vmatprep.subr.bf16.mxu0 0
    %3011 = vmatpush1.bf16.msra.mxu0 %v2988
    %3012 = vmatprep.subr.bf16.mxu0 0
    %3013 = vmatpush1.bf16.msra.mxu0 %v2989
    %3014 = vmatprep.subr.bf16.mxu0 0
    %3015 = vmatpush1.bf16.msra.mxu0 0
    %3016 = vmatprep.subr.bf16.mxu0 0
    %3017 = vmatpush1.bf16.msra.mxu0 0
    %3018 = vmatprep.subr.bf16.mxu0 0
    %3019 = vmatpush1.bf16.msra.mxu0 0
    %3020 = vmatprep.subr.bf16.mxu0 0
    %3021 = vmatpush1.bf16.msra.mxu0 0
    %3022 = vmatprep.subr.bf16.mxu0 0
    %3023 = vmatpush1.bf16.msra.mxu0 0
    %3024 = vmatprep.subr.bf16.mxu0 0
    %3025 = vmatpush1.bf16.msra.mxu0 0
    %3026 = vmatprep.subr.bf16.mxu0 0
    %3027 = vmatpush1.bf16.msra.mxu0 0
    %3028 = vmatprep.subr.bf16.mxu0 0
    %3029 = vmatpush1.bf16.msra.mxu0 0
    %3030 = vmatprep.mubr.bf16.mxu0 0
    %3031 = vmatmul.mubr.bf16.gmra.mrb[0].mxu0 %v2827
    %v3032 = vpop.f32.mrb[0].mxu0
    %v3033 = vadd.f32 0.0, %v3032
    %v3034 = vpop.f32.mrb[0].mxu0
    %v3035 = vpop.f32.mrb[0].mxu0
    %v3036 = vpop.f32.mrb[0].mxu0
    %3037 = vdwg.mxu0
    %v3038 = vmax.f32 %v2928, %v3033
    %v3039 = vpack.c.bf16 %v3038, %v3038
    %s3040 = scalar_lea.vmem [#allocation2], 1984
    %v3041 = vld [vmem:[%s3040] sm:$0xf]
    %v3042 = vld [vmem:[%s3040 + $0x4] sm:$0xf]
    %v3043 = vld [vmem:[%s3040 + $0x8] sm:$0xf]
    %v3044 = vld [vmem:[%s3040 + $0xc] sm:$0xf]
    %v3045 = vld [vmem:[%s3040 + $0x10] sm:$0xf]
    %v3046 = vld [vmem:[%s3040 + $0x14] sm:$0xf]
    %v3047 = vld [vmem:[%s3040 + $0x18] sm:$0xf]
    %v3048 = vld [vmem:[%s3040 + $0x1c] sm:$0xf]
    %s3049 = scalar_lea.vmem [#allocation2], 1920
    %v3050 = vld [vmem:[%s3049] sm:$0xf]
    %v3051 = vld [vmem:[%s3049 + $0x4] sm:$0xf]
    %v3052 = vld [vmem:[%s3049 + $0x8] sm:$0xf]
    %v3053 = vld [vmem:[%s3049 + $0xc] sm:$0xf]
    %v3054 = vld [vmem:[%s3049 + $0x10] sm:$0xf]
    %v3055 = vld [vmem:[%s3049 + $0x14] sm:$0xf]
    %v3056 = vld [vmem:[%s3049 + $0x18] sm:$0xf]
    %v3057 = vld [vmem:[%s3049 + $0x1c] sm:$0xf]
    %v3066 = vunpack.c.l.b16 %v3050
    %v3067 = vunpack.c.l.b16 %v3051
    %v3068 = vunpack.c.l.b16 %v3052
    %v3069 = vunpack.c.l.b16 %v3053
    %v3070 = vunpack.c.l.b16 %v3054
    %v3071 = vunpack.c.l.b16 %v3055
    %v3072 = vunpack.c.l.b16 %v3056
    %v3073 = vunpack.c.l.b16 %v3057
    %v3074 = vpack.c.b16 %v3067, %v3066
    %v3075 = vpack.c.b16 %v3069, %v3068
    %v3076 = vpack.c.b16 %v3071, %v3070
    %v3077 = vpack.c.b16 %v3073, %v3072
    %v3083 = vsel %vm240, %v3039, 0
    %3085 = vmatprep.subr.bf16.mxu0 0
    %3086 = vmatpush1.bf16.msra.mxu0 %v3074
    %3087 = vmatprep.subr.bf16.mxu0 0
    %3088 = vmatpush1.bf16.msra.mxu0 %v3075
    %3089 = vmatprep.subr.bf16.mxu0 0
    %3090 = vmatpush1.bf16.msra.mxu0 %v3076
    %3091 = vmatprep.subr.bf16.mxu0 0
    %3092 = vmatpush1.bf16.msra.mxu0 %v3077
    %3093 = vmatprep.subr.bf16.mxu0 0
    %3094 = vmatpush1.bf16.msra.mxu0 0
    %3095 = vmatprep.subr.bf16.mxu0 0
    %3096 = vmatpush1.bf16.msra.mxu0 0
    %3097 = vmatprep.subr.bf16.mxu0 0
    %3098 = vmatpush1.bf16.msra.mxu0 0
    %3099 = vmatprep.subr.bf16.mxu0 0
    %3100 = vmatpush1.bf16.msra.mxu0 0
    %3101 = vmatprep.subr.bf16.mxu0 0
    %3102 = vmatpush1.bf16.msra.mxu0 0
    %3103 = vmatprep.subr.bf16.mxu0 0
    %3104 = vmatpush1.bf16.msra.mxu0 0
    %3105 = vmatprep.subr.bf16.mxu0 0
    %3106 = vmatpush1.bf16.msra.mxu0 0
    %3107 = vmatprep.subr.bf16.mxu0 0
    %3108 = vmatpush1.bf16.msra.mxu0 0
    %3109 = vmatprep.subr.bf16.mxu0 0
    %3110 = vmatpush1.bf16.msra.mxu0 0
    %3111 = vmatprep.subr.bf16.mxu0 0
    %3112 = vmatpush1.bf16.msra.mxu0 0
    %3113 = vmatprep.subr.bf16.mxu0 0
    %3114 = vmatpush1.bf16.msra.mxu0 0
    %3115 = vmatprep.subr.bf16.mxu0 0
    %3116 = vmatpush1.bf16.msra.mxu0 0
    %3117 = vmatprep.mubr.bf16.mxu0 0
    %3118 = vmatmul.mubr.bf16.gmra.mrb[0].mxu0 %v3083
    %v3119 = vpop.f32.mrb[0].mxu0
    %v3120 = vadd.f32 0.0, %v3119
    %v3121 = vpop.f32.mrb[0].mxu0
    %v3122 = vpop.f32.mrb[0].mxu0
    %v3123 = vpop.f32.mrb[0].mxu0
    %3124 = vdwg.mxu0
    %s3125 = scalar_lea.vmem [#allocation2], 2048
    %v3126 = vld [vmem:[%s3125] sm:$0xf]
    %v3127 = vld [vmem:[%s3125 + $0x4] sm:$0xf]
    %v3128 = vld [vmem:[%s3125 + $0x8] sm:$0xf]
    %v3129 = vld [vmem:[%s3125 + $0xc] sm:$0xf]
    %v3130 = vld [vmem:[%s3125 + $0x10] sm:$0xf]
    %v3131 = vld [vmem:[%s3125 + $0x14] sm:$0xf]
    %v3132 = vld [vmem:[%s3125 + $0x18] sm:$0xf]
    %v3133 = vld [vmem:[%s3125 + $0x1c] sm:$0xf]
    %v3142 = vunpack.c.l.b16 %v3126
    %v3143 = vunpack.c.l.b16 %v3127
    %v3144 = vunpack.c.l.b16 %v3128
    %v3145 = vunpack.c.l.b16 %v3129
    %v3146 = vunpack.c.l.b16 %v3130
    %v3147 = vunpack.c.l.b16 %v3131
    %v3148 = vunpack.c.l.b16 %v3132
    %v3149 = vunpack.c.l.b16 %v3133
    %v3150 = vpack.c.b16 %v3143, %v3142
    %v3151 = vpack.c.b16 %v3145, %v3144
    %v3152 = vpack.c.b16 %v3147, %v3146
    %v3153 = vpack.c.b16 %v3149, %v3148
    %3158 = vmatprep.subr.bf16.mxu0 0
    %3159 = vmatpush1.bf16.msra.mxu0 %v3150
    %3160 = vmatprep.subr.bf16.mxu0 0
    %3161 = vmatpush1.bf16.msra.mxu0 %v3151
    %3162 = vmatprep.subr.bf16.mxu0 0
    %3163 = vmatpush1.bf16.msra.mxu0 %v3152
    %3164 = vmatprep.subr.bf16.mxu0 0
    %3165 = vmatpush1.bf16.msra.mxu0 %v3153
    %3166 = vmatprep.subr.bf16.mxu0 0
    %3167 = vmatpush1.bf16.msra.mxu0 0
    %3168 = vmatprep.subr.bf16.mxu0 0
    %3169 = vmatpush1.bf16.msra.mxu0 0
    %3170 = vmatprep.subr.bf16.mxu0 0
    %3171 = vmatpush1.bf16.msra.mxu0 0
    %3172 = vmatprep.subr.bf16.mxu0 0
    %3173 = vmatpush1.bf16.msra.mxu0 0
    %3174 = vmatprep.subr.bf16.mxu0 0
    %3175 = vmatpush1.bf16.msra.mxu0 0
    %3176 = vmatprep.subr.bf16.mxu0 0
    %3177 = vmatpush1.bf16.msra.mxu0 0
    %3178 = vmatprep.subr.bf16.mxu0 0
    %3179 = vmatpush1.bf16.msra.mxu0 0
    %3180 = vmatprep.subr.bf16.mxu0 0
    %3181 = vmatpush1.bf16.msra.mxu0 0
    %3182 = vmatprep.subr.bf16.mxu0 0
    %3183 = vmatpush1.bf16.msra.mxu0 0
    %3184 = vmatprep.subr.bf16.mxu0 0
    %3185 = vmatpush1.bf16.msra.mxu0 0
    %3186 = vmatprep.subr.bf16.mxu0 0
    %3187 = vmatpush1.bf16.msra.mxu0 0
    %3188 = vmatprep.subr.bf16.mxu0 0
    %3189 = vmatpush1.bf16.msra.mxu0 0
    %3190 = vmatprep.mubr.bf16.mxu0 0
    %3191 = vmatmul.mubr.bf16.gmra.mrb[0].mxu0 %v3083
    %v3192 = vpop.f32.mrb[0].mxu0
    %v3193 = vadd.f32 0.0, %v3192
    %v3194 = vpop.f32.mrb[0].mxu0
    %v3195 = vpop.f32.mrb[0].mxu0
    %v3196 = vpop.f32.mrb[0].mxu0
    %3197 = vdwg.mxu0
    %v3199 = vrot.slane %v3120, 3
    %v3201 = vrot.slane %v3120, 7
    %v3203 = vsel %vm384, %v3199, %v3201
    %v3204 = vmul.f32 %v189, %v3203
    %v3213 = vunpack.c.l.b16 %v3041
    %v3214 = vunpack.c.l.b16 %v3042
    %v3215 = vunpack.c.l.b16 %v3043
    %v3216 = vunpack.c.l.b16 %v3044
    %v3217 = vunpack.c.l.b16 %v3045
    %v3218 = vunpack.c.l.b16 %v3046
    %v3219 = vunpack.c.l.b16 %v3047
    %v3220 = vunpack.c.l.b16 %v3048
    %v3221 = vpack.c.b16 %v3214, %v3213
    %v3222 = vpack.c.b16 %v3216, %v3215
    %v3223 = vpack.c.b16 %v3218, %v3217
    %v3224 = vpack.c.b16 %v3220, %v3219
    %3229 = vmatprep.subr.bf16.mxu0 0
    %3230 = vmatpush1.bf16.msra.mxu0 %v3221
    %3231 = vmatprep.subr.bf16.mxu0 0
    %3232 = vmatpush1.bf16.msra.mxu0 %v3222
    %3233 = vmatprep.subr.bf16.mxu0 0
    %3234 = vmatpush1.bf16.msra.mxu0 %v3223
    %3235 = vmatprep.subr.bf16.mxu0 0
    %3236 = vmatpush1.bf16.msra.mxu0 %v3224
    %3237 = vmatprep.subr.bf16.mxu0 0
    %3238 = vmatpush1.bf16.msra.mxu0 0
    %3239 = vmatprep.subr.bf16.mxu0 0
    %3240 = vmatpush1.bf16.msra.mxu0 0
    %3241 = vmatprep.subr.bf16.mxu0 0
    %3242 = vmatpush1.bf16.msra.mxu0 0
    %3243 = vmatprep.subr.bf16.mxu0 0
    %3244 = vmatpush1.bf16.msra.mxu0 0
    %3245 = vmatprep.subr.bf16.mxu0 0
    %3246 = vmatpush1.bf16.msra.mxu0 0
    %3247 = vmatprep.subr.bf16.mxu0 0
    %3248 = vmatpush1.bf16.msra.mxu0 0
    %3249 = vmatprep.subr.bf16.mxu0 0
    %3250 = vmatpush1.bf16.msra.mxu0 0
    %3251 = vmatprep.subr.bf16.mxu0 0
    %3252 = vmatpush1.bf16.msra.mxu0 0
    %3253 = vmatprep.subr.bf16.mxu0 0
    %3254 = vmatpush1.bf16.msra.mxu0 0
    %3255 = vmatprep.subr.bf16.mxu0 0
    %3256 = vmatpush1.bf16.msra.mxu0 0
    %3257 = vmatprep.subr.bf16.mxu0 0
    %3258 = vmatpush1.bf16.msra.mxu0 0
    %3259 = vmatprep.subr.bf16.mxu0 0
    %3260 = vmatpush1.bf16.msra.mxu0 0
    %3261 = vmatprep.mubr.bf16.mxu0 0
    %3262 = vmatmul.mubr.bf16.gmra.mrb[0].mxu0 %v3083
    %v3263 = vpop.f32.mrb[0].mxu0
    %v3264 = vadd.f32 %v3204, %v3263
    %v3265 = vpop.f32.mrb[0].mxu0
    %v3266 = vpop.f32.mrb[0].mxu0
    %v3267 = vpop.f32.mrb[0].mxu0
    %3268 = vdwg.mxu0
    %v3270 = vrot.slane %v3193, 1
    %v3272 = vrot.slane %v3193, 5
    %vm3274 = vcmask 1042432
    %v3275 = vsel %vm3274, %v3270, %v3272
    %v3276 = vmul.f32 %v192, %v3275
    %v3277 = vadd.f32 %v3264, %v3276
    %v3278 = vld [vmem:[#allocation5 + $0x6] sm:$0x1]
    %v3279 = vlaneseq
    %v3280 = vshrl.u32 %v3279, 7
    %v3281 = vsub.s32 0, %v3280
    %v3282 = vrot.slane %v3278, %v3281
    %v3283 = vadd.f32 %v3277, %v3282
    %v3284 = vmax.f32 %v3283, 0.0
    %v3285 = vpack.c.bf16 %v3284, %v3284
    %s3286 = scalar_lea.vmem [#allocation2], 2176
    %v3287 = vld [vmem:[%s3286] sm:$0xf]
    %v3288 = vld [vmem:[%s3286 + $0x4] sm:$0xf]
    %v3289 = vld [vmem:[%s3286 + $0x8] sm:$0xf]
    %v3290 = vld [vmem:[%s3286 + $0xc] sm:$0xf]
    %v3291 = vld [vmem:[%s3286 + $0x10] sm:$0xf]
    %v3292 = vld [vmem:[%s3286 + $0x14] sm:$0xf]
    %v3293 = vld [vmem:[%s3286 + $0x18] sm:$0xf]
    %v3294 = vld [vmem:[%s3286 + $0x1c] sm:$0xf]
    %v3295 = vld [vmem:[%s3286 + $0x20] sm:$0xf]
    %v3296 = vld [vmem:[%s3286 + $0x24] sm:$0xf]
    %v3297 = vld [vmem:[%s3286 + $0x28] sm:$0xf]
    %v3298 = vld [vmem:[%s3286 + $0x2c] sm:$0xf]
    %v3299 = vld [vmem:[%s3286 + $0x30] sm:$0xf]
    %v3300 = vld [vmem:[%s3286 + $0x34] sm:$0xf]
    %v3301 = vld [vmem:[%s3286 + $0x38] sm:$0xf]
    %v3302 = vld [vmem:[%s3286 + $0x3c] sm:$0xf]
    %s3303 = scalar_lea.vmem [#allocation2], 2112
    %v3304 = vld [vmem:[%s3303] sm:$0xf]
    %v3305 = vld [vmem:[%s3303 + $0x4] sm:$0xf]
    %v3306 = vld [vmem:[%s3303 + $0x8] sm:$0xf]
    %v3307 = vld [vmem:[%s3303 + $0xc] sm:$0xf]
    %v3308 = vld [vmem:[%s3303 + $0x10] sm:$0xf]
    %v3309 = vld [vmem:[%s3303 + $0x14] sm:$0xf]
    %v3310 = vld [vmem:[%s3303 + $0x18] sm:$0xf]
    %v3311 = vld [vmem:[%s3303 + $0x1c] sm:$0xf]
    %v3312 = vld [vmem:[%s3303 + $0x20] sm:$0xf]
    %v3313 = vld [vmem:[%s3303 + $0x24] sm:$0xf]
    %v3314 = vld [vmem:[%s3303 + $0x28] sm:$0xf]
    %v3315 = vld [vmem:[%s3303 + $0x2c] sm:$0xf]
    %v3316 = vld [vmem:[%s3303 + $0x30] sm:$0xf]
    %v3317 = vld [vmem:[%s3303 + $0x34] sm:$0xf]
    %v3318 = vld [vmem:[%s3303 + $0x38] sm:$0xf]
    %v3319 = vld [vmem:[%s3303 + $0x3c] sm:$0xf]
    %v3336 = vunpack.c.l.b16 %v3304
    %v3337 = vunpack.c.l.b16 %v3305
    %v3338 = vunpack.c.l.b16 %v3306
    %v3339 = vunpack.c.l.b16 %v3307
    %v3340 = vunpack.c.l.b16 %v3308
    %v3341 = vunpack.c.l.b16 %v3309
    %v3342 = vunpack.c.l.b16 %v3310
    %v3343 = vunpack.c.l.b16 %v3311
    %v3344 = vunpack.c.l.b16 %v3312
    %v3345 = vunpack.c.l.b16 %v3313
    %v3346 = vunpack.c.l.b16 %v3314
    %v3347 = vunpack.c.l.b16 %v3315
    %v3348 = vunpack.c.l.b16 %v3316
    %v3349 = vunpack.c.l.b16 %v3317
    %v3350 = vunpack.c.l.b16 %v3318
    %v3351 = vunpack.c.l.b16 %v3319
    %v3352 = vpack.c.b16 %v3337, %v3336
    %v3353 = vpack.c.b16 %v3339, %v3338
    %v3354 = vpack.c.b16 %v3341, %v3340
    %v3355 = vpack.c.b16 %v3343, %v3342
    %v3356 = vpack.c.b16 %v3345, %v3344
    %v3357 = vpack.c.b16 %v3347, %v3346
    %v3358 = vpack.c.b16 %v3349, %v3348
    %v3359 = vpack.c.b16 %v3351, %v3350
    %3368 = vmatprep.subr.bf16.mxu0 0
    %3369 = vmatpush1.bf16.msra.mxu0 %v3352
    %3370 = vmatprep.subr.bf16.mxu0 0
    %3371 = vmatpush1.bf16.msra.mxu0 %v3353
    %3372 = vmatprep.subr.bf16.mxu0 0
    %3373 = vmatpush1.bf16.msra.mxu0 %v3354
    %3374 = vmatprep.subr.bf16.mxu0 0
    %3375 = vmatpush1.bf16.msra.mxu0 %v3355
    %3376 = vmatprep.subr.bf16.mxu0 0
    %3377 = vmatpush1.bf16.msra.mxu0 %v3356
    %3378 = vmatprep.subr.bf16.mxu0 0
    %3379 = vmatpush1.bf16.msra.mxu0 %v3357
    %3380 = vmatprep.subr.bf16.mxu0 0
    %3381 = vmatpush1.bf16.msra.mxu0 %v3358
    %3382 = vmatprep.subr.bf16.mxu0 0
    %3383 = vmatpush1.bf16.msra.mxu0 %v3359
    %3384 = vmatprep.subr.bf16.mxu0 0
    %3385 = vmatpush1.bf16.msra.mxu0 0
    %3386 = vmatprep.subr.bf16.mxu0 0
    %3387 = vmatpush1.bf16.msra.mxu0 0
    %3388 = vmatprep.subr.bf16.mxu0 0
    %3389 = vmatpush1.bf16.msra.mxu0 0
    %3390 = vmatprep.subr.bf16.mxu0 0
    %3391 = vmatpush1.bf16.msra.mxu0 0
    %3392 = vmatprep.subr.bf16.mxu0 0
    %3393 = vmatpush1.bf16.msra.mxu0 0
    %3394 = vmatprep.subr.bf16.mxu0 0
    %3395 = vmatpush1.bf16.msra.mxu0 0
    %3396 = vmatprep.subr.bf16.mxu0 0
    %3397 = vmatpush1.bf16.msra.mxu0 0
    %3398 = vmatprep.subr.bf16.mxu0 0
    %3399 = vmatpush1.bf16.msra.mxu0 0
    %3400 = vmatprep.mubr.bf16.mxu0 0
    %3401 = vmatmul.mubr.bf16.gmra.mrb[0].mxu0 %v3285
    %v3402 = vpop.f32.mrb[0].mxu0
    %v3403 = vadd.f32 0.0, %v3402
    %v3404 = vpop.f32.mrb[0].mxu0
    %v3405 = vpop.f32.mrb[0].mxu0
    %v3406 = vpop.f32.mrb[0].mxu0
    %3407 = vdwg.mxu0
    %s3408 = scalar_lea.vmem [#allocation2], 2240
    %v3409 = vld [vmem:[%s3408] sm:$0xf]
    %v3410 = vld [vmem:[%s3408 + $0x4] sm:$0xf]
    %v3411 = vld [vmem:[%s3408 + $0x8] sm:$0xf]
    %v3412 = vld [vmem:[%s3408 + $0xc] sm:$0xf]
    %v3413 = vld [vmem:[%s3408 + $0x10] sm:$0xf]
    %v3414 = vld [vmem:[%s3408 + $0x14] sm:$0xf]
    %v3415 = vld [vmem:[%s3408 + $0x18] sm:$0xf]
    %v3416 = vld [vmem:[%s3408 + $0x1c] sm:$0xf]
    %v3417 = vld [vmem:[%s3408 + $0x20] sm:$0xf]
    %v3418 = vld [vmem:[%s3408 + $0x24] sm:$0xf]
    %v3419 = vld [vmem:[%s3408 + $0x28] sm:$0xf]
    %v3420 = vld [vmem:[%s3408 + $0x2c] sm:$0xf]
    %v3421 = vld [vmem:[%s3408 + $0x30] sm:$0xf]
    %v3422 = vld [vmem:[%s3408 + $0x34] sm:$0xf]
    %v3423 = vld [vmem:[%s3408 + $0x38] sm:$0xf]
    %v3424 = vld [vmem:[%s3408 + $0x3c] sm:$0xf]
    %v3441 = vunpack.c.l.b16 %v3409
    %v3442 = vunpack.c.l.b16 %v3410
    %v3443 = vunpack.c.l.b16 %v3411
    %v3444 = vunpack.c.l.b16 %v3412
    %v3445 = vunpack.c.l.b16 %v3413
    %v3446 = vunpack.c.l.b16 %v3414
    %v3447 = vunpack.c.l.b16 %v3415
    %v3448 = vunpack.c.l.b16 %v3416
    %v3449 = vunpack.c.l.b16 %v3417
    %v3450 = vunpack.c.l.b16 %v3418
    %v3451 = vunpack.c.l.b16 %v3419
    %v3452 = vunpack.c.l.b16 %v3420
    %v3453 = vunpack.c.l.b16 %v3421
    %v3454 = vunpack.c.l.b16 %v3422
    %v3455 = vunpack.c.l.b16 %v3423
    %v3456 = vunpack.c.l.b16 %v3424
    %v3457 = vpack.c.b16 %v3442, %v3441
    %v3458 = vpack.c.b16 %v3444, %v3443
    %v3459 = vpack.c.b16 %v3446, %v3445
    %v3460 = vpack.c.b16 %v3448, %v3447
    %v3461 = vpack.c.b16 %v3450, %v3449
    %v3462 = vpack.c.b16 %v3452, %v3451
    %v3463 = vpack.c.b16 %v3454, %v3453
    %v3464 = vpack.c.b16 %v3456, %v3455
    %3473 = vmatprep.subr.bf16.mxu0 0
    %3474 = vmatpush1.bf16.msra.mxu0 %v3457
    %3475 = vmatprep.subr.bf16.mxu0 0
    %3476 = vmatpush1.bf16.msra.mxu0 %v3458
    %3477 = vmatprep.subr.bf16.mxu0 0
    %3478 = vmatpush1.bf16.msra.mxu0 %v3459
    %3479 = vmatprep.subr.bf16.mxu0 0
    %3480 = vmatpush1.bf16.msra.mxu0 %v3460
    %3481 = vmatprep.subr.bf16.mxu0 0
    %3482 = vmatpush1.bf16.msra.mxu0 %v3461
    %3483 = vmatprep.subr.bf16.mxu0 0
    %3484 = vmatpush1.bf16.msra.mxu0 %v3462
    %3485 = vmatprep.subr.bf16.mxu0 0
    %3486 = vmatpush1.bf16.msra.mxu0 %v3463
    %3487 = vmatprep.subr.bf16.mxu0 0
    %3488 = vmatpush1.bf16.msra.mxu0 %v3464
    %3489 = vmatprep.subr.bf16.mxu0 0
    %3490 = vmatpush1.bf16.msra.mxu0 0
    %3491 = vmatprep.subr.bf16.mxu0 0
    %3492 = vmatpush1.bf16.msra.mxu0 0
    %3493 = vmatprep.subr.bf16.mxu0 0
    %3494 = vmatpush1.bf16.msra.mxu0 0
    %3495 = vmatprep.subr.bf16.mxu0 0
    %3496 = vmatpush1.bf16.msra.mxu0 0
    %3497 = vmatprep.subr.bf16.mxu0 0
    %3498 = vmatpush1.bf16.msra.mxu0 0
    %3499 = vmatprep.subr.bf16.mxu0 0
    %3500 = vmatpush1.bf16.msra.mxu0 0
    %3501 = vmatprep.subr.bf16.mxu0 0
    %3502 = vmatpush1.bf16.msra.mxu0 0
    %3503 = vmatprep.subr.bf16.mxu0 0
    %3504 = vmatpush1.bf16.msra.mxu0 0
    %3505 = vmatprep.mubr.bf16.mxu0 0
    %3506 = vmatmul.mubr.bf16.gmra.mrb[0].mxu0 %v3285
    %v3507 = vpop.f32.mrb[0].mxu0
    %v3508 = vadd.f32 0.0, %v3507
    %v3509 = vpop.f32.mrb[0].mxu0
    %v3510 = vpop.f32.mrb[0].mxu0
    %v3511 = vpop.f32.mrb[0].mxu0
    %3512 = vdwg.mxu0
    %v3514 = vrot.slane %v3403, 3
    %v3516 = vrot.slane %v3403, 7
    %v3518 = vsel %vm384, %v3514, %v3516
    %v3519 = vmul.f32 %v189, %v3518
    %v3536 = vunpack.c.l.b16 %v3287
    %v3537 = vunpack.c.l.b16 %v3288
    %v3538 = vunpack.c.l.b16 %v3289
    %v3539 = vunpack.c.l.b16 %v3290
    %v3540 = vunpack.c.l.b16 %v3291
    %v3541 = vunpack.c.l.b16 %v3292
    %v3542 = vunpack.c.l.b16 %v3293
    %v3543 = vunpack.c.l.b16 %v3294
    %v3544 = vunpack.c.l.b16 %v3295
    %v3545 = vunpack.c.l.b16 %v3296
    %v3546 = vunpack.c.l.b16 %v3297
    %v3547 = vunpack.c.l.b16 %v3298
    %v3548 = vunpack.c.l.b16 %v3299
    %v3549 = vunpack.c.l.b16 %v3300
    %v3550 = vunpack.c.l.b16 %v3301
    %v3551 = vunpack.c.l.b16 %v3302
    %v3552 = vpack.c.b16 %v3537, %v3536
    %v3553 = vpack.c.b16 %v3539, %v3538
    %v3554 = vpack.c.b16 %v3541, %v3540
    %v3555 = vpack.c.b16 %v3543, %v3542
    %v3556 = vpack.c.b16 %v3545, %v3544
    %v3557 = vpack.c.b16 %v3547, %v3546
    %v3558 = vpack.c.b16 %v3549, %v3548
    %v3559 = vpack.c.b16 %v3551, %v3550
    %3568 = vmatprep.subr.bf16.mxu0 0
    %3569 = vmatpush1.bf16.msra.mxu0 %v3552
    %3570 = vmatprep.subr.bf16.mxu0 0
    %3571 = vmatpush1.bf16.msra.mxu0 %v3553
    %3572 = vmatprep.subr.bf16.mxu0 0
    %3573 = vmatpush1.bf16.msra.mxu0 %v3554
    %3574 = vmatprep.subr.bf16.mxu0 0
    %3575 = vmatpush1.bf16.msra.mxu0 %v3555
    %3576 = vmatprep.subr.bf16.mxu0 0
    %3577 = vmatpush1.bf16.msra.mxu0 %v3556
    %3578 = vmatprep.subr.bf16.mxu0 0
    %3579 = vmatpush1.bf16.msra.mxu0 %v3557
    %3580 = vmatprep.subr.bf16.mxu0 0
    %3581 = vmatpush1.bf16.msra.mxu0 %v3558
    %3582 = vmatprep.subr.bf16.mxu0 0
    %3583 = vmatpush1.bf16.msra.mxu0 %v3559
    %3584 = vmatprep.subr.bf16.mxu0 0
    %3585 = vmatpush1.bf16.msra.mxu0 0
    %3586 = vmatprep.subr.bf16.mxu0 0
    %3587 = vmatpush1.bf16.msra.mxu0 0
    %3588 = vmatprep.subr.bf16.mxu0 0
    %3589 = vmatpush1.bf16.msra.mxu0 0
    %3590 = vmatprep.subr.bf16.mxu0 0
    %3591 = vmatpush1.bf16.msra.mxu0 0
    %3592 = vmatprep.subr.bf16.mxu0 0
    %3593 = vmatpush1.bf16.msra.mxu0 0
    %3594 = vmatprep.subr.bf16.mxu0 0
    %3595 = vmatpush1.bf16.msra.mxu0 0
    %3596 = vmatprep.subr.bf16.mxu0 0
    %3597 = vmatpush1.bf16.msra.mxu0 0
    %3598 = vmatprep.subr.bf16.mxu0 0
    %3599 = vmatpush1.bf16.msra.mxu0 0
    %3600 = vmatprep.mubr.bf16.mxu0 0
    %3601 = vmatmul.mubr.bf16.gmra.mrb[0].mxu0 %v3285
    %v3602 = vpop.f32.mrb[0].mxu0
    %v3603 = vadd.f32 %v3519, %v3602
    %v3604 = vpop.f32.mrb[0].mxu0
    %v3605 = vpop.f32.mrb[0].mxu0
    %v3606 = vpop.f32.mrb[0].mxu0
    %3607 = vdwg.mxu0
    %v3609 = vrot.slane %v3508, 1
    %v3611 = vrot.slane %v3508, 5
    %v3613 = vsel %vm3274, %v3609, %v3611
    %v3614 = vmul.f32 %v192, %v3613
    %v3615 = vadd.f32 %v3603, %v3614
    %v3616 = vld [vmem:[#allocation5 + $0x7] sm:$0x1]
    %v3617 = vlaneseq
    %v3618 = vshrl.u32 %v3617, 7
    %v3619 = vsub.s32 0, %v3618
    %v3620 = vrot.slane %v3616, %v3619
    %v3621 = vadd.f32 %v3615, %v3620
    %v3622 = vmax.f32 %v3621, 0.0
    %v3623 = vpack.c.bf16 %v3622, %v3622
    %s3624 = scalar_lea.vmem [#allocation2], 2304
    %v3625 = vld [vmem:[%s3624] sm:$0xf]
    %vm3626 = vcmask 31744
    %v3628 = vsel %vm3626, %v3625, 0
    %vm3630 = vcmask 1041408
    %v3632 = vsel %vm3630, %v3623, 0
    %3634 = vmatprep.subr.bf16.mxu0 0
    %3635 = vmatpush1.bf16.msra.mxu0 %v3632
    %3636 = vmatprep.subr.bf16.mxu0 0
    %3637 = vmatpush1.bf16.msra.mxu0 0
    %3638 = vmatprep.subr.bf16.mxu0 0
    %3639 = vmatpush1.bf16.msra.mxu0 0
    %3640 = vmatprep.subr.bf16.mxu0 0
    %3641 = vmatpush1.bf16.msra.mxu0 0
    %3642 = vmatprep.subr.bf16.mxu0 0
    %3643 = vmatpush1.bf16.msra.mxu0 0
    %3644 = vmatprep.subr.bf16.mxu0 0
    %3645 = vmatpush1.bf16.msra.mxu0 0
    %3646 = vmatprep.subr.bf16.mxu0 0
    %3647 = vmatpush1.bf16.msra.mxu0 0
    %3648 = vmatprep.subr.bf16.mxu0 0
    %3649 = vmatpush1.bf16.msra.mxu0 0
    %3650 = vmatprep.subr.bf16.mxu0 0
    %3651 = vmatpush1.bf16.msra.mxu0 0
    %3652 = vmatprep.subr.bf16.mxu0 0
    %3653 = vmatpush1.bf16.msra.mxu0 0
    %3654 = vmatprep.subr.bf16.mxu0 0
    %3655 = vmatpush1.bf16.msra.mxu0 0
    %3656 = vmatprep.subr.bf16.mxu0 0
    %3657 = vmatpush1.bf16.msra.mxu0 0
    %3658 = vmatprep.subr.bf16.mxu0 0
    %3659 = vmatpush1.bf16.msra.mxu0 0
    %3660 = vmatprep.subr.bf16.mxu0 0
    %3661 = vmatpush1.bf16.msra.mxu0 0
    %3662 = vmatprep.subr.bf16.mxu0 0
    %3663 = vmatpush1.bf16.msra.mxu0 0
    %3664 = vmatprep.subr.bf16.mxu0 0
    %3665 = vmatpush1.bf16.msra.mxu0 0
    %3666 = vmatprep.mubr.bf16.mxu0 0
    %3667 = vmatmul.mubr.bf16.gmra.mrb[0].mxu0 %v3628
    %v3668 = vpop.f32.mrb[0].mxu0
    %v3669 = vadd.f32 0.0, %v3668
    %v3670 = vpop.f32.mrb[0].mxu0
    %v3671 = vpop.f32.mrb[0].mxu0
    %v3672 = vpop.f32.mrb[0].mxu0
    %3673 = vdwg.mxu0
    %s3674 = scalar_lea.vmem [#allocation2], 2368
    %v3675 = vld [vmem:[%s3674] sm:$0xf]
    %v3677 = vsel %vm3626, %v3675, 0
    %3679 = vmatprep.subr.bf16.mxu0 0
    %3680 = vmatpush1.bf16.msra.mxu0 %v3632
    %3681 = vmatprep.subr.bf16.mxu0 0
    %3682 = vmatpush1.bf16.msra.mxu0 0
    %3683 = vmatprep.subr.bf16.mxu0 0
    %3684 = vmatpush1.bf16.msra.mxu0 0
    %3685 = vmatprep.subr.bf16.mxu0 0
    %3686 = vmatpush1.bf16.msra.mxu0 0
    %3687 = vmatprep.subr.bf16.mxu0 0
    %3688 = vmatpush1.bf16.msra.mxu0 0
    %3689 = vmatprep.subr.bf16.mxu0 0
    %3690 = vmatpush1.bf16.msra.mxu0 0
    %3691 = vmatprep.subr.bf16.mxu0 0
    %3692 = vmatpush1.bf16.msra.mxu0 0
    %3693 = vmatprep.subr.bf16.mxu0 0
    %3694 = vmatpush1.bf16.msra.mxu0 0
    %3695 = vmatprep.subr.bf16.mxu0 0
    %3696 = vmatpush1.bf16.msra.mxu0 0
    %3697 = vmatprep.subr.bf16.mxu0 0
    %3698 = vmatpush1.bf16.msra.mxu0 0
    %3699 = vmatprep.subr.bf16.mxu0 0
    %3700 = vmatpush1.bf16.msra.mxu0 0
    %3701 = vmatprep.subr.bf16.mxu0 0
    %3702 = vmatpush1.bf16.msra.mxu0 0
    %3703 = vmatprep.subr.bf16.mxu0 0
    %3704 = vmatpush1.bf16.msra.mxu0 0
    %3705 = vmatprep.subr.bf16.mxu0 0
    %3706 = vmatpush1.bf16.msra.mxu0 0
    %3707 = vmatprep.subr.bf16.mxu0 0
    %3708 = vmatpush1.bf16.msra.mxu0 0
    %3709 = vmatprep.subr.bf16.mxu0 0
    %3710 = vmatpush1.bf16.msra.mxu0 0
    %3711 = vmatprep.mubr.bf16.mxu0 0
    %3712 = vmatmul.mubr.bf16.gmra.mrb[0].mxu0 %v3677
    %v3713 = vpop.f32.mrb[0].mxu0
    %v3714 = vadd.f32 0.0, %v3713
    %v3715 = vpop.f32.mrb[0].mxu0
    %v3716 = vpop.f32.mrb[0].mxu0
    %v3717 = vpop.f32.mrb[0].mxu0
    %3718 = vdwg.mxu0
    %v3719 = vmax.f32 %v3669, %v3714
    %v3720 = vpack.c.bf16 %v3719, %v3719
    %s3721 = scalar_lea.vmem [#allocation2], 2432
    %v3722 = vld [vmem:[%s3721] sm:$0xf]
    %v3723 = vld [vmem:[%s3721 + $0x4] sm:$0xf]
    %v3724 = vld [vmem:[%s3721 + $0x8] sm:$0xf]
    %v3725 = vld [vmem:[%s3721 + $0xc] sm:$0xf]
    %v3726 = vld [vmem:[%s3721 + $0x10] sm:$0xf]
    %v3727 = vld [vmem:[%s3721 + $0x14] sm:$0xf]
    %v3728 = vld [vmem:[%s3721 + $0x18] sm:$0xf]
    %v3729 = vld [vmem:[%s3721 + $0x1c] sm:$0xf]
    %v3730 = vld [vmem:[%s3721 + $0x20] sm:$0xf]
    %v3731 = vld [vmem:[%s3721 + $0x24] sm:$0xf]
    %v3732 = vld [vmem:[%s3721 + $0x28] sm:$0xf]
    %v3733 = vld [vmem:[%s3721 + $0x2c] sm:$0xf]
    %v3734 = vld [vmem:[%s3721 + $0x30] sm:$0xf]
    %v3735 = vld [vmem:[%s3721 + $0x34] sm:$0xf]
    %v3736 = vld [vmem:[%s3721 + $0x38] sm:$0xf]
    %v3737 = vld [vmem:[%s3721 + $0x3c] sm:$0xf]
    %v3754 = vunpack.c.l.b16 %v3722
    %v3755 = vunpack.c.l.b16 %v3723
    %v3756 = vunpack.c.l.b16 %v3724
    %v3757 = vunpack.c.l.b16 %v3725
    %v3758 = vunpack.c.l.b16 %v3726
    %v3759 = vunpack.c.l.b16 %v3727
    %v3760 = vunpack.c.l.b16 %v3728
    %v3761 = vunpack.c.l.b16 %v3729
    %v3762 = vunpack.c.l.b16 %v3730
    %v3763 = vunpack.c.l.b16 %v3731
    %v3764 = vunpack.c.l.b16 %v3732
    %v3765 = vunpack.c.l.b16 %v3733
    %v3766 = vunpack.c.l.b16 %v3734
    %v3767 = vunpack.c.l.b16 %v3735
    %v3768 = vunpack.c.l.b16 %v3736
    %v3769 = vunpack.c.l.b16 %v3737
    %v3770 = vpack.c.b16 %v3755, %v3754
    %v3771 = vpack.c.b16 %v3757, %v3756
    %v3772 = vpack.c.b16 %v3759, %v3758
    %v3773 = vpack.c.b16 %v3761, %v3760
    %v3774 = vpack.c.b16 %v3763, %v3762
    %v3775 = vpack.c.b16 %v3765, %v3764
    %v3776 = vpack.c.b16 %v3767, %v3766
    %v3777 = vpack.c.b16 %v3769, %v3768
    %3786 = vmatprep.subr.bf16.mxu0 0
    %3787 = vmatpush1.bf16.msra.mxu0 %v3770
    %3788 = vmatprep.subr.bf16.mxu0 0
    %3789 = vmatpush1.bf16.msra.mxu0 %v3771
    %3790 = vmatprep.subr.bf16.mxu0 0
    %3791 = vmatpush1.bf16.msra.mxu0 %v3772
    %3792 = vmatprep.subr.bf16.mxu0 0
    %3793 = vmatpush1.bf16.msra.mxu0 %v3773
    %3794 = vmatprep.subr.bf16.mxu0 0
    %3795 = vmatpush1.bf16.msra.mxu0 %v3774
    %3796 = vmatprep.subr.bf16.mxu0 0
    %3797 = vmatpush1.bf16.msra.mxu0 %v3775
    %3798 = vmatprep.subr.bf16.mxu0 0
    %3799 = vmatpush1.bf16.msra.mxu0 %v3776
    %3800 = vmatprep.subr.bf16.mxu0 0
    %3801 = vmatpush1.bf16.msra.mxu0 %v3777
    %3802 = vmatprep.subr.bf16.mxu0 0
    %3803 = vmatpush1.bf16.msra.mxu0 0
    %3804 = vmatprep.subr.bf16.mxu0 0
    %3805 = vmatpush1.bf16.msra.mxu0 0
    %3806 = vmatprep.subr.bf16.mxu0 0
    %3807 = vmatpush1.bf16.msra.mxu0 0
    %3808 = vmatprep.subr.bf16.mxu0 0
    %3809 = vmatpush1.bf16.msra.mxu0 0
    %3810 = vmatprep.subr.bf16.mxu0 0
    %3811 = vmatpush1.bf16.msra.mxu0 0
    %3812 = vmatprep.subr.bf16.mxu0 0
    %3813 = vmatpush1.bf16.msra.mxu0 0
    %3814 = vmatprep.subr.bf16.mxu0 0
    %3815 = vmatpush1.bf16.msra.mxu0 0
    %3816 = vmatprep.subr.bf16.mxu0 0
    %3817 = vmatpush1.bf16.msra.mxu0 0
    %3818 = vmatprep.mubr.bf16.mxu0 0
    %3819 = vmatmul.mubr.bf16.gmra.mrb[0].mxu0 %v3720
    %v3820 = vpop.f32.mrb[0].mxu0
    %v3821 = vadd.f32 0.0, %v3820
    %v3822 = vpop.f32.mrb[0].mxu0
    %v3823 = vpop.f32.mrb[0].mxu0
    %v3824 = vpop.f32.mrb[0].mxu0
    %3825 = vdwg.mxu0
    %s3826 = scalar_lea.vmem [#allocation2], 2496
    %v3827 = vld [vmem:[%s3826] sm:$0xf]
    %v3828 = vld [vmem:[%s3826 + $0x4] sm:$0xf]
    %v3829 = vld [vmem:[%s3826 + $0x8] sm:$0xf]
    %v3830 = vld [vmem:[%s3826 + $0xc] sm:$0xf]
    %v3831 = vld [vmem:[%s3826 + $0x10] sm:$0xf]
    %v3832 = vld [vmem:[%s3826 + $0x14] sm:$0xf]
    %v3833 = vld [vmem:[%s3826 + $0x18] sm:$0xf]
    %v3834 = vld [vmem:[%s3826 + $0x1c] sm:$0xf]
    %v3835 = vld [vmem:[%s3826 + $0x20] sm:$0xf]
    %v3836 = vld [vmem:[%s3826 + $0x24] sm:$0xf]
    %v3837 = vld [vmem:[%s3826 + $0x28] sm:$0xf]
    %v3838 = vld [vmem:[%s3826 + $0x2c] sm:$0xf]
    %v3839 = vld [vmem:[%s3826 + $0x30] sm:$0xf]
    %v3840 = vld [vmem:[%s3826 + $0x34] sm:$0xf]
    %v3841 = vld [vmem:[%s3826 + $0x38] sm:$0xf]
    %v3842 = vld [vmem:[%s3826 + $0x3c] sm:$0xf]
    %v3859 = vunpack.c.l.b16 %v3827
    %v3860 = vunpack.c.l.b16 %v3828
    %v3861 = vunpack.c.l.b16 %v3829
    %v3862 = vunpack.c.l.b16 %v3830
    %v3863 = vunpack.c.l.b16 %v3831
    %v3864 = vunpack.c.l.b16 %v3832
    %v3865 = vunpack.c.l.b16 %v3833
    %v3866 = vunpack.c.l.b16 %v3834
    %v3867 = vunpack.c.l.b16 %v3835
    %v3868 = vunpack.c.l.b16 %v3836
    %v3869 = vunpack.c.l.b16 %v3837
    %v3870 = vunpack.c.l.b16 %v3838
    %v3871 = vunpack.c.l.b16 %v3839
    %v3872 = vunpack.c.l.b16 %v3840
    %v3873 = vunpack.c.l.b16 %v3841
    %v3874 = vunpack.c.l.b16 %v3842
    %v3875 = vpack.c.b16 %v3860, %v3859
    %v3876 = vpack.c.b16 %v3862, %v3861
    %v3877 = vpack.c.b16 %v3864, %v3863
    %v3878 = vpack.c.b16 %v3866, %v3865
    %v3879 = vpack.c.b16 %v3868, %v3867
    %v3880 = vpack.c.b16 %v3870, %v3869
    %v3881 = vpack.c.b16 %v3872, %v3871
    %v3882 = vpack.c.b16 %v3874, %v3873
    %3891 = vmatprep.subr.bf16.mxu0 0
    %3892 = vmatpush1.bf16.msra.mxu0 %v3875
    %3893 = vmatprep.subr.bf16.mxu0 0
    %3894 = vmatpush1.bf16.msra.mxu0 %v3876
    %3895 = vmatprep.subr.bf16.mxu0 0
    %3896 = vmatpush1.bf16.msra.mxu0 %v3877
    %3897 = vmatprep.subr.bf16.mxu0 0
    %3898 = vmatpush1.bf16.msra.mxu0 %v3878
    %3899 = vmatprep.subr.bf16.mxu0 0
    %3900 = vmatpush1.bf16.msra.mxu0 %v3879
    %3901 = vmatprep.subr.bf16.mxu0 0
    %3902 = vmatpush1.bf16.msra.mxu0 %v3880
    %3903 = vmatprep.subr.bf16.mxu0 0
    %3904 = vmatpush1.bf16.msra.mxu0 %v3881
    %3905 = vmatprep.subr.bf16.mxu0 0
    %3906 = vmatpush1.bf16.msra.mxu0 %v3882
    %3907 = vmatprep.subr.bf16.mxu0 0
    %3908 = vmatpush1.bf16.msra.mxu0 0
    %3909 = vmatprep.subr.bf16.mxu0 0
    %3910 = vmatpush1.bf16.msra.mxu0 0
    %3911 = vmatprep.subr.bf16.mxu0 0
    %3912 = vmatpush1.bf16.msra.mxu0 0
    %3913 = vmatprep.subr.bf16.mxu0 0
    %3914 = vmatpush1.bf16.msra.mxu0 0
    %3915 = vmatprep.subr.bf16.mxu0 0
    %3916 = vmatpush1.bf16.msra.mxu0 0
    %3917 = vmatprep.subr.bf16.mxu0 0
    %3918 = vmatpush1.bf16.msra.mxu0 0
    %3919 = vmatprep.subr.bf16.mxu0 0
    %3920 = vmatpush1.bf16.msra.mxu0 0
    %3921 = vmatprep.subr.bf16.mxu0 0
    %3922 = vmatpush1.bf16.msra.mxu0 0
    %3923 = vmatprep.mubr.bf16.mxu0 0
    %3924 = vmatmul.mubr.bf16.gmra.mrb[0].mxu0 %v3720
    %v3925 = vpop.f32.mrb[0].mxu0
    %v3926 = vadd.f32 0.0, %v3925
    %v3927 = vpop.f32.mrb[0].mxu0
    %v3928 = vpop.f32.mrb[0].mxu0
    %v3929 = vpop.f32.mrb[0].mxu0
    %3930 = vdwg.mxu0
    %v3931 = vmax.f32 %v3821, %v3926
    %v3932 = vpack.c.bf16 %v3931, %v3931
    %s3933 = scalar_lea.vmem [#allocation2], 2624
    %v3934 = vld [vmem:[%s3933] sm:$0xf]
    %v3935 = vld [vmem:[%s3933 + $0x4] sm:$0xf]
    %v3936 = vld [vmem:[%s3933 + $0x8] sm:$0xf]
    %v3937 = vld [vmem:[%s3933 + $0xc] sm:$0xf]
    %v3938 = vld [vmem:[%s3933 + $0x10] sm:$0xf]
    %v3939 = vld [vmem:[%s3933 + $0x14] sm:$0xf]
    %v3940 = vld [vmem:[%s3933 + $0x18] sm:$0xf]
    %v3941 = vld [vmem:[%s3933 + $0x1c] sm:$0xf]
    %v3942 = vld [vmem:[#allocation5 + $0x8] sm:$0x1]
    %v3943 = vlaneseq
    %v3944 = vshrl.u32 %v3943, 7
    %v3945 = vsub.s32 0, %v3944
    %v3946 = vrot.slane %v3942, %v3945
    %v3955 = vunpack.c.l.b16 %v3934
    %v3956 = vunpack.c.l.b16 %v3935
    %v3957 = vunpack.c.l.b16 %v3936
    %v3958 = vunpack.c.l.b16 %v3937
    %v3959 = vunpack.c.l.b16 %v3938
    %v3960 = vunpack.c.l.b16 %v3939
    %v3961 = vunpack.c.l.b16 %v3940
    %v3962 = vunpack.c.l.b16 %v3941
    %v3963 = vpack.c.b16 %v3956, %v3955
    %v3964 = vpack.c.b16 %v3958, %v3957
    %v3965 = vpack.c.b16 %v3960, %v3959
    %v3966 = vpack.c.b16 %v3962, %v3961
    %v3972 = vsel %vm240, %v3932, 0
    %3974 = vmatprep.subr.bf16.mxu0 0
    %3975 = vmatpush1.bf16.msra.mxu0 %v3963
    %3976 = vmatprep.subr.bf16.mxu0 0
    %3977 = vmatpush1.bf16.msra.mxu0 %v3964
    %3978 = vmatprep.subr.bf16.mxu0 0
    %3979 = vmatpush1.bf16.msra.mxu0 %v3965
    %3980 = vmatprep.subr.bf16.mxu0 0
    %3981 = vmatpush1.bf16.msra.mxu0 %v3966
    %3982 = vmatprep.subr.bf16.mxu0 0
    %3983 = vmatpush1.bf16.msra.mxu0 0
    %3984 = vmatprep.subr.bf16.mxu0 0
    %3985 = vmatpush1.bf16.msra.mxu0 0
    %3986 = vmatprep.subr.bf16.mxu0 0
    %3987 = vmatpush1.bf16.msra.mxu0 0
    %3988 = vmatprep.subr.bf16.mxu0 0
    %3989 = vmatpush1.bf16.msra.mxu0 0
    %3990 = vmatprep.subr.bf16.mxu0 0
    %3991 = vmatpush1.bf16.msra.mxu0 0
    %3992 = vmatprep.subr.bf16.mxu0 0
    %3993 = vmatpush1.bf16.msra.mxu0 0
    %3994 = vmatprep.subr.bf16.mxu0 0
    %3995 = vmatpush1.bf16.msra.mxu0 0
    %3996 = vmatprep.subr.bf16.mxu0 0
    %3997 = vmatpush1.bf16.msra.mxu0 0
    %3998 = vmatprep.subr.bf16.mxu0 0
    %3999 = vmatpush1.bf16.msra.mxu0 0
    %4000 = vmatprep.subr.bf16.mxu0 0
    %4001 = vmatpush1.bf16.msra.mxu0 0
    %4002 = vmatprep.subr.bf16.mxu0 0
    %4003 = vmatpush1.bf16.msra.mxu0 0
    %4004 = vmatprep.subr.bf16.mxu0 0
    %4005 = vmatpush1.bf16.msra.mxu0 0
    %4006 = vmatprep.mubr.bf16.mxu0 0
    %4007 = vmatmul.mubr.bf16.gmra.mrb[0].mxu0 %v3972
    %v4008 = vpop.f32.mrb[0].mxu0
    %v4009 = vadd.f32 %v3946, %v4008
    %v4010 = vpop.f32.mrb[0].mxu0
    %v4011 = vpop.f32.mrb[0].mxu0
    %v4012 = vpop.f32.mrb[0].mxu0
    %4013 = vdwg.mxu0
    %v4014 = vmax.f32 %v4009, 0.0
    %v4015 = vpack.c.bf16 %v4014, %v4014
    %s4016 = scalar_lea.vmem [#allocation2], 2816
    %v4017 = vld [vmem:[%s4016] sm:$0xf]
    %v4018 = vld [vmem:[%s4016 + $0x4] sm:$0xf]
    %v4019 = vld [vmem:[%s4016 + $0x8] sm:$0xf]
    %v4020 = vld [vmem:[%s4016 + $0xc] sm:$0xf]
    %v4021 = vld [vmem:[%s4016 + $0x10] sm:$0xf]
    %v4022 = vld [vmem:[%s4016 + $0x14] sm:$0xf]
    %v4023 = vld [vmem:[%s4016 + $0x18] sm:$0xf]
    %v4024 = vld [vmem:[%s4016 + $0x1c] sm:$0xf]
    %v4025 = vld [vmem:[%s4016 + $0x20] sm:$0xf]
    %v4026 = vld [vmem:[%s4016 + $0x24] sm:$0xf]
    %v4027 = vld [vmem:[%s4016 + $0x28] sm:$0xf]
    %v4028 = vld [vmem:[%s4016 + $0x2c] sm:$0xf]
    %v4029 = vld [vmem:[%s4016 + $0x30] sm:$0xf]
    %v4030 = vld [vmem:[%s4016 + $0x34] sm:$0xf]
    %v4031 = vld [vmem:[%s4016 + $0x38] sm:$0xf]
    %v4032 = vld [vmem:[%s4016 + $0x3c] sm:$0xf]
    %v4033 = vld [vmem:[#allocation5 + $0x9] sm:$0x1]
    %v4034 = vlaneseq
    %v4035 = vshrl.u32 %v4034, 7
    %v4036 = vsub.s32 0, %v4035
    %v4037 = vrot.slane %v4033, %v4036
    %v4054 = vunpack.c.l.b16 %v4017
    %v4055 = vunpack.c.l.b16 %v4018
    %v4056 = vunpack.c.l.b16 %v4019
    %v4057 = vunpack.c.l.b16 %v4020
    %v4058 = vunpack.c.l.b16 %v4021
    %v4059 = vunpack.c.l.b16 %v4022
    %v4060 = vunpack.c.l.b16 %v4023
    %v4061 = vunpack.c.l.b16 %v4024
    %v4062 = vunpack.c.l.b16 %v4025
    %v4063 = vunpack.c.l.b16 %v4026
    %v4064 = vunpack.c.l.b16 %v4027
    %v4065 = vunpack.c.l.b16 %v4028
    %v4066 = vunpack.c.l.b16 %v4029
    %v4067 = vunpack.c.l.b16 %v4030
    %v4068 = vunpack.c.l.b16 %v4031
    %v4069 = vunpack.c.l.b16 %v4032
    %v4070 = vpack.c.b16 %v4055, %v4054
    %v4071 = vpack.c.b16 %v4057, %v4056
    %v4072 = vpack.c.b16 %v4059, %v4058
    %v4073 = vpack.c.b16 %v4061, %v4060
    %v4074 = vpack.c.b16 %v4063, %v4062
    %v4075 = vpack.c.b16 %v4065, %v4064
    %v4076 = vpack.c.b16 %v4067, %v4066
    %v4077 = vpack.c.b16 %v4069, %v4068
    %4086 = vmatprep.subr.bf16.mxu0 0
    %4087 = vmatpush1.bf16.msra.mxu0 %v4070
    %4088 = vmatprep.subr.bf16.mxu0 0
    %4089 = vmatpush1.bf16.msra.mxu0 %v4071
    %4090 = vmatprep.subr.bf16.mxu0 0
    %4091 = vmatpush1.bf16.msra.mxu0 %v4072
    %4092 = vmatprep.subr.bf16.mxu0 0
    %4093 = vmatpush1.bf16.msra.mxu0 %v4073
    %4094 = vmatprep.subr.bf16.mxu0 0
    %4095 = vmatpush1.bf16.msra.mxu0 %v4074
    %4096 = vmatprep.subr.bf16.mxu0 0
    %4097 = vmatpush1.bf16.msra.mxu0 %v4075
    %4098 = vmatprep.subr.bf16.mxu0 0
    %4099 = vmatpush1.bf16.msra.mxu0 %v4076
    %4100 = vmatprep.subr.bf16.mxu0 0
    %4101 = vmatpush1.bf16.msra.mxu0 %v4077
    %4102 = vmatprep.subr.bf16.mxu0 0
    %4103 = vmatpush1.bf16.msra.mxu0 0
    %4104 = vmatprep.subr.bf16.mxu0 0
    %4105 = vmatpush1.bf16.msra.mxu0 0
    %4106 = vmatprep.subr.bf16.mxu0 0
    %4107 = vmatpush1.bf16.msra.mxu0 0
    %4108 = vmatprep.subr.bf16.mxu0 0
    %4109 = vmatpush1.bf16.msra.mxu0 0
    %4110 = vmatprep.subr.bf16.mxu0 0
    %4111 = vmatpush1.bf16.msra.mxu0 0
    %4112 = vmatprep.subr.bf16.mxu0 0
    %4113 = vmatpush1.bf16.msra.mxu0 0
    %4114 = vmatprep.subr.bf16.mxu0 0
    %4115 = vmatpush1.bf16.msra.mxu0 0
    %4116 = vmatprep.subr.bf16.mxu0 0
    %4117 = vmatpush1.bf16.msra.mxu0 0
    %4118 = vmatprep.mubr.bf16.mxu0 0
    %4119 = vmatmul.mubr.bf16.gmra.mrb[0].mxu0 %v4015
    %v4120 = vpop.f32.mrb[0].mxu0
    %v4121 = vadd.f32 %v4037, %v4120
    %v4122 = vpop.f32.mrb[0].mxu0
    %v4123 = vpop.f32.mrb[0].mxu0
    %v4124 = vpop.f32.mrb[0].mxu0
    %4125 = vdwg.mxu0
    %v4126 = vmax.f32 %v4121, 0.0
    %v4127 = vpack.c.bf16 %v4126, %v4126
    %s4128 = scalar_lea.vmem [#allocation2], 2944
    %v4129 = vld [vmem:[%s4128] sm:$0xf]
    %v4130 = vld [vmem:[%s4128 + $0x4] sm:$0xf]
    %v4131 = vld [vmem:[%s4128 + $0x8] sm:$0xf]
    %v4132 = vld [vmem:[%s4128 + $0xc] sm:$0xf]
    %v4133 = vld [vmem:[%s4128 + $0x10] sm:$0xf]
    %v4134 = vld [vmem:[%s4128 + $0x14] sm:$0xf]
    %v4135 = vld [vmem:[%s4128 + $0x18] sm:$0xf]
    %v4136 = vld [vmem:[%s4128 + $0x1c] sm:$0xf]
    %v4137 = vld [vmem:[%s4128 + $0x20] sm:$0xf]
    %v4138 = vld [vmem:[%s4128 + $0x24] sm:$0xf]
    %v4139 = vld [vmem:[%s4128 + $0x28] sm:$0xf]
    %v4140 = vld [vmem:[%s4128 + $0x2c] sm:$0xf]
    %v4141 = vld [vmem:[%s4128 + $0x30] sm:$0xf]
    %v4142 = vld [vmem:[%s4128 + $0x34] sm:$0xf]
    %v4143 = vld [vmem:[%s4128 + $0x38] sm:$0xf]
    %v4144 = vld [vmem:[%s4128 + $0x3c] sm:$0xf]
    %v4161 = vunpack.c.l.b16 %v4129
    %v4162 = vunpack.c.l.b16 %v4130
    %v4163 = vunpack.c.l.b16 %v4131
    %v4164 = vunpack.c.l.b16 %v4132
    %v4165 = vunpack.c.l.b16 %v4133
    %v4166 = vunpack.c.l.b16 %v4134
    %v4167 = vunpack.c.l.b16 %v4135
    %v4168 = vunpack.c.l.b16 %v4136
    %v4169 = vunpack.c.l.b16 %v4137
    %v4170 = vunpack.c.l.b16 %v4138
    %v4171 = vunpack.c.l.b16 %v4139
    %v4172 = vunpack.c.l.b16 %v4140
    %v4173 = vunpack.c.l.b16 %v4141
    %v4174 = vunpack.c.l.b16 %v4142
    %v4175 = vunpack.c.l.b16 %v4143
    %v4176 = vunpack.c.l.b16 %v4144
    %v4177 = vpack.c.b16 %v4162, %v4161
    %v4178 = vpack.c.b16 %v4164, %v4163
    %v4179 = vpack.c.b16 %v4166, %v4165
    %v4180 = vpack.c.b16 %v4168, %v4167
    %v4181 = vpack.c.b16 %v4170, %v4169
    %v4182 = vpack.c.b16 %v4172, %v4171
    %v4183 = vpack.c.b16 %v4174, %v4173
    %v4184 = vpack.c.b16 %v4176, %v4175
    %4193 = vmatprep.subr.bf16.mxu0 0
    %4194 = vmatpush1.bf16.msra.mxu0 %v4177
    %4195 = vmatprep.subr.bf16.mxu0 0
    %4196 = vmatpush1.bf16.msra.mxu0 %v4178
    %4197 = vmatprep.subr.bf16.mxu0 0
    %4198 = vmatpush1.bf16.msra.mxu0 %v4179
    %4199 = vmatprep.subr.bf16.mxu0 0
    %4200 = vmatpush1.bf16.msra.mxu0 %v4180
    %4201 = vmatprep.subr.bf16.mxu0 0
    %4202 = vmatpush1.bf16.msra.mxu0 %v4181
    %4203 = vmatprep.subr.bf16.mxu0 0
    %4204 = vmatpush1.bf16.msra.mxu0 %v4182
    %4205 = vmatprep.subr.bf16.mxu0 0
    %4206 = vmatpush1.bf16.msra.mxu0 %v4183
    %4207 = vmatprep.subr.bf16.mxu0 0
    %4208 = vmatpush1.bf16.msra.mxu0 %v4184
    %4209 = vmatprep.subr.bf16.mxu0 0
    %4210 = vmatpush1.bf16.msra.mxu0 0
    %4211 = vmatprep.subr.bf16.mxu0 0
    %4212 = vmatpush1.bf16.msra.mxu0 0
    %4213 = vmatprep.subr.bf16.mxu0 0
    %4214 = vmatpush1.bf16.msra.mxu0 0
    %4215 = vmatprep.subr.bf16.mxu0 0
    %4216 = vmatpush1.bf16.msra.mxu0 0
    %4217 = vmatprep.subr.bf16.mxu0 0
    %4218 = vmatpush1.bf16.msra.mxu0 0
    %4219 = vmatprep.subr.bf16.mxu0 0
    %4220 = vmatpush1.bf16.msra.mxu0 0
    %4221 = vmatprep.subr.bf16.mxu0 0
    %4222 = vmatpush1.bf16.msra.mxu0 0
    %4223 = vmatprep.subr.bf16.mxu0 0
    %4224 = vmatpush1.bf16.msra.mxu0 0
    %4225 = vmatprep.mubr.bf16.mxu0 0
    %4226 = vmatmul.mubr.bf16.gmra.mrb[0].mxu0 %v4127
    %v4227 = vpop.f32.mrb[0].mxu0
    %v4228 = vadd.f32 0.0, %v4227
    %v4229 = vpop.f32.mrb[0].mxu0
    %v4230 = vpop.f32.mrb[0].mxu0
    %v4231 = vpop.f32.mrb[0].mxu0
    %4232 = vdwg.mxu0
    %v4233 = vpack.c.bf16 %v4228, %v4228
    %s4234 = scalar_lea.vmem [#allocation2], 3008
    %v4235 = vld [vmem:[%s4234] sm:$0xf]
    %v4236 = vld [vmem:[%s4234 + $0x4] sm:$0xf]
    %v4237 = vld [vmem:[%s4234 + $0x8] sm:$0xf]
    %v4238 = vld [vmem:[%s4234 + $0xc] sm:$0xf]
    %v4239 = vld [vmem:[%s4234 + $0x10] sm:$0xf]
    %v4240 = vld [vmem:[%s4234 + $0x14] sm:$0xf]
    %v4241 = vld [vmem:[%s4234 + $0x18] sm:$0xf]
    %v4242 = vld [vmem:[%s4234 + $0x1c] sm:$0xf]
    %v4243 = vld [vmem:[%s4234 + $0x20] sm:$0xf]
    %v4244 = vld [vmem:[%s4234 + $0x24] sm:$0xf]
    %v4245 = vld [vmem:[%s4234 + $0x28] sm:$0xf]
    %v4246 = vld [vmem:[%s4234 + $0x2c] sm:$0xf]
    %v4247 = vld [vmem:[%s4234 + $0x30] sm:$0xf]
    %v4248 = vld [vmem:[%s4234 + $0x34] sm:$0xf]
    %v4249 = vld [vmem:[%s4234 + $0x38] sm:$0xf]
    %v4250 = vld [vmem:[%s4234 + $0x3c] sm:$0xf]
    %v4267 = vunpack.c.l.b16 %v4235
    %v4268 = vunpack.c.l.b16 %v4236
    %v4269 = vunpack.c.l.b16 %v4237
    %v4270 = vunpack.c.l.b16 %v4238
    %v4271 = vunpack.c.l.b16 %v4239
    %v4272 = vunpack.c.l.b16 %v4240
    %v4273 = vunpack.c.l.b16 %v4241
    %v4274 = vunpack.c.l.b16 %v4242
    %v4275 = vunpack.c.l.b16 %v4243
    %v4276 = vunpack.c.l.b16 %v4244
    %v4277 = vunpack.c.l.b16 %v4245
    %v4278 = vunpack.c.l.b16 %v4246
    %v4279 = vunpack.c.l.b16 %v4247
    %v4280 = vunpack.c.l.b16 %v4248
    %v4281 = vunpack.c.l.b16 %v4249
    %v4282 = vunpack.c.l.b16 %v4250
    %v4283 = vpack.c.b16 %v4268, %v4267
    %v4284 = vpack.c.b16 %v4270, %v4269
    %v4285 = vpack.c.b16 %v4272, %v4271
    %v4286 = vpack.c.b16 %v4274, %v4273
    %v4287 = vpack.c.b16 %v4276, %v4275
    %v4288 = vpack.c.b16 %v4278, %v4277
    %v4289 = vpack.c.b16 %v4280, %v4279
    %v4290 = vpack.c.b16 %v4282, %v4281
    %4299 = vmatprep.subr.bf16.mxu0 0
    %4300 = vmatpush1.bf16.msra.mxu0 %v4283
    %4301 = vmatprep.subr.bf16.mxu0 0
    %4302 = vmatpush1.bf16.msra.mxu0 %v4284
    %4303 = vmatprep.subr.bf16.mxu0 0
    %4304 = vmatpush1.bf16.msra.mxu0 %v4285
    %4305 = vmatprep.subr.bf16.mxu0 0
    %4306 = vmatpush1.bf16.msra.mxu0 %v4286
    %4307 = vmatprep.subr.bf16.mxu0 0
    %4308 = vmatpush1.bf16.msra.mxu0 %v4287
    %4309 = vmatprep.subr.bf16.mxu0 0
    %4310 = vmatpush1.bf16.msra.mxu0 %v4288
    %4311 = vmatprep.subr.bf16.mxu0 0
    %4312 = vmatpush1.bf16.msra.mxu0 %v4289
    %4313 = vmatprep.subr.bf16.mxu0 0
    %4314 = vmatpush1.bf16.msra.mxu0 %v4290
    %4315 = vmatprep.subr.bf16.mxu0 0
    %4316 = vmatpush1.bf16.msra.mxu0 0
    %4317 = vmatprep.subr.bf16.mxu0 0
    %4318 = vmatpush1.bf16.msra.mxu0 0
    %4319 = vmatprep.subr.bf16.mxu0 0
    %4320 = vmatpush1.bf16.msra.mxu0 0
    %4321 = vmatprep.subr.bf16.mxu0 0
    %4322 = vmatpush1.bf16.msra.mxu0 0
    %4323 = vmatprep.subr.bf16.mxu0 0
    %4324 = vmatpush1.bf16.msra.mxu0 0
    %4325 = vmatprep.subr.bf16.mxu0 0
    %4326 = vmatpush1.bf16.msra.mxu0 0
    %4327 = vmatprep.subr.bf16.mxu0 0
    %4328 = vmatpush1.bf16.msra.mxu0 0
    %4329 = vmatprep.subr.bf16.mxu0 0
    %4330 = vmatpush1.bf16.msra.mxu0 0
    %4331 = vmatprep.mubr.bf16.mxu0 0
    %4332 = vmatmul.mubr.bf16.gmra.mrb[0].mxu0 %v4127
    %v4333 = vpop.f32.mrb[0].mxu0
    %v4334 = vadd.f32 0.0, %v4333
    %v4335 = vpop.f32.mrb[0].mxu0
    %v4336 = vpop.f32.mrb[0].mxu0
    %v4337 = vpop.f32.mrb[0].mxu0
    %4338 = vdwg.mxu0
    %v4339 = vpack.c.bf16 %v4334, %v4334
    %s4340 = scalar_lea.vmem [#allocation2], 3072
    %v4341 = vld [vmem:[%s4340] sm:$0xf]
    %s4342 = scalar_lea.vmem [#allocation2], 3136
    %v4343 = vld [vmem:[%s4342] sm:$0xf]
    %vm4344 = vcmask 15360
    %v4346 = vsel %vm4344, %v4343, 0
    %v4349 = vsel %vm384, %v4339, 0
    %4351 = vmatprep.subr.bf16.mxu0 0
    %4352 = vmatpush1.bf16.msra.mxu0 %v4349
    %4353 = vmatprep.subr.bf16.mxu0 0
    %4354 = vmatpush1.bf16.msra.mxu0 0
    %4355 = vmatprep.subr.bf16.mxu0 0
    %4356 = vmatpush1.bf16.msra.mxu0 0
    %4357 = vmatprep.subr.bf16.mxu0 0
    %4358 = vmatpush1.bf16.msra.mxu0 0
    %4359 = vmatprep.subr.bf16.mxu0 0
    %4360 = vmatpush1.bf16.msra.mxu0 0
    %4361 = vmatprep.subr.bf16.mxu0 0
    %4362 = vmatpush1.bf16.msra.mxu0 0
    %4363 = vmatprep.subr.bf16.mxu0 0
    %4364 = vmatpush1.bf16.msra.mxu0 0
    %4365 = vmatprep.subr.bf16.mxu0 0
    %4366 = vmatpush1.bf16.msra.mxu0 0
    %4367 = vmatprep.subr.bf16.mxu0 0
    %4368 = vmatpush1.bf16.msra.mxu0 0
    %4369 = vmatprep.subr.bf16.mxu0 0
    %4370 = vmatpush1.bf16.msra.mxu0 0
    %4371 = vmatprep.subr.bf16.mxu0 0
    %4372 = vmatpush1.bf16.msra.mxu0 0
    %4373 = vmatprep.subr.bf16.mxu0 0
    %4374 = vmatpush1.bf16.msra.mxu0 0
    %4375 = vmatprep.subr.bf16.mxu0 0
    %4376 = vmatpush1.bf16.msra.mxu0 0
    %4377 = vmatprep.subr.bf16.mxu0 0
    %4378 = vmatpush1.bf16.msra.mxu0 0
    %4379 = vmatprep.subr.bf16.mxu0 0
    %4380 = vmatpush1.bf16.msra.mxu0 0
    %4381 = vmatprep.subr.bf16.mxu0 0
    %4382 = vmatpush1.bf16.msra.mxu0 0
    %4383 = vmatprep.mubr.bf16.mxu0 0
    %4384 = vmatmul.mubr.bf16.gmra.mrb[0].mxu0 %v4346
    %v4385 = vpop.f32.mrb[0].mxu0
    %v4386 = vadd.f32 0.0, %v4385
    %v4387 = vpop.f32.mrb[0].mxu0
    %v4388 = vpop.f32.mrb[0].mxu0
    %v4389 = vpop.f32.mrb[0].mxu0
    %4390 = vdwg.mxu0
    %v4392 = vsel %vm4344, %v4341, 0
    %v4395 = vsel %vm384, %v4233, 0
    %4397 = vmatprep.subr.bf16.mxu0 0
    %4398 = vmatpush1.bf16.msra.mxu0 %v4395
    %4399 = vmatprep.subr.bf16.mxu0 0
    %4400 = vmatpush1.bf16.msra.mxu0 0
    %4401 = vmatprep.subr.bf16.mxu0 0
    %4402 = vmatpush1.bf16.msra.mxu0 0
    %4403 = vmatprep.subr.bf16.mxu0 0
    %4404 = vmatpush1.bf16.msra.mxu0 0
    %4405 = vmatprep.subr.bf16.mxu0 0
    %4406 = vmatpush1.bf16.msra.mxu0 0
    %4407 = vmatprep.subr.bf16.mxu0 0
    %4408 = vmatpush1.bf16.msra.mxu0 0
    %4409 = vmatprep.subr.bf16.mxu0 0
    %4410 = vmatpush1.bf16.msra.mxu0 0
    %4411 = vmatprep.subr.bf16.mxu0 0
    %4412 = vmatpush1.bf16.msra.mxu0 0
    %4413 = vmatprep.subr.bf16.mxu0 0
    %4414 = vmatpush1.bf16.msra.mxu0 0
    %4415 = vmatprep.subr.bf16.mxu0 0
    %4416 = vmatpush1.bf16.msra.mxu0 0
    %4417 = vmatprep.subr.bf16.mxu0 0
    %4418 = vmatpush1.bf16.msra.mxu0 0
    %4419 = vmatprep.subr.bf16.mxu0 0
    %4420 = vmatpush1.bf16.msra.mxu0 0
    %4421 = vmatprep.subr.bf16.mxu0 0
    %4422 = vmatpush1.bf16.msra.mxu0 0
    %4423 = vmatprep.subr.bf16.mxu0 0
    %4424 = vmatpush1.bf16.msra.mxu0 0
    %4425 = vmatprep.subr.bf16.mxu0 0
    %4426 = vmatpush1.bf16.msra.mxu0 0
    %4427 = vmatprep.subr.bf16.mxu0 0
    %4428 = vmatpush1.bf16.msra.mxu0 0
    %4429 = vmatprep.mubr.bf16.mxu0 0
    %4430 = vmatmul.mubr.bf16.gmra.mrb[0].mxu0 %v4392
    %v4431 = vpop.f32.mrb[0].mxu0
    %v4432 = vadd.f32 %v4386, %v4431
    %v4433 = vpop.f32.mrb[0].mxu0
    %v4434 = vpop.f32.mrb[0].mxu0
    %v4435 = vpop.f32.mrb[0].mxu0
    %4436 = vdwg.mxu0
    %v4437 = vld [vmem:[#allocation5 + $0xa] sm:$0x1]
    %v4438 = vlaneseq
    %v4439 = vshrl.u32 %v4438, 7
    %v4440 = vsub.s32 0, %v4439
    %v4441 = vrot.slane %v4437, %v4440
    %v4442 = vadd.f32 %v4432, %v4441
    %s4443 = scalar_lea.vmem [#allocation2], 3264
    %v4444 = vld [vmem:[%s4443] sm:$0xf]
    %v4445 = vld [vmem:[%s4443 + $0x4] sm:$0xf]
    %v4446 = vld [vmem:[%s4443 + $0x8] sm:$0xf]
    %v4447 = vld [vmem:[%s4443 + $0xc] sm:$0xf]
    %v4448 = vld [vmem:[%s4443 + $0x10] sm:$0xf]
    %v4449 = vld [vmem:[%s4443 + $0x14] sm:$0xf]
    %v4450 = vld [vmem:[%s4443 + $0x18] sm:$0xf]
    %v4451 = vld [vmem:[%s4443 + $0x1c] sm:$0xf]
    %v4452 = vld [vmem:[%s4443 + $0x20] sm:$0xf]
    %v4453 = vld [vmem:[%s4443 + $0x24] sm:$0xf]
    %v4454 = vld [vmem:[%s4443 + $0x28] sm:$0xf]
    %v4455 = vld [vmem:[%s4443 + $0x2c] sm:$0xf]
    %v4456 = vld [vmem:[%s4443 + $0x30] sm:$0xf]
    %v4457 = vld [vmem:[%s4443 + $0x34] sm:$0xf]
    %v4458 = vld [vmem:[%s4443 + $0x38] sm:$0xf]
    %v4459 = vld [vmem:[%s4443 + $0x3c] sm:$0xf]
    %s4460 = scalar_lea.vmem [#allocation2], 3200
    %v4461 = vld [vmem:[%s4460] sm:$0xf]
    %v4462 = vld [vmem:[%s4460 + $0x4] sm:$0xf]
    %v4463 = vld [vmem:[%s4460 + $0x8] sm:$0xf]
    %v4464 = vld [vmem:[%s4460 + $0xc] sm:$0xf]
    %v4465 = vld [vmem:[%s4460 + $0x10] sm:$0xf]
    %v4466 = vld [vmem:[%s4460 + $0x14] sm:$0xf]
    %v4467 = vld [vmem:[%s4460 + $0x18] sm:$0xf]
    %v4468 = vld [vmem:[%s4460 + $0x1c] sm:$0xf]
    %v4469 = vld [vmem:[%s4460 + $0x20] sm:$0xf]
    %v4470 = vld [vmem:[%s4460 + $0x24] sm:$0xf]
    %v4471 = vld [vmem:[%s4460 + $0x28] sm:$0xf]
    %v4472 = vld [vmem:[%s4460 + $0x2c] sm:$0xf]
    %v4473 = vld [vmem:[%s4460 + $0x30] sm:$0xf]
    %v4474 = vld [vmem:[%s4460 + $0x34] sm:$0xf]
    %v4475 = vld [vmem:[%s4460 + $0x38] sm:$0xf]
    %v4476 = vld [vmem:[%s4460 + $0x3c] sm:$0xf]
    %v4493 = vunpack.c.l.b16 %v4461
    %v4494 = vunpack.c.l.b16 %v4462
    %v4495 = vunpack.c.l.b16 %v4463
    %v4496 = vunpack.c.l.b16 %v4464
    %v4497 = vunpack.c.l.b16 %v4465
    %v4498 = vunpack.c.l.b16 %v4466
    %v4499 = vunpack.c.l.b16 %v4467
    %v4500 = vunpack.c.l.b16 %v4468
    %v4501 = vunpack.c.l.b16 %v4469
    %v4502 = vunpack.c.l.b16 %v4470
    %v4503 = vunpack.c.l.b16 %v4471
    %v4504 = vunpack.c.l.b16 %v4472
    %v4505 = vunpack.c.l.b16 %v4473
    %v4506 = vunpack.c.l.b16 %v4474
    %v4507 = vunpack.c.l.b16 %v4475
    %v4508 = vunpack.c.l.b16 %v4476
    %v4509 = vpack.c.b16 %v4494, %v4493
    %v4510 = vpack.c.b16 %v4496, %v4495
    %v4511 = vpack.c.b16 %v4498, %v4497
    %v4512 = vpack.c.b16 %v4500, %v4499
    %v4513 = vpack.c.b16 %v4502, %v4501
    %v4514 = vpack.c.b16 %v4504, %v4503
    %v4515 = vpack.c.b16 %v4506, %v4505
    %v4516 = vpack.c.b16 %v4508, %v4507
    %4525 = vmatprep.subr.bf16.mxu0 0
    %4526 = vmatpush1.bf16.msra.mxu0 %v4509
    %4527 = vmatprep.subr.bf16.mxu0 0
    %4528 = vmatpush1.bf16.msra.mxu0 %v4510
    %4529 = vmatprep.subr.bf16.mxu0 0
    %4530 = vmatpush1.bf16.msra.mxu0 %v4511
    %4531 = vmatprep.subr.bf16.mxu0 0
    %4532 = vmatpush1.bf16.msra.mxu0 %v4512
    %4533 = vmatprep.subr.bf16.mxu0 0
    %4534 = vmatpush1.bf16.msra.mxu0 %v4513
    %4535 = vmatprep.subr.bf16.mxu0 0
    %4536 = vmatpush1.bf16.msra.mxu0 %v4514
    %4537 = vmatprep.subr.bf16.mxu0 0
    %4538 = vmatpush1.bf16.msra.mxu0 %v4515
    %4539 = vmatprep.subr.bf16.mxu0 0
    %4540 = vmatpush1.bf16.msra.mxu0 %v4516
    %4541 = vmatprep.subr.bf16.mxu0 0
    %4542 = vmatpush1.bf16.msra.mxu0 0
    %4543 = vmatprep.subr.bf16.mxu0 0
    %4544 = vmatpush1.bf16.msra.mxu0 0
    %4545 = vmatprep.subr.bf16.mxu0 0
    %4546 = vmatpush1.bf16.msra.mxu0 0
    %4547 = vmatprep.subr.bf16.mxu0 0
    %4548 = vmatpush1.bf16.msra.mxu0 0
    %4549 = vmatprep.subr.bf16.mxu0 0
    %4550 = vmatpush1.bf16.msra.mxu0 0
    %4551 = vmatprep.subr.bf16.mxu0 0
    %4552 = vmatpush1.bf16.msra.mxu0 0
    %4553 = vmatprep.subr.bf16.mxu0 0
    %4554 = vmatpush1.bf16.msra.mxu0 0
    %4555 = vmatprep.subr.bf16.mxu0 0
    %4556 = vmatpush1.bf16.msra.mxu0 0
    %4557 = vmatprep.mubr.bf16.mxu0 0
    %4558 = vmatmul.mubr.bf16.gmra.mrb[0].mxu0 %v3623
    %v4559 = vpop.f32.mrb[0].mxu0
    %v4560 = vadd.f32 0.0, %v4559
    %v4561 = vpop.f32.mrb[0].mxu0
    %v4562 = vpop.f32.mrb[0].mxu0
    %v4563 = vpop.f32.mrb[0].mxu0
    %4564 = vdwg.mxu0
    %s4565 = scalar_lea.vmem [#allocation2], 3328
    %v4566 = vld [vmem:[%s4565] sm:$0xf]
    %v4567 = vld [vmem:[%s4565 + $0x4] sm:$0xf]
    %v4568 = vld [vmem:[%s4565 + $0x8] sm:$0xf]
    %v4569 = vld [vmem:[%s4565 + $0xc] sm:$0xf]
    %v4570 = vld [vmem:[%s4565 + $0x10] sm:$0xf]
    %v4571 = vld [vmem:[%s4565 + $0x14] sm:$0xf]
    %v4572 = vld [vmem:[%s4565 + $0x18] sm:$0xf]
    %v4573 = vld [vmem:[%s4565 + $0x1c] sm:$0xf]
    %v4574 = vld [vmem:[%s4565 + $0x20] sm:$0xf]
    %v4575 = vld [vmem:[%s4565 + $0x24] sm:$0xf]
    %v4576 = vld [vmem:[%s4565 + $0x28] sm:$0xf]
    %v4577 = vld [vmem:[%s4565 + $0x2c] sm:$0xf]
    %v4578 = vld [vmem:[%s4565 + $0x30] sm:$0xf]
    %v4579 = vld [vmem:[%s4565 + $0x34] sm:$0xf]
    %v4580 = vld [vmem:[%s4565 + $0x38] sm:$0xf]
    %v4581 = vld [vmem:[%s4565 + $0x3c] sm:$0xf]
    %v4598 = vunpack.c.l.b16 %v4566
    %v4599 = vunpack.c.l.b16 %v4567
    %v4600 = vunpack.c.l.b16 %v4568
    %v4601 = vunpack.c.l.b16 %v4569
    %v4602 = vunpack.c.l.b16 %v4570
    %v4603 = vunpack.c.l.b16 %v4571
    %v4604 = vunpack.c.l.b16 %v4572
    %v4605 = vunpack.c.l.b16 %v4573
    %v4606 = vunpack.c.l.b16 %v4574
    %v4607 = vunpack.c.l.b16 %v4575
    %v4608 = vunpack.c.l.b16 %v4576
    %v4609 = vunpack.c.l.b16 %v4577
    %v4610 = vunpack.c.l.b16 %v4578
    %v4611 = vunpack.c.l.b16 %v4579
    %v4612 = vunpack.c.l.b16 %v4580
    %v4613 = vunpack.c.l.b16 %v4581
    %v4614 = vpack.c.b16 %v4599, %v4598
    %v4615 = vpack.c.b16 %v4601, %v4600
    %v4616 = vpack.c.b16 %v4603, %v4602
    %v4617 = vpack.c.b16 %v4605, %v4604
    %v4618 = vpack.c.b16 %v4607, %v4606
    %v4619 = vpack.c.b16 %v4609, %v4608
    %v4620 = vpack.c.b16 %v4611, %v4610
    %v4621 = vpack.c.b16 %v4613, %v4612
    %4630 = vmatprep.subr.bf16.mxu0 0
    %4631 = vmatpush1.bf16.msra.mxu0 %v4614
    %4632 = vmatprep.subr.bf16.mxu0 0
    %4633 = vmatpush1.bf16.msra.mxu0 %v4615
    %4634 = vmatprep.subr.bf16.mxu0 0
    %4635 = vmatpush1.bf16.msra.mxu0 %v4616
    %4636 = vmatprep.subr.bf16.mxu0 0
    %4637 = vmatpush1.bf16.msra.mxu0 %v4617
    %4638 = vmatprep.subr.bf16.mxu0 0
    %4639 = vmatpush1.bf16.msra.mxu0 %v4618
    %4640 = vmatprep.subr.bf16.mxu0 0
    %4641 = vmatpush1.bf16.msra.mxu0 %v4619
    %4642 = vmatprep.subr.bf16.mxu0 0
    %4643 = vmatpush1.bf16.msra.mxu0 %v4620
    %4644 = vmatprep.subr.bf16.mxu0 0
    %4645 = vmatpush1.bf16.msra.mxu0 %v4621
    %4646 = vmatprep.subr.bf16.mxu0 0
    %4647 = vmatpush1.bf16.msra.mxu0 0
    %4648 = vmatprep.subr.bf16.mxu0 0
    %4649 = vmatpush1.bf16.msra.mxu0 0
    %4650 = vmatprep.subr.bf16.mxu0 0
    %4651 = vmatpush1.bf16.msra.mxu0 0
    %4652 = vmatprep.subr.bf16.mxu0 0
    %4653 = vmatpush1.bf16.msra.mxu0 0
    %4654 = vmatprep.subr.bf16.mxu0 0
    %4655 = vmatpush1.bf16.msra.mxu0 0
    %4656 = vmatprep.subr.bf16.mxu0 0
    %4657 = vmatpush1.bf16.msra.mxu0 0
    %4658 = vmatprep.subr.bf16.mxu0 0
    %4659 = vmatpush1.bf16.msra.mxu0 0
    %4660 = vmatprep.subr.bf16.mxu0 0
    %4661 = vmatpush1.bf16.msra.mxu0 0
    %4662 = vmatprep.mubr.bf16.mxu0 0
    %4663 = vmatmul.mubr.bf16.gmra.mrb[0].mxu0 %v3623
    %v4664 = vpop.f32.mrb[0].mxu0
    %v4665 = vadd.f32 0.0, %v4664
    %v4666 = vpop.f32.mrb[0].mxu0
    %v4667 = vpop.f32.mrb[0].mxu0
    %v4668 = vpop.f32.mrb[0].mxu0
    %4669 = vdwg.mxu0
    %v4671 = vrot.slane %v4560, 3
    %v4673 = vrot.slane %v4560, 7
    %v4675 = vsel %vm384, %v4671, %v4673
    %v4676 = vmul.f32 %v189, %v4675
    %v4693 = vunpack.c.l.b16 %v4444
    %v4694 = vunpack.c.l.b16 %v4445
    %v4695 = vunpack.c.l.b16 %v4446
    %v4696 = vunpack.c.l.b16 %v4447
    %v4697 = vunpack.c.l.b16 %v4448
    %v4698 = vunpack.c.l.b16 %v4449
    %v4699 = vunpack.c.l.b16 %v4450
    %v4700 = vunpack.c.l.b16 %v4451
    %v4701 = vunpack.c.l.b16 %v4452
    %v4702 = vunpack.c.l.b16 %v4453
    %v4703 = vunpack.c.l.b16 %v4454
    %v4704 = vunpack.c.l.b16 %v4455
    %v4705 = vunpack.c.l.b16 %v4456
    %v4706 = vunpack.c.l.b16 %v4457
    %v4707 = vunpack.c.l.b16 %v4458
    %v4708 = vunpack.c.l.b16 %v4459
    %v4709 = vpack.c.b16 %v4694, %v4693
    %v4710 = vpack.c.b16 %v4696, %v4695
    %v4711 = vpack.c.b16 %v4698, %v4697
    %v4712 = vpack.c.b16 %v4700, %v4699
    %v4713 = vpack.c.b16 %v4702, %v4701
    %v4714 = vpack.c.b16 %v4704, %v4703
    %v4715 = vpack.c.b16 %v4706, %v4705
    %v4716 = vpack.c.b16 %v4708, %v4707
    %4725 = vmatprep.subr.bf16.mxu0 0
    %4726 = vmatpush1.bf16.msra.mxu0 %v4709
    %4727 = vmatprep.subr.bf16.mxu0 0
    %4728 = vmatpush1.bf16.msra.mxu0 %v4710
    %4729 = vmatprep.subr.bf16.mxu0 0
    %4730 = vmatpush1.bf16.msra.mxu0 %v4711
    %4731 = vmatprep.subr.bf16.mxu0 0
    %4732 = vmatpush1.bf16.msra.mxu0 %v4712
    %4733 = vmatprep.subr.bf16.mxu0 0
    %4734 = vmatpush1.bf16.msra.mxu0 %v4713
    %4735 = vmatprep.subr.bf16.mxu0 0
    %4736 = vmatpush1.bf16.msra.mxu0 %v4714
    %4737 = vmatprep.subr.bf16.mxu0 0
    %4738 = vmatpush1.bf16.msra.mxu0 %v4715
    %4739 = vmatprep.subr.bf16.mxu0 0
    %4740 = vmatpush1.bf16.msra.mxu0 %v4716
    %4741 = vmatprep.subr.bf16.mxu0 0
    %4742 = vmatpush1.bf16.msra.mxu0 0
    %4743 = vmatprep.subr.bf16.mxu0 0
    %4744 = vmatpush1.bf16.msra.mxu0 0
    %4745 = vmatprep.subr.bf16.mxu0 0
    %4746 = vmatpush1.bf16.msra.mxu0 0
    %4747 = vmatprep.subr.bf16.mxu0 0
    %4748 = vmatpush1.bf16.msra.mxu0 0
    %4749 = vmatprep.subr.bf16.mxu0 0
    %4750 = vmatpush1.bf16.msra.mxu0 0
    %4751 = vmatprep.subr.bf16.mxu0 0
    %4752 = vmatpush1.bf16.msra.mxu0 0
    %4753 = vmatprep.subr.bf16.mxu0 0
    %4754 = vmatpush1.bf16.msra.mxu0 0
    %4755 = vmatprep.subr.bf16.mxu0 0
    %4756 = vmatpush1.bf16.msra.mxu0 0
    %4757 = vmatprep.mubr.bf16.mxu0 0
    %4758 = vmatmul.mubr.bf16.gmra.mrb[0].mxu0 %v3623
    %v4759 = vpop.f32.mrb[0].mxu0
    %v4760 = vadd.f32 %v4676, %v4759
    %v4761 = vpop.f32.mrb[0].mxu0
    %v4762 = vpop.f32.mrb[0].mxu0
    %v4763 = vpop.f32.mrb[0].mxu0
    %4764 = vdwg.mxu0
    %v4766 = vrot.slane %v4665, 1
    %v4768 = vrot.slane %v4665, 5
    %v4770 = vsel %vm3274, %v4766, %v4768
    %v4771 = vmul.f32 %v192, %v4770
    %v4772 = vadd.f32 %v4760, %v4771
    %v4773 = vpack.c.bf16 %v4442, %v4442
    %s4774 = scalar_lea.vmem [#allocation2], 3456
    %v4775 = vld [vmem:[%s4774] sm:$0xf]
    %v4776 = vld [vmem:[%s4774 + $0x4] sm:$0xf]
    %v4777 = vld [vmem:[%s4774 + $0x8] sm:$0xf]
    %v4778 = vld [vmem:[%s4774 + $0xc] sm:$0xf]
    %v4779 = vld [vmem:[%s4774 + $0x10] sm:$0xf]
    %v4780 = vld [vmem:[%s4774 + $0x14] sm:$0xf]
    %v4781 = vld [vmem:[%s4774 + $0x18] sm:$0xf]
    %v4782 = vld [vmem:[%s4774 + $0x1c] sm:$0xf]
    %v4783 = vld [vmem:[%s4774 + $0x20] sm:$0xf]
    %v4784 = vld [vmem:[%s4774 + $0x24] sm:$0xf]
    %v4785 = vld [vmem:[%s4774 + $0x28] sm:$0xf]
    %v4786 = vld [vmem:[%s4774 + $0x2c] sm:$0xf]
    %v4787 = vld [vmem:[%s4774 + $0x30] sm:$0xf]
    %v4788 = vld [vmem:[%s4774 + $0x34] sm:$0xf]
    %v4789 = vld [vmem:[%s4774 + $0x38] sm:$0xf]
    %v4790 = vld [vmem:[%s4774 + $0x3c] sm:$0xf]
    %s4791 = scalar_lea.vmem [#allocation2], 3392
    %v4792 = vld [vmem:[%s4791] sm:$0xf]
    %v4793 = vld [vmem:[%s4791 + $0x4] sm:$0xf]
    %v4794 = vld [vmem:[%s4791 + $0x8] sm:$0xf]
    %v4795 = vld [vmem:[%s4791 + $0xc] sm:$0xf]
    %v4796 = vld [vmem:[%s4791 + $0x10] sm:$0xf]
    %v4797 = vld [vmem:[%s4791 + $0x14] sm:$0xf]
    %v4798 = vld [vmem:[%s4791 + $0x18] sm:$0xf]
    %v4799 = vld [vmem:[%s4791 + $0x1c] sm:$0xf]
    %v4800 = vld [vmem:[%s4791 + $0x20] sm:$0xf]
    %v4801 = vld [vmem:[%s4791 + $0x24] sm:$0xf]
    %v4802 = vld [vmem:[%s4791 + $0x28] sm:$0xf]
    %v4803 = vld [vmem:[%s4791 + $0x2c] sm:$0xf]
    %v4804 = vld [vmem:[%s4791 + $0x30] sm:$0xf]
    %v4805 = vld [vmem:[%s4791 + $0x34] sm:$0xf]
    %v4806 = vld [vmem:[%s4791 + $0x38] sm:$0xf]
    %v4807 = vld [vmem:[%s4791 + $0x3c] sm:$0xf]
    %v4824 = vunpack.c.l.b16 %v4792
    %v4825 = vunpack.c.l.b16 %v4793
    %v4826 = vunpack.c.l.b16 %v4794
    %v4827 = vunpack.c.l.b16 %v4795
    %v4828 = vunpack.c.l.b16 %v4796
    %v4829 = vunpack.c.l.b16 %v4797
    %v4830 = vunpack.c.l.b16 %v4798
    %v4831 = vunpack.c.l.b16 %v4799
    %v4832 = vunpack.c.l.b16 %v4800
    %v4833 = vunpack.c.l.b16 %v4801
    %v4834 = vunpack.c.l.b16 %v4802
    %v4835 = vunpack.c.l.b16 %v4803
    %v4836 = vunpack.c.l.b16 %v4804
    %v4837 = vunpack.c.l.b16 %v4805
    %v4838 = vunpack.c.l.b16 %v4806
    %v4839 = vunpack.c.l.b16 %v4807
    %v4840 = vpack.c.b16 %v4825, %v4824
    %v4841 = vpack.c.b16 %v4827, %v4826
    %v4842 = vpack.c.b16 %v4829, %v4828
    %v4843 = vpack.c.b16 %v4831, %v4830
    %v4844 = vpack.c.b16 %v4833, %v4832
    %v4845 = vpack.c.b16 %v4835, %v4834
    %v4846 = vpack.c.b16 %v4837, %v4836
    %v4847 = vpack.c.b16 %v4839, %v4838
    %4856 = vmatprep.subr.bf16.mxu0 0
    %4857 = vmatpush1.bf16.msra.mxu0 %v4840
    %4858 = vmatprep.subr.bf16.mxu0 0
    %4859 = vmatpush1.bf16.msra.mxu0 %v4841
    %4860 = vmatprep.subr.bf16.mxu0 0
    %4861 = vmatpush1.bf16.msra.mxu0 %v4842
    %4862 = vmatprep.subr.bf16.mxu0 0
    %4863 = vmatpush1.bf16.msra.mxu0 %v4843
    %4864 = vmatprep.subr.bf16.mxu0 0
    %4865 = vmatpush1.bf16.msra.mxu0 %v4844
    %4866 = vmatprep.subr.bf16.mxu0 0
    %4867 = vmatpush1.bf16.msra.mxu0 %v4845
    %4868 = vmatprep.subr.bf16.mxu0 0
    %4869 = vmatpush1.bf16.msra.mxu0 %v4846
    %4870 = vmatprep.subr.bf16.mxu0 0
    %4871 = vmatpush1.bf16.msra.mxu0 %v4847
    %4872 = vmatprep.subr.bf16.mxu0 0
    %4873 = vmatpush1.bf16.msra.mxu0 0
    %4874 = vmatprep.subr.bf16.mxu0 0
    %4875 = vmatpush1.bf16.msra.mxu0 0
    %4876 = vmatprep.subr.bf16.mxu0 0
    %4877 = vmatpush1.bf16.msra.mxu0 0
    %4878 = vmatprep.subr.bf16.mxu0 0
    %4879 = vmatpush1.bf16.msra.mxu0 0
    %4880 = vmatprep.subr.bf16.mxu0 0
    %4881 = vmatpush1.bf16.msra.mxu0 0
    %4882 = vmatprep.subr.bf16.mxu0 0
    %4883 = vmatpush1.bf16.msra.mxu0 0
    %4884 = vmatprep.subr.bf16.mxu0 0
    %4885 = vmatpush1.bf16.msra.mxu0 0
    %4886 = vmatprep.subr.bf16.mxu0 0
    %4887 = vmatpush1.bf16.msra.mxu0 0
    %4888 = vmatprep.mubr.bf16.mxu0 0
    %4889 = vmatmul.mubr.bf16.gmra.mrb[0].mxu0 %v4773
    %v4890 = vpop.f32.mrb[0].mxu0
    %v4891 = vadd.f32 0.0, %v4890
    %v4892 = vpop.f32.mrb[0].mxu0
    %v4893 = vpop.f32.mrb[0].mxu0
    %v4894 = vpop.f32.mrb[0].mxu0
    %4895 = vdwg.mxu0
    %s4896 = scalar_lea.vmem [#allocation2], 3520
    %v4897 = vld [vmem:[%s4896] sm:$0xf]
    %v4898 = vld [vmem:[%s4896 + $0x4] sm:$0xf]
    %v4899 = vld [vmem:[%s4896 + $0x8] sm:$0xf]
    %v4900 = vld [vmem:[%s4896 + $0xc] sm:$0xf]
    %v4901 = vld [vmem:[%s4896 + $0x10] sm:$0xf]
    %v4902 = vld [vmem:[%s4896 + $0x14] sm:$0xf]
    %v4903 = vld [vmem:[%s4896 + $0x18] sm:$0xf]
    %v4904 = vld [vmem:[%s4896 + $0x1c] sm:$0xf]
    %v4905 = vld [vmem:[%s4896 + $0x20] sm:$0xf]
    %v4906 = vld [vmem:[%s4896 + $0x24] sm:$0xf]
    %v4907 = vld [vmem:[%s4896 + $0x28] sm:$0xf]
    %v4908 = vld [vmem:[%s4896 + $0x2c] sm:$0xf]
    %v4909 = vld [vmem:[%s4896 + $0x30] sm:$0xf]
    %v4910 = vld [vmem:[%s4896 + $0x34] sm:$0xf]
    %v4911 = vld [vmem:[%s4896 + $0x38] sm:$0xf]
    %v4912 = vld [vmem:[%s4896 + $0x3c] sm:$0xf]
    %v4929 = vunpack.c.l.b16 %v4897
    %v4930 = vunpack.c.l.b16 %v4898
    %v4931 = vunpack.c.l.b16 %v4899
    %v4932 = vunpack.c.l.b16 %v4900
    %v4933 = vunpack.c.l.b16 %v4901
    %v4934 = vunpack.c.l.b16 %v4902
    %v4935 = vunpack.c.l.b16 %v4903
    %v4936 = vunpack.c.l.b16 %v4904
    %v4937 = vunpack.c.l.b16 %v4905
    %v4938 = vunpack.c.l.b16 %v4906
    %v4939 = vunpack.c.l.b16 %v4907
    %v4940 = vunpack.c.l.b16 %v4908
    %v4941 = vunpack.c.l.b16 %v4909
    %v4942 = vunpack.c.l.b16 %v4910
    %v4943 = vunpack.c.l.b16 %v4911
    %v4944 = vunpack.c.l.b16 %v4912
    %v4945 = vpack.c.b16 %v4930, %v4929
    %v4946 = vpack.c.b16 %v4932, %v4931
    %v4947 = vpack.c.b16 %v4934, %v4933
    %v4948 = vpack.c.b16 %v4936, %v4935
    %v4949 = vpack.c.b16 %v4938, %v4937
    %v4950 = vpack.c.b16 %v4940, %v4939
    %v4951 = vpack.c.b16 %v4942, %v4941
    %v4952 = vpack.c.b16 %v4944, %v4943
    %4961 = vmatprep.subr.bf16.mxu0 0
    %4962 = vmatpush1.bf16.msra.mxu0 %v4945
    %4963 = vmatprep.subr.bf16.mxu0 0
    %4964 = vmatpush1.bf16.msra.mxu0 %v4946
    %4965 = vmatprep.subr.bf16.mxu0 0
    %4966 = vmatpush1.bf16.msra.mxu0 %v4947
    %4967 = vmatprep.subr.bf16.mxu0 0
    %4968 = vmatpush1.bf16.msra.mxu0 %v4948
    %4969 = vmatprep.subr.bf16.mxu0 0
    %4970 = vmatpush1.bf16.msra.mxu0 %v4949
    %4971 = vmatprep.subr.bf16.mxu0 0
    %4972 = vmatpush1.bf16.msra.mxu0 %v4950
    %4973 = vmatprep.subr.bf16.mxu0 0
    %4974 = vmatpush1.bf16.msra.mxu0 %v4951
    %4975 = vmatprep.subr.bf16.mxu0 0
    %4976 = vmatpush1.bf16.msra.mxu0 %v4952
    %4977 = vmatprep.subr.bf16.mxu0 0
    %4978 = vmatpush1.bf16.msra.mxu0 0
    %4979 = vmatprep.subr.bf16.mxu0 0
    %4980 = vmatpush1.bf16.msra.mxu0 0
    %4981 = vmatprep.subr.bf16.mxu0 0
    %4982 = vmatpush1.bf16.msra.mxu0 0
    %4983 = vmatprep.subr.bf16.mxu0 0
    %4984 = vmatpush1.bf16.msra.mxu0 0
    %4985 = vmatprep.subr.bf16.mxu0 0
    %4986 = vmatpush1.bf16.msra.mxu0 0
    %4987 = vmatprep.subr.bf16.mxu0 0
    %4988 = vmatpush1.bf16.msra.mxu0 0
    %4989 = vmatprep.subr.bf16.mxu0 0
    %4990 = vmatpush1.bf16.msra.mxu0 0
    %4991 = vmatprep.subr.bf16.mxu0 0
    %4992 = vmatpush1.bf16.msra.mxu0 0
    %4993 = vmatprep.mubr.bf16.mxu0 0
    %4994 = vmatmul.mubr.bf16.gmra.mrb[0].mxu0 %v4773
    %v4995 = vpop.f32.mrb[0].mxu0
    %v4996 = vadd.f32 0.0, %v4995
    %v4997 = vpop.f32.mrb[0].mxu0
    %v4998 = vpop.f32.mrb[0].mxu0
    %v4999 = vpop.f32.mrb[0].mxu0
    %5000 = vdwg.mxu0
    %v5002 = vrot.slane %v4891, 3
    %v5004 = vrot.slane %v4891, 7
    %v5006 = vsel %vm384, %v5002, %v5004
    %v5007 = vmul.f32 %v189, %v5006
    %v5024 = vunpack.c.l.b16 %v4775
    %v5025 = vunpack.c.l.b16 %v4776
    %v5026 = vunpack.c.l.b16 %v4777
    %v5027 = vunpack.c.l.b16 %v4778
    %v5028 = vunpack.c.l.b16 %v4779
    %v5029 = vunpack.c.l.b16 %v4780
    %v5030 = vunpack.c.l.b16 %v4781
    %v5031 = vunpack.c.l.b16 %v4782
    %v5032 = vunpack.c.l.b16 %v4783
    %v5033 = vunpack.c.l.b16 %v4784
    %v5034 = vunpack.c.l.b16 %v4785
    %v5035 = vunpack.c.l.b16 %v4786
    %v5036 = vunpack.c.l.b16 %v4787
    %v5037 = vunpack.c.l.b16 %v4788
    %v5038 = vunpack.c.l.b16 %v4789
    %v5039 = vunpack.c.l.b16 %v4790
    %v5040 = vpack.c.b16 %v5025, %v5024
    %v5041 = vpack.c.b16 %v5027, %v5026
    %v5042 = vpack.c.b16 %v5029, %v5028
    %v5043 = vpack.c.b16 %v5031, %v5030
    %v5044 = vpack.c.b16 %v5033, %v5032
    %v5045 = vpack.c.b16 %v5035, %v5034
    %v5046 = vpack.c.b16 %v5037, %v5036
    %v5047 = vpack.c.b16 %v5039, %v5038
    %5056 = vmatprep.subr.bf16.mxu0 0
    %5057 = vmatpush1.bf16.msra.mxu0 %v5040
    %5058 = vmatprep.subr.bf16.mxu0 0
    %5059 = vmatpush1.bf16.msra.mxu0 %v5041
    %5060 = vmatprep.subr.bf16.mxu0 0
    %5061 = vmatpush1.bf16.msra.mxu0 %v5042
    %5062 = vmatprep.subr.bf16.mxu0 0
    %5063 = vmatpush1.bf16.msra.mxu0 %v5043
    %5064 = vmatprep.subr.bf16.mxu0 0
    %5065 = vmatpush1.bf16.msra.mxu0 %v5044
    %5066 = vmatprep.subr.bf16.mxu0 0
    %5067 = vmatpush1.bf16.msra.mxu0 %v5045
    %5068 = vmatprep.subr.bf16.mxu0 0
    %5069 = vmatpush1.bf16.msra.mxu0 %v5046
    %5070 = vmatprep.subr.bf16.mxu0 0
    %5071 = vmatpush1.bf16.msra.mxu0 %v5047
    %5072 = vmatprep.subr.bf16.mxu0 0
    %5073 = vmatpush1.bf16.msra.mxu0 0
    %5074 = vmatprep.subr.bf16.mxu0 0
    %5075 = vmatpush1.bf16.msra.mxu0 0
    %5076 = vmatprep.subr.bf16.mxu0 0
    %5077 = vmatpush1.bf16.msra.mxu0 0
    %5078 = vmatprep.subr.bf16.mxu0 0
    %5079 = vmatpush1.bf16.msra.mxu0 0
    %5080 = vmatprep.subr.bf16.mxu0 0
    %5081 = vmatpush1.bf16.msra.mxu0 0
    %5082 = vmatprep.subr.bf16.mxu0 0
    %5083 = vmatpush1.bf16.msra.mxu0 0
    %5084 = vmatprep.subr.bf16.mxu0 0
    %5085 = vmatpush1.bf16.msra.mxu0 0
    %5086 = vmatprep.subr.bf16.mxu0 0
    %5087 = vmatpush1.bf16.msra.mxu0 0
    %5088 = vmatprep.mubr.bf16.mxu0 0
    %5089 = vmatmul.mubr.bf16.gmra.mrb[0].mxu0 %v4773
    %v5090 = vpop.f32.mrb[0].mxu0
    %v5091 = vadd.f32 %v5007, %v5090
    %v5092 = vpop.f32.mrb[0].mxu0
    %v5093 = vpop.f32.mrb[0].mxu0
    %v5094 = vpop.f32.mrb[0].mxu0
    %5095 = vdwg.mxu0
    %v5097 = vrot.slane %v4996, 1
    %v5099 = vrot.slane %v4996, 5
    %v5101 = vsel %vm3274, %v5097, %v5099
    %v5102 = vmul.f32 %v192, %v5101
    %v5103 = vadd.f32 %v5091, %v5102
    %v5104 = vadd.f32 %v4772, %v5103
    %v5105 = vld [vmem:[#allocation5 + $0xb] sm:$0x1]
    %v5106 = vlaneseq
    %v5107 = vshrl.u32 %v5106, 7
    %v5108 = vsub.s32 0, %v5107
    %v5109 = vrot.slane %v5105, %v5108
    %v5110 = vadd.f32 %v5104, %v5109
    %v5111 = vmax.f32 %v5110, 0.0
    %v5112 = vpack.c.bf16 %v5111, %v5111
    %s5113 = scalar_lea.vmem [#allocation2], 3648
    %v5114 = vld [vmem:[%s5113] sm:$0xf]
    %v5115 = vld [vmem:[%s5113 + $0x4] sm:$0xf]
    %v5116 = vld [vmem:[%s5113 + $0x8] sm:$0xf]
    %v5117 = vld [vmem:[%s5113 + $0xc] sm:$0xf]
    %v5118 = vld [vmem:[%s5113 + $0x10] sm:$0xf]
    %v5119 = vld [vmem:[%s5113 + $0x14] sm:$0xf]
    %v5120 = vld [vmem:[%s5113 + $0x18] sm:$0xf]
    %v5121 = vld [vmem:[%s5113 + $0x1c] sm:$0xf]
    %v5122 = vld [vmem:[%s5113 + $0x20] sm:$0xf]
    %v5123 = vld [vmem:[%s5113 + $0x24] sm:$0xf]
    %v5124 = vld [vmem:[%s5113 + $0x28] sm:$0xf]
    %v5125 = vld [vmem:[%s5113 + $0x2c] sm:$0xf]
    %v5126 = vld [vmem:[%s5113 + $0x30] sm:$0xf]
    %v5127 = vld [vmem:[%s5113 + $0x34] sm:$0xf]
    %v5128 = vld [vmem:[%s5113 + $0x38] sm:$0xf]
    %v5129 = vld [vmem:[%s5113 + $0x3c] sm:$0xf]
    %s5130 = scalar_lea.vmem [#allocation2], 3584
    %v5131 = vld [vmem:[%s5130] sm:$0xf]
    %v5132 = vld [vmem:[%s5130 + $0x4] sm:$0xf]
    %v5133 = vld [vmem:[%s5130 + $0x8] sm:$0xf]
    %v5134 = vld [vmem:[%s5130 + $0xc] sm:$0xf]
    %v5135 = vld [vmem:[%s5130 + $0x10] sm:$0xf]
    %v5136 = vld [vmem:[%s5130 + $0x14] sm:$0xf]
    %v5137 = vld [vmem:[%s5130 + $0x18] sm:$0xf]
    %v5138 = vld [vmem:[%s5130 + $0x1c] sm:$0xf]
    %v5139 = vld [vmem:[%s5130 + $0x20] sm:$0xf]
    %v5140 = vld [vmem:[%s5130 + $0x24] sm:$0xf]
    %v5141 = vld [vmem:[%s5130 + $0x28] sm:$0xf]
    %v5142 = vld [vmem:[%s5130 + $0x2c] sm:$0xf]
    %v5143 = vld [vmem:[%s5130 + $0x30] sm:$0xf]
    %v5144 = vld [vmem:[%s5130 + $0x34] sm:$0xf]
    %v5145 = vld [vmem:[%s5130 + $0x38] sm:$0xf]
    %v5146 = vld [vmem:[%s5130 + $0x3c] sm:$0xf]
    %v5163 = vunpack.c.l.b16 %v5131
    %v5164 = vunpack.c.l.b16 %v5132
    %v5165 = vunpack.c.l.b16 %v5133
    %v5166 = vunpack.c.l.b16 %v5134
    %v5167 = vunpack.c.l.b16 %v5135
    %v5168 = vunpack.c.l.b16 %v5136
    %v5169 = vunpack.c.l.b16 %v5137
    %v5170 = vunpack.c.l.b16 %v5138
    %v5171 = vunpack.c.l.b16 %v5139
    %v5172 = vunpack.c.l.b16 %v5140
    %v5173 = vunpack.c.l.b16 %v5141
    %v5174 = vunpack.c.l.b16 %v5142
    %v5175 = vunpack.c.l.b16 %v5143
    %v5176 = vunpack.c.l.b16 %v5144
    %v5177 = vunpack.c.l.b16 %v5145
    %v5178 = vunpack.c.l.b16 %v5146
    %v5179 = vpack.c.b16 %v5164, %v5163
    %v5180 = vpack.c.b16 %v5166, %v5165
    %v5181 = vpack.c.b16 %v5168, %v5167
    %v5182 = vpack.c.b16 %v5170, %v5169
    %v5183 = vpack.c.b16 %v5172, %v5171
    %v5184 = vpack.c.b16 %v5174, %v5173
    %v5185 = vpack.c.b16 %v5176, %v5175
    %v5186 = vpack.c.b16 %v5178, %v5177
    %5195 = vmatprep.subr.bf16.mxu0 0
    %5196 = vmatpush1.bf16.msra.mxu0 %v5179
    %5197 = vmatprep.subr.bf16.mxu0 0
    %5198 = vmatpush1.bf16.msra.mxu0 %v5180
    %5199 = vmatprep.subr.bf16.mxu0 0
    %5200 = vmatpush1.bf16.msra.mxu0 %v5181
    %5201 = vmatprep.subr.bf16.mxu0 0
    %5202 = vmatpush1.bf16.msra.mxu0 %v5182
    %5203 = vmatprep.subr.bf16.mxu0 0
    %5204 = vmatpush1.bf16.msra.mxu0 %v5183
    %5205 = vmatprep.subr.bf16.mxu0 0
    %5206 = vmatpush1.bf16.msra.mxu0 %v5184
    %5207 = vmatprep.subr.bf16.mxu0 0
    %5208 = vmatpush1.bf16.msra.mxu0 %v5185
    %5209 = vmatprep.subr.bf16.mxu0 0
    %5210 = vmatpush1.bf16.msra.mxu0 %v5186
    %5211 = vmatprep.subr.bf16.mxu0 0
    %5212 = vmatpush1.bf16.msra.mxu0 0
    %5213 = vmatprep.subr.bf16.mxu0 0
    %5214 = vmatpush1.bf16.msra.mxu0 0
    %5215 = vmatprep.subr.bf16.mxu0 0
    %5216 = vmatpush1.bf16.msra.mxu0 0
    %5217 = vmatprep.subr.bf16.mxu0 0
    %5218 = vmatpush1.bf16.msra.mxu0 0
    %5219 = vmatprep.subr.bf16.mxu0 0
    %5220 = vmatpush1.bf16.msra.mxu0 0
    %5221 = vmatprep.subr.bf16.mxu0 0
    %5222 = vmatpush1.bf16.msra.mxu0 0
    %5223 = vmatprep.subr.bf16.mxu0 0
    %5224 = vmatpush1.bf16.msra.mxu0 0
    %5225 = vmatprep.subr.bf16.mxu0 0
    %5226 = vmatpush1.bf16.msra.mxu0 0
    %5227 = vmatprep.mubr.bf16.mxu0 0
    %5228 = vmatmul.mubr.bf16.gmra.mrb[0].mxu0 %v5112
    %v5229 = vpop.f32.mrb[0].mxu0
    %v5230 = vadd.f32 0.0, %v5229
    %v5231 = vpop.f32.mrb[0].mxu0
    %v5232 = vpop.f32.mrb[0].mxu0
    %v5233 = vpop.f32.mrb[0].mxu0
    %5234 = vdwg.mxu0
    %s5235 = scalar_lea.vmem [#allocation2], 3712
    %v5236 = vld [vmem:[%s5235] sm:$0xf]
    %v5237 = vld [vmem:[%s5235 + $0x4] sm:$0xf]
    %v5238 = vld [vmem:[%s5235 + $0x8] sm:$0xf]
    %v5239 = vld [vmem:[%s5235 + $0xc] sm:$0xf]
    %v5240 = vld [vmem:[%s5235 + $0x10] sm:$0xf]
    %v5241 = vld [vmem:[%s5235 + $0x14] sm:$0xf]
    %v5242 = vld [vmem:[%s5235 + $0x18] sm:$0xf]
    %v5243 = vld [vmem:[%s5235 + $0x1c] sm:$0xf]
    %v5244 = vld [vmem:[%s5235 + $0x20] sm:$0xf]
    %v5245 = vld [vmem:[%s5235 + $0x24] sm:$0xf]
    %v5246 = vld [vmem:[%s5235 + $0x28] sm:$0xf]
    %v5247 = vld [vmem:[%s5235 + $0x2c] sm:$0xf]
    %v5248 = vld [vmem:[%s5235 + $0x30] sm:$0xf]
    %v5249 = vld [vmem:[%s5235 + $0x34] sm:$0xf]
    %v5250 = vld [vmem:[%s5235 + $0x38] sm:$0xf]
    %v5251 = vld [vmem:[%s5235 + $0x3c] sm:$0xf]
    %v5268 = vunpack.c.l.b16 %v5236
    %v5269 = vunpack.c.l.b16 %v5237
    %v5270 = vunpack.c.l.b16 %v5238
    %v5271 = vunpack.c.l.b16 %v5239
    %v5272 = vunpack.c.l.b16 %v5240
    %v5273 = vunpack.c.l.b16 %v5241
    %v5274 = vunpack.c.l.b16 %v5242
    %v5275 = vunpack.c.l.b16 %v5243
    %v5276 = vunpack.c.l.b16 %v5244
    %v5277 = vunpack.c.l.b16 %v5245
    %v5278 = vunpack.c.l.b16 %v5246
    %v5279 = vunpack.c.l.b16 %v5247
    %v5280 = vunpack.c.l.b16 %v5248
    %v5281 = vunpack.c.l.b16 %v5249
    %v5282 = vunpack.c.l.b16 %v5250
    %v5283 = vunpack.c.l.b16 %v5251
    %v5284 = vpack.c.b16 %v5269, %v5268
    %v5285 = vpack.c.b16 %v5271, %v5270
    %v5286 = vpack.c.b16 %v5273, %v5272
    %v5287 = vpack.c.b16 %v5275, %v5274
    %v5288 = vpack.c.b16 %v5277, %v5276
    %v5289 = vpack.c.b16 %v5279, %v5278
    %v5290 = vpack.c.b16 %v5281, %v5280
    %v5291 = vpack.c.b16 %v5283, %v5282
    %5300 = vmatprep.subr.bf16.mxu0 0
    %5301 = vmatpush1.bf16.msra.mxu0 %v5284
    %5302 = vmatprep.subr.bf16.mxu0 0
    %5303 = vmatpush1.bf16.msra.mxu0 %v5285
    %5304 = vmatprep.subr.bf16.mxu0 0
    %5305 = vmatpush1.bf16.msra.mxu0 %v5286
    %5306 = vmatprep.subr.bf16.mxu0 0
    %5307 = vmatpush1.bf16.msra.mxu0 %v5287
    %5308 = vmatprep.subr.bf16.mxu0 0
    %5309 = vmatpush1.bf16.msra.mxu0 %v5288
    %5310 = vmatprep.subr.bf16.mxu0 0
    %5311 = vmatpush1.bf16.msra.mxu0 %v5289
    %5312 = vmatprep.subr.bf16.mxu0 0
    %5313 = vmatpush1.bf16.msra.mxu0 %v5290
    %5314 = vmatprep.subr.bf16.mxu0 0
    %5315 = vmatpush1.bf16.msra.mxu0 %v5291
    %5316 = vmatprep.subr.bf16.mxu0 0
    %5317 = vmatpush1.bf16.msra.mxu0 0
    %5318 = vmatprep.subr.bf16.mxu0 0
    %5319 = vmatpush1.bf16.msra.mxu0 0
    %5320 = vmatprep.subr.bf16.mxu0 0
    %5321 = vmatpush1.bf16.msra.mxu0 0
    %5322 = vmatprep.subr.bf16.mxu0 0
    %5323 = vmatpush1.bf16.msra.mxu0 0
    %5324 = vmatprep.subr.bf16.mxu0 0
    %5325 = vmatpush1.bf16.msra.mxu0 0
    %5326 = vmatprep.subr.bf16.mxu0 0
    %5327 = vmatpush1.bf16.msra.mxu0 0
    %5328 = vmatprep.subr.bf16.mxu0 0
    %5329 = vmatpush1.bf16.msra.mxu0 0
    %5330 = vmatprep.subr.bf16.mxu0 0
    %5331 = vmatpush1.bf16.msra.mxu0 0
    %5332 = vmatprep.mubr.bf16.mxu0 0
    %5333 = vmatmul.mubr.bf16.gmra.mrb[0].mxu0 %v5112
    %v5334 = vpop.f32.mrb[0].mxu0
    %v5335 = vadd.f32 0.0, %v5334
    %v5336 = vpop.f32.mrb[0].mxu0
    %v5337 = vpop.f32.mrb[0].mxu0
    %v5338 = vpop.f32.mrb[0].mxu0
    %5339 = vdwg.mxu0
    %v5341 = vrot.slane %v5230, 3
    %v5343 = vrot.slane %v5230, 7
    %v5345 = vsel %vm384, %v5341, %v5343
    %v5346 = vmul.f32 %v189, %v5345
    %v5363 = vunpack.c.l.b16 %v5114
    %v5364 = vunpack.c.l.b16 %v5115
    %v5365 = vunpack.c.l.b16 %v5116
    %v5366 = vunpack.c.l.b16 %v5117
    %v5367 = vunpack.c.l.b16 %v5118
    %v5368 = vunpack.c.l.b16 %v5119
    %v5369 = vunpack.c.l.b16 %v5120
    %v5370 = vunpack.c.l.b16 %v5121
    %v5371 = vunpack.c.l.b16 %v5122
    %v5372 = vunpack.c.l.b16 %v5123
    %v5373 = vunpack.c.l.b16 %v5124
    %v5374 = vunpack.c.l.b16 %v5125
    %v5375 = vunpack.c.l.b16 %v5126
    %v5376 = vunpack.c.l.b16 %v5127
    %v5377 = vunpack.c.l.b16 %v5128
    %v5378 = vunpack.c.l.b16 %v5129
    %v5379 = vpack.c.b16 %v5364, %v5363
    %v5380 = vpack.c.b16 %v5366, %v5365
    %v5381 = vpack.c.b16 %v5368, %v5367
    %v5382 = vpack.c.b16 %v5370, %v5369
    %v5383 = vpack.c.b16 %v5372, %v5371
    %v5384 = vpack.c.b16 %v5374, %v5373
    %v5385 = vpack.c.b16 %v5376, %v5375
    %v5386 = vpack.c.b16 %v5378, %v5377
    %5395 = vmatprep.subr.bf16.mxu0 0
    %5396 = vmatpush1.bf16.msra.mxu0 %v5379
    %5397 = vmatprep.subr.bf16.mxu0 0
    %5398 = vmatpush1.bf16.msra.mxu0 %v5380
    %5399 = vmatprep.subr.bf16.mxu0 0
    %5400 = vmatpush1.bf16.msra.mxu0 %v5381
    %5401 = vmatprep.subr.bf16.mxu0 0
    %5402 = vmatpush1.bf16.msra.mxu0 %v5382
    %5403 = vmatprep.subr.bf16.mxu0 0
    %5404 = vmatpush1.bf16.msra.mxu0 %v5383
    %5405 = vmatprep.subr.bf16.mxu0 0
    %5406 = vmatpush1.bf16.msra.mxu0 %v5384
    %5407 = vmatprep.subr.bf16.mxu0 0
    %5408 = vmatpush1.bf16.msra.mxu0 %v5385
    %5409 = vmatprep.subr.bf16.mxu0 0
    %5410 = vmatpush1.bf16.msra.mxu0 %v5386
    %5411 = vmatprep.subr.bf16.mxu0 0
    %5412 = vmatpush1.bf16.msra.mxu0 0
    %5413 = vmatprep.subr.bf16.mxu0 0
    %5414 = vmatpush1.bf16.msra.mxu0 0
    %5415 = vmatprep.subr.bf16.mxu0 0
    %5416 = vmatpush1.bf16.msra.mxu0 0
    %5417 = vmatprep.subr.bf16.mxu0 0
    %5418 = vmatpush1.bf16.msra.mxu0 0
    %5419 = vmatprep.subr.bf16.mxu0 0
    %5420 = vmatpush1.bf16.msra.mxu0 0
    %5421 = vmatprep.subr.bf16.mxu0 0
    %5422 = vmatpush1.bf16.msra.mxu0 0
    %5423 = vmatprep.subr.bf16.mxu0 0
    %5424 = vmatpush1.bf16.msra.mxu0 0
    %5425 = vmatprep.subr.bf16.mxu0 0
    %5426 = vmatpush1.bf16.msra.mxu0 0
    %5427 = vmatprep.mubr.bf16.mxu0 0
    %5428 = vmatmul.mubr.bf16.gmra.mrb[0].mxu0 %v5112
    %v5429 = vpop.f32.mrb[0].mxu0
    %v5430 = vadd.f32 %v5346, %v5429
    %v5431 = vpop.f32.mrb[0].mxu0
    %v5432 = vpop.f32.mrb[0].mxu0
    %v5433 = vpop.f32.mrb[0].mxu0
    %5434 = vdwg.mxu0
    %v5436 = vrot.slane %v5335, 1
    %v5438 = vrot.slane %v5335, 5
    %v5440 = vsel %vm3274, %v5436, %v5438
    %v5441 = vmul.f32 %v192, %v5440
    %v5442 = vadd.f32 %v5430, %v5441
    %v5443 = vld [vmem:[#allocation5 + $0xc] sm:$0x1]
    %v5444 = vlaneseq
    %v5445 = vshrl.u32 %v5444, 7
    %v5446 = vsub.s32 0, %v5445
    %v5447 = vrot.slane %v5443, %v5446
    %v5448 = vadd.f32 %v5442, %v5447
    %v5449 = vmax.f32 %v5448, 0.0
    %v5450 = vpack.c.bf16 %v5449, %v5449
    %s5451 = scalar_lea.vmem [#allocation2], 3776
    %v5452 = vld [vmem:[%s5451] sm:$0xf]
    %v5453 = vld [vmem:[%s5451 + $0x4] sm:$0xf]
    %v5454 = vld [vmem:[%s5451 + $0x8] sm:$0xf]
    %v5455 = vld [vmem:[%s5451 + $0xc] sm:$0xf]
    %v5456 = vld [vmem:[%s5451 + $0x10] sm:$0xf]
    %v5457 = vld [vmem:[%s5451 + $0x14] sm:$0xf]
    %v5458 = vld [vmem:[%s5451 + $0x18] sm:$0xf]
    %v5459 = vld [vmem:[%s5451 + $0x1c] sm:$0xf]
    %v5460 = vld [vmem:[%s5451 + $0x20] sm:$0xf]
    %v5461 = vld [vmem:[%s5451 + $0x24] sm:$0xf]
    %v5462 = vld [vmem:[%s5451 + $0x28] sm:$0xf]
    %v5463 = vld [vmem:[%s5451 + $0x2c] sm:$0xf]
    %v5464 = vld [vmem:[%s5451 + $0x30] sm:$0xf]
    %v5465 = vld [vmem:[%s5451 + $0x34] sm:$0xf]
    %v5466 = vld [vmem:[%s5451 + $0x38] sm:$0xf]
    %v5467 = vld [vmem:[%s5451 + $0x3c] sm:$0xf]
    %v5484 = vunpack.c.l.b16 %v5452
    %v5485 = vunpack.c.l.b16 %v5453
    %v5486 = vunpack.c.l.b16 %v5454
    %v5487 = vunpack.c.l.b16 %v5455
    %v5488 = vunpack.c.l.b16 %v5456
    %v5489 = vunpack.c.l.b16 %v5457
    %v5490 = vunpack.c.l.b16 %v5458
    %v5491 = vunpack.c.l.b16 %v5459
    %v5492 = vunpack.c.l.b16 %v5460
    %v5493 = vunpack.c.l.b16 %v5461
    %v5494 = vunpack.c.l.b16 %v5462
    %v5495 = vunpack.c.l.b16 %v5463
    %v5496 = vunpack.c.l.b16 %v5464
    %v5497 = vunpack.c.l.b16 %v5465
    %v5498 = vunpack.c.l.b16 %v5466
    %v5499 = vunpack.c.l.b16 %v5467
    %v5500 = vpack.c.b16 %v5485, %v5484
    %v5501 = vpack.c.b16 %v5487, %v5486
    %v5502 = vpack.c.b16 %v5489, %v5488
    %v5503 = vpack.c.b16 %v5491, %v5490
    %v5504 = vpack.c.b16 %v5493, %v5492
    %v5505 = vpack.c.b16 %v5495, %v5494
    %v5506 = vpack.c.b16 %v5497, %v5496
    %v5507 = vpack.c.b16 %v5499, %v5498
    %5516 = vmatprep.subr.bf16.mxu0 0
    %5517 = vmatpush1.bf16.msra.mxu0 %v5500
    %5518 = vmatprep.subr.bf16.mxu0 0
    %5519 = vmatpush1.bf16.msra.mxu0 %v5501
    %5520 = vmatprep.subr.bf16.mxu0 0
    %5521 = vmatpush1.bf16.msra.mxu0 %v5502
    %5522 = vmatprep.subr.bf16.mxu0 0
    %5523 = vmatpush1.bf16.msra.mxu0 %v5503
    %5524 = vmatprep.subr.bf16.mxu0 0
    %5525 = vmatpush1.bf16.msra.mxu0 %v5504
    %5526 = vmatprep.subr.bf16.mxu0 0
    %5527 = vmatpush1.bf16.msra.mxu0 %v5505
    %5528 = vmatprep.subr.bf16.mxu0 0
    %5529 = vmatpush1.bf16.msra.mxu0 %v5506
    %5530 = vmatprep.subr.bf16.mxu0 0
    %5531 = vmatpush1.bf16.msra.mxu0 %v5507
    %5532 = vmatprep.subr.bf16.mxu0 0
    %5533 = vmatpush1.bf16.msra.mxu0 0
    %5534 = vmatprep.subr.bf16.mxu0 0
    %5535 = vmatpush1.bf16.msra.mxu0 0
    %5536 = vmatprep.subr.bf16.mxu0 0
    %5537 = vmatpush1.bf16.msra.mxu0 0
    %5538 = vmatprep.subr.bf16.mxu0 0
    %5539 = vmatpush1.bf16.msra.mxu0 0
    %5540 = vmatprep.subr.bf16.mxu0 0
    %5541 = vmatpush1.bf16.msra.mxu0 0
    %5542 = vmatprep.subr.bf16.mxu0 0
    %5543 = vmatpush1.bf16.msra.mxu0 0
    %5544 = vmatprep.subr.bf16.mxu0 0
    %5545 = vmatpush1.bf16.msra.mxu0 0
    %5546 = vmatprep.subr.bf16.mxu0 0
    %5547 = vmatpush1.bf16.msra.mxu0 0
    %5548 = vmatprep.mubr.bf16.mxu0 0
    %5549 = vmatmul.mubr.bf16.gmra.mrb[0].mxu0 %v5450
    %v5550 = vpop.f32.mrb[0].mxu0
    %v5551 = vadd.f32 0.0, %v5550
    %v5552 = vpop.f32.mrb[0].mxu0
    %v5553 = vpop.f32.mrb[0].mxu0
    %v5554 = vpop.f32.mrb[0].mxu0
    %5555 = vdwg.mxu0
    %v5556 = vpack.c.bf16 %v5551, %v5551
    %s5557 = scalar_lea.vmem [#allocation2], 3840
    %v5558 = vld [vmem:[%s5557] sm:$0xf]
    %v5559 = vld [vmem:[%s5557 + $0x4] sm:$0xf]
    %v5560 = vld [vmem:[%s5557 + $0x8] sm:$0xf]
    %v5561 = vld [vmem:[%s5557 + $0xc] sm:$0xf]
    %v5562 = vld [vmem:[%s5557 + $0x10] sm:$0xf]
    %v5563 = vld [vmem:[%s5557 + $0x14] sm:$0xf]
    %v5564 = vld [vmem:[%s5557 + $0x18] sm:$0xf]
    %v5565 = vld [vmem:[%s5557 + $0x1c] sm:$0xf]
    %v5566 = vld [vmem:[%s5557 + $0x20] sm:$0xf]
    %v5567 = vld [vmem:[%s5557 + $0x24] sm:$0xf]
    %v5568 = vld [vmem:[%s5557 + $0x28] sm:$0xf]
    %v5569 = vld [vmem:[%s5557 + $0x2c] sm:$0xf]
    %v5570 = vld [vmem:[%s5557 + $0x30] sm:$0xf]
    %v5571 = vld [vmem:[%s5557 + $0x34] sm:$0xf]
    %v5572 = vld [vmem:[%s5557 + $0x38] sm:$0xf]
    %v5573 = vld [vmem:[%s5557 + $0x3c] sm:$0xf]
    %v5590 = vunpack.c.l.b16 %v5558
    %v5591 = vunpack.c.l.b16 %v5559
    %v5592 = vunpack.c.l.b16 %v5560
    %v5593 = vunpack.c.l.b16 %v5561
    %v5594 = vunpack.c.l.b16 %v5562
    %v5595 = vunpack.c.l.b16 %v5563
    %v5596 = vunpack.c.l.b16 %v5564
    %v5597 = vunpack.c.l.b16 %v5565
    %v5598 = vunpack.c.l.b16 %v5566
    %v5599 = vunpack.c.l.b16 %v5567
    %v5600 = vunpack.c.l.b16 %v5568
    %v5601 = vunpack.c.l.b16 %v5569
    %v5602 = vunpack.c.l.b16 %v5570
    %v5603 = vunpack.c.l.b16 %v5571
    %v5604 = vunpack.c.l.b16 %v5572
    %v5605 = vunpack.c.l.b16 %v5573
    %v5606 = vpack.c.b16 %v5591, %v5590
    %v5607 = vpack.c.b16 %v5593, %v5592
    %v5608 = vpack.c.b16 %v5595, %v5594
    %v5609 = vpack.c.b16 %v5597, %v5596
    %v5610 = vpack.c.b16 %v5599, %v5598
    %v5611 = vpack.c.b16 %v5601, %v5600
    %v5612 = vpack.c.b16 %v5603, %v5602
    %v5613 = vpack.c.b16 %v5605, %v5604
    %5622 = vmatprep.subr.bf16.mxu0 0
    %5623 = vmatpush1.bf16.msra.mxu0 %v5606
    %5624 = vmatprep.subr.bf16.mxu0 0
    %5625 = vmatpush1.bf16.msra.mxu0 %v5607
    %5626 = vmatprep.subr.bf16.mxu0 0
    %5627 = vmatpush1.bf16.msra.mxu0 %v5608
    %5628 = vmatprep.subr.bf16.mxu0 0
    %5629 = vmatpush1.bf16.msra.mxu0 %v5609
    %5630 = vmatprep.subr.bf16.mxu0 0
    %5631 = vmatpush1.bf16.msra.mxu0 %v5610
    %5632 = vmatprep.subr.bf16.mxu0 0
    %5633 = vmatpush1.bf16.msra.mxu0 %v5611
    %5634 = vmatprep.subr.bf16.mxu0 0
    %5635 = vmatpush1.bf16.msra.mxu0 %v5612
    %5636 = vmatprep.subr.bf16.mxu0 0
    %5637 = vmatpush1.bf16.msra.mxu0 %v5613
    %5638 = vmatprep.subr.bf16.mxu0 0
    %5639 = vmatpush1.bf16.msra.mxu0 0
    %5640 = vmatprep.subr.bf16.mxu0 0
    %5641 = vmatpush1.bf16.msra.mxu0 0
    %5642 = vmatprep.subr.bf16.mxu0 0
    %5643 = vmatpush1.bf16.msra.mxu0 0
    %5644 = vmatprep.subr.bf16.mxu0 0
    %5645 = vmatpush1.bf16.msra.mxu0 0
    %5646 = vmatprep.subr.bf16.mxu0 0
    %5647 = vmatpush1.bf16.msra.mxu0 0
    %5648 = vmatprep.subr.bf16.mxu0 0
    %5649 = vmatpush1.bf16.msra.mxu0 0
    %5650 = vmatprep.subr.bf16.mxu0 0
    %5651 = vmatpush1.bf16.msra.mxu0 0
    %5652 = vmatprep.subr.bf16.mxu0 0
    %5653 = vmatpush1.bf16.msra.mxu0 0
    %5654 = vmatprep.mubr.bf16.mxu0 0
    %5655 = vmatmul.mubr.bf16.gmra.mrb[0].mxu0 %v5450
    %v5656 = vpop.f32.mrb[0].mxu0
    %v5657 = vadd.f32 0.0, %v5656
    %v5658 = vpop.f32.mrb[0].mxu0
    %v5659 = vpop.f32.mrb[0].mxu0
    %v5660 = vpop.f32.mrb[0].mxu0
    %5661 = vdwg.mxu0
    %v5662 = vpack.c.bf16 %v5657, %v5657
    %s5663 = scalar_lea.vmem [#allocation2], 3904
    %v5664 = vld [vmem:[%s5663] sm:$0xf]
    %s5665 = scalar_lea.vmem [#allocation2], 3968
    %v5666 = vld [vmem:[%s5665] sm:$0xf]
    %v5668 = vsel %vm3626, %v5666, 0
    %v5671 = vsel %vm3630, %v5662, 0
    %5673 = vmatprep.subr.bf16.mxu0 0
    %5674 = vmatpush1.bf16.msra.mxu0 %v5671
    %5675 = vmatprep.subr.bf16.mxu0 0
    %5676 = vmatpush1.bf16.msra.mxu0 0
    %5677 = vmatprep.subr.bf16.mxu0 0
    %5678 = vmatpush1.bf16.msra.mxu0 0
    %5679 = vmatprep.subr.bf16.mxu0 0
    %5680 = vmatpush1.bf16.msra.mxu0 0
    %5681 = vmatprep.subr.bf16.mxu0 0
    %5682 = vmatpush1.bf16.msra.mxu0 0
    %5683 = vmatprep.subr.bf16.mxu0 0
    %5684 = vmatpush1.bf16.msra.mxu0 0
    %5685 = vmatprep.subr.bf16.mxu0 0
    %5686 = vmatpush1.bf16.msra.mxu0 0
    %5687 = vmatprep.subr.bf16.mxu0 0
    %5688 = vmatpush1.bf16.msra.mxu0 0
    %5689 = vmatprep.subr.bf16.mxu0 0
    %5690 = vmatpush1.bf16.msra.mxu0 0
    %5691 = vmatprep.subr.bf16.mxu0 0
    %5692 = vmatpush1.bf16.msra.mxu0 0
    %5693 = vmatprep.subr.bf16.mxu0 0
    %5694 = vmatpush1.bf16.msra.mxu0 0
    %5695 = vmatprep.subr.bf16.mxu0 0
    %5696 = vmatpush1.bf16.msra.mxu0 0
    %5697 = vmatprep.subr.bf16.mxu0 0
    %5698 = vmatpush1.bf16.msra.mxu0 0
    %5699 = vmatprep.subr.bf16.mxu0 0
    %5700 = vmatpush1.bf16.msra.mxu0 0
    %5701 = vmatprep.subr.bf16.mxu0 0
    %5702 = vmatpush1.bf16.msra.mxu0 0
    %5703 = vmatprep.subr.bf16.mxu0 0
    %5704 = vmatpush1.bf16.msra.mxu0 0
    %5705 = vmatprep.mubr.bf16.mxu0 0
    %5706 = vmatmul.mubr.bf16.gmra.mrb[0].mxu0 %v5668
    %v5707 = vpop.f32.mrb[0].mxu0
    %v5708 = vadd.f32 0.0, %v5707
    %v5709 = vpop.f32.mrb[0].mxu0
    %v5710 = vpop.f32.mrb[0].mxu0
    %v5711 = vpop.f32.mrb[0].mxu0
    %5712 = vdwg.mxu0
    %v5714 = vsel %vm3626, %v5664, 0
    %v5717 = vsel %vm3630, %v5556, 0
    %5719 = vmatprep.subr.bf16.mxu0 0
    %5720 = vmatpush1.bf16.msra.mxu0 %v5717
    %5721 = vmatprep.subr.bf16.mxu0 0
    %5722 = vmatpush1.bf16.msra.mxu0 0
    %5723 = vmatprep.subr.bf16.mxu0 0
    %5724 = vmatpush1.bf16.msra.mxu0 0
    %5725 = vmatprep.subr.bf16.mxu0 0
    %5726 = vmatpush1.bf16.msra.mxu0 0
    %5727 = vmatprep.subr.bf16.mxu0 0
    %5728 = vmatpush1.bf16.msra.mxu0 0
    %5729 = vmatprep.subr.bf16.mxu0 0
    %5730 = vmatpush1.bf16.msra.mxu0 0
    %5731 = vmatprep.subr.bf16.mxu0 0
    %5732 = vmatpush1.bf16.msra.mxu0 0
    %5733 = vmatprep.subr.bf16.mxu0 0
    %5734 = vmatpush1.bf16.msra.mxu0 0
    %5735 = vmatprep.subr.bf16.mxu0 0
    %5736 = vmatpush1.bf16.msra.mxu0 0
    %5737 = vmatprep.subr.bf16.mxu0 0
    %5738 = vmatpush1.bf16.msra.mxu0 0
    %5739 = vmatprep.subr.bf16.mxu0 0
    %5740 = vmatpush1.bf16.msra.mxu0 0
    %5741 = vmatprep.subr.bf16.mxu0 0
    %5742 = vmatpush1.bf16.msra.mxu0 0
    %5743 = vmatprep.subr.bf16.mxu0 0
    %5744 = vmatpush1.bf16.msra.mxu0 0
    %5745 = vmatprep.subr.bf16.mxu0 0
    %5746 = vmatpush1.bf16.msra.mxu0 0
    %5747 = vmatprep.subr.bf16.mxu0 0
    %5748 = vmatpush1.bf16.msra.mxu0 0
    %5749 = vmatprep.subr.bf16.mxu0 0
    %5750 = vmatpush1.bf16.msra.mxu0 0
    %5751 = vmatprep.mubr.bf16.mxu0 0
    %5752 = vmatmul.mubr.bf16.gmra.mrb[0].mxu0 %v5714
    %v5753 = vpop.f32.mrb[0].mxu0
    %v5754 = vadd.f32 %v5708, %v5753
    %v5755 = vpop.f32.mrb[0].mxu0
    %v5756 = vpop.f32.mrb[0].mxu0
    %v5757 = vpop.f32.mrb[0].mxu0
    %5758 = vdwg.mxu0
    %v5759 = vld [vmem:[#allocation5 + $0xd] sm:$0x1]
    %v5760 = vlaneseq
    %v5761 = vshrl.u32 %v5760, 7
    %v5762 = vsub.s32 0, %v5761
    %v5763 = vrot.slane %v5759, %v5762
    %v5764 = vadd.f32 %v5754, %v5763
    %s5765 = scalar_lea.vmem [#allocation2], 4096
    %v5766 = vld [vmem:[%s5765] sm:$0xf]
    %v5767 = vld [vmem:[%s5765 + $0x4] sm:$0xf]
    %v5768 = vld [vmem:[%s5765 + $0x8] sm:$0xf]
    %v5769 = vld [vmem:[%s5765 + $0xc] sm:$0xf]
    %v5770 = vld [vmem:[%s5765 + $0x10] sm:$0xf]
    %v5771 = vld [vmem:[%s5765 + $0x14] sm:$0xf]
    %v5772 = vld [vmem:[%s5765 + $0x18] sm:$0xf]
    %v5773 = vld [vmem:[%s5765 + $0x1c] sm:$0xf]
    %v5774 = vld [vmem:[%s5765 + $0x20] sm:$0xf]
    %v5775 = vld [vmem:[%s5765 + $0x24] sm:$0xf]
    %v5776 = vld [vmem:[%s5765 + $0x28] sm:$0xf]
    %v5777 = vld [vmem:[%s5765 + $0x2c] sm:$0xf]
    %v5778 = vld [vmem:[%s5765 + $0x30] sm:$0xf]
    %v5779 = vld [vmem:[%s5765 + $0x34] sm:$0xf]
    %v5780 = vld [vmem:[%s5765 + $0x38] sm:$0xf]
    %v5781 = vld [vmem:[%s5765 + $0x3c] sm:$0xf]
    %s5782 = scalar_lea.vmem [#allocation2], 4032
    %v5783 = vld [vmem:[%s5782] sm:$0xf]
    %v5784 = vld [vmem:[%s5782 + $0x4] sm:$0xf]
    %v5785 = vld [vmem:[%s5782 + $0x8] sm:$0xf]
    %v5786 = vld [vmem:[%s5782 + $0xc] sm:$0xf]
    %v5787 = vld [vmem:[%s5782 + $0x10] sm:$0xf]
    %v5788 = vld [vmem:[%s5782 + $0x14] sm:$0xf]
    %v5789 = vld [vmem:[%s5782 + $0x18] sm:$0xf]
    %v5790 = vld [vmem:[%s5782 + $0x1c] sm:$0xf]
    %v5791 = vld [vmem:[%s5782 + $0x20] sm:$0xf]
    %v5792 = vld [vmem:[%s5782 + $0x24] sm:$0xf]
    %v5793 = vld [vmem:[%s5782 + $0x28] sm:$0xf]
    %v5794 = vld [vmem:[%s5782 + $0x2c] sm:$0xf]
    %v5795 = vld [vmem:[%s5782 + $0x30] sm:$0xf]
    %v5796 = vld [vmem:[%s5782 + $0x34] sm:$0xf]
    %v5797 = vld [vmem:[%s5782 + $0x38] sm:$0xf]
    %v5798 = vld [vmem:[%s5782 + $0x3c] sm:$0xf]
    %v5815 = vunpack.c.l.b16 %v5783
    %v5816 = vunpack.c.l.b16 %v5784
    %v5817 = vunpack.c.l.b16 %v5785
    %v5818 = vunpack.c.l.b16 %v5786
    %v5819 = vunpack.c.l.b16 %v5787
    %v5820 = vunpack.c.l.b16 %v5788
    %v5821 = vunpack.c.l.b16 %v5789
    %v5822 = vunpack.c.l.b16 %v5790
    %v5823 = vunpack.c.l.b16 %v5791
    %v5824 = vunpack.c.l.b16 %v5792
    %v5825 = vunpack.c.l.b16 %v5793
    %v5826 = vunpack.c.l.b16 %v5794
    %v5827 = vunpack.c.l.b16 %v5795
    %v5828 = vunpack.c.l.b16 %v5796
    %v5829 = vunpack.c.l.b16 %v5797
    %v5830 = vunpack.c.l.b16 %v5798
    %v5831 = vpack.c.b16 %v5816, %v5815
    %v5832 = vpack.c.b16 %v5818, %v5817
    %v5833 = vpack.c.b16 %v5820, %v5819
    %v5834 = vpack.c.b16 %v5822, %v5821
    %v5835 = vpack.c.b16 %v5824, %v5823
    %v5836 = vpack.c.b16 %v5826, %v5825
    %v5837 = vpack.c.b16 %v5828, %v5827
    %v5838 = vpack.c.b16 %v5830, %v5829
    %5847 = vmatprep.subr.bf16.mxu0 0
    %5848 = vmatpush1.bf16.msra.mxu0 %v5831
    %5849 = vmatprep.subr.bf16.mxu0 0
    %5850 = vmatpush1.bf16.msra.mxu0 %v5832
    %5851 = vmatprep.subr.bf16.mxu0 0
    %5852 = vmatpush1.bf16.msra.mxu0 %v5833
    %5853 = vmatprep.subr.bf16.mxu0 0
    %5854 = vmatpush1.bf16.msra.mxu0 %v5834
    %5855 = vmatprep.subr.bf16.mxu0 0
    %5856 = vmatpush1.bf16.msra.mxu0 %v5835
    %5857 = vmatprep.subr.bf16.mxu0 0
    %5858 = vmatpush1.bf16.msra.mxu0 %v5836
    %5859 = vmatprep.subr.bf16.mxu0 0
    %5860 = vmatpush1.bf16.msra.mxu0 %v5837
    %5861 = vmatprep.subr.bf16.mxu0 0
    %5862 = vmatpush1.bf16.msra.mxu0 %v5838
    %5863 = vmatprep.subr.bf16.mxu0 0
    %5864 = vmatpush1.bf16.msra.mxu0 0
    %5865 = vmatprep.subr.bf16.mxu0 0
    %5866 = vmatpush1.bf16.msra.mxu0 0
    %5867 = vmatprep.subr.bf16.mxu0 0
    %5868 = vmatpush1.bf16.msra.mxu0 0
    %5869 = vmatprep.subr.bf16.mxu0 0
    %5870 = vmatpush1.bf16.msra.mxu0 0
    %5871 = vmatprep.subr.bf16.mxu0 0
    %5872 = vmatpush1.bf16.msra.mxu0 0
    %5873 = vmatprep.subr.bf16.mxu0 0
    %5874 = vmatpush1.bf16.msra.mxu0 0
    %5875 = vmatprep.subr.bf16.mxu0 0
    %5876 = vmatpush1.bf16.msra.mxu0 0
    %5877 = vmatprep.subr.bf16.mxu0 0
    %5878 = vmatpush1.bf16.msra.mxu0 0
    %5879 = vmatprep.mubr.bf16.mxu0 0
    %5880 = vmatmul.mubr.bf16.gmra.mrb[0].mxu0 %v2730
    %v5881 = vpop.f32.mrb[0].mxu0
    %v5882 = vadd.f32 0.0, %v5881
    %v5883 = vpop.f32.mrb[0].mxu0
    %v5884 = vpop.f32.mrb[0].mxu0
    %v5885 = vpop.f32.mrb[0].mxu0
    %5886 = vdwg.mxu0
    %s5887 = scalar_lea.vmem [#allocation2], 4160
    %v5888 = vld [vmem:[%s5887] sm:$0xf]
    %v5889 = vld [vmem:[%s5887 + $0x4] sm:$0xf]
    %v5890 = vld [vmem:[%s5887 + $0x8] sm:$0xf]
    %v5891 = vld [vmem:[%s5887 + $0xc] sm:$0xf]
    %v5892 = vld [vmem:[%s5887 + $0x10] sm:$0xf]
    %v5893 = vld [vmem:[%s5887 + $0x14] sm:$0xf]
    %v5894 = vld [vmem:[%s5887 + $0x18] sm:$0xf]
    %v5895 = vld [vmem:[%s5887 + $0x1c] sm:$0xf]
    %v5896 = vld [vmem:[%s5887 + $0x20] sm:$0xf]
    %v5897 = vld [vmem:[%s5887 + $0x24] sm:$0xf]
    %v5898 = vld [vmem:[%s5887 + $0x28] sm:$0xf]
    %v5899 = vld [vmem:[%s5887 + $0x2c] sm:$0xf]
    %v5900 = vld [vmem:[%s5887 + $0x30] sm:$0xf]
    %v5901 = vld [vmem:[%s5887 + $0x34] sm:$0xf]
    %v5902 = vld [vmem:[%s5887 + $0x38] sm:$0xf]
    %v5903 = vld [vmem:[%s5887 + $0x3c] sm:$0xf]
    %v5920 = vunpack.c.l.b16 %v5888
    %v5921 = vunpack.c.l.b16 %v5889
    %v5922 = vunpack.c.l.b16 %v5890
    %v5923 = vunpack.c.l.b16 %v5891
    %v5924 = vunpack.c.l.b16 %v5892
    %v5925 = vunpack.c.l.b16 %v5893
    %v5926 = vunpack.c.l.b16 %v5894
    %v5927 = vunpack.c.l.b16 %v5895
    %v5928 = vunpack.c.l.b16 %v5896
    %v5929 = vunpack.c.l.b16 %v5897
    %v5930 = vunpack.c.l.b16 %v5898
    %v5931 = vunpack.c.l.b16 %v5899
    %v5932 = vunpack.c.l.b16 %v5900
    %v5933 = vunpack.c.l.b16 %v5901
    %v5934 = vunpack.c.l.b16 %v5902
    %v5935 = vunpack.c.l.b16 %v5903
    %v5936 = vpack.c.b16 %v5921, %v5920
    %v5937 = vpack.c.b16 %v5923, %v5922
    %v5938 = vpack.c.b16 %v5925, %v5924
    %v5939 = vpack.c.b16 %v5927, %v5926
    %v5940 = vpack.c.b16 %v5929, %v5928
    %v5941 = vpack.c.b16 %v5931, %v5930
    %v5942 = vpack.c.b16 %v5933, %v5932
    %v5943 = vpack.c.b16 %v5935, %v5934
    %5952 = vmatprep.subr.bf16.mxu0 0
    %5953 = vmatpush1.bf16.msra.mxu0 %v5936
    %5954 = vmatprep.subr.bf16.mxu0 0
    %5955 = vmatpush1.bf16.msra.mxu0 %v5937
    %5956 = vmatprep.subr.bf16.mxu0 0
    %5957 = vmatpush1.bf16.msra.mxu0 %v5938
    %5958 = vmatprep.subr.bf16.mxu0 0
    %5959 = vmatpush1.bf16.msra.mxu0 %v5939
    %5960 = vmatprep.subr.bf16.mxu0 0
    %5961 = vmatpush1.bf16.msra.mxu0 %v5940
    %5962 = vmatprep.subr.bf16.mxu0 0
    %5963 = vmatpush1.bf16.msra.mxu0 %v5941
    %5964 = vmatprep.subr.bf16.mxu0 0
    %5965 = vmatpush1.bf16.msra.mxu0 %v5942
    %5966 = vmatprep.subr.bf16.mxu0 0
    %5967 = vmatpush1.bf16.msra.mxu0 %v5943
    %5968 = vmatprep.subr.bf16.mxu0 0
    %5969 = vmatpush1.bf16.msra.mxu0 0
    %5970 = vmatprep.subr.bf16.mxu0 0
    %5971 = vmatpush1.bf16.msra.mxu0 0
    %5972 = vmatprep.subr.bf16.mxu0 0
    %5973 = vmatpush1.bf16.msra.mxu0 0
    %5974 = vmatprep.subr.bf16.mxu0 0
    %5975 = vmatpush1.bf16.msra.mxu0 0
    %5976 = vmatprep.subr.bf16.mxu0 0
    %5977 = vmatpush1.bf16.msra.mxu0 0
    %5978 = vmatprep.subr.bf16.mxu0 0
    %5979 = vmatpush1.bf16.msra.mxu0 0
    %5980 = vmatprep.subr.bf16.mxu0 0
    %5981 = vmatpush1.bf16.msra.mxu0 0
    %5982 = vmatprep.subr.bf16.mxu0 0
    %5983 = vmatpush1.bf16.msra.mxu0 0
    %5984 = vmatprep.mubr.bf16.mxu0 0
    %5985 = vmatmul.mubr.bf16.gmra.mrb[0].mxu0 %v2730
    %v5986 = vpop.f32.mrb[0].mxu0
    %v5987 = vadd.f32 0.0, %v5986
    %v5988 = vpop.f32.mrb[0].mxu0
    %v5989 = vpop.f32.mrb[0].mxu0
    %v5990 = vpop.f32.mrb[0].mxu0
    %5991 = vdwg.mxu0
    %v5993 = vrot.slane %v5882, 7
    %v5995 = vsel %vm384, %v5993, %v5993
    %v5996 = vmul.f32 %v171, %v5995
    %v6013 = vunpack.c.l.b16 %v5766
    %v6014 = vunpack.c.l.b16 %v5767
    %v6015 = vunpack.c.l.b16 %v5768
    %v6016 = vunpack.c.l.b16 %v5769
    %v6017 = vunpack.c.l.b16 %v5770
    %v6018 = vunpack.c.l.b16 %v5771
    %v6019 = vunpack.c.l.b16 %v5772
    %v6020 = vunpack.c.l.b16 %v5773
    %v6021 = vunpack.c.l.b16 %v5774
    %v6022 = vunpack.c.l.b16 %v5775
    %v6023 = vunpack.c.l.b16 %v5776
    %v6024 = vunpack.c.l.b16 %v5777
    %v6025 = vunpack.c.l.b16 %v5778
    %v6026 = vunpack.c.l.b16 %v5779
    %v6027 = vunpack.c.l.b16 %v5780
    %v6028 = vunpack.c.l.b16 %v5781
    %v6029 = vpack.c.b16 %v6014, %v6013
    %v6030 = vpack.c.b16 %v6016, %v6015
    %v6031 = vpack.c.b16 %v6018, %v6017
    %v6032 = vpack.c.b16 %v6020, %v6019
    %v6033 = vpack.c.b16 %v6022, %v6021
    %v6034 = vpack.c.b16 %v6024, %v6023
    %v6035 = vpack.c.b16 %v6026, %v6025
    %v6036 = vpack.c.b16 %v6028, %v6027
    %6045 = vmatprep.subr.bf16.mxu0 0
    %6046 = vmatpush1.bf16.msra.mxu0 %v6029
    %6047 = vmatprep.subr.bf16.mxu0 0
    %6048 = vmatpush1.bf16.msra.mxu0 %v6030
    %6049 = vmatprep.subr.bf16.mxu0 0
    %6050 = vmatpush1.bf16.msra.mxu0 %v6031
    %6051 = vmatprep.subr.bf16.mxu0 0
    %6052 = vmatpush1.bf16.msra.mxu0 %v6032
    %6053 = vmatprep.subr.bf16.mxu0 0
    %6054 = vmatpush1.bf16.msra.mxu0 %v6033
    %6055 = vmatprep.subr.bf16.mxu0 0
    %6056 = vmatpush1.bf16.msra.mxu0 %v6034
    %6057 = vmatprep.subr.bf16.mxu0 0
    %6058 = vmatpush1.bf16.msra.mxu0 %v6035
    %6059 = vmatprep.subr.bf16.mxu0 0
    %6060 = vmatpush1.bf16.msra.mxu0 %v6036
    %6061 = vmatprep.subr.bf16.mxu0 0
    %6062 = vmatpush1.bf16.msra.mxu0 0
    %6063 = vmatprep.subr.bf16.mxu0 0
    %6064 = vmatpush1.bf16.msra.mxu0 0
    %6065 = vmatprep.subr.bf16.mxu0 0
    %6066 = vmatpush1.bf16.msra.mxu0 0
    %6067 = vmatprep.subr.bf16.mxu0 0
    %6068 = vmatpush1.bf16.msra.mxu0 0
    %6069 = vmatprep.subr.bf16.mxu0 0
    %6070 = vmatpush1.bf16.msra.mxu0 0
    %6071 = vmatprep.subr.bf16.mxu0 0
    %6072 = vmatpush1.bf16.msra.mxu0 0
    %6073 = vmatprep.subr.bf16.mxu0 0
    %6074 = vmatpush1.bf16.msra.mxu0 0
    %6075 = vmatprep.subr.bf16.mxu0 0
    %6076 = vmatpush1.bf16.msra.mxu0 0
    %6077 = vmatprep.mubr.bf16.mxu0 0
    %6078 = vmatmul.mubr.bf16.gmra.mrb[0].mxu0 %v2730
    %v6079 = vpop.f32.mrb[0].mxu0
    %v6080 = vadd.f32 %v5996, %v6079
    %v6081 = vpop.f32.mrb[0].mxu0
    %v6082 = vpop.f32.mrb[0].mxu0
    %v6083 = vpop.f32.mrb[0].mxu0
    %6084 = vdwg.mxu0
    %v6086 = vrot.slane %v5987, 1
    %v6088 = vsel %vm477, %v6086, %v6086
    %v6089 = vmul.f32 %v174, %v6088
    %v6090 = vadd.f32 %v6080, %v6089
    %v6091 = vpack.c.bf16 %v5764, %v5764
    %s6092 = scalar_lea.vmem [#allocation2], 4288
    %v6093 = vld [vmem:[%s6092] sm:$0xf]
    %v6094 = vld [vmem:[%s6092 + $0x4] sm:$0xf]
    %v6095 = vld [vmem:[%s6092 + $0x8] sm:$0xf]
    %v6096 = vld [vmem:[%s6092 + $0xc] sm:$0xf]
    %v6097 = vld [vmem:[%s6092 + $0x10] sm:$0xf]
    %v6098 = vld [vmem:[%s6092 + $0x14] sm:$0xf]
    %v6099 = vld [vmem:[%s6092 + $0x18] sm:$0xf]
    %v6100 = vld [vmem:[%s6092 + $0x1c] sm:$0xf]
    %v6101 = vld [vmem:[%s6092 + $0x20] sm:$0xf]
    %v6102 = vld [vmem:[%s6092 + $0x24] sm:$0xf]
    %v6103 = vld [vmem:[%s6092 + $0x28] sm:$0xf]
    %v6104 = vld [vmem:[%s6092 + $0x2c] sm:$0xf]
    %v6105 = vld [vmem:[%s6092 + $0x30] sm:$0xf]
    %v6106 = vld [vmem:[%s6092 + $0x34] sm:$0xf]
    %v6107 = vld [vmem:[%s6092 + $0x38] sm:$0xf]
    %v6108 = vld [vmem:[%s6092 + $0x3c] sm:$0xf]
    %s6109 = scalar_lea.vmem [#allocation2], 4224
    %v6110 = vld [vmem:[%s6109] sm:$0xf]
    %v6111 = vld [vmem:[%s6109 + $0x4] sm:$0xf]
    %v6112 = vld [vmem:[%s6109 + $0x8] sm:$0xf]
    %v6113 = vld [vmem:[%s6109 + $0xc] sm:$0xf]
    %v6114 = vld [vmem:[%s6109 + $0x10] sm:$0xf]
    %v6115 = vld [vmem:[%s6109 + $0x14] sm:$0xf]
    %v6116 = vld [vmem:[%s6109 + $0x18] sm:$0xf]
    %v6117 = vld [vmem:[%s6109 + $0x1c] sm:$0xf]
    %v6118 = vld [vmem:[%s6109 + $0x20] sm:$0xf]
    %v6119 = vld [vmem:[%s6109 + $0x24] sm:$0xf]
    %v6120 = vld [vmem:[%s6109 + $0x28] sm:$0xf]
    %v6121 = vld [vmem:[%s6109 + $0x2c] sm:$0xf]
    %v6122 = vld [vmem:[%s6109 + $0x30] sm:$0xf]
    %v6123 = vld [vmem:[%s6109 + $0x34] sm:$0xf]
    %v6124 = vld [vmem:[%s6109 + $0x38] sm:$0xf]
    %v6125 = vld [vmem:[%s6109 + $0x3c] sm:$0xf]
    %v6142 = vunpack.c.l.b16 %v6110
    %v6143 = vunpack.c.l.b16 %v6111
    %v6144 = vunpack.c.l.b16 %v6112
    %v6145 = vunpack.c.l.b16 %v6113
    %v6146 = vunpack.c.l.b16 %v6114
    %v6147 = vunpack.c.l.b16 %v6115
    %v6148 = vunpack.c.l.b16 %v6116
    %v6149 = vunpack.c.l.b16 %v6117
    %v6150 = vunpack.c.l.b16 %v6118
    %v6151 = vunpack.c.l.b16 %v6119
    %v6152 = vunpack.c.l.b16 %v6120
    %v6153 = vunpack.c.l.b16 %v6121
    %v6154 = vunpack.c.l.b16 %v6122
    %v6155 = vunpack.c.l.b16 %v6123
    %v6156 = vunpack.c.l.b16 %v6124
    %v6157 = vunpack.c.l.b16 %v6125
    %v6158 = vpack.c.b16 %v6143, %v6142
    %v6159 = vpack.c.b16 %v6145, %v6144
    %v6160 = vpack.c.b16 %v6147, %v6146
    %v6161 = vpack.c.b16 %v6149, %v6148
    %v6162 = vpack.c.b16 %v6151, %v6150
    %v6163 = vpack.c.b16 %v6153, %v6152
    %v6164 = vpack.c.b16 %v6155, %v6154
    %v6165 = vpack.c.b16 %v6157, %v6156
    %6174 = vmatprep.subr.bf16.mxu0 0
    %6175 = vmatpush1.bf16.msra.mxu0 %v6158
    %6176 = vmatprep.subr.bf16.mxu0 0
    %6177 = vmatpush1.bf16.msra.mxu0 %v6159
    %6178 = vmatprep.subr.bf16.mxu0 0
    %6179 = vmatpush1.bf16.msra.mxu0 %v6160
    %6180 = vmatprep.subr.bf16.mxu0 0
    %6181 = vmatpush1.bf16.msra.mxu0 %v6161
    %6182 = vmatprep.subr.bf16.mxu0 0
    %6183 = vmatpush1.bf16.msra.mxu0 %v6162
    %6184 = vmatprep.subr.bf16.mxu0 0
    %6185 = vmatpush1.bf16.msra.mxu0 %v6163
    %6186 = vmatprep.subr.bf16.mxu0 0
    %6187 = vmatpush1.bf16.msra.mxu0 %v6164
    %6188 = vmatprep.subr.bf16.mxu0 0
    %6189 = vmatpush1.bf16.msra.mxu0 %v6165
    %6190 = vmatprep.subr.bf16.mxu0 0
    %6191 = vmatpush1.bf16.msra.mxu0 0
    %6192 = vmatprep.subr.bf16.mxu0 0
    %6193 = vmatpush1.bf16.msra.mxu0 0
    %6194 = vmatprep.subr.bf16.mxu0 0
    %6195 = vmatpush1.bf16.msra.mxu0 0
    %6196 = vmatprep.subr.bf16.mxu0 0
    %6197 = vmatpush1.bf16.msra.mxu0 0
    %6198 = vmatprep.subr.bf16.mxu0 0
    %6199 = vmatpush1.bf16.msra.mxu0 0
    %6200 = vmatprep.subr.bf16.mxu0 0
    %6201 = vmatpush1.bf16.msra.mxu0 0
    %6202 = vmatprep.subr.bf16.mxu0 0
    %6203 = vmatpush1.bf16.msra.mxu0 0
    %6204 = vmatprep.subr.bf16.mxu0 0
    %6205 = vmatpush1.bf16.msra.mxu0 0
    %6206 = vmatprep.mubr.bf16.mxu0 0
    %6207 = vmatmul.mubr.bf16.gmra.mrb[0].mxu0 %v6091
    %v6208 = vpop.f32.mrb[0].mxu0
    %v6209 = vadd.f32 0.0, %v6208
    %v6210 = vpop.f32.mrb[0].mxu0
    %v6211 = vpop.f32.mrb[0].mxu0
    %v6212 = vpop.f32.mrb[0].mxu0
    %6213 = vdwg.mxu0
    %s6214 = scalar_lea.vmem [#allocation2], 4352
    %v6215 = vld [vmem:[%s6214] sm:$0xf]
    %v6216 = vld [vmem:[%s6214 + $0x4] sm:$0xf]
    %v6217 = vld [vmem:[%s6214 + $0x8] sm:$0xf]
    %v6218 = vld [vmem:[%s6214 + $0xc] sm:$0xf]
    %v6219 = vld [vmem:[%s6214 + $0x10] sm:$0xf]
    %v6220 = vld [vmem:[%s6214 + $0x14] sm:$0xf]
    %v6221 = vld [vmem:[%s6214 + $0x18] sm:$0xf]
    %v6222 = vld [vmem:[%s6214 + $0x1c] sm:$0xf]
    %v6223 = vld [vmem:[%s6214 + $0x20] sm:$0xf]
    %v6224 = vld [vmem:[%s6214 + $0x24] sm:$0xf]
    %v6225 = vld [vmem:[%s6214 + $0x28] sm:$0xf]
    %v6226 = vld [vmem:[%s6214 + $0x2c] sm:$0xf]
    %v6227 = vld [vmem:[%s6214 + $0x30] sm:$0xf]
    %v6228 = vld [vmem:[%s6214 + $0x34] sm:$0xf]
    %v6229 = vld [vmem:[%s6214 + $0x38] sm:$0xf]
    %v6230 = vld [vmem:[%s6214 + $0x3c] sm:$0xf]
    %v6247 = vunpack.c.l.b16 %v6215
    %v6248 = vunpack.c.l.b16 %v6216
    %v6249 = vunpack.c.l.b16 %v6217
    %v6250 = vunpack.c.l.b16 %v6218
    %v6251 = vunpack.c.l.b16 %v6219
    %v6252 = vunpack.c.l.b16 %v6220
    %v6253 = vunpack.c.l.b16 %v6221
    %v6254 = vunpack.c.l.b16 %v6222
    %v6255 = vunpack.c.l.b16 %v6223
    %v6256 = vunpack.c.l.b16 %v6224
    %v6257 = vunpack.c.l.b16 %v6225
    %v6258 = vunpack.c.l.b16 %v6226
    %v6259 = vunpack.c.l.b16 %v6227
    %v6260 = vunpack.c.l.b16 %v6228
    %v6261 = vunpack.c.l.b16 %v6229
    %v6262 = vunpack.c.l.b16 %v6230
    %v6263 = vpack.c.b16 %v6248, %v6247
    %v6264 = vpack.c.b16 %v6250, %v6249
    %v6265 = vpack.c.b16 %v6252, %v6251
    %v6266 = vpack.c.b16 %v6254, %v6253
    %v6267 = vpack.c.b16 %v6256, %v6255
    %v6268 = vpack.c.b16 %v6258, %v6257
    %v6269 = vpack.c.b16 %v6260, %v6259
    %v6270 = vpack.c.b16 %v6262, %v6261
    %6279 = vmatprep.subr.bf16.mxu0 0
    %6280 = vmatpush1.bf16.msra.mxu0 %v6263
    %6281 = vmatprep.subr.bf16.mxu0 0
    %6282 = vmatpush1.bf16.msra.mxu0 %v6264
    %6283 = vmatprep.subr.bf16.mxu0 0
    %6284 = vmatpush1.bf16.msra.mxu0 %v6265
    %6285 = vmatprep.subr.bf16.mxu0 0
    %6286 = vmatpush1.bf16.msra.mxu0 %v6266
    %6287 = vmatprep.subr.bf16.mxu0 0
    %6288 = vmatpush1.bf16.msra.mxu0 %v6267
    %6289 = vmatprep.subr.bf16.mxu0 0
    %6290 = vmatpush1.bf16.msra.mxu0 %v6268
    %6291 = vmatprep.subr.bf16.mxu0 0
    %6292 = vmatpush1.bf16.msra.mxu0 %v6269
    %6293 = vmatprep.subr.bf16.mxu0 0
    %6294 = vmatpush1.bf16.msra.mxu0 %v6270
    %6295 = vmatprep.subr.bf16.mxu0 0
    %6296 = vmatpush1.bf16.msra.mxu0 0
    %6297 = vmatprep.subr.bf16.mxu0 0
    %6298 = vmatpush1.bf16.msra.mxu0 0
    %6299 = vmatprep.subr.bf16.mxu0 0
    %6300 = vmatpush1.bf16.msra.mxu0 0
    %6301 = vmatprep.subr.bf16.mxu0 0
    %6302 = vmatpush1.bf16.msra.mxu0 0
    %6303 = vmatprep.subr.bf16.mxu0 0
    %6304 = vmatpush1.bf16.msra.mxu0 0
    %6305 = vmatprep.subr.bf16.mxu0 0
    %6306 = vmatpush1.bf16.msra.mxu0 0
    %6307 = vmatprep.subr.bf16.mxu0 0
    %6308 = vmatpush1.bf16.msra.mxu0 0
    %6309 = vmatprep.subr.bf16.mxu0 0
    %6310 = vmatpush1.bf16.msra.mxu0 0
    %6311 = vmatprep.mubr.bf16.mxu0 0
    %6312 = vmatmul.mubr.bf16.gmra.mrb[0].mxu0 %v6091
    %v6313 = vpop.f32.mrb[0].mxu0
    %v6314 = vadd.f32 0.0, %v6313
    %v6315 = vpop.f32.mrb[0].mxu0
    %v6316 = vpop.f32.mrb[0].mxu0
    %v6317 = vpop.f32.mrb[0].mxu0
    %6318 = vdwg.mxu0
    %v6320 = vrot.slane %v6209, 7
    %v6322 = vsel %vm384, %v6320, %v6320
    %v6323 = vmul.f32 %v171, %v6322
    %v6340 = vunpack.c.l.b16 %v6093
    %v6341 = vunpack.c.l.b16 %v6094
    %v6342 = vunpack.c.l.b16 %v6095
    %v6343 = vunpack.c.l.b16 %v6096
    %v6344 = vunpack.c.l.b16 %v6097
    %v6345 = vunpack.c.l.b16 %v6098
    %v6346 = vunpack.c.l.b16 %v6099
    %v6347 = vunpack.c.l.b16 %v6100
    %v6348 = vunpack.c.l.b16 %v6101
    %v6349 = vunpack.c.l.b16 %v6102
    %v6350 = vunpack.c.l.b16 %v6103
    %v6351 = vunpack.c.l.b16 %v6104
    %v6352 = vunpack.c.l.b16 %v6105
    %v6353 = vunpack.c.l.b16 %v6106
    %v6354 = vunpack.c.l.b16 %v6107
    %v6355 = vunpack.c.l.b16 %v6108
    %v6356 = vpack.c.b16 %v6341, %v6340
    %v6357 = vpack.c.b16 %v6343, %v6342
    %v6358 = vpack.c.b16 %v6345, %v6344
    %v6359 = vpack.c.b16 %v6347, %v6346
    %v6360 = vpack.c.b16 %v6349, %v6348
    %v6361 = vpack.c.b16 %v6351, %v6350
    %v6362 = vpack.c.b16 %v6353, %v6352
    %v6363 = vpack.c.b16 %v6355, %v6354
    %6372 = vmatprep.subr.bf16.mxu0 0
    %6373 = vmatpush1.bf16.msra.mxu0 %v6356
    %6374 = vmatprep.subr.bf16.mxu0 0
    %6375 = vmatpush1.bf16.msra.mxu0 %v6357
    %6376 = vmatprep.subr.bf16.mxu0 0
    %6377 = vmatpush1.bf16.msra.mxu0 %v6358
    %6378 = vmatprep.subr.bf16.mxu0 0
    %6379 = vmatpush1.bf16.msra.mxu0 %v6359
    %6380 = vmatprep.subr.bf16.mxu0 0
    %6381 = vmatpush1.bf16.msra.mxu0 %v6360
    %6382 = vmatprep.subr.bf16.mxu0 0
    %6383 = vmatpush1.bf16.msra.mxu0 %v6361
    %6384 = vmatprep.subr.bf16.mxu0 0
    %6385 = vmatpush1.bf16.msra.mxu0 %v6362
    %6386 = vmatprep.subr.bf16.mxu0 0
    %6387 = vmatpush1.bf16.msra.mxu0 %v6363
    %6388 = vmatprep.subr.bf16.mxu0 0
    %6389 = vmatpush1.bf16.msra.mxu0 0
    %6390 = vmatprep.subr.bf16.mxu0 0
    %6391 = vmatpush1.bf16.msra.mxu0 0
    %6392 = vmatprep.subr.bf16.mxu0 0
    %6393 = vmatpush1.bf16.msra.mxu0 0
    %6394 = vmatprep.subr.bf16.mxu0 0
    %6395 = vmatpush1.bf16.msra.mxu0 0
    %6396 = vmatprep.subr.bf16.mxu0 0
    %6397 = vmatpush1.bf16.msra.mxu0 0
    %6398 = vmatprep.subr.bf16.mxu0 0
    %6399 = vmatpush1.bf16.msra.mxu0 0
    %6400 = vmatprep.subr.bf16.mxu0 0
    %6401 = vmatpush1.bf16.msra.mxu0 0
    %6402 = vmatprep.subr.bf16.mxu0 0
    %6403 = vmatpush1.bf16.msra.mxu0 0
    %6404 = vmatprep.mubr.bf16.mxu0 0
    %6405 = vmatmul.mubr.bf16.gmra.mrb[0].mxu0 %v6091
    %v6406 = vpop.f32.mrb[0].mxu0
    %v6407 = vadd.f32 %v6323, %v6406
    %v6408 = vpop.f32.mrb[0].mxu0
    %v6409 = vpop.f32.mrb[0].mxu0
    %v6410 = vpop.f32.mrb[0].mxu0
    %6411 = vdwg.mxu0
    %v6413 = vrot.slane %v6314, 1
    %v6415 = vsel %vm477, %v6413, %v6413
    %v6416 = vmul.f32 %v174, %v6415
    %v6417 = vadd.f32 %v6407, %v6416
    %v6418 = vadd.f32 %v6090, %v6417
    %v6419 = vld [vmem:[#allocation5 + $0xe] sm:$0x1]
    %v6420 = vlaneseq
    %v6421 = vshrl.u32 %v6420, 7
    %v6422 = vsub.s32 0, %v6421
    %v6423 = vrot.slane %v6419, %v6422
    %v6424 = vadd.f32 %v6418, %v6423
    %v6425 = vmax.f32 %v6424, 0.0
    %v6426 = vpack.c.bf16 %v6425, %v6425
    %s6427 = scalar_lea.vmem [#allocation2], 4480
    %v6428 = vld [vmem:[%s6427] sm:$0xf]
    %v6429 = vld [vmem:[%s6427 + $0x4] sm:$0xf]
    %v6430 = vld [vmem:[%s6427 + $0x8] sm:$0xf]
    %v6431 = vld [vmem:[%s6427 + $0xc] sm:$0xf]
    %v6432 = vld [vmem:[%s6427 + $0x10] sm:$0xf]
    %v6433 = vld [vmem:[%s6427 + $0x14] sm:$0xf]
    %v6434 = vld [vmem:[%s6427 + $0x18] sm:$0xf]
    %v6435 = vld [vmem:[%s6427 + $0x1c] sm:$0xf]
    %v6436 = vld [vmem:[%s6427 + $0x20] sm:$0xf]
    %v6437 = vld [vmem:[%s6427 + $0x24] sm:$0xf]
    %v6438 = vld [vmem:[%s6427 + $0x28] sm:$0xf]
    %v6439 = vld [vmem:[%s6427 + $0x2c] sm:$0xf]
    %v6440 = vld [vmem:[%s6427 + $0x30] sm:$0xf]
    %v6441 = vld [vmem:[%s6427 + $0x34] sm:$0xf]
    %v6442 = vld [vmem:[%s6427 + $0x38] sm:$0xf]
    %v6443 = vld [vmem:[%s6427 + $0x3c] sm:$0xf]
    %s6444 = scalar_lea.vmem [#allocation2], 4416
    %v6445 = vld [vmem:[%s6444] sm:$0xf]
    %v6446 = vld [vmem:[%s6444 + $0x4] sm:$0xf]
    %v6447 = vld [vmem:[%s6444 + $0x8] sm:$0xf]
    %v6448 = vld [vmem:[%s6444 + $0xc] sm:$0xf]
    %v6449 = vld [vmem:[%s6444 + $0x10] sm:$0xf]
    %v6450 = vld [vmem:[%s6444 + $0x14] sm:$0xf]
    %v6451 = vld [vmem:[%s6444 + $0x18] sm:$0xf]
    %v6452 = vld [vmem:[%s6444 + $0x1c] sm:$0xf]
    %v6453 = vld [vmem:[%s6444 + $0x20] sm:$0xf]
    %v6454 = vld [vmem:[%s6444 + $0x24] sm:$0xf]
    %v6455 = vld [vmem:[%s6444 + $0x28] sm:$0xf]
    %v6456 = vld [vmem:[%s6444 + $0x2c] sm:$0xf]
    %v6457 = vld [vmem:[%s6444 + $0x30] sm:$0xf]
    %v6458 = vld [vmem:[%s6444 + $0x34] sm:$0xf]
    %v6459 = vld [vmem:[%s6444 + $0x38] sm:$0xf]
    %v6460 = vld [vmem:[%s6444 + $0x3c] sm:$0xf]
    %v6477 = vunpack.c.l.b16 %v6445
    %v6478 = vunpack.c.l.b16 %v6446
    %v6479 = vunpack.c.l.b16 %v6447
    %v6480 = vunpack.c.l.b16 %v6448
    %v6481 = vunpack.c.l.b16 %v6449
    %v6482 = vunpack.c.l.b16 %v6450
    %v6483 = vunpack.c.l.b16 %v6451
    %v6484 = vunpack.c.l.b16 %v6452
    %v6485 = vunpack.c.l.b16 %v6453
    %v6486 = vunpack.c.l.b16 %v6454
    %v6487 = vunpack.c.l.b16 %v6455
    %v6488 = vunpack.c.l.b16 %v6456
    %v6489 = vunpack.c.l.b16 %v6457
    %v6490 = vunpack.c.l.b16 %v6458
    %v6491 = vunpack.c.l.b16 %v6459
    %v6492 = vunpack.c.l.b16 %v6460
    %v6493 = vpack.c.b16 %v6478, %v6477
    %v6494 = vpack.c.b16 %v6480, %v6479
    %v6495 = vpack.c.b16 %v6482, %v6481
    %v6496 = vpack.c.b16 %v6484, %v6483
    %v6497 = vpack.c.b16 %v6486, %v6485
    %v6498 = vpack.c.b16 %v6488, %v6487
    %v6499 = vpack.c.b16 %v6490, %v6489
    %v6500 = vpack.c.b16 %v6492, %v6491
    %6509 = vmatprep.subr.bf16.mxu0 0
    %6510 = vmatpush1.bf16.msra.mxu0 %v6493
    %6511 = vmatprep.subr.bf16.mxu0 0
    %6512 = vmatpush1.bf16.msra.mxu0 %v6494
    %6513 = vmatprep.subr.bf16.mxu0 0
    %6514 = vmatpush1.bf16.msra.mxu0 %v6495
    %6515 = vmatprep.subr.bf16.mxu0 0
    %6516 = vmatpush1.bf16.msra.mxu0 %v6496
    %6517 = vmatprep.subr.bf16.mxu0 0
    %6518 = vmatpush1.bf16.msra.mxu0 %v6497
    %6519 = vmatprep.subr.bf16.mxu0 0
    %6520 = vmatpush1.bf16.msra.mxu0 %v6498
    %6521 = vmatprep.subr.bf16.mxu0 0
    %6522 = vmatpush1.bf16.msra.mxu0 %v6499
    %6523 = vmatprep.subr.bf16.mxu0 0
    %6524 = vmatpush1.bf16.msra.mxu0 %v6500
    %6525 = vmatprep.subr.bf16.mxu0 0
    %6526 = vmatpush1.bf16.msra.mxu0 0
    %6527 = vmatprep.subr.bf16.mxu0 0
    %6528 = vmatpush1.bf16.msra.mxu0 0
    %6529 = vmatprep.subr.bf16.mxu0 0
    %6530 = vmatpush1.bf16.msra.mxu0 0
    %6531 = vmatprep.subr.bf16.mxu0 0
    %6532 = vmatpush1.bf16.msra.mxu0 0
    %6533 = vmatprep.subr.bf16.mxu0 0
    %6534 = vmatpush1.bf16.msra.mxu0 0
    %6535 = vmatprep.subr.bf16.mxu0 0
    %6536 = vmatpush1.bf16.msra.mxu0 0
    %6537 = vmatprep.subr.bf16.mxu0 0
    %6538 = vmatpush1.bf16.msra.mxu0 0
    %6539 = vmatprep.subr.bf16.mxu0 0
    %6540 = vmatpush1.bf16.msra.mxu0 0
    %6541 = vmatprep.mubr.bf16.mxu0 0
    %6542 = vmatmul.mubr.bf16.gmra.mrb[0].mxu0 %v6426
    %v6543 = vpop.f32.mrb[0].mxu0
    %v6544 = vadd.f32 0.0, %v6543
    %v6545 = vpop.f32.mrb[0].mxu0
    %v6546 = vpop.f32.mrb[0].mxu0
    %v6547 = vpop.f32.mrb[0].mxu0
    %6548 = vdwg.mxu0
    %s6549 = scalar_lea.vmem [#allocation2], 4544
    %v6550 = vld [vmem:[%s6549] sm:$0xf]
    %v6551 = vld [vmem:[%s6549 + $0x4] sm:$0xf]
    %v6552 = vld [vmem:[%s6549 + $0x8] sm:$0xf]
    %v6553 = vld [vmem:[%s6549 + $0xc] sm:$0xf]
    %v6554 = vld [vmem:[%s6549 + $0x10] sm:$0xf]
    %v6555 = vld [vmem:[%s6549 + $0x14] sm:$0xf]
    %v6556 = vld [vmem:[%s6549 + $0x18] sm:$0xf]
    %v6557 = vld [vmem:[%s6549 + $0x1c] sm:$0xf]
    %v6558 = vld [vmem:[%s6549 + $0x20] sm:$0xf]
    %v6559 = vld [vmem:[%s6549 + $0x24] sm:$0xf]
    %v6560 = vld [vmem:[%s6549 + $0x28] sm:$0xf]
    %v6561 = vld [vmem:[%s6549 + $0x2c] sm:$0xf]
    %v6562 = vld [vmem:[%s6549 + $0x30] sm:$0xf]
    %v6563 = vld [vmem:[%s6549 + $0x34] sm:$0xf]
    %v6564 = vld [vmem:[%s6549 + $0x38] sm:$0xf]
    %v6565 = vld [vmem:[%s6549 + $0x3c] sm:$0xf]
    %v6582 = vunpack.c.l.b16 %v6550
    %v6583 = vunpack.c.l.b16 %v6551
    %v6584 = vunpack.c.l.b16 %v6552
    %v6585 = vunpack.c.l.b16 %v6553
    %v6586 = vunpack.c.l.b16 %v6554
    %v6587 = vunpack.c.l.b16 %v6555
    %v6588 = vunpack.c.l.b16 %v6556
    %v6589 = vunpack.c.l.b16 %v6557
    %v6590 = vunpack.c.l.b16 %v6558
    %v6591 = vunpack.c.l.b16 %v6559
    %v6592 = vunpack.c.l.b16 %v6560
    %v6593 = vunpack.c.l.b16 %v6561
    %v6594 = vunpack.c.l.b16 %v6562
    %v6595 = vunpack.c.l.b16 %v6563
    %v6596 = vunpack.c.l.b16 %v6564
    %v6597 = vunpack.c.l.b16 %v6565
    %v6598 = vpack.c.b16 %v6583, %v6582
    %v6599 = vpack.c.b16 %v6585, %v6584
    %v6600 = vpack.c.b16 %v6587, %v6586
    %v6601 = vpack.c.b16 %v6589, %v6588
    %v6602 = vpack.c.b16 %v6591, %v6590
    %v6603 = vpack.c.b16 %v6593, %v6592
    %v6604 = vpack.c.b16 %v6595, %v6594
    %v6605 = vpack.c.b16 %v6597, %v6596
    %6614 = vmatprep.subr.bf16.mxu0 0
    %6615 = vmatpush1.bf16.msra.mxu0 %v6598
    %6616 = vmatprep.subr.bf16.mxu0 0
    %6617 = vmatpush1.bf16.msra.mxu0 %v6599
    %6618 = vmatprep.subr.bf16.mxu0 0
    %6619 = vmatpush1.bf16.msra.mxu0 %v6600
    %6620 = vmatprep.subr.bf16.mxu0 0
    %6621 = vmatpush1.bf16.msra.mxu0 %v6601
    %6622 = vmatprep.subr.bf16.mxu0 0
    %6623 = vmatpush1.bf16.msra.mxu0 %v6602
    %6624 = vmatprep.subr.bf16.mxu0 0
    %6625 = vmatpush1.bf16.msra.mxu0 %v6603
    %6626 = vmatprep.subr.bf16.mxu0 0
    %6627 = vmatpush1.bf16.msra.mxu0 %v6604
    %6628 = vmatprep.subr.bf16.mxu0 0
    %6629 = vmatpush1.bf16.msra.mxu0 %v6605
    %6630 = vmatprep.subr.bf16.mxu0 0
    %6631 = vmatpush1.bf16.msra.mxu0 0
    %6632 = vmatprep.subr.bf16.mxu0 0
    %6633 = vmatpush1.bf16.msra.mxu0 0
    %6634 = vmatprep.subr.bf16.mxu0 0
    %6635 = vmatpush1.bf16.msra.mxu0 0
    %6636 = vmatprep.subr.bf16.mxu0 0
    %6637 = vmatpush1.bf16.msra.mxu0 0
    %6638 = vmatprep.subr.bf16.mxu0 0
    %6639 = vmatpush1.bf16.msra.mxu0 0
    %6640 = vmatprep.subr.bf16.mxu0 0
    %6641 = vmatpush1.bf16.msra.mxu0 0
    %6642 = vmatprep.subr.bf16.mxu0 0
    %6643 = vmatpush1.bf16.msra.mxu0 0
    %6644 = vmatprep.subr.bf16.mxu0 0
    %6645 = vmatpush1.bf16.msra.mxu0 0
    %6646 = vmatprep.mubr.bf16.mxu0 0
    %6647 = vmatmul.mubr.bf16.gmra.mrb[0].mxu0 %v6426
    %v6648 = vpop.f32.mrb[0].mxu0
    %v6649 = vadd.f32 0.0, %v6648
    %v6650 = vpop.f32.mrb[0].mxu0
    %v6651 = vpop.f32.mrb[0].mxu0
    %v6652 = vpop.f32.mrb[0].mxu0
    %6653 = vdwg.mxu0
    %v6655 = vrot.slane %v6544, 7
    %v6657 = vsel %vm384, %v6655, %v6655
    %v6658 = vmul.f32 %v171, %v6657
    %v6675 = vunpack.c.l.b16 %v6428
    %v6676 = vunpack.c.l.b16 %v6429
    %v6677 = vunpack.c.l.b16 %v6430
    %v6678 = vunpack.c.l.b16 %v6431
    %v6679 = vunpack.c.l.b16 %v6432
    %v6680 = vunpack.c.l.b16 %v6433
    %v6681 = vunpack.c.l.b16 %v6434
    %v6682 = vunpack.c.l.b16 %v6435
    %v6683 = vunpack.c.l.b16 %v6436
    %v6684 = vunpack.c.l.b16 %v6437
    %v6685 = vunpack.c.l.b16 %v6438
    %v6686 = vunpack.c.l.b16 %v6439
    %v6687 = vunpack.c.l.b16 %v6440
    %v6688 = vunpack.c.l.b16 %v6441
    %v6689 = vunpack.c.l.b16 %v6442
    %v6690 = vunpack.c.l.b16 %v6443
    %v6691 = vpack.c.b16 %v6676, %v6675
    %v6692 = vpack.c.b16 %v6678, %v6677
    %v6693 = vpack.c.b16 %v6680, %v6679
    %v6694 = vpack.c.b16 %v6682, %v6681
    %v6695 = vpack.c.b16 %v6684, %v6683
    %v6696 = vpack.c.b16 %v6686, %v6685
    %v6697 = vpack.c.b16 %v6688, %v6687
    %v6698 = vpack.c.b16 %v6690, %v6689
    %6707 = vmatprep.subr.bf16.mxu0 0
    %6708 = vmatpush1.bf16.msra.mxu0 %v6691
    %6709 = vmatprep.subr.bf16.mxu0 0
    %6710 = vmatpush1.bf16.msra.mxu0 %v6692
    %6711 = vmatprep.subr.bf16.mxu0 0
    %6712 = vmatpush1.bf16.msra.mxu0 %v6693
    %6713 = vmatprep.subr.bf16.mxu0 0
    %6714 = vmatpush1.bf16.msra.mxu0 %v6694
    %6715 = vmatprep.subr.bf16.mxu0 0
    %6716 = vmatpush1.bf16.msra.mxu0 %v6695
    %6717 = vmatprep.subr.bf16.mxu0 0
    %6718 = vmatpush1.bf16.msra.mxu0 %v6696
    %6719 = vmatprep.subr.bf16.mxu0 0
    %6720 = vmatpush1.bf16.msra.mxu0 %v6697
    %6721 = vmatprep.subr.bf16.mxu0 0
    %6722 = vmatpush1.bf16.msra.mxu0 %v6698
    %6723 = vmatprep.subr.bf16.mxu0 0
    %6724 = vmatpush1.bf16.msra.mxu0 0
    %6725 = vmatprep.subr.bf16.mxu0 0
    %6726 = vmatpush1.bf16.msra.mxu0 0
    %6727 = vmatprep.subr.bf16.mxu0 0
    %6728 = vmatpush1.bf16.msra.mxu0 0
    %6729 = vmatprep.subr.bf16.mxu0 0
    %6730 = vmatpush1.bf16.msra.mxu0 0
    %6731 = vmatprep.subr.bf16.mxu0 0
    %6732 = vmatpush1.bf16.msra.mxu0 0
    %6733 = vmatprep.subr.bf16.mxu0 0
    %6734 = vmatpush1.bf16.msra.mxu0 0
    %6735 = vmatprep.subr.bf16.mxu0 0
    %6736 = vmatpush1.bf16.msra.mxu0 0
    %6737 = vmatprep.subr.bf16.mxu0 0
    %6738 = vmatpush1.bf16.msra.mxu0 0
    %6739 = vmatprep.mubr.bf16.mxu0 0
    %6740 = vmatmul.mubr.bf16.gmra.mrb[0].mxu0 %v6426
    %v6741 = vpop.f32.mrb[0].mxu0
    %v6742 = vadd.f32 %v6658, %v6741
    %v6743 = vpop.f32.mrb[0].mxu0
    %v6744 = vpop.f32.mrb[0].mxu0
    %v6745 = vpop.f32.mrb[0].mxu0
    %6746 = vdwg.mxu0
    %v6748 = vrot.slane %v6649, 1
    %v6750 = vsel %vm477, %v6748, %v6748
    %v6751 = vmul.f32 %v174, %v6750
    %v6752 = vadd.f32 %v6742, %v6751
    %v6753 = vld [vmem:[#allocation5 + $0xf] sm:$0x1]
    %v6754 = vlaneseq
    %v6755 = vshrl.u32 %v6754, 7
    %v6756 = vsub.s32 0, %v6755
    %v6757 = vrot.slane %v6753, %v6756
    %v6758 = vadd.f32 %v6752, %v6757
    %v6759 = vmax.f32 %v6758, 0.0
    %v6760 = vpack.c.bf16 %v6759, %v6759
    %s6761 = scalar_lea.vmem [#allocation2], 4608
    %v6762 = vld [vmem:[%s6761] sm:$0xf]
    %v6763 = vld [vmem:[%s6761 + $0x4] sm:$0xf]
    %v6764 = vld [vmem:[%s6761 + $0x8] sm:$0xf]
    %v6765 = vld [vmem:[%s6761 + $0xc] sm:$0xf]
    %v6766 = vld [vmem:[%s6761 + $0x10] sm:$0xf]
    %v6767 = vld [vmem:[%s6761 + $0x14] sm:$0xf]
    %v6768 = vld [vmem:[%s6761 + $0x18] sm:$0xf]
    %v6769 = vld [vmem:[%s6761 + $0x1c] sm:$0xf]
    %v6770 = vld [vmem:[%s6761 + $0x20] sm:$0xf]
    %v6771 = vld [vmem:[%s6761 + $0x24] sm:$0xf]
    %v6772 = vld [vmem:[%s6761 + $0x28] sm:$0xf]
    %v6773 = vld [vmem:[%s6761 + $0x2c] sm:$0xf]
    %v6774 = vld [vmem:[%s6761 + $0x30] sm:$0xf]
    %v6775 = vld [vmem:[%s6761 + $0x34] sm:$0xf]
    %v6776 = vld [vmem:[%s6761 + $0x38] sm:$0xf]
    %v6777 = vld [vmem:[%s6761 + $0x3c] sm:$0xf]
    %v6794 = vunpack.c.l.b16 %v6762
    %v6795 = vunpack.c.l.b16 %v6763
    %v6796 = vunpack.c.l.b16 %v6764
    %v6797 = vunpack.c.l.b16 %v6765
    %v6798 = vunpack.c.l.b16 %v6766
    %v6799 = vunpack.c.l.b16 %v6767
    %v6800 = vunpack.c.l.b16 %v6768
    %v6801 = vunpack.c.l.b16 %v6769
    %v6802 = vunpack.c.l.b16 %v6770
    %v6803 = vunpack.c.l.b16 %v6771
    %v6804 = vunpack.c.l.b16 %v6772
    %v6805 = vunpack.c.l.b16 %v6773
    %v6806 = vunpack.c.l.b16 %v6774
    %v6807 = vunpack.c.l.b16 %v6775
    %v6808 = vunpack.c.l.b16 %v6776
    %v6809 = vunpack.c.l.b16 %v6777
    %v6810 = vpack.c.b16 %v6795, %v6794
    %v6811 = vpack.c.b16 %v6797, %v6796
    %v6812 = vpack.c.b16 %v6799, %v6798
    %v6813 = vpack.c.b16 %v6801, %v6800
    %v6814 = vpack.c.b16 %v6803, %v6802
    %v6815 = vpack.c.b16 %v6805, %v6804
    %v6816 = vpack.c.b16 %v6807, %v6806
    %v6817 = vpack.c.b16 %v6809, %v6808
    %6826 = vmatprep.subr.bf16.mxu0 0
    %6827 = vmatpush1.bf16.msra.mxu0 %v6810
    %6828 = vmatprep.subr.bf16.mxu0 0
    %6829 = vmatpush1.bf16.msra.mxu0 %v6811
    %6830 = vmatprep.subr.bf16.mxu0 0
    %6831 = vmatpush1.bf16.msra.mxu0 %v6812
    %6832 = vmatprep.subr.bf16.mxu0 0
    %6833 = vmatpush1.bf16.msra.mxu0 %v6813
    %6834 = vmatprep.subr.bf16.mxu0 0
    %6835 = vmatpush1.bf16.msra.mxu0 %v6814
    %6836 = vmatprep.subr.bf16.mxu0 0
    %6837 = vmatpush1.bf16.msra.mxu0 %v6815
    %6838 = vmatprep.subr.bf16.mxu0 0
    %6839 = vmatpush1.bf16.msra.mxu0 %v6816
    %6840 = vmatprep.subr.bf16.mxu0 0
    %6841 = vmatpush1.bf16.msra.mxu0 %v6817
    %6842 = vmatprep.subr.bf16.mxu0 0
    %6843 = vmatpush1.bf16.msra.mxu0 0
    %6844 = vmatprep.subr.bf16.mxu0 0
    %6845 = vmatpush1.bf16.msra.mxu0 0
    %6846 = vmatprep.subr.bf16.mxu0 0
    %6847 = vmatpush1.bf16.msra.mxu0 0
    %6848 = vmatprep.subr.bf16.mxu0 0
    %6849 = vmatpush1.bf16.msra.mxu0 0
    %6850 = vmatprep.subr.bf16.mxu0 0
    %6851 = vmatpush1.bf16.msra.mxu0 0
    %6852 = vmatprep.subr.bf16.mxu0 0
    %6853 = vmatpush1.bf16.msra.mxu0 0
    %6854 = vmatprep.subr.bf16.mxu0 0
    %6855 = vmatpush1.bf16.msra.mxu0 0
    %6856 = vmatprep.subr.bf16.mxu0 0
    %6857 = vmatpush1.bf16.msra.mxu0 0
    %6858 = vmatprep.mubr.bf16.mxu0 0
    %6859 = vmatmul.mubr.bf16.gmra.mrb[0].mxu0 %v6760
    %v6860 = vpop.f32.mrb[0].mxu0
    %v6861 = vadd.f32 0.0, %v6860
    %v6862 = vpop.f32.mrb[0].mxu0
    %v6863 = vpop.f32.mrb[0].mxu0
    %v6864 = vpop.f32.mrb[0].mxu0
    %6865 = vdwg.mxu0
    %v6866 = vpack.c.bf16 %v6861, %v6861
    %s6867 = scalar_lea.vmem [#allocation2], 4672
    %v6868 = vld [vmem:[%s6867] sm:$0xf]
    %v6869 = vld [vmem:[%s6867 + $0x4] sm:$0xf]
    %v6870 = vld [vmem:[%s6867 + $0x8] sm:$0xf]
    %v6871 = vld [vmem:[%s6867 + $0xc] sm:$0xf]
    %v6872 = vld [vmem:[%s6867 + $0x10] sm:$0xf]
    %v6873 = vld [vmem:[%s6867 + $0x14] sm:$0xf]
    %v6874 = vld [vmem:[%s6867 + $0x18] sm:$0xf]
    %v6875 = vld [vmem:[%s6867 + $0x1c] sm:$0xf]
    %v6876 = vld [vmem:[%s6867 + $0x20] sm:$0xf]
    %v6877 = vld [vmem:[%s6867 + $0x24] sm:$0xf]
    %v6878 = vld [vmem:[%s6867 + $0x28] sm:$0xf]
    %v6879 = vld [vmem:[%s6867 + $0x2c] sm:$0xf]
    %v6880 = vld [vmem:[%s6867 + $0x30] sm:$0xf]
    %v6881 = vld [vmem:[%s6867 + $0x34] sm:$0xf]
    %v6882 = vld [vmem:[%s6867 + $0x38] sm:$0xf]
    %v6883 = vld [vmem:[%s6867 + $0x3c] sm:$0xf]
    %v6900 = vunpack.c.l.b16 %v6868
    %v6901 = vunpack.c.l.b16 %v6869
    %v6902 = vunpack.c.l.b16 %v6870
    %v6903 = vunpack.c.l.b16 %v6871
    %v6904 = vunpack.c.l.b16 %v6872
    %v6905 = vunpack.c.l.b16 %v6873
    %v6906 = vunpack.c.l.b16 %v6874
    %v6907 = vunpack.c.l.b16 %v6875
    %v6908 = vunpack.c.l.b16 %v6876
    %v6909 = vunpack.c.l.b16 %v6877
    %v6910 = vunpack.c.l.b16 %v6878
    %v6911 = vunpack.c.l.b16 %v6879
    %v6912 = vunpack.c.l.b16 %v6880
    %v6913 = vunpack.c.l.b16 %v6881
    %v6914 = vunpack.c.l.b16 %v6882
    %v6915 = vunpack.c.l.b16 %v6883
    %v6916 = vpack.c.b16 %v6901, %v6900
    %v6917 = vpack.c.b16 %v6903, %v6902
    %v6918 = vpack.c.b16 %v6905, %v6904
    %v6919 = vpack.c.b16 %v6907, %v6906
    %v6920 = vpack.c.b16 %v6909, %v6908
    %v6921 = vpack.c.b16 %v6911, %v6910
    %v6922 = vpack.c.b16 %v6913, %v6912
    %v6923 = vpack.c.b16 %v6915, %v6914
    %6932 = vmatprep.subr.bf16.mxu0 0
    %6933 = vmatpush1.bf16.msra.mxu0 %v6916
    %6934 = vmatprep.subr.bf16.mxu0 0
    %6935 = vmatpush1.bf16.msra.mxu0 %v6917
    %6936 = vmatprep.subr.bf16.mxu0 0
    %6937 = vmatpush1.bf16.msra.mxu0 %v6918
    %6938 = vmatprep.subr.bf16.mxu0 0
    %6939 = vmatpush1.bf16.msra.mxu0 %v6919
    %6940 = vmatprep.subr.bf16.mxu0 0
    %6941 = vmatpush1.bf16.msra.mxu0 %v6920
    %6942 = vmatprep.subr.bf16.mxu0 0
    %6943 = vmatpush1.bf16.msra.mxu0 %v6921
    %6944 = vmatprep.subr.bf16.mxu0 0
    %6945 = vmatpush1.bf16.msra.mxu0 %v6922
    %6946 = vmatprep.subr.bf16.mxu0 0
    %6947 = vmatpush1.bf16.msra.mxu0 %v6923
    %6948 = vmatprep.subr.bf16.mxu0 0
    %6949 = vmatpush1.bf16.msra.mxu0 0
    %6950 = vmatprep.subr.bf16.mxu0 0
    %6951 = vmatpush1.bf16.msra.mxu0 0
    %6952 = vmatprep.subr.bf16.mxu0 0
    %6953 = vmatpush1.bf16.msra.mxu0 0
    %6954 = vmatprep.subr.bf16.mxu0 0
    %6955 = vmatpush1.bf16.msra.mxu0 0
    %6956 = vmatprep.subr.bf16.mxu0 0
    %6957 = vmatpush1.bf16.msra.mxu0 0
    %6958 = vmatprep.subr.bf16.mxu0 0
    %6959 = vmatpush1.bf16.msra.mxu0 0
    %6960 = vmatprep.subr.bf16.mxu0 0
    %6961 = vmatpush1.bf16.msra.mxu0 0
    %6962 = vmatprep.subr.bf16.mxu0 0
    %6963 = vmatpush1.bf16.msra.mxu0 0
    %6964 = vmatprep.mubr.bf16.mxu0 0
    %6965 = vmatmul.mubr.bf16.gmra.mrb[0].mxu0 %v6760
    %v6966 = vpop.f32.mrb[0].mxu0
    %v6967 = vadd.f32 0.0, %v6966
    %v6968 = vpop.f32.mrb[0].mxu0
    %v6969 = vpop.f32.mrb[0].mxu0
    %v6970 = vpop.f32.mrb[0].mxu0
    %6971 = vdwg.mxu0
    %v6972 = vpack.c.bf16 %v6967, %v6967
    %s6973 = scalar_lea.vmem [#allocation2], 4736
    %v6974 = vld [vmem:[%s6973] sm:$0xf]
    %v6975 = vld [vmem:[%s6973 + $0x4] sm:$0xf]
    %s6976 = scalar_lea.vmem [#allocation2], 4800
    %v6977 = vld [vmem:[%s6976] sm:$0xf]
    %v6978 = vld [vmem:[%s6976 + $0x4] sm:$0xf]
    %v6981 = vunpack.c.l.b16 %v6977
    %v6982 = vunpack.c.l.b16 %v6978
    %v6983 = vpack.c.b16 %v6982, %v6981
    %v6985 = vsel %vm2733, %v6983, 0
    %v6988 = vsel %vm2737, %v6972, 0
    %6990 = vmatprep.subr.bf16.mxu0 0
    %6991 = vmatpush1.bf16.msra.mxu0 %v6988
    %6992 = vmatprep.subr.bf16.mxu0 0
    %6993 = vmatpush1.bf16.msra.mxu0 0
    %6994 = vmatprep.subr.bf16.mxu0 0
    %6995 = vmatpush1.bf16.msra.mxu0 0
    %6996 = vmatprep.subr.bf16.mxu0 0
    %6997 = vmatpush1.bf16.msra.mxu0 0
    %6998 = vmatprep.subr.bf16.mxu0 0
    %6999 = vmatpush1.bf16.msra.mxu0 0
    %7000 = vmatprep.subr.bf16.mxu0 0
    %7001 = vmatpush1.bf16.msra.mxu0 0
    %7002 = vmatprep.subr.bf16.mxu0 0
    %7003 = vmatpush1.bf16.msra.mxu0 0
    %7004 = vmatprep.subr.bf16.mxu0 0
    %7005 = vmatpush1.bf16.msra.mxu0 0
    %7006 = vmatprep.subr.bf16.mxu0 0
    %7007 = vmatpush1.bf16.msra.mxu0 0
    %7008 = vmatprep.subr.bf16.mxu0 0
    %7009 = vmatpush1.bf16.msra.mxu0 0
    %7010 = vmatprep.subr.bf16.mxu0 0
    %7011 = vmatpush1.bf16.msra.mxu0 0
    %7012 = vmatprep.subr.bf16.mxu0 0
    %7013 = vmatpush1.bf16.msra.mxu0 0
    %7014 = vmatprep.subr.bf16.mxu0 0
    %7015 = vmatpush1.bf16.msra.mxu0 0
    %7016 = vmatprep.subr.bf16.mxu0 0
    %7017 = vmatpush1.bf16.msra.mxu0 0
    %7018 = vmatprep.subr.bf16.mxu0 0
    %7019 = vmatpush1.bf16.msra.mxu0 0
    %7020 = vmatprep.subr.bf16.mxu0 0
    %7021 = vmatpush1.bf16.msra.mxu0 0
    %7022 = vmatprep.mubr.bf16.mxu0 0
    %7023 = vmatmul.mubr.bf16.gmra.mrb[0].mxu0 %v6985
    %v7024 = vpop.f32.mrb[0].mxu0
    %v7025 = vadd.f32 0.0, %v7024
    %v7026 = vpop.f32.mrb[0].mxu0
    %v7027 = vpop.f32.mrb[0].mxu0
    %v7028 = vadd.f32 0.0, %v7027
    %v7029 = vpop.f32.mrb[0].mxu0
    %7030 = vdwg.mxu0
    %v7033 = vunpack.c.l.b16 %v6974
    %v7034 = vunpack.c.l.b16 %v6975
    %v7035 = vpack.c.b16 %v7034, %v7033
    %v7037 = vsel %vm2733, %v7035, 0
    %v7040 = vsel %vm2737, %v6866, 0
    %7042 = vmatprep.subr.bf16.mxu0 0
    %7043 = vmatpush1.bf16.msra.mxu0 %v7040
    %7044 = vmatprep.subr.bf16.mxu0 0
    %7045 = vmatpush1.bf16.msra.mxu0 0
    %7046 = vmatprep.subr.bf16.mxu0 0
    %7047 = vmatpush1.bf16.msra.mxu0 0
    %7048 = vmatprep.subr.bf16.mxu0 0
    %7049 = vmatpush1.bf16.msra.mxu0 0
    %7050 = vmatprep.subr.bf16.mxu0 0
    %7051 = vmatpush1.bf16.msra.mxu0 0
    %7052 = vmatprep.subr.bf16.mxu0 0
    %7053 = vmatpush1.bf16.msra.mxu0 0
    %7054 = vmatprep.subr.bf16.mxu0 0
    %7055 = vmatpush1.bf16.msra.mxu0 0
    %7056 = vmatprep.subr.bf16.mxu0 0
    %7057 = vmatpush1.bf16.msra.mxu0 0
    %7058 = vmatprep.subr.bf16.mxu0 0
    %7059 = vmatpush1.bf16.msra.mxu0 0
    %7060 = vmatprep.subr.bf16.mxu0 0
    %7061 = vmatpush1.bf16.msra.mxu0 0
    %7062 = vmatprep.subr.bf16.mxu0 0
    %7063 = vmatpush1.bf16.msra.mxu0 0
    %7064 = vmatprep.subr.bf16.mxu0 0
    %7065 = vmatpush1.bf16.msra.mxu0 0
    %7066 = vmatprep.subr.bf16.mxu0 0
    %7067 = vmatpush1.bf16.msra.mxu0 0
    %7068 = vmatprep.subr.bf16.mxu0 0
    %7069 = vmatpush1.bf16.msra.mxu0 0
    %7070 = vmatprep.subr.bf16.mxu0 0
    %7071 = vmatpush1.bf16.msra.mxu0 0
    %7072 = vmatprep.subr.bf16.mxu0 0
    %7073 = vmatpush1.bf16.msra.mxu0 0
    %7074 = vmatprep.mubr.bf16.mxu0 0
    %7075 = vmatmul.mubr.bf16.gmra.mrb[0].mxu0 %v7037
    %v7076 = vpop.f32.mrb[0].mxu0
    %v7077 = vadd.f32 %v7025, %v7076
    %v7078 = vpop.f32.mrb[0].mxu0
    %v7079 = vpop.f32.mrb[0].mxu0
    %v7080 = vadd.f32 %v7028, %v7079
    %v7081 = vpop.f32.mrb[0].mxu0
    %7082 = vdwg.mxu0
    %v7083 = vld [vmem:[#allocation5 + $0x10] sm:$0x1]
    %v7084 = vlaneseq
    %v7085 = vshrl.u32 %v7084, 7
    %v7086 = vsub.s32 0, %v7085
    %v7087 = vrot.slane %v7083, %v7086
    %v7088 = vadd.f32 %v7077, %v7087
    %v7089 = vadd.f32 %v7080, %v7087
    %s7090 = scalar_lea.vmem [#allocation2], 4928
    %v7091 = vld [vmem:[%s7090] sm:$0xf]
    %v7092 = vld [vmem:[%s7090 + $0x4] sm:$0xf]
    %v7093 = vld [vmem:[%s7090 + $0x8] sm:$0xf]
    %v7094 = vld [vmem:[%s7090 + $0xc] sm:$0xf]
    %v7095 = vld [vmem:[%s7090 + $0x10] sm:$0xf]
    %v7096 = vld [vmem:[%s7090 + $0x14] sm:$0xf]
    %v7097 = vld [vmem:[%s7090 + $0x18] sm:$0xf]
    %v7098 = vld [vmem:[%s7090 + $0x1c] sm:$0xf]
    %v7099 = vld [vmem:[%s7090 + $0x20] sm:$0xf]
    %v7100 = vld [vmem:[%s7090 + $0x24] sm:$0xf]
    %v7101 = vld [vmem:[%s7090 + $0x28] sm:$0xf]
    %v7102 = vld [vmem:[%s7090 + $0x2c] sm:$0xf]
    %v7103 = vld [vmem:[%s7090 + $0x30] sm:$0xf]
    %v7104 = vld [vmem:[%s7090 + $0x34] sm:$0xf]
    %v7105 = vld [vmem:[%s7090 + $0x38] sm:$0xf]
    %v7106 = vld [vmem:[%s7090 + $0x3c] sm:$0xf]
    %s7107 = scalar_lea.vmem [#allocation2], 4864
    %v7108 = vld [vmem:[%s7107] sm:$0xf]
    %v7109 = vld [vmem:[%s7107 + $0x4] sm:$0xf]
    %v7110 = vld [vmem:[%s7107 + $0x8] sm:$0xf]
    %v7111 = vld [vmem:[%s7107 + $0xc] sm:$0xf]
    %v7112 = vld [vmem:[%s7107 + $0x10] sm:$0xf]
    %v7113 = vld [vmem:[%s7107 + $0x14] sm:$0xf]
    %v7114 = vld [vmem:[%s7107 + $0x18] sm:$0xf]
    %v7115 = vld [vmem:[%s7107 + $0x1c] sm:$0xf]
    %v7116 = vld [vmem:[%s7107 + $0x20] sm:$0xf]
    %v7117 = vld [vmem:[%s7107 + $0x24] sm:$0xf]
    %v7118 = vld [vmem:[%s7107 + $0x28] sm:$0xf]
    %v7119 = vld [vmem:[%s7107 + $0x2c] sm:$0xf]
    %v7120 = vld [vmem:[%s7107 + $0x30] sm:$0xf]
    %v7121 = vld [vmem:[%s7107 + $0x34] sm:$0xf]
    %v7122 = vld [vmem:[%s7107 + $0x38] sm:$0xf]
    %v7123 = vld [vmem:[%s7107 + $0x3c] sm:$0xf]
    %v7140 = vunpack.c.l.b16 %v7108
    %v7141 = vunpack.c.l.b16 %v7109
    %v7142 = vunpack.c.l.b16 %v7110
    %v7143 = vunpack.c.l.b16 %v7111
    %v7144 = vunpack.c.l.b16 %v7112
    %v7145 = vunpack.c.l.b16 %v7113
    %v7146 = vunpack.c.l.b16 %v7114
    %v7147 = vunpack.c.l.b16 %v7115
    %v7148 = vunpack.c.l.b16 %v7116
    %v7149 = vunpack.c.l.b16 %v7117
    %v7150 = vunpack.c.l.b16 %v7118
    %v7151 = vunpack.c.l.b16 %v7119
    %v7152 = vunpack.c.l.b16 %v7120
    %v7153 = vunpack.c.l.b16 %v7121
    %v7154 = vunpack.c.l.b16 %v7122
    %v7155 = vunpack.c.l.b16 %v7123
    %v7156 = vpack.c.b16 %v7141, %v7140
    %v7157 = vpack.c.b16 %v7143, %v7142
    %v7158 = vpack.c.b16 %v7145, %v7144
    %v7159 = vpack.c.b16 %v7147, %v7146
    %v7160 = vpack.c.b16 %v7149, %v7148
    %v7161 = vpack.c.b16 %v7151, %v7150
    %v7162 = vpack.c.b16 %v7153, %v7152
    %v7163 = vpack.c.b16 %v7155, %v7154
    %7172 = vmatprep.subr.bf16.mxu0 0
    %7173 = vmatpush1.bf16.msra.mxu0 %v7156
    %7174 = vmatprep.subr.bf16.mxu0 0
    %7175 = vmatpush1.bf16.msra.mxu0 %v7157
    %7176 = vmatprep.subr.bf16.mxu0 0
    %7177 = vmatpush1.bf16.msra.mxu0 %v7158
    %7178 = vmatprep.subr.bf16.mxu0 0
    %7179 = vmatpush1.bf16.msra.mxu0 %v7159
    %7180 = vmatprep.subr.bf16.mxu0 0
    %7181 = vmatpush1.bf16.msra.mxu0 %v7160
    %7182 = vmatprep.subr.bf16.mxu0 0
    %7183 = vmatpush1.bf16.msra.mxu0 %v7161
    %7184 = vmatprep.subr.bf16.mxu0 0
    %7185 = vmatpush1.bf16.msra.mxu0 %v7162
    %7186 = vmatprep.subr.bf16.mxu0 0
    %7187 = vmatpush1.bf16.msra.mxu0 %v7163
    %7188 = vmatprep.subr.bf16.mxu0 0
    %7189 = vmatpush1.bf16.msra.mxu0 0
    %7190 = vmatprep.subr.bf16.mxu0 0
    %7191 = vmatpush1.bf16.msra.mxu0 0
    %7192 = vmatprep.subr.bf16.mxu0 0
    %7193 = vmatpush1.bf16.msra.mxu0 0
    %7194 = vmatprep.subr.bf16.mxu0 0
    %7195 = vmatpush1.bf16.msra.mxu0 0
    %7196 = vmatprep.subr.bf16.mxu0 0
    %7197 = vmatpush1.bf16.msra.mxu0 0
    %7198 = vmatprep.subr.bf16.mxu0 0
    %7199 = vmatpush1.bf16.msra.mxu0 0
    %7200 = vmatprep.subr.bf16.mxu0 0
    %7201 = vmatpush1.bf16.msra.mxu0 0
    %7202 = vmatprep.subr.bf16.mxu0 0
    %7203 = vmatpush1.bf16.msra.mxu0 0
    %7204 = vmatprep.mubr.bf16.mxu0 0
    %7205 = vmatmul.mubr.bf16.gmra.mrb[0].mxu0 %v1850
    %v7206 = vpop.f32.mrb[0].mxu0
    %v7207 = vadd.f32 0.0, %v7206
    %v7208 = vpop.f32.mrb[0].mxu0
    %v7209 = vpop.f32.mrb[0].mxu0
    %v7210 = vadd.f32 0.0, %v7209
    %v7211 = vpop.f32.mrb[0].mxu0
    %7212 = vdwg.mxu0
    %s7213 = scalar_lea.vmem [#allocation2], 4992
    %v7214 = vld [vmem:[%s7213] sm:$0xf]
    %v7215 = vld [vmem:[%s7213 + $0x4] sm:$0xf]
    %v7216 = vld [vmem:[%s7213 + $0x8] sm:$0xf]
    %v7217 = vld [vmem:[%s7213 + $0xc] sm:$0xf]
    %v7218 = vld [vmem:[%s7213 + $0x10] sm:$0xf]
    %v7219 = vld [vmem:[%s7213 + $0x14] sm:$0xf]
    %v7220 = vld [vmem:[%s7213 + $0x18] sm:$0xf]
    %v7221 = vld [vmem:[%s7213 + $0x1c] sm:$0xf]
    %v7222 = vld [vmem:[%s7213 + $0x20] sm:$0xf]
    %v7223 = vld [vmem:[%s7213 + $0x24] sm:$0xf]
    %v7224 = vld [vmem:[%s7213 + $0x28] sm:$0xf]
    %v7225 = vld [vmem:[%s7213 + $0x2c] sm:$0xf]
    %v7226 = vld [vmem:[%s7213 + $0x30] sm:$0xf]
    %v7227 = vld [vmem:[%s7213 + $0x34] sm:$0xf]
    %v7228 = vld [vmem:[%s7213 + $0x38] sm:$0xf]
    %v7229 = vld [vmem:[%s7213 + $0x3c] sm:$0xf]
    %v7246 = vunpack.c.l.b16 %v7214
    %v7247 = vunpack.c.l.b16 %v7215
    %v7248 = vunpack.c.l.b16 %v7216
    %v7249 = vunpack.c.l.b16 %v7217
    %v7250 = vunpack.c.l.b16 %v7218
    %v7251 = vunpack.c.l.b16 %v7219
    %v7252 = vunpack.c.l.b16 %v7220
    %v7253 = vunpack.c.l.b16 %v7221
    %v7254 = vunpack.c.l.b16 %v7222
    %v7255 = vunpack.c.l.b16 %v7223
    %v7256 = vunpack.c.l.b16 %v7224
    %v7257 = vunpack.c.l.b16 %v7225
    %v7258 = vunpack.c.l.b16 %v7226
    %v7259 = vunpack.c.l.b16 %v7227
    %v7260 = vunpack.c.l.b16 %v7228
    %v7261 = vunpack.c.l.b16 %v7229
    %v7262 = vpack.c.b16 %v7247, %v7246
    %v7263 = vpack.c.b16 %v7249, %v7248
    %v7264 = vpack.c.b16 %v7251, %v7250
    %v7265 = vpack.c.b16 %v7253, %v7252
    %v7266 = vpack.c.b16 %v7255, %v7254
    %v7267 = vpack.c.b16 %v7257, %v7256
    %v7268 = vpack.c.b16 %v7259, %v7258
    %v7269 = vpack.c.b16 %v7261, %v7260
    %7278 = vmatprep.subr.bf16.mxu0 0
    %7279 = vmatpush1.bf16.msra.mxu0 %v7262
    %7280 = vmatprep.subr.bf16.mxu0 0
    %7281 = vmatpush1.bf16.msra.mxu0 %v7263
    %7282 = vmatprep.subr.bf16.mxu0 0
    %7283 = vmatpush1.bf16.msra.mxu0 %v7264
    %7284 = vmatprep.subr.bf16.mxu0 0
    %7285 = vmatpush1.bf16.msra.mxu0 %v7265
    %7286 = vmatprep.subr.bf16.mxu0 0
    %7287 = vmatpush1.bf16.msra.mxu0 %v7266
    %7288 = vmatprep.subr.bf16.mxu0 0
    %7289 = vmatpush1.bf16.msra.mxu0 %v7267
    %7290 = vmatprep.subr.bf16.mxu0 0
    %7291 = vmatpush1.bf16.msra.mxu0 %v7268
    %7292 = vmatprep.subr.bf16.mxu0 0
    %7293 = vmatpush1.bf16.msra.mxu0 %v7269
    %7294 = vmatprep.subr.bf16.mxu0 0
    %7295 = vmatpush1.bf16.msra.mxu0 0
    %7296 = vmatprep.subr.bf16.mxu0 0
    %7297 = vmatpush1.bf16.msra.mxu0 0
    %7298 = vmatprep.subr.bf16.mxu0 0
    %7299 = vmatpush1.bf16.msra.mxu0 0
    %7300 = vmatprep.subr.bf16.mxu0 0
    %7301 = vmatpush1.bf16.msra.mxu0 0
    %7302 = vmatprep.subr.bf16.mxu0 0
    %7303 = vmatpush1.bf16.msra.mxu0 0
    %7304 = vmatprep.subr.bf16.mxu0 0
    %7305 = vmatpush1.bf16.msra.mxu0 0
    %7306 = vmatprep.subr.bf16.mxu0 0
    %7307 = vmatpush1.bf16.msra.mxu0 0
    %7308 = vmatprep.subr.bf16.mxu0 0
    %7309 = vmatpush1.bf16.msra.mxu0 0
    %7310 = vmatprep.mubr.bf16.mxu0 0
    %7311 = vmatmul.mubr.bf16.gmra.mrb[0].mxu0 %v1850
    %v7312 = vpop.f32.mrb[0].mxu0
    %v7313 = vadd.f32 0.0, %v7312
    %v7314 = vpop.f32.mrb[0].mxu0
    %v7315 = vpop.f32.mrb[0].mxu0
    %v7316 = vadd.f32 0.0, %v7315
    %v7317 = vpop.f32.mrb[0].mxu0
    %7318 = vdwg.mxu0
    %v7320 = vrot.slane %v7210, 7
    %v7323 = vrot.slane %v7207, 7
    %v7324 = vsel %vm384, %v7323, %v7320
    %v7327 = vsel %vm384, %v7320, %v7323
    %v7328 = vmul.f32 %v149, %v7327
    %v7329 = vmul.f32 %v150, %v7324
    %v7346 = vunpack.c.l.b16 %v7091
    %v7347 = vunpack.c.l.b16 %v7092
    %v7348 = vunpack.c.l.b16 %v7093
    %v7349 = vunpack.c.l.b16 %v7094
    %v7350 = vunpack.c.l.b16 %v7095
    %v7351 = vunpack.c.l.b16 %v7096
    %v7352 = vunpack.c.l.b16 %v7097
    %v7353 = vunpack.c.l.b16 %v7098
    %v7354 = vunpack.c.l.b16 %v7099
    %v7355 = vunpack.c.l.b16 %v7100
    %v7356 = vunpack.c.l.b16 %v7101
    %v7357 = vunpack.c.l.b16 %v7102
    %v7358 = vunpack.c.l.b16 %v7103
    %v7359 = vunpack.c.l.b16 %v7104
    %v7360 = vunpack.c.l.b16 %v7105
    %v7361 = vunpack.c.l.b16 %v7106
    %v7362 = vpack.c.b16 %v7347, %v7346
    %v7363 = vpack.c.b16 %v7349, %v7348
    %v7364 = vpack.c.b16 %v7351, %v7350
    %v7365 = vpack.c.b16 %v7353, %v7352
    %v7366 = vpack.c.b16 %v7355, %v7354
    %v7367 = vpack.c.b16 %v7357, %v7356
    %v7368 = vpack.c.b16 %v7359, %v7358
    %v7369 = vpack.c.b16 %v7361, %v7360
    %7378 = vmatprep.subr.bf16.mxu0 0
    %7379 = vmatpush1.bf16.msra.mxu0 %v7362
    %7380 = vmatprep.subr.bf16.mxu0 0
    %7381 = vmatpush1.bf16.msra.mxu0 %v7363
    %7382 = vmatprep.subr.bf16.mxu0 0
    %7383 = vmatpush1.bf16.msra.mxu0 %v7364
    %7384 = vmatprep.subr.bf16.mxu0 0
    %7385 = vmatpush1.bf16.msra.mxu0 %v7365
    %7386 = vmatprep.subr.bf16.mxu0 0
    %7387 = vmatpush1.bf16.msra.mxu0 %v7366
    %7388 = vmatprep.subr.bf16.mxu0 0
    %7389 = vmatpush1.bf16.msra.mxu0 %v7367
    %7390 = vmatprep.subr.bf16.mxu0 0
    %7391 = vmatpush1.bf16.msra.mxu0 %v7368
    %7392 = vmatprep.subr.bf16.mxu0 0
    %7393 = vmatpush1.bf16.msra.mxu0 %v7369
    %7394 = vmatprep.subr.bf16.mxu0 0
    %7395 = vmatpush1.bf16.msra.mxu0 0
    %7396 = vmatprep.subr.bf16.mxu0 0
    %7397 = vmatpush1.bf16.msra.mxu0 0
    %7398 = vmatprep.subr.bf16.mxu0 0
    %7399 = vmatpush1.bf16.msra.mxu0 0
    %7400 = vmatprep.subr.bf16.mxu0 0
    %7401 = vmatpush1.bf16.msra.mxu0 0
    %7402 = vmatprep.subr.bf16.mxu0 0
    %7403 = vmatpush1.bf16.msra.mxu0 0
    %7404 = vmatprep.subr.bf16.mxu0 0
    %7405 = vmatpush1.bf16.msra.mxu0 0
    %7406 = vmatprep.subr.bf16.mxu0 0
    %7407 = vmatpush1.bf16.msra.mxu0 0
    %7408 = vmatprep.subr.bf16.mxu0 0
    %7409 = vmatpush1.bf16.msra.mxu0 0
    %7410 = vmatprep.mubr.bf16.mxu0 0
    %7411 = vmatmul.mubr.bf16.gmra.mrb[0].mxu0 %v1850
    %v7412 = vpop.f32.mrb[0].mxu0
    %v7413 = vadd.f32 %v7328, %v7412
    %v7414 = vpop.f32.mrb[0].mxu0
    %v7415 = vpop.f32.mrb[0].mxu0
    %v7416 = vadd.f32 %v7329, %v7415
    %v7417 = vpop.f32.mrb[0].mxu0
    %7418 = vdwg.mxu0
    %v7421 = vrot.slane %v7313, 1
    %v7422 = vrot.slane %v7316, 1
    %v7423 = vsel %vm477, %v7421, %v7422
    %v7427 = vsel %vm477, %v7422, %v7421
    %v7428 = vmul.f32 %v155, %v7423
    %v7429 = vmul.f32 %v156, %v7427
    %v7430 = vadd.f32 %v7413, %v7428
    %v7431 = vadd.f32 %v7416, %v7429
    %v7432 = vpack.c.bf16 %v7089, %v7088
    %s7433 = scalar_lea.vmem [#allocation2], 5120
    %v7434 = vld [vmem:[%s7433] sm:$0xf]
    %v7435 = vld [vmem:[%s7433 + $0x4] sm:$0xf]
    %v7436 = vld [vmem:[%s7433 + $0x8] sm:$0xf]
    %v7437 = vld [vmem:[%s7433 + $0xc] sm:$0xf]
    %v7438 = vld [vmem:[%s7433 + $0x10] sm:$0xf]
    %v7439 = vld [vmem:[%s7433 + $0x14] sm:$0xf]
    %v7440 = vld [vmem:[%s7433 + $0x18] sm:$0xf]
    %v7441 = vld [vmem:[%s7433 + $0x1c] sm:$0xf]
    %v7442 = vld [vmem:[%s7433 + $0x20] sm:$0xf]
    %v7443 = vld [vmem:[%s7433 + $0x24] sm:$0xf]
    %v7444 = vld [vmem:[%s7433 + $0x28] sm:$0xf]
    %v7445 = vld [vmem:[%s7433 + $0x2c] sm:$0xf]
    %v7446 = vld [vmem:[%s7433 + $0x30] sm:$0xf]
    %v7447 = vld [vmem:[%s7433 + $0x34] sm:$0xf]
    %v7448 = vld [vmem:[%s7433 + $0x38] sm:$0xf]
    %v7449 = vld [vmem:[%s7433 + $0x3c] sm:$0xf]
    %s7450 = scalar_lea.vmem [#allocation2], 5056
    %v7451 = vld [vmem:[%s7450] sm:$0xf]
    %v7452 = vld [vmem:[%s7450 + $0x4] sm:$0xf]
    %v7453 = vld [vmem:[%s7450 + $0x8] sm:$0xf]
    %v7454 = vld [vmem:[%s7450 + $0xc] sm:$0xf]
    %v7455 = vld [vmem:[%s7450 + $0x10] sm:$0xf]
    %v7456 = vld [vmem:[%s7450 + $0x14] sm:$0xf]
    %v7457 = vld [vmem:[%s7450 + $0x18] sm:$0xf]
    %v7458 = vld [vmem:[%s7450 + $0x1c] sm:$0xf]
    %v7459 = vld [vmem:[%s7450 + $0x20] sm:$0xf]
    %v7460 = vld [vmem:[%s7450 + $0x24] sm:$0xf]
    %v7461 = vld [vmem:[%s7450 + $0x28] sm:$0xf]
    %v7462 = vld [vmem:[%s7450 + $0x2c] sm:$0xf]
    %v7463 = vld [vmem:[%s7450 + $0x30] sm:$0xf]
    %v7464 = vld [vmem:[%s7450 + $0x34] sm:$0xf]
    %v7465 = vld [vmem:[%s7450 + $0x38] sm:$0xf]
    %v7466 = vld [vmem:[%s7450 + $0x3c] sm:$0xf]
    %v7483 = vunpack.c.l.b16 %v7451
    %v7484 = vunpack.c.l.b16 %v7452
    %v7485 = vunpack.c.l.b16 %v7453
    %v7486 = vunpack.c.l.b16 %v7454
    %v7487 = vunpack.c.l.b16 %v7455
    %v7488 = vunpack.c.l.b16 %v7456
    %v7489 = vunpack.c.l.b16 %v7457
    %v7490 = vunpack.c.l.b16 %v7458
    %v7491 = vunpack.c.l.b16 %v7459
    %v7492 = vunpack.c.l.b16 %v7460
    %v7493 = vunpack.c.l.b16 %v7461
    %v7494 = vunpack.c.l.b16 %v7462
    %v7495 = vunpack.c.l.b16 %v7463
    %v7496 = vunpack.c.l.b16 %v7464
    %v7497 = vunpack.c.l.b16 %v7465
    %v7498 = vunpack.c.l.b16 %v7466
    %v7499 = vpack.c.b16 %v7484, %v7483
    %v7500 = vpack.c.b16 %v7486, %v7485
    %v7501 = vpack.c.b16 %v7488, %v7487
    %v7502 = vpack.c.b16 %v7490, %v7489
    %v7503 = vpack.c.b16 %v7492, %v7491
    %v7504 = vpack.c.b16 %v7494, %v7493
    %v7505 = vpack.c.b16 %v7496, %v7495
    %v7506 = vpack.c.b16 %v7498, %v7497
    %7515 = vmatprep.subr.bf16.mxu0 0
    %7516 = vmatpush1.bf16.msra.mxu0 %v7499
    %7517 = vmatprep.subr.bf16.mxu0 0
    %7518 = vmatpush1.bf16.msra.mxu0 %v7500
    %7519 = vmatprep.subr.bf16.mxu0 0
    %7520 = vmatpush1.bf16.msra.mxu0 %v7501
    %7521 = vmatprep.subr.bf16.mxu0 0
    %7522 = vmatpush1.bf16.msra.mxu0 %v7502
    %7523 = vmatprep.subr.bf16.mxu0 0
    %7524 = vmatpush1.bf16.msra.mxu0 %v7503
    %7525 = vmatprep.subr.bf16.mxu0 0
    %7526 = vmatpush1.bf16.msra.mxu0 %v7504
    %7527 = vmatprep.subr.bf16.mxu0 0
    %7528 = vmatpush1.bf16.msra.mxu0 %v7505
    %7529 = vmatprep.subr.bf16.mxu0 0
    %7530 = vmatpush1.bf16.msra.mxu0 %v7506
    %7531 = vmatprep.subr.bf16.mxu0 0
    %7532 = vmatpush1.bf16.msra.mxu0 0
    %7533 = vmatprep.subr.bf16.mxu0 0
    %7534 = vmatpush1.bf16.msra.mxu0 0
    %7535 = vmatprep.subr.bf16.mxu0 0
    %7536 = vmatpush1.bf16.msra.mxu0 0
    %7537 = vmatprep.subr.bf16.mxu0 0
    %7538 = vmatpush1.bf16.msra.mxu0 0
    %7539 = vmatprep.subr.bf16.mxu0 0
    %7540 = vmatpush1.bf16.msra.mxu0 0
    %7541 = vmatprep.subr.bf16.mxu0 0
    %7542 = vmatpush1.bf16.msra.mxu0 0
    %7543 = vmatprep.subr.bf16.mxu0 0
    %7544 = vmatpush1.bf16.msra.mxu0 0
    %7545 = vmatprep.subr.bf16.mxu0 0
    %7546 = vmatpush1.bf16.msra.mxu0 0
    %7547 = vmatprep.mubr.bf16.mxu0 0
    %7548 = vmatmul.mubr.bf16.gmra.mrb[0].mxu0 %v7432
    %v7549 = vpop.f32.mrb[0].mxu0
    %v7550 = vadd.f32 0.0, %v7549
    %v7551 = vpop.f32.mrb[0].mxu0
    %v7552 = vpop.f32.mrb[0].mxu0
    %v7553 = vadd.f32 0.0, %v7552
    %v7554 = vpop.f32.mrb[0].mxu0
    %7555 = vdwg.mxu0
    %s7556 = scalar_lea.vmem [#allocation2], 5184
    %v7557 = vld [vmem:[%s7556] sm:$0xf]
    %v7558 = vld [vmem:[%s7556 + $0x4] sm:$0xf]
    %v7559 = vld [vmem:[%s7556 + $0x8] sm:$0xf]
    %v7560 = vld [vmem:[%s7556 + $0xc] sm:$0xf]
    %v7561 = vld [vmem:[%s7556 + $0x10] sm:$0xf]
    %v7562 = vld [vmem:[%s7556 + $0x14] sm:$0xf]
    %v7563 = vld [vmem:[%s7556 + $0x18] sm:$0xf]
    %v7564 = vld [vmem:[%s7556 + $0x1c] sm:$0xf]
    %v7565 = vld [vmem:[%s7556 + $0x20] sm:$0xf]
    %v7566 = vld [vmem:[%s7556 + $0x24] sm:$0xf]
    %v7567 = vld [vmem:[%s7556 + $0x28] sm:$0xf]
    %v7568 = vld [vmem:[%s7556 + $0x2c] sm:$0xf]
    %v7569 = vld [vmem:[%s7556 + $0x30] sm:$0xf]
    %v7570 = vld [vmem:[%s7556 + $0x34] sm:$0xf]
    %v7571 = vld [vmem:[%s7556 + $0x38] sm:$0xf]
    %v7572 = vld [vmem:[%s7556 + $0x3c] sm:$0xf]
    %v7589 = vunpack.c.l.b16 %v7557
    %v7590 = vunpack.c.l.b16 %v7558
    %v7591 = vunpack.c.l.b16 %v7559
    %v7592 = vunpack.c.l.b16 %v7560
    %v7593 = vunpack.c.l.b16 %v7561
    %v7594 = vunpack.c.l.b16 %v7562
    %v7595 = vunpack.c.l.b16 %v7563
    %v7596 = vunpack.c.l.b16 %v7564
    %v7597 = vunpack.c.l.b16 %v7565
    %v7598 = vunpack.c.l.b16 %v7566
    %v7599 = vunpack.c.l.b16 %v7567
    %v7600 = vunpack.c.l.b16 %v7568
    %v7601 = vunpack.c.l.b16 %v7569
    %v7602 = vunpack.c.l.b16 %v7570
    %v7603 = vunpack.c.l.b16 %v7571
    %v7604 = vunpack.c.l.b16 %v7572
    %v7605 = vpack.c.b16 %v7590, %v7589
    %v7606 = vpack.c.b16 %v7592, %v7591
    %v7607 = vpack.c.b16 %v7594, %v7593
    %v7608 = vpack.c.b16 %v7596, %v7595
    %v7609 = vpack.c.b16 %v7598, %v7597
    %v7610 = vpack.c.b16 %v7600, %v7599
    %v7611 = vpack.c.b16 %v7602, %v7601
    %v7612 = vpack.c.b16 %v7604, %v7603
    %7621 = vmatprep.subr.bf16.mxu0 0
    %7622 = vmatpush1.bf16.msra.mxu0 %v7605
    %7623 = vmatprep.subr.bf16.mxu0 0
    %7624 = vmatpush1.bf16.msra.mxu0 %v7606
    %7625 = vmatprep.subr.bf16.mxu0 0
    %7626 = vmatpush1.bf16.msra.mxu0 %v7607
    %7627 = vmatprep.subr.bf16.mxu0 0
    %7628 = vmatpush1.bf16.msra.mxu0 %v7608
    %7629 = vmatprep.subr.bf16.mxu0 0
    %7630 = vmatpush1.bf16.msra.mxu0 %v7609
    %7631 = vmatprep.subr.bf16.mxu0 0
    %7632 = vmatpush1.bf16.msra.mxu0 %v7610
    %7633 = vmatprep.subr.bf16.mxu0 0
    %7634 = vmatpush1.bf16.msra.mxu0 %v7611
    %7635 = vmatprep.subr.bf16.mxu0 0
    %7636 = vmatpush1.bf16.msra.mxu0 %v7612
    %7637 = vmatprep.subr.bf16.mxu0 0
    %7638 = vmatpush1.bf16.msra.mxu0 0
    %7639 = vmatprep.subr.bf16.mxu0 0
    %7640 = vmatpush1.bf16.msra.mxu0 0
    %7641 = vmatprep.subr.bf16.mxu0 0
    %7642 = vmatpush1.bf16.msra.mxu0 0
    %7643 = vmatprep.subr.bf16.mxu0 0
    %7644 = vmatpush1.bf16.msra.mxu0 0
    %7645 = vmatprep.subr.bf16.mxu0 0
    %7646 = vmatpush1.bf16.msra.mxu0 0
    %7647 = vmatprep.subr.bf16.mxu0 0
    %7648 = vmatpush1.bf16.msra.mxu0 0
    %7649 = vmatprep.subr.bf16.mxu0 0
    %7650 = vmatpush1.bf16.msra.mxu0 0
    %7651 = vmatprep.subr.bf16.mxu0 0
    %7652 = vmatpush1.bf16.msra.mxu0 0
    %7653 = vmatprep.mubr.bf16.mxu0 0
    %7654 = vmatmul.mubr.bf16.gmra.mrb[0].mxu0 %v7432
    %v7655 = vpop.f32.mrb[0].mxu0
    %v7656 = vadd.f32 0.0, %v7655
    %v7657 = vpop.f32.mrb[0].mxu0
    %v7658 = vpop.f32.mrb[0].mxu0
    %v7659 = vadd.f32 0.0, %v7658
    %v7660 = vpop.f32.mrb[0].mxu0
    %7661 = vdwg.mxu0
    %v7663 = vrot.slane %v7553, 7
    %v7666 = vrot.slane %v7550, 7
    %v7667 = vsel %vm384, %v7666, %v7663
    %v7670 = vsel %vm384, %v7663, %v7666
    %v7671 = vmul.f32 %v149, %v7670
    %v7672 = vmul.f32 %v150, %v7667
    %v7689 = vunpack.c.l.b16 %v7434
    %v7690 = vunpack.c.l.b16 %v7435
    %v7691 = vunpack.c.l.b16 %v7436
    %v7692 = vunpack.c.l.b16 %v7437
    %v7693 = vunpack.c.l.b16 %v7438
    %v7694 = vunpack.c.l.b16 %v7439
    %v7695 = vunpack.c.l.b16 %v7440
    %v7696 = vunpack.c.l.b16 %v7441
    %v7697 = vunpack.c.l.b16 %v7442
    %v7698 = vunpack.c.l.b16 %v7443
    %v7699 = vunpack.c.l.b16 %v7444
    %v7700 = vunpack.c.l.b16 %v7445
    %v7701 = vunpack.c.l.b16 %v7446
    %v7702 = vunpack.c.l.b16 %v7447
    %v7703 = vunpack.c.l.b16 %v7448
    %v7704 = vunpack.c.l.b16 %v7449
    %v7705 = vpack.c.b16 %v7690, %v7689
    %v7706 = vpack.c.b16 %v7692, %v7691
    %v7707 = vpack.c.b16 %v7694, %v7693
    %v7708 = vpack.c.b16 %v7696, %v7695
    %v7709 = vpack.c.b16 %v7698, %v7697
    %v7710 = vpack.c.b16 %v7700, %v7699
    %v7711 = vpack.c.b16 %v7702, %v7701
    %v7712 = vpack.c.b16 %v7704, %v7703
    %7721 = vmatprep.subr.bf16.mxu0 0
    %7722 = vmatpush1.bf16.msra.mxu0 %v7705
    %7723 = vmatprep.subr.bf16.mxu0 0
    %7724 = vmatpush1.bf16.msra.mxu0 %v7706
    %7725 = vmatprep.subr.bf16.mxu0 0
    %7726 = vmatpush1.bf16.msra.mxu0 %v7707
    %7727 = vmatprep.subr.bf16.mxu0 0
    %7728 = vmatpush1.bf16.msra.mxu0 %v7708
    %7729 = vmatprep.subr.bf16.mxu0 0
    %7730 = vmatpush1.bf16.msra.mxu0 %v7709
    %7731 = vmatprep.subr.bf16.mxu0 0
    %7732 = vmatpush1.bf16.msra.mxu0 %v7710
    %7733 = vmatprep.subr.bf16.mxu0 0
    %7734 = vmatpush1.bf16.msra.mxu0 %v7711
    %7735 = vmatprep.subr.bf16.mxu0 0
    %7736 = vmatpush1.bf16.msra.mxu0 %v7712
    %7737 = vmatprep.subr.bf16.mxu0 0
    %7738 = vmatpush1.bf16.msra.mxu0 0
    %7739 = vmatprep.subr.bf16.mxu0 0
    %7740 = vmatpush1.bf16.msra.mxu0 0
    %7741 = vmatprep.subr.bf16.mxu0 0
    %7742 = vmatpush1.bf16.msra.mxu0 0
    %7743 = vmatprep.subr.bf16.mxu0 0
    %7744 = vmatpush1.bf16.msra.mxu0 0
    %7745 = vmatprep.subr.bf16.mxu0 0
    %7746 = vmatpush1.bf16.msra.mxu0 0
    %7747 = vmatprep.subr.bf16.mxu0 0
    %7748 = vmatpush1.bf16.msra.mxu0 0
    %7749 = vmatprep.subr.bf16.mxu0 0
    %7750 = vmatpush1.bf16.msra.mxu0 0
    %7751 = vmatprep.subr.bf16.mxu0 0
    %7752 = vmatpush1.bf16.msra.mxu0 0
    %7753 = vmatprep.mubr.bf16.mxu0 0
    %7754 = vmatmul.mubr.bf16.gmra.mrb[0].mxu0 %v7432
    %v7755 = vpop.f32.mrb[0].mxu0
    %v7756 = vadd.f32 %v7671, %v7755
    %v7757 = vpop.f32.mrb[0].mxu0
    %v7758 = vpop.f32.mrb[0].mxu0
    %v7759 = vadd.f32 %v7672, %v7758
    %v7760 = vpop.f32.mrb[0].mxu0
    %7761 = vdwg.mxu0
    %v7764 = vrot.slane %v7656, 1
    %v7765 = vrot.slane %v7659, 1
    %v7766 = vsel %vm477, %v7764, %v7765
    %v7770 = vsel %vm477, %v7765, %v7764
    %v7771 = vmul.f32 %v155, %v7766
    %v7772 = vmul.f32 %v156, %v7770
    %v7773 = vadd.f32 %v7756, %v7771
    %v7774 = vadd.f32 %v7759, %v7772
    %v7775 = vadd.f32 %v7430, %v7773
    %v7776 = vadd.f32 %v7431, %v7774
    %v7777 = vld [vmem:[#allocation5 + $0x11] sm:$0x1]
    %v7778 = vlaneseq
    %v7779 = vshrl.u32 %v7778, 7
    %v7780 = vsub.s32 0, %v7779
    %v7781 = vrot.slane %v7777, %v7780
    %v7782 = vadd.f32 %v7775, %v7781
    %v7783 = vadd.f32 %v7776, %v7781
    %v7784 = vmax.f32 %v7782, 0.0
    %v7785 = vmax.f32 %v7783, 0.0
    %v7786 = vpack.c.bf16 %v7785, %v7784
    %s7787 = scalar_lea.vmem [#allocation2], 5312
    %v7788 = vld [vmem:[%s7787] sm:$0xf]
    %v7789 = vld [vmem:[%s7787 + $0x4] sm:$0xf]
    %v7790 = vld [vmem:[%s7787 + $0x8] sm:$0xf]
    %v7791 = vld [vmem:[%s7787 + $0xc] sm:$0xf]
    %v7792 = vld [vmem:[%s7787 + $0x10] sm:$0xf]
    %v7793 = vld [vmem:[%s7787 + $0x14] sm:$0xf]
    %v7794 = vld [vmem:[%s7787 + $0x18] sm:$0xf]
    %v7795 = vld [vmem:[%s7787 + $0x1c] sm:$0xf]
    %v7796 = vld [vmem:[%s7787 + $0x20] sm:$0xf]
    %v7797 = vld [vmem:[%s7787 + $0x24] sm:$0xf]
    %v7798 = vld [vmem:[%s7787 + $0x28] sm:$0xf]
    %v7799 = vld [vmem:[%s7787 + $0x2c] sm:$0xf]
    %v7800 = vld [vmem:[%s7787 + $0x30] sm:$0xf]
    %v7801 = vld [vmem:[%s7787 + $0x34] sm:$0xf]
    %v7802 = vld [vmem:[%s7787 + $0x38] sm:$0xf]
    %v7803 = vld [vmem:[%s7787 + $0x3c] sm:$0xf]
    %s7804 = scalar_lea.vmem [#allocation2], 5248
    %v7805 = vld [vmem:[%s7804] sm:$0xf]
    %v7806 = vld [vmem:[%s7804 + $0x4] sm:$0xf]
    %v7807 = vld [vmem:[%s7804 + $0x8] sm:$0xf]
    %v7808 = vld [vmem:[%s7804 + $0xc] sm:$0xf]
    %v7809 = vld [vmem:[%s7804 + $0x10] sm:$0xf]
    %v7810 = vld [vmem:[%s7804 + $0x14] sm:$0xf]
    %v7811 = vld [vmem:[%s7804 + $0x18] sm:$0xf]
    %v7812 = vld [vmem:[%s7804 + $0x1c] sm:$0xf]
    %v7813 = vld [vmem:[%s7804 + $0x20] sm:$0xf]
    %v7814 = vld [vmem:[%s7804 + $0x24] sm:$0xf]
    %v7815 = vld [vmem:[%s7804 + $0x28] sm:$0xf]
    %v7816 = vld [vmem:[%s7804 + $0x2c] sm:$0xf]
    %v7817 = vld [vmem:[%s7804 + $0x30] sm:$0xf]
    %v7818 = vld [vmem:[%s7804 + $0x34] sm:$0xf]
    %v7819 = vld [vmem:[%s7804 + $0x38] sm:$0xf]
    %v7820 = vld [vmem:[%s7804 + $0x3c] sm:$0xf]
    %v7837 = vunpack.c.l.b16 %v7805
    %v7838 = vunpack.c.l.b16 %v7806
    %v7839 = vunpack.c.l.b16 %v7807
    %v7840 = vunpack.c.l.b16 %v7808
    %v7841 = vunpack.c.l.b16 %v7809
    %v7842 = vunpack.c.l.b16 %v7810
    %v7843 = vunpack.c.l.b16 %v7811
    %v7844 = vunpack.c.l.b16 %v7812
    %v7845 = vunpack.c.l.b16 %v7813
    %v7846 = vunpack.c.l.b16 %v7814
    %v7847 = vunpack.c.l.b16 %v7815
    %v7848 = vunpack.c.l.b16 %v7816
    %v7849 = vunpack.c.l.b16 %v7817
    %v7850 = vunpack.c.l.b16 %v7818
    %v7851 = vunpack.c.l.b16 %v7819
    %v7852 = vunpack.c.l.b16 %v7820
    %v7853 = vpack.c.b16 %v7838, %v7837
    %v7854 = vpack.c.b16 %v7840, %v7839
    %v7855 = vpack.c.b16 %v7842, %v7841
    %v7856 = vpack.c.b16 %v7844, %v7843
    %v7857 = vpack.c.b16 %v7846, %v7845
    %v7858 = vpack.c.b16 %v7848, %v7847
    %v7859 = vpack.c.b16 %v7850, %v7849
    %v7860 = vpack.c.b16 %v7852, %v7851
    %7869 = vmatprep.subr.bf16.mxu0 0
    %7870 = vmatpush1.bf16.msra.mxu0 %v7853
    %7871 = vmatprep.subr.bf16.mxu0 0
    %7872 = vmatpush1.bf16.msra.mxu0 %v7854
    %7873 = vmatprep.subr.bf16.mxu0 0
    %7874 = vmatpush1.bf16.msra.mxu0 %v7855
    %7875 = vmatprep.subr.bf16.mxu0 0
    %7876 = vmatpush1.bf16.msra.mxu0 %v7856
    %7877 = vmatprep.subr.bf16.mxu0 0
    %7878 = vmatpush1.bf16.msra.mxu0 %v7857
    %7879 = vmatprep.subr.bf16.mxu0 0
    %7880 = vmatpush1.bf16.msra.mxu0 %v7858
    %7881 = vmatprep.subr.bf16.mxu0 0
    %7882 = vmatpush1.bf16.msra.mxu0 %v7859
    %7883 = vmatprep.subr.bf16.mxu0 0
    %7884 = vmatpush1.bf16.msra.mxu0 %v7860
    %7885 = vmatprep.subr.bf16.mxu0 0
    %7886 = vmatpush1.bf16.msra.mxu0 0
    %7887 = vmatprep.subr.bf16.mxu0 0
    %7888 = vmatpush1.bf16.msra.mxu0 0
    %7889 = vmatprep.subr.bf16.mxu0 0
    %7890 = vmatpush1.bf16.msra.mxu0 0
    %7891 = vmatprep.subr.bf16.mxu0 0
    %7892 = vmatpush1.bf16.msra.mxu0 0
    %7893 = vmatprep.subr.bf16.mxu0 0
    %7894 = vmatpush1.bf16.msra.mxu0 0
    %7895 = vmatprep.subr.bf16.mxu0 0
    %7896 = vmatpush1.bf16.msra.mxu0 0
    %7897 = vmatprep.subr.bf16.mxu0 0
    %7898 = vmatpush1.bf16.msra.mxu0 0
    %7899 = vmatprep.subr.bf16.mxu0 0
    %7900 = vmatpush1.bf16.msra.mxu0 0
    %7901 = vmatprep.mubr.bf16.mxu0 0
    %7902 = vmatmul.mubr.bf16.gmra.mrb[0].mxu0 %v7786
    %v7903 = vpop.f32.mrb[0].mxu0
    %v7904 = vadd.f32 0.0, %v7903
    %v7905 = vpop.f32.mrb[0].mxu0
    %v7906 = vpop.f32.mrb[0].mxu0
    %v7907 = vadd.f32 0.0, %v7906
    %v7908 = vpop.f32.mrb[0].mxu0
    %7909 = vdwg.mxu0
    %s7910 = scalar_lea.vmem [#allocation2], 5376
    %v7911 = vld [vmem:[%s7910] sm:$0xf]
    %v7912 = vld [vmem:[%s7910 + $0x4] sm:$0xf]
    %v7913 = vld [vmem:[%s7910 + $0x8] sm:$0xf]
    %v7914 = vld [vmem:[%s7910 + $0xc] sm:$0xf]
    %v7915 = vld [vmem:[%s7910 + $0x10] sm:$0xf]
    %v7916 = vld [vmem:[%s7910 + $0x14] sm:$0xf]
    %v7917 = vld [vmem:[%s7910 + $0x18] sm:$0xf]
    %v7918 = vld [vmem:[%s7910 + $0x1c] sm:$0xf]
    %v7919 = vld [vmem:[%s7910 + $0x20] sm:$0xf]
    %v7920 = vld [vmem:[%s7910 + $0x24] sm:$0xf]
    %v7921 = vld [vmem:[%s7910 + $0x28] sm:$0xf]
    %v7922 = vld [vmem:[%s7910 + $0x2c] sm:$0xf]
    %v7923 = vld [vmem:[%s7910 + $0x30] sm:$0xf]
    %v7924 = vld [vmem:[%s7910 + $0x34] sm:$0xf]
    %v7925 = vld [vmem:[%s7910 + $0x38] sm:$0xf]
    %v7926 = vld [vmem:[%s7910 + $0x3c] sm:$0xf]
    %v7943 = vunpack.c.l.b16 %v7911
    %v7944 = vunpack.c.l.b16 %v7912
    %v7945 = vunpack.c.l.b16 %v7913
    %v7946 = vunpack.c.l.b16 %v7914
    %v7947 = vunpack.c.l.b16 %v7915
    %v7948 = vunpack.c.l.b16 %v7916
    %v7949 = vunpack.c.l.b16 %v7917
    %v7950 = vunpack.c.l.b16 %v7918
    %v7951 = vunpack.c.l.b16 %v7919
    %v7952 = vunpack.c.l.b16 %v7920
    %v7953 = vunpack.c.l.b16 %v7921
    %v7954 = vunpack.c.l.b16 %v7922
    %v7955 = vunpack.c.l.b16 %v7923
    %v7956 = vunpack.c.l.b16 %v7924
    %v7957 = vunpack.c.l.b16 %v7925
    %v7958 = vunpack.c.l.b16 %v7926
    %v7959 = vpack.c.b16 %v7944, %v7943
    %v7960 = vpack.c.b16 %v7946, %v7945
    %v7961 = vpack.c.b16 %v7948, %v7947
    %v7962 = vpack.c.b16 %v7950, %v7949
    %v7963 = vpack.c.b16 %v7952, %v7951
    %v7964 = vpack.c.b16 %v7954, %v7953
    %v7965 = vpack.c.b16 %v7956, %v7955
    %v7966 = vpack.c.b16 %v7958, %v7957
    %7975 = vmatprep.subr.bf16.mxu0 0
    %7976 = vmatpush1.bf16.msra.mxu0 %v7959
    %7977 = vmatprep.subr.bf16.mxu0 0
    %7978 = vmatpush1.bf16.msra.mxu0 %v7960
    %7979 = vmatprep.subr.bf16.mxu0 0
    %7980 = vmatpush1.bf16.msra.mxu0 %v7961
    %7981 = vmatprep.subr.bf16.mxu0 0
    %7982 = vmatpush1.bf16.msra.mxu0 %v7962
    %7983 = vmatprep.subr.bf16.mxu0 0
    %7984 = vmatpush1.bf16.msra.mxu0 %v7963
    %7985 = vmatprep.subr.bf16.mxu0 0
    %7986 = vmatpush1.bf16.msra.mxu0 %v7964
    %7987 = vmatprep.subr.bf16.mxu0 0
    %7988 = vmatpush1.bf16.msra.mxu0 %v7965
    %7989 = vmatprep.subr.bf16.mxu0 0
    %7990 = vmatpush1.bf16.msra.mxu0 %v7966
    %7991 = vmatprep.subr.bf16.mxu0 0
    %7992 = vmatpush1.bf16.msra.mxu0 0
    %7993 = vmatprep.subr.bf16.mxu0 0
    %7994 = vmatpush1.bf16.msra.mxu0 0
    %7995 = vmatprep.subr.bf16.mxu0 0
    %7996 = vmatpush1.bf16.msra.mxu0 0
    %7997 = vmatprep.subr.bf16.mxu0 0
    %7998 = vmatpush1.bf16.msra.mxu0 0
    %7999 = vmatprep.subr.bf16.mxu0 0
    %8000 = vmatpush1.bf16.msra.mxu0 0
    %8001 = vmatprep.subr.bf16.mxu0 0
    %8002 = vmatpush1.bf16.msra.mxu0 0
    %8003 = vmatprep.subr.bf16.mxu0 0
    %8004 = vmatpush1.bf16.msra.mxu0 0
    %8005 = vmatprep.subr.bf16.mxu0 0
    %8006 = vmatpush1.bf16.msra.mxu0 0
    %8007 = vmatprep.mubr.bf16.mxu0 0
    %8008 = vmatmul.mubr.bf16.gmra.mrb[0].mxu0 %v7786
    %v8009 = vpop.f32.mrb[0].mxu0
    %v8010 = vadd.f32 0.0, %v8009
    %v8011 = vpop.f32.mrb[0].mxu0
    %v8012 = vpop.f32.mrb[0].mxu0
    %v8013 = vadd.f32 0.0, %v8012
    %v8014 = vpop.f32.mrb[0].mxu0
    %8015 = vdwg.mxu0
    %v8017 = vrot.slane %v7907, 7
    %v8020 = vrot.slane %v7904, 7
    %v8021 = vsel %vm384, %v8020, %v8017
    %v8024 = vsel %vm384, %v8017, %v8020
    %v8025 = vmul.f32 %v149, %v8024
    %v8026 = vmul.f32 %v150, %v8021
    %v8043 = vunpack.c.l.b16 %v7788
    %v8044 = vunpack.c.l.b16 %v7789
    %v8045 = vunpack.c.l.b16 %v7790
    %v8046 = vunpack.c.l.b16 %v7791
    %v8047 = vunpack.c.l.b16 %v7792
    %v8048 = vunpack.c.l.b16 %v7793
    %v8049 = vunpack.c.l.b16 %v7794
    %v8050 = vunpack.c.l.b16 %v7795
    %v8051 = vunpack.c.l.b16 %v7796
    %v8052 = vunpack.c.l.b16 %v7797
    %v8053 = vunpack.c.l.b16 %v7798
    %v8054 = vunpack.c.l.b16 %v7799
    %v8055 = vunpack.c.l.b16 %v7800
    %v8056 = vunpack.c.l.b16 %v7801
    %v8057 = vunpack.c.l.b16 %v7802
    %v8058 = vunpack.c.l.b16 %v7803
    %v8059 = vpack.c.b16 %v8044, %v8043
    %v8060 = vpack.c.b16 %v8046, %v8045
    %v8061 = vpack.c.b16 %v8048, %v8047
    %v8062 = vpack.c.b16 %v8050, %v8049
    %v8063 = vpack.c.b16 %v8052, %v8051
    %v8064 = vpack.c.b16 %v8054, %v8053
    %v8065 = vpack.c.b16 %v8056, %v8055
    %v8066 = vpack.c.b16 %v8058, %v8057
    %8075 = vmatprep.subr.bf16.mxu0 0
    %8076 = vmatpush1.bf16.msra.mxu0 %v8059
    %8077 = vmatprep.subr.bf16.mxu0 0
    %8078 = vmatpush1.bf16.msra.mxu0 %v8060
    %8079 = vmatprep.subr.bf16.mxu0 0
    %8080 = vmatpush1.bf16.msra.mxu0 %v8061
    %8081 = vmatprep.subr.bf16.mxu0 0
    %8082 = vmatpush1.bf16.msra.mxu0 %v8062
    %8083 = vmatprep.subr.bf16.mxu0 0
    %8084 = vmatpush1.bf16.msra.mxu0 %v8063
    %8085 = vmatprep.subr.bf16.mxu0 0
    %8086 = vmatpush1.bf16.msra.mxu0 %v8064
    %8087 = vmatprep.subr.bf16.mxu0 0
    %8088 = vmatpush1.bf16.msra.mxu0 %v8065
    %8089 = vmatprep.subr.bf16.mxu0 0
    %8090 = vmatpush1.bf16.msra.mxu0 %v8066
    %8091 = vmatprep.subr.bf16.mxu0 0
    %8092 = vmatpush1.bf16.msra.mxu0 0
    %8093 = vmatprep.subr.bf16.mxu0 0
    %8094 = vmatpush1.bf16.msra.mxu0 0
    %8095 = vmatprep.subr.bf16.mxu0 0
    %8096 = vmatpush1.bf16.msra.mxu0 0
    %8097 = vmatprep.subr.bf16.mxu0 0
    %8098 = vmatpush1.bf16.msra.mxu0 0
    %8099 = vmatprep.subr.bf16.mxu0 0
    %8100 = vmatpush1.bf16.msra.mxu0 0
    %8101 = vmatprep.subr.bf16.mxu0 0
    %8102 = vmatpush1.bf16.msra.mxu0 0
    %8103 = vmatprep.subr.bf16.mxu0 0
    %8104 = vmatpush1.bf16.msra.mxu0 0
    %8105 = vmatprep.subr.bf16.mxu0 0
    %8106 = vmatpush1.bf16.msra.mxu0 0
    %8107 = vmatprep.mubr.bf16.mxu0 0
    %8108 = vmatmul.mubr.bf16.gmra.mrb[0].mxu0 %v7786
    %v8109 = vpop.f32.mrb[0].mxu0
    %v8110 = vadd.f32 %v8025, %v8109
    %v8111 = vpop.f32.mrb[0].mxu0
    %v8112 = vpop.f32.mrb[0].mxu0
    %v8113 = vadd.f32 %v8026, %v8112
    %v8114 = vpop.f32.mrb[0].mxu0
    %8115 = vdwg.mxu0
    %v8118 = vrot.slane %v8010, 1
    %v8119 = vrot.slane %v8013, 1
    %v8120 = vsel %vm477, %v8118, %v8119
    %v8124 = vsel %vm477, %v8119, %v8118
    %v8125 = vmul.f32 %v155, %v8120
    %v8126 = vmul.f32 %v156, %v8124
    %v8127 = vadd.f32 %v8110, %v8125
    %v8128 = vadd.f32 %v8113, %v8126
    %v8129 = vld [vmem:[#allocation5 + $0x12] sm:$0x1]
    %v8130 = vlaneseq
    %v8131 = vshrl.u32 %v8130, 7
    %v8132 = vsub.s32 0, %v8131
    %v8133 = vrot.slane %v8129, %v8132
    %v8134 = vadd.f32 %v8127, %v8133
    %v8135 = vadd.f32 %v8128, %v8133
    %v8136 = vmax.f32 %v8134, 0.0
    %v8137 = vmax.f32 %v8135, 0.0
    %v8138 = vpack.c.bf16 %v8137, %v8136
    %s8139 = scalar_lea.vmem [#allocation2], 5440
    %v8140 = vld [vmem:[%s8139] sm:$0xf]
    %v8141 = vld [vmem:[%s8139 + $0x4] sm:$0xf]
    %v8142 = vld [vmem:[%s8139 + $0x8] sm:$0xf]
    %v8143 = vld [vmem:[%s8139 + $0xc] sm:$0xf]
    %v8144 = vld [vmem:[%s8139 + $0x10] sm:$0xf]
    %v8145 = vld [vmem:[%s8139 + $0x14] sm:$0xf]
    %v8146 = vld [vmem:[%s8139 + $0x18] sm:$0xf]
    %v8147 = vld [vmem:[%s8139 + $0x1c] sm:$0xf]
    %v8148 = vld [vmem:[%s8139 + $0x20] sm:$0xf]
    %v8149 = vld [vmem:[%s8139 + $0x24] sm:$0xf]
    %v8150 = vld [vmem:[%s8139 + $0x28] sm:$0xf]
    %v8151 = vld [vmem:[%s8139 + $0x2c] sm:$0xf]
    %v8152 = vld [vmem:[%s8139 + $0x30] sm:$0xf]
    %v8153 = vld [vmem:[%s8139 + $0x34] sm:$0xf]
    %v8154 = vld [vmem:[%s8139 + $0x38] sm:$0xf]
    %v8155 = vld [vmem:[%s8139 + $0x3c] sm:$0xf]
    %v8172 = vunpack.c.l.b16 %v8140
    %v8173 = vunpack.c.l.b16 %v8141
    %v8174 = vunpack.c.l.b16 %v8142
    %v8175 = vunpack.c.l.b16 %v8143
    %v8176 = vunpack.c.l.b16 %v8144
    %v8177 = vunpack.c.l.b16 %v8145
    %v8178 = vunpack.c.l.b16 %v8146
    %v8179 = vunpack.c.l.b16 %v8147
    %v8180 = vunpack.c.l.b16 %v8148
    %v8181 = vunpack.c.l.b16 %v8149
    %v8182 = vunpack.c.l.b16 %v8150
    %v8183 = vunpack.c.l.b16 %v8151
    %v8184 = vunpack.c.l.b16 %v8152
    %v8185 = vunpack.c.l.b16 %v8153
    %v8186 = vunpack.c.l.b16 %v8154
    %v8187 = vunpack.c.l.b16 %v8155
    %v8188 = vpack.c.b16 %v8173, %v8172
    %v8189 = vpack.c.b16 %v8175, %v8174
    %v8190 = vpack.c.b16 %v8177, %v8176
    %v8191 = vpack.c.b16 %v8179, %v8178
    %v8192 = vpack.c.b16 %v8181, %v8180
    %v8193 = vpack.c.b16 %v8183, %v8182
    %v8194 = vpack.c.b16 %v8185, %v8184
    %v8195 = vpack.c.b16 %v8187, %v8186
    %8204 = vmatprep.subr.bf16.mxu0 0
    %8205 = vmatpush1.bf16.msra.mxu0 %v8188
    %8206 = vmatprep.subr.bf16.mxu0 0
    %8207 = vmatpush1.bf16.msra.mxu0 %v8189
    %8208 = vmatprep.subr.bf16.mxu0 0
    %8209 = vmatpush1.bf16.msra.mxu0 %v8190
    %8210 = vmatprep.subr.bf16.mxu0 0
    %8211 = vmatpush1.bf16.msra.mxu0 %v8191
    %8212 = vmatprep.subr.bf16.mxu0 0
    %8213 = vmatpush1.bf16.msra.mxu0 %v8192
    %8214 = vmatprep.subr.bf16.mxu0 0
    %8215 = vmatpush1.bf16.msra.mxu0 %v8193
    %8216 = vmatprep.subr.bf16.mxu0 0
    %8217 = vmatpush1.bf16.msra.mxu0 %v8194
    %8218 = vmatprep.subr.bf16.mxu0 0
    %8219 = vmatpush1.bf16.msra.mxu0 %v8195
    %8220 = vmatprep.subr.bf16.mxu0 0
    %8221 = vmatpush1.bf16.msra.mxu0 0
    %8222 = vmatprep.subr.bf16.mxu0 0
    %8223 = vmatpush1.bf16.msra.mxu0 0
    %8224 = vmatprep.subr.bf16.mxu0 0
    %8225 = vmatpush1.bf16.msra.mxu0 0
    %8226 = vmatprep.subr.bf16.mxu0 0
    %8227 = vmatpush1.bf16.msra.mxu0 0
    %8228 = vmatprep.subr.bf16.mxu0 0
    %8229 = vmatpush1.bf16.msra.mxu0 0
    %8230 = vmatprep.subr.bf16.mxu0 0
    %8231 = vmatpush1.bf16.msra.mxu0 0
    %8232 = vmatprep.subr.bf16.mxu0 0
    %8233 = vmatpush1.bf16.msra.mxu0 0
    %8234 = vmatprep.subr.bf16.mxu0 0
    %8235 = vmatpush1.bf16.msra.mxu0 0
    %8236 = vmatprep.mubr.bf16.mxu0 0
    %8237 = vmatmul.mubr.bf16.gmra.mrb[0].mxu0 %v8138
    %v8238 = vpop.f32.mrb[0].mxu0
    %v8239 = vadd.f32 0.0, %v8238
    %v8240 = vpop.f32.mrb[0].mxu0
    %v8241 = vpop.f32.mrb[0].mxu0
    %v8242 = vadd.f32 0.0, %v8241
    %v8243 = vpop.f32.mrb[0].mxu0
    %8244 = vdwg.mxu0
    %v8245 = vpack.c.bf16 %v8242, %v8239
    %s8246 = scalar_lea.vmem [#allocation2], 5504
    %v8247 = vld [vmem:[%s8246] sm:$0xf]
    %v8248 = vld [vmem:[%s8246 + $0x4] sm:$0xf]
    %v8249 = vld [vmem:[%s8246 + $0x8] sm:$0xf]
    %v8250 = vld [vmem:[%s8246 + $0xc] sm:$0xf]
    %v8251 = vld [vmem:[%s8246 + $0x10] sm:$0xf]
    %v8252 = vld [vmem:[%s8246 + $0x14] sm:$0xf]
    %v8253 = vld [vmem:[%s8246 + $0x18] sm:$0xf]
    %v8254 = vld [vmem:[%s8246 + $0x1c] sm:$0xf]
    %v8255 = vld [vmem:[%s8246 + $0x20] sm:$0xf]
    %v8256 = vld [vmem:[%s8246 + $0x24] sm:$0xf]
    %v8257 = vld [vmem:[%s8246 + $0x28] sm:$0xf]
    %v8258 = vld [vmem:[%s8246 + $0x2c] sm:$0xf]
    %v8259 = vld [vmem:[%s8246 + $0x30] sm:$0xf]
    %v8260 = vld [vmem:[%s8246 + $0x34] sm:$0xf]
    %v8261 = vld [vmem:[%s8246 + $0x38] sm:$0xf]
    %v8262 = vld [vmem:[%s8246 + $0x3c] sm:$0xf]
    %v8279 = vunpack.c.l.b16 %v8247
    %v8280 = vunpack.c.l.b16 %v8248
    %v8281 = vunpack.c.l.b16 %v8249
    %v8282 = vunpack.c.l.b16 %v8250
    %v8283 = vunpack.c.l.b16 %v8251
    %v8284 = vunpack.c.l.b16 %v8252
    %v8285 = vunpack.c.l.b16 %v8253
    %v8286 = vunpack.c.l.b16 %v8254
    %v8287 = vunpack.c.l.b16 %v8255
    %v8288 = vunpack.c.l.b16 %v8256
    %v8289 = vunpack.c.l.b16 %v8257
    %v8290 = vunpack.c.l.b16 %v8258
    %v8291 = vunpack.c.l.b16 %v8259
    %v8292 = vunpack.c.l.b16 %v8260
    %v8293 = vunpack.c.l.b16 %v8261
    %v8294 = vunpack.c.l.b16 %v8262
    %v8295 = vpack.c.b16 %v8280, %v8279
    %v8296 = vpack.c.b16 %v8282, %v8281
    %v8297 = vpack.c.b16 %v8284, %v8283
    %v8298 = vpack.c.b16 %v8286, %v8285
    %v8299 = vpack.c.b16 %v8288, %v8287
    %v8300 = vpack.c.b16 %v8290, %v8289
    %v8301 = vpack.c.b16 %v8292, %v8291
    %v8302 = vpack.c.b16 %v8294, %v8293
    %8311 = vmatprep.subr.bf16.mxu0 0
    %8312 = vmatpush1.bf16.msra.mxu0 %v8295
    %8313 = vmatprep.subr.bf16.mxu0 0
    %8314 = vmatpush1.bf16.msra.mxu0 %v8296
    %8315 = vmatprep.subr.bf16.mxu0 0
    %8316 = vmatpush1.bf16.msra.mxu0 %v8297
    %8317 = vmatprep.subr.bf16.mxu0 0
    %8318 = vmatpush1.bf16.msra.mxu0 %v8298
    %8319 = vmatprep.subr.bf16.mxu0 0
    %8320 = vmatpush1.bf16.msra.mxu0 %v8299
    %8321 = vmatprep.subr.bf16.mxu0 0
    %8322 = vmatpush1.bf16.msra.mxu0 %v8300
    %8323 = vmatprep.subr.bf16.mxu0 0
    %8324 = vmatpush1.bf16.msra.mxu0 %v8301
    %8325 = vmatprep.subr.bf16.mxu0 0
    %8326 = vmatpush1.bf16.msra.mxu0 %v8302
    %8327 = vmatprep.subr.bf16.mxu0 0
    %8328 = vmatpush1.bf16.msra.mxu0 0
    %8329 = vmatprep.subr.bf16.mxu0 0
    %8330 = vmatpush1.bf16.msra.mxu0 0
    %8331 = vmatprep.subr.bf16.mxu0 0
    %8332 = vmatpush1.bf16.msra.mxu0 0
    %8333 = vmatprep.subr.bf16.mxu0 0
    %8334 = vmatpush1.bf16.msra.mxu0 0
    %8335 = vmatprep.subr.bf16.mxu0 0
    %8336 = vmatpush1.bf16.msra.mxu0 0
    %8337 = vmatprep.subr.bf16.mxu0 0
    %8338 = vmatpush1.bf16.msra.mxu0 0
    %8339 = vmatprep.subr.bf16.mxu0 0
    %8340 = vmatpush1.bf16.msra.mxu0 0
    %8341 = vmatprep.subr.bf16.mxu0 0
    %8342 = vmatpush1.bf16.msra.mxu0 0
    %8343 = vmatprep.mubr.bf16.mxu0 0
    %8344 = vmatmul.mubr.bf16.gmra.mrb[0].mxu0 %v8138
    %v8345 = vpop.f32.mrb[0].mxu0
    %v8346 = vadd.f32 0.0, %v8345
    %v8347 = vpop.f32.mrb[0].mxu0
    %v8348 = vpop.f32.mrb[0].mxu0
    %v8349 = vadd.f32 0.0, %v8348
    %v8350 = vpop.f32.mrb[0].mxu0
    %8351 = vdwg.mxu0
    %v8352 = vpack.c.bf16 %v8349, %v8346
    %s8353 = scalar_lea.vmem [#allocation2], 5568
    %v8354 = vld [vmem:[%s8353] sm:$0xf]
    %v8355 = vld [vmem:[%s8353 + $0x4] sm:$0xf]
    %v8356 = vld [vmem:[%s8353 + $0x8] sm:$0xf]
    %v8357 = vld [vmem:[%s8353 + $0xc] sm:$0xf]
    %s8358 = scalar_lea.vmem [#allocation2], 5632
    %v8359 = vld [vmem:[%s8358] sm:$0xf]
    %v8360 = vld [vmem:[%s8358 + $0x4] sm:$0xf]
    %v8361 = vld [vmem:[%s8358 + $0x8] sm:$0xf]
    %v8362 = vld [vmem:[%s8358 + $0xc] sm:$0xf]
    %v8367 = vunpack.c.l.b16 %v8359
    %v8368 = vunpack.c.l.b16 %v8360
    %v8369 = vunpack.c.l.b16 %v8361
    %v8370 = vunpack.c.l.b16 %v8362
    %v8371 = vpack.c.b16 %v8368, %v8367
    %v8372 = vpack.c.b16 %v8370, %v8369
    %v8374 = vsel %vm1853, %v8371, 0
    %v8377 = vsel %vm1853, %v8372, 0
    %8379 = vmatprep.subr.bf16.mxu0 0
    %8380 = vmatpush1.bf16.msra.mxu0 %v8352
    %8381 = vmatprep.subr.bf16.mxu0 0
    %8382 = vmatpush1.bf16.msra.mxu0 0
    %8383 = vmatprep.subr.bf16.mxu0 0
    %8384 = vmatpush1.bf16.msra.mxu0 0
    %8385 = vmatprep.subr.bf16.mxu0 0
    %8386 = vmatpush1.bf16.msra.mxu0 0
    %8387 = vmatprep.subr.bf16.mxu0 0
    %8388 = vmatpush1.bf16.msra.mxu0 0
    %8389 = vmatprep.subr.bf16.mxu0 0
    %8390 = vmatpush1.bf16.msra.mxu0 0
    %8391 = vmatprep.subr.bf16.mxu0 0
    %8392 = vmatpush1.bf16.msra.mxu0 0
    %8393 = vmatprep.subr.bf16.mxu0 0
    %8394 = vmatpush1.bf16.msra.mxu0 0
    %8395 = vmatprep.subr.bf16.mxu0 0
    %8396 = vmatpush1.bf16.msra.mxu0 0
    %8397 = vmatprep.subr.bf16.mxu0 0
    %8398 = vmatpush1.bf16.msra.mxu0 0
    %8399 = vmatprep.subr.bf16.mxu0 0
    %8400 = vmatpush1.bf16.msra.mxu0 0
    %8401 = vmatprep.subr.bf16.mxu0 0
    %8402 = vmatpush1.bf16.msra.mxu0 0
    %8403 = vmatprep.subr.bf16.mxu0 0
    %8404 = vmatpush1.bf16.msra.mxu0 0
    %8405 = vmatprep.subr.bf16.mxu0 0
    %8406 = vmatpush1.bf16.msra.mxu0 0
    %8407 = vmatprep.subr.bf16.mxu0 0
    %8408 = vmatpush1.bf16.msra.mxu0 0
    %8409 = vmatprep.subr.bf16.mxu0 0
    %8410 = vmatpush1.bf16.msra.mxu0 0
    %8411 = vmatprep.mubr.bf16.mxu0 0
    %8412 = vmatmul.mubr.bf16.gmra.mrb[0].mxu0 %v8374
    %v8413 = vpop.f32.mrb[0].mxu0
    %v8414 = vadd.f32 0.0, %v8413
    %v8415 = vpop.f32.mrb[0].mxu0
    %v8416 = vpop.f32.mrb[0].mxu0
    %v8417 = vadd.f32 0.0, %v8416
    %v8418 = vpop.f32.mrb[0].mxu0
    %8419 = vmatprep.mubr.bf16.mxu0 0
    %8420 = vmatmul.mubr.bf16.gmra.mrb[0].mxu0 %v8377
    %v8421 = vpop.f32.mrb[0].mxu0
    %v8422 = vadd.f32 0.0, %v8421
    %v8423 = vpop.f32.mrb[0].mxu0
    %v8424 = vpop.f32.mrb[0].mxu0
    %v8425 = vadd.f32 0.0, %v8424
    %v8426 = vpop.f32.mrb[0].mxu0
    %8427 = vdwg.mxu0
    %v8432 = vunpack.c.l.b16 %v8354
    %v8433 = vunpack.c.l.b16 %v8355
    %v8434 = vunpack.c.l.b16 %v8356
    %v8435 = vunpack.c.l.b16 %v8357
    %v8436 = vpack.c.b16 %v8433, %v8432
    %v8437 = vpack.c.b16 %v8435, %v8434
    %v8439 = vsel %vm1853, %v8436, 0
    %v8442 = vsel %vm1853, %v8437, 0
    %8444 = vmatprep.subr.bf16.mxu0 0
    %8445 = vmatpush1.bf16.msra.mxu0 %v8245
    %8446 = vmatprep.subr.bf16.mxu0 0
    %8447 = vmatpush1.bf16.msra.mxu0 0
    %8448 = vmatprep.subr.bf16.mxu0 0
    %8449 = vmatpush1.bf16.msra.mxu0 0
    %8450 = vmatprep.subr.bf16.mxu0 0
    %8451 = vmatpush1.bf16.msra.mxu0 0
    %8452 = vmatprep.subr.bf16.mxu0 0
    %8453 = vmatpush1.bf16.msra.mxu0 0
    %8454 = vmatprep.subr.bf16.mxu0 0
    %8455 = vmatpush1.bf16.msra.mxu0 0
    %8456 = vmatprep.subr.bf16.mxu0 0
    %8457 = vmatpush1.bf16.msra.mxu0 0
    %8458 = vmatprep.subr.bf16.mxu0 0
    %8459 = vmatpush1.bf16.msra.mxu0 0
    %8460 = vmatprep.subr.bf16.mxu0 0
    %8461 = vmatpush1.bf16.msra.mxu0 0
    %8462 = vmatprep.subr.bf16.mxu0 0
    %8463 = vmatpush1.bf16.msra.mxu0 0
    %8464 = vmatprep.subr.bf16.mxu0 0
    %8465 = vmatpush1.bf16.msra.mxu0 0
    %8466 = vmatprep.subr.bf16.mxu0 0
    %8467 = vmatpush1.bf16.msra.mxu0 0
    %8468 = vmatprep.subr.bf16.mxu0 0
    %8469 = vmatpush1.bf16.msra.mxu0 0
    %8470 = vmatprep.subr.bf16.mxu0 0
    %8471 = vmatpush1.bf16.msra.mxu0 0
    %8472 = vmatprep.subr.bf16.mxu0 0
    %8473 = vmatpush1.bf16.msra.mxu0 0
    %8474 = vmatprep.subr.bf16.mxu0 0
    %8475 = vmatpush1.bf16.msra.mxu0 0
    %8476 = vmatprep.mubr.bf16.mxu0 0
    %8477 = vmatmul.mubr.bf16.gmra.mrb[0].mxu0 %v8439
    %v8478 = vpop.f32.mrb[0].mxu0
    %v8479 = vadd.f32 %v8414, %v8478
    %v8480 = vpop.f32.mrb[0].mxu0
    %v8481 = vpop.f32.mrb[0].mxu0
    %v8482 = vadd.f32 %v8417, %v8481
    %v8483 = vpop.f32.mrb[0].mxu0
    %8484 = vmatprep.mubr.bf16.mxu0 0
    %8485 = vmatmul.mubr.bf16.gmra.mrb[0].mxu0 %v8442
    %v8486 = vpop.f32.mrb[0].mxu0
    %v8487 = vadd.f32 %v8422, %v8486
    %v8488 = vpop.f32.mrb[0].mxu0
    %v8489 = vpop.f32.mrb[0].mxu0
    %v8490 = vadd.f32 %v8425, %v8489
    %v8491 = vpop.f32.mrb[0].mxu0
    %8492 = vdwg.mxu0
    %v8493 = vld [vmem:[#allocation5 + $0x13] sm:$0x1]
    %v8494 = vlaneseq
    %v8495 = vshrl.u32 %v8494, 7
    %v8496 = vsub.s32 0, %v8495
    %v8497 = vrot.slane %v8493, %v8496
    %v8498 = vadd.f32 %v8479, %v8497
    %v8499 = vadd.f32 %v8482, %v8497
    %v8500 = vadd.f32 %v8487, %v8497
    %v8501 = vadd.f32 %v8490, %v8497
    %s8502 = scalar_lea.vmem [#allocation2], 5760
    %v8503 = vld [vmem:[%s8502] sm:$0xf]
    %v8504 = vld [vmem:[%s8502 + $0x4] sm:$0xf]
    %v8505 = vld [vmem:[%s8502 + $0x8] sm:$0xf]
    %v8506 = vld [vmem:[%s8502 + $0xc] sm:$0xf]
    %v8507 = vld [vmem:[%s8502 + $0x10] sm:$0xf]
    %v8508 = vld [vmem:[%s8502 + $0x14] sm:$0xf]
    %v8509 = vld [vmem:[%s8502 + $0x18] sm:$0xf]
    %v8510 = vld [vmem:[%s8502 + $0x1c] sm:$0xf]
    %v8511 = vld [vmem:[%s8502 + $0x20] sm:$0xf]
    %v8512 = vld [vmem:[%s8502 + $0x24] sm:$0xf]
    %v8513 = vld [vmem:[%s8502 + $0x28] sm:$0xf]
    %v8514 = vld [vmem:[%s8502 + $0x2c] sm:$0xf]
    %v8515 = vld [vmem:[%s8502 + $0x30] sm:$0xf]
    %v8516 = vld [vmem:[%s8502 + $0x34] sm:$0xf]
    %v8517 = vld [vmem:[%s8502 + $0x38] sm:$0xf]
    %v8518 = vld [vmem:[%s8502 + $0x3c] sm:$0xf]
    %s8519 = scalar_lea.vmem [#allocation2], 5696
    %v8520 = vld [vmem:[%s8519] sm:$0xf]
    %v8521 = vld [vmem:[%s8519 + $0x4] sm:$0xf]
    %v8522 = vld [vmem:[%s8519 + $0x8] sm:$0xf]
    %v8523 = vld [vmem:[%s8519 + $0xc] sm:$0xf]
    %v8524 = vld [vmem:[%s8519 + $0x10] sm:$0xf]
    %v8525 = vld [vmem:[%s8519 + $0x14] sm:$0xf]
    %v8526 = vld [vmem:[%s8519 + $0x18] sm:$0xf]
    %v8527 = vld [vmem:[%s8519 + $0x1c] sm:$0xf]
    %v8528 = vld [vmem:[%s8519 + $0x20] sm:$0xf]
    %v8529 = vld [vmem:[%s8519 + $0x24] sm:$0xf]
    %v8530 = vld [vmem:[%s8519 + $0x28] sm:$0xf]
    %v8531 = vld [vmem:[%s8519 + $0x2c] sm:$0xf]
    %v8532 = vld [vmem:[%s8519 + $0x30] sm:$0xf]
    %v8533 = vld [vmem:[%s8519 + $0x34] sm:$0xf]
    %v8534 = vld [vmem:[%s8519 + $0x38] sm:$0xf]
    %v8535 = vld [vmem:[%s8519 + $0x3c] sm:$0xf]
    %v8552 = vunpack.c.l.b16 %v8520
    %v8553 = vunpack.c.l.b16 %v8521
    %v8554 = vunpack.c.l.b16 %v8522
    %v8555 = vunpack.c.l.b16 %v8523
    %v8556 = vunpack.c.l.b16 %v8524
    %v8557 = vunpack.c.l.b16 %v8525
    %v8558 = vunpack.c.l.b16 %v8526
    %v8559 = vunpack.c.l.b16 %v8527
    %v8560 = vunpack.c.l.b16 %v8528
    %v8561 = vunpack.c.l.b16 %v8529
    %v8562 = vunpack.c.l.b16 %v8530
    %v8563 = vunpack.c.l.b16 %v8531
    %v8564 = vunpack.c.l.b16 %v8532
    %v8565 = vunpack.c.l.b16 %v8533
    %v8566 = vunpack.c.l.b16 %v8534
    %v8567 = vunpack.c.l.b16 %v8535
    %v8568 = vpack.c.b16 %v8553, %v8552
    %v8569 = vpack.c.b16 %v8555, %v8554
    %v8570 = vpack.c.b16 %v8557, %v8556
    %v8571 = vpack.c.b16 %v8559, %v8558
    %v8572 = vpack.c.b16 %v8561, %v8560
    %v8573 = vpack.c.b16 %v8563, %v8562
    %v8574 = vpack.c.b16 %v8565, %v8564
    %v8575 = vpack.c.b16 %v8567, %v8566
    %8584 = vmatprep.subr.bf16.mxu0 0
    %8585 = vmatpush1.bf16.msra.mxu0 %v8568
    %8586 = vmatprep.subr.bf16.mxu0 0
    %8587 = vmatpush1.bf16.msra.mxu0 %v8569
    %8588 = vmatprep.subr.bf16.mxu0 0
    %8589 = vmatpush1.bf16.msra.mxu0 %v8570
    %8590 = vmatprep.subr.bf16.mxu0 0
    %8591 = vmatpush1.bf16.msra.mxu0 %v8571
    %8592 = vmatprep.subr.bf16.mxu0 0
    %8593 = vmatpush1.bf16.msra.mxu0 %v8572
    %8594 = vmatprep.subr.bf16.mxu0 0
    %8595 = vmatpush1.bf16.msra.mxu0 %v8573
    %8596 = vmatprep.subr.bf16.mxu0 0
    %8597 = vmatpush1.bf16.msra.mxu0 %v8574
    %8598 = vmatprep.subr.bf16.mxu0 0
    %8599 = vmatpush1.bf16.msra.mxu0 %v8575
    %8600 = vmatprep.subr.bf16.mxu0 0
    %8601 = vmatpush1.bf16.msra.mxu0 0
    %8602 = vmatprep.subr.bf16.mxu0 0
    %8603 = vmatpush1.bf16.msra.mxu0 0
    %8604 = vmatprep.subr.bf16.mxu0 0
    %8605 = vmatpush1.bf16.msra.mxu0 0
    %8606 = vmatprep.subr.bf16.mxu0 0
    %8607 = vmatpush1.bf16.msra.mxu0 0
    %8608 = vmatprep.subr.bf16.mxu0 0
    %8609 = vmatpush1.bf16.msra.mxu0 0
    %8610 = vmatprep.subr.bf16.mxu0 0
    %8611 = vmatpush1.bf16.msra.mxu0 0
    %8612 = vmatprep.subr.bf16.mxu0 0
    %8613 = vmatpush1.bf16.msra.mxu0 0
    %8614 = vmatprep.subr.bf16.mxu0 0
    %8615 = vmatpush1.bf16.msra.mxu0 0
    %8616 = vmatprep.mubr.bf16.mxu0 0
    %8617 = vmatmul.mubr.bf16.gmra.mrb[0].mxu0 %v915
    %v8618 = vpop.f32.mrb[0].mxu0
    %v8619 = vadd.f32 0.0, %v8618
    %v8620 = vpop.f32.mrb[0].mxu0
    %v8621 = vpop.f32.mrb[0].mxu0
    %v8622 = vadd.f32 0.0, %v8621
    %v8623 = vpop.f32.mrb[0].mxu0
    %8624 = vmatprep.mubr.bf16.mxu0 0
    %8625 = vmatmul.mubr.bf16.gmra.mrb[0].mxu0 %v916
    %v8626 = vpop.f32.mrb[0].mxu0
    %v8627 = vadd.f32 0.0, %v8626
    %v8628 = vpop.f32.mrb[0].mxu0
    %v8629 = vpop.f32.mrb[0].mxu0
    %v8630 = vadd.f32 0.0, %v8629
    %v8631 = vpop.f32.mrb[0].mxu0
    %8632 = vdwg.mxu0
    %s8633 = scalar_lea.vmem [#allocation2], 5824
    %v8634 = vld [vmem:[%s8633] sm:$0xf]
    %v8635 = vld [vmem:[%s8633 + $0x4] sm:$0xf]
    %v8636 = vld [vmem:[%s8633 + $0x8] sm:$0xf]
    %v8637 = vld [vmem:[%s8633 + $0xc] sm:$0xf]
    %v8638 = vld [vmem:[%s8633 + $0x10] sm:$0xf]
    %v8639 = vld [vmem:[%s8633 + $0x14] sm:$0xf]
    %v8640 = vld [vmem:[%s8633 + $0x18] sm:$0xf]
    %v8641 = vld [vmem:[%s8633 + $0x1c] sm:$0xf]
    %v8642 = vld [vmem:[%s8633 + $0x20] sm:$0xf]
    %v8643 = vld [vmem:[%s8633 + $0x24] sm:$0xf]
    %v8644 = vld [vmem:[%s8633 + $0x28] sm:$0xf]
    %v8645 = vld [vmem:[%s8633 + $0x2c] sm:$0xf]
    %v8646 = vld [vmem:[%s8633 + $0x30] sm:$0xf]
    %v8647 = vld [vmem:[%s8633 + $0x34] sm:$0xf]
    %v8648 = vld [vmem:[%s8633 + $0x38] sm:$0xf]
    %v8649 = vld [vmem:[%s8633 + $0x3c] sm:$0xf]
    %v8666 = vunpack.c.l.b16 %v8634
    %v8667 = vunpack.c.l.b16 %v8635
    %v8668 = vunpack.c.l.b16 %v8636
    %v8669 = vunpack.c.l.b16 %v8637
    %v8670 = vunpack.c.l.b16 %v8638
    %v8671 = vunpack.c.l.b16 %v8639
    %v8672 = vunpack.c.l.b16 %v8640
    %v8673 = vunpack.c.l.b16 %v8641
    %v8674 = vunpack.c.l.b16 %v8642
    %v8675 = vunpack.c.l.b16 %v8643
    %v8676 = vunpack.c.l.b16 %v8644
    %v8677 = vunpack.c.l.b16 %v8645
    %v8678 = vunpack.c.l.b16 %v8646
    %v8679 = vunpack.c.l.b16 %v8647
    %v8680 = vunpack.c.l.b16 %v8648
    %v8681 = vunpack.c.l.b16 %v8649
    %v8682 = vpack.c.b16 %v8667, %v8666
    %v8683 = vpack.c.b16 %v8669, %v8668
    %v8684 = vpack.c.b16 %v8671, %v8670
    %v8685 = vpack.c.b16 %v8673, %v8672
    %v8686 = vpack.c.b16 %v8675, %v8674
    %v8687 = vpack.c.b16 %v8677, %v8676
    %v8688 = vpack.c.b16 %v8679, %v8678
    %v8689 = vpack.c.b16 %v8681, %v8680
    %8698 = vmatprep.subr.bf16.mxu0 0
    %8699 = vmatpush1.bf16.msra.mxu0 %v8682
    %8700 = vmatprep.subr.bf16.mxu0 0
    %8701 = vmatpush1.bf16.msra.mxu0 %v8683
    %8702 = vmatprep.subr.bf16.mxu0 0
    %8703 = vmatpush1.bf16.msra.mxu0 %v8684
    %8704 = vmatprep.subr.bf16.mxu0 0
    %8705 = vmatpush1.bf16.msra.mxu0 %v8685
    %8706 = vmatprep.subr.bf16.mxu0 0
    %8707 = vmatpush1.bf16.msra.mxu0 %v8686
    %8708 = vmatprep.subr.bf16.mxu0 0
    %8709 = vmatpush1.bf16.msra.mxu0 %v8687
    %8710 = vmatprep.subr.bf16.mxu0 0
    %8711 = vmatpush1.bf16.msra.mxu0 %v8688
    %8712 = vmatprep.subr.bf16.mxu0 0
    %8713 = vmatpush1.bf16.msra.mxu0 %v8689
    %8714 = vmatprep.subr.bf16.mxu0 0
    %8715 = vmatpush1.bf16.msra.mxu0 0
    %8716 = vmatprep.subr.bf16.mxu0 0
    %8717 = vmatpush1.bf16.msra.mxu0 0
    %8718 = vmatprep.subr.bf16.mxu0 0
    %8719 = vmatpush1.bf16.msra.mxu0 0
    %8720 = vmatprep.subr.bf16.mxu0 0
    %8721 = vmatpush1.bf16.msra.mxu0 0
    %8722 = vmatprep.subr.bf16.mxu0 0
    %8723 = vmatpush1.bf16.msra.mxu0 0
    %8724 = vmatprep.subr.bf16.mxu0 0
    %8725 = vmatpush1.bf16.msra.mxu0 0
    %8726 = vmatprep.subr.bf16.mxu0 0
    %8727 = vmatpush1.bf16.msra.mxu0 0
    %8728 = vmatprep.subr.bf16.mxu0 0
    %8729 = vmatpush1.bf16.msra.mxu0 0
    %8730 = vmatprep.mubr.bf16.mxu0 0
    %8731 = vmatmul.mubr.bf16.gmra.mrb[0].mxu0 %v915
    %v8732 = vpop.f32.mrb[0].mxu0
    %v8733 = vadd.f32 0.0, %v8732
    %v8734 = vpop.f32.mrb[0].mxu0
    %v8735 = vpop.f32.mrb[0].mxu0
    %v8736 = vadd.f32 0.0, %v8735
    %v8737 = vpop.f32.mrb[0].mxu0
    %8738 = vmatprep.mubr.bf16.mxu0 0
    %8739 = vmatmul.mubr.bf16.gmra.mrb[0].mxu0 %v916
    %v8740 = vpop.f32.mrb[0].mxu0
    %v8741 = vadd.f32 0.0, %v8740
    %v8742 = vpop.f32.mrb[0].mxu0
    %v8743 = vpop.f32.mrb[0].mxu0
    %v8744 = vadd.f32 0.0, %v8743
    %v8745 = vpop.f32.mrb[0].mxu0
    %8746 = vdwg.mxu0
    %v8748 = vrot.slane %v8630, 7
    %v8753 = vrot.slane %v8619, 7
    %v8754 = vrot.slane %v8622, 7
    %v8755 = vsel %vm384, %v8753, %v8754
    %v8756 = vrot.slane %v8627, 7
    %v8757 = vsel %vm384, %v8754, %v8756
    %v8758 = vsel %vm384, %v8756, %v8748
    %v8763 = vsel %vm384, %v8748, %v8753
    %v8764 = vmul.f32 %v105, %v8763
    %v8765 = vmul.f32 %v106, %v8755
    %v8766 = vmul.f32 %v107, %v8757
    %v8767 = vmul.f32 %v108, %v8758
    %v8784 = vunpack.c.l.b16 %v8503
    %v8785 = vunpack.c.l.b16 %v8504
    %v8786 = vunpack.c.l.b16 %v8505
    %v8787 = vunpack.c.l.b16 %v8506
    %v8788 = vunpack.c.l.b16 %v8507
    %v8789 = vunpack.c.l.b16 %v8508
    %v8790 = vunpack.c.l.b16 %v8509
    %v8791 = vunpack.c.l.b16 %v8510
    %v8792 = vunpack.c.l.b16 %v8511
    %v8793 = vunpack.c.l.b16 %v8512
    %v8794 = vunpack.c.l.b16 %v8513
    %v8795 = vunpack.c.l.b16 %v8514
    %v8796 = vunpack.c.l.b16 %v8515
    %v8797 = vunpack.c.l.b16 %v8516
    %v8798 = vunpack.c.l.b16 %v8517
    %v8799 = vunpack.c.l.b16 %v8518
    %v8800 = vpack.c.b16 %v8785, %v8784
    %v8801 = vpack.c.b16 %v8787, %v8786
    %v8802 = vpack.c.b16 %v8789, %v8788
    %v8803 = vpack.c.b16 %v8791, %v8790
    %v8804 = vpack.c.b16 %v8793, %v8792
    %v8805 = vpack.c.b16 %v8795, %v8794
    %v8806 = vpack.c.b16 %v8797, %v8796
    %v8807 = vpack.c.b16 %v8799, %v8798
    %8816 = vmatprep.subr.bf16.mxu0 0
    %8817 = vmatpush1.bf16.msra.mxu0 %v8800
    %8818 = vmatprep.subr.bf16.mxu0 0
    %8819 = vmatpush1.bf16.msra.mxu0 %v8801
    %8820 = vmatprep.subr.bf16.mxu0 0
    %8821 = vmatpush1.bf16.msra.mxu0 %v8802
    %8822 = vmatprep.subr.bf16.mxu0 0
    %8823 = vmatpush1.bf16.msra.mxu0 %v8803
    %8824 = vmatprep.subr.bf16.mxu0 0
    %8825 = vmatpush1.bf16.msra.mxu0 %v8804
    %8826 = vmatprep.subr.bf16.mxu0 0
    %8827 = vmatpush1.bf16.msra.mxu0 %v8805
    %8828 = vmatprep.subr.bf16.mxu0 0
    %8829 = vmatpush1.bf16.msra.mxu0 %v8806
    %8830 = vmatprep.subr.bf16.mxu0 0
    %8831 = vmatpush1.bf16.msra.mxu0 %v8807
    %8832 = vmatprep.subr.bf16.mxu0 0
    %8833 = vmatpush1.bf16.msra.mxu0 0
    %8834 = vmatprep.subr.bf16.mxu0 0
    %8835 = vmatpush1.bf16.msra.mxu0 0
    %8836 = vmatprep.subr.bf16.mxu0 0
    %8837 = vmatpush1.bf16.msra.mxu0 0
    %8838 = vmatprep.subr.bf16.mxu0 0
    %8839 = vmatpush1.bf16.msra.mxu0 0
    %8840 = vmatprep.subr.bf16.mxu0 0
    %8841 = vmatpush1.bf16.msra.mxu0 0
    %8842 = vmatprep.subr.bf16.mxu0 0
    %8843 = vmatpush1.bf16.msra.mxu0 0
    %8844 = vmatprep.subr.bf16.mxu0 0
    %8845 = vmatpush1.bf16.msra.mxu0 0
    %8846 = vmatprep.subr.bf16.mxu0 0
    %8847 = vmatpush1.bf16.msra.mxu0 0
    %8848 = vmatprep.mubr.bf16.mxu0 0
    %8849 = vmatmul.mubr.bf16.gmra.mrb[0].mxu0 %v915
    %v8850 = vpop.f32.mrb[0].mxu0
    %v8851 = vadd.f32 %v8764, %v8850
    %v8852 = vpop.f32.mrb[0].mxu0
    %v8853 = vpop.f32.mrb[0].mxu0
    %v8854 = vadd.f32 %v8765, %v8853
    %v8855 = vpop.f32.mrb[0].mxu0
    %8856 = vmatprep.mubr.bf16.mxu0 0
    %8857 = vmatmul.mubr.bf16.gmra.mrb[0].mxu0 %v916
    %v8858 = vpop.f32.mrb[0].mxu0
    %v8859 = vadd.f32 %v8766, %v8858
    %v8860 = vpop.f32.mrb[0].mxu0
    %v8861 = vpop.f32.mrb[0].mxu0
    %v8862 = vadd.f32 %v8767, %v8861
    %v8863 = vpop.f32.mrb[0].mxu0
    %8864 = vdwg.mxu0
    %v8869 = vrot.slane %v8733, 1
    %v8870 = vrot.slane %v8736, 1
    %v8871 = vsel %vm477, %v8869, %v8870
    %v8872 = vrot.slane %v8741, 1
    %v8873 = vsel %vm477, %v8870, %v8872
    %v8874 = vrot.slane %v8744, 1
    %v8875 = vsel %vm477, %v8872, %v8874
    %v8881 = vsel %vm477, %v8874, %v8869
    %v8882 = vmul.f32 %v117, %v8871
    %v8883 = vmul.f32 %v118, %v8873
    %v8884 = vmul.f32 %v119, %v8875
    %v8885 = vmul.f32 %v120, %v8881
    %v8886 = vadd.f32 %v8851, %v8882
    %v8887 = vadd.f32 %v8854, %v8883
    %v8888 = vadd.f32 %v8859, %v8884
    %v8889 = vadd.f32 %v8862, %v8885
    %v8890 = vpack.c.bf16 %v8499, %v8498
    %v8891 = vpack.c.bf16 %v8501, %v8500
    %s8892 = scalar_lea.vmem [#allocation2], 5952
    %v8893 = vld [vmem:[%s8892] sm:$0xf]
    %v8894 = vld [vmem:[%s8892 + $0x4] sm:$0xf]
    %v8895 = vld [vmem:[%s8892 + $0x8] sm:$0xf]
    %v8896 = vld [vmem:[%s8892 + $0xc] sm:$0xf]
    %v8897 = vld [vmem:[%s8892 + $0x10] sm:$0xf]
    %v8898 = vld [vmem:[%s8892 + $0x14] sm:$0xf]
    %v8899 = vld [vmem:[%s8892 + $0x18] sm:$0xf]
    %v8900 = vld [vmem:[%s8892 + $0x1c] sm:$0xf]
    %v8901 = vld [vmem:[%s8892 + $0x20] sm:$0xf]
    %v8902 = vld [vmem:[%s8892 + $0x24] sm:$0xf]
    %v8903 = vld [vmem:[%s8892 + $0x28] sm:$0xf]
    %v8904 = vld [vmem:[%s8892 + $0x2c] sm:$0xf]
    %v8905 = vld [vmem:[%s8892 + $0x30] sm:$0xf]
    %v8906 = vld [vmem:[%s8892 + $0x34] sm:$0xf]
    %v8907 = vld [vmem:[%s8892 + $0x38] sm:$0xf]
    %v8908 = vld [vmem:[%s8892 + $0x3c] sm:$0xf]
    %s8909 = scalar_lea.vmem [#allocation2], 5888
    %v8910 = vld [vmem:[%s8909] sm:$0xf]
    %v8911 = vld [vmem:[%s8909 + $0x4] sm:$0xf]
    %v8912 = vld [vmem:[%s8909 + $0x8] sm:$0xf]
    %v8913 = vld [vmem:[%s8909 + $0xc] sm:$0xf]
    %v8914 = vld [vmem:[%s8909 + $0x10] sm:$0xf]
    %v8915 = vld [vmem:[%s8909 + $0x14] sm:$0xf]
    %v8916 = vld [vmem:[%s8909 + $0x18] sm:$0xf]
    %v8917 = vld [vmem:[%s8909 + $0x1c] sm:$0xf]
    %v8918 = vld [vmem:[%s8909 + $0x20] sm:$0xf]
    %v8919 = vld [vmem:[%s8909 + $0x24] sm:$0xf]
    %v8920 = vld [vmem:[%s8909 + $0x28] sm:$0xf]
    %v8921 = vld [vmem:[%s8909 + $0x2c] sm:$0xf]
    %v8922 = vld [vmem:[%s8909 + $0x30] sm:$0xf]
    %v8923 = vld [vmem:[%s8909 + $0x34] sm:$0xf]
    %v8924 = vld [vmem:[%s8909 + $0x38] sm:$0xf]
    %v8925 = vld [vmem:[%s8909 + $0x3c] sm:$0xf]
    %v8942 = vunpack.c.l.b16 %v8910
    %v8943 = vunpack.c.l.b16 %v8911
    %v8944 = vunpack.c.l.b16 %v8912
    %v8945 = vunpack.c.l.b16 %v8913
    %v8946 = vunpack.c.l.b16 %v8914
    %v8947 = vunpack.c.l.b16 %v8915
    %v8948 = vunpack.c.l.b16 %v8916
    %v8949 = vunpack.c.l.b16 %v8917
    %v8950 = vunpack.c.l.b16 %v8918
    %v8951 = vunpack.c.l.b16 %v8919
    %v8952 = vunpack.c.l.b16 %v8920
    %v8953 = vunpack.c.l.b16 %v8921
    %v8954 = vunpack.c.l.b16 %v8922
    %v8955 = vunpack.c.l.b16 %v8923
    %v8956 = vunpack.c.l.b16 %v8924
    %v8957 = vunpack.c.l.b16 %v8925
    %v8958 = vpack.c.b16 %v8943, %v8942
    %v8959 = vpack.c.b16 %v8945, %v8944
    %v8960 = vpack.c.b16 %v8947, %v8946
    %v8961 = vpack.c.b16 %v8949, %v8948
    %v8962 = vpack.c.b16 %v8951, %v8950
    %v8963 = vpack.c.b16 %v8953, %v8952
    %v8964 = vpack.c.b16 %v8955, %v8954
    %v8965 = vpack.c.b16 %v8957, %v8956
    %8974 = vmatprep.subr.bf16.mxu0 0
    %8975 = vmatpush1.bf16.msra.mxu0 %v8958
    %8976 = vmatprep.subr.bf16.mxu0 0
    %8977 = vmatpush1.bf16.msra.mxu0 %v8959
    %8978 = vmatprep.subr.bf16.mxu0 0
    %8979 = vmatpush1.bf16.msra.mxu0 %v8960
    %8980 = vmatprep.subr.bf16.mxu0 0
    %8981 = vmatpush1.bf16.msra.mxu0 %v8961
    %8982 = vmatprep.subr.bf16.mxu0 0
    %8983 = vmatpush1.bf16.msra.mxu0 %v8962
    %8984 = vmatprep.subr.bf16.mxu0 0
    %8985 = vmatpush1.bf16.msra.mxu0 %v8963
    %8986 = vmatprep.subr.bf16.mxu0 0
    %8987 = vmatpush1.bf16.msra.mxu0 %v8964
    %8988 = vmatprep.subr.bf16.mxu0 0
    %8989 = vmatpush1.bf16.msra.mxu0 %v8965
    %8990 = vmatprep.subr.bf16.mxu0 0
    %8991 = vmatpush1.bf16.msra.mxu0 0
    %8992 = vmatprep.subr.bf16.mxu0 0
    %8993 = vmatpush1.bf16.msra.mxu0 0
    %8994 = vmatprep.subr.bf16.mxu0 0
    %8995 = vmatpush1.bf16.msra.mxu0 0
    %8996 = vmatprep.subr.bf16.mxu0 0
    %8997 = vmatpush1.bf16.msra.mxu0 0
    %8998 = vmatprep.subr.bf16.mxu0 0
    %8999 = vmatpush1.bf16.msra.mxu0 0
    %9000 = vmatprep.subr.bf16.mxu0 0
    %9001 = vmatpush1.bf16.msra.mxu0 0
    %9002 = vmatprep.subr.bf16.mxu0 0
    %9003 = vmatpush1.bf16.msra.mxu0 0
    %9004 = vmatprep.subr.bf16.mxu0 0
    %9005 = vmatpush1.bf16.msra.mxu0 0
    %9006 = vmatprep.mubr.bf16.mxu0 0
    %9007 = vmatmul.mubr.bf16.gmra.mrb[0].mxu0 %v8890
    %v9008 = vpop.f32.mrb[0].mxu0
    %v9009 = vadd.f32 0.0, %v9008
    %v9010 = vpop.f32.mrb[0].mxu0
    %v9011 = vpop.f32.mrb[0].mxu0
    %v9012 = vadd.f32 0.0, %v9011
    %v9013 = vpop.f32.mrb[0].mxu0
    %9014 = vmatprep.mubr.bf16.mxu0 0
    %9015 = vmatmul.mubr.bf16.gmra.mrb[0].mxu0 %v8891
    %v9016 = vpop.f32.mrb[0].mxu0
    %v9017 = vadd.f32 0.0, %v9016
    %v9018 = vpop.f32.mrb[0].mxu0
    %v9019 = vpop.f32.mrb[0].mxu0
    %v9020 = vadd.f32 0.0, %v9019
    %v9021 = vpop.f32.mrb[0].mxu0
    %9022 = vdwg.mxu0
    %s9023 = scalar_lea.vmem [#allocation2], 6016
    %v9024 = vld [vmem:[%s9023] sm:$0xf]
    %v9025 = vld [vmem:[%s9023 + $0x4] sm:$0xf]
    %v9026 = vld [vmem:[%s9023 + $0x8] sm:$0xf]
    %v9027 = vld [vmem:[%s9023 + $0xc] sm:$0xf]
    %v9028 = vld [vmem:[%s9023 + $0x10] sm:$0xf]
    %v9029 = vld [vmem:[%s9023 + $0x14] sm:$0xf]
    %v9030 = vld [vmem:[%s9023 + $0x18] sm:$0xf]
    %v9031 = vld [vmem:[%s9023 + $0x1c] sm:$0xf]
    %v9032 = vld [vmem:[%s9023 + $0x20] sm:$0xf]
    %v9033 = vld [vmem:[%s9023 + $0x24] sm:$0xf]
    %v9034 = vld [vmem:[%s9023 + $0x28] sm:$0xf]
    %v9035 = vld [vmem:[%s9023 + $0x2c] sm:$0xf]
    %v9036 = vld [vmem:[%s9023 + $0x30] sm:$0xf]
    %v9037 = vld [vmem:[%s9023 + $0x34] sm:$0xf]
    %v9038 = vld [vmem:[%s9023 + $0x38] sm:$0xf]
    %v9039 = vld [vmem:[%s9023 + $0x3c] sm:$0xf]
    %v9056 = vunpack.c.l.b16 %v9024
    %v9057 = vunpack.c.l.b16 %v9025
    %v9058 = vunpack.c.l.b16 %v9026
    %v9059 = vunpack.c.l.b16 %v9027
    %v9060 = vunpack.c.l.b16 %v9028
    %v9061 = vunpack.c.l.b16 %v9029
    %v9062 = vunpack.c.l.b16 %v9030
    %v9063 = vunpack.c.l.b16 %v9031
    %v9064 = vunpack.c.l.b16 %v9032
    %v9065 = vunpack.c.l.b16 %v9033
    %v9066 = vunpack.c.l.b16 %v9034
    %v9067 = vunpack.c.l.b16 %v9035
    %v9068 = vunpack.c.l.b16 %v9036
    %v9069 = vunpack.c.l.b16 %v9037
    %v9070 = vunpack.c.l.b16 %v9038
    %v9071 = vunpack.c.l.b16 %v9039
    %v9072 = vpack.c.b16 %v9057, %v9056
    %v9073 = vpack.c.b16 %v9059, %v9058
    %v9074 = vpack.c.b16 %v9061, %v9060
    %v9075 = vpack.c.b16 %v9063, %v9062
    %v9076 = vpack.c.b16 %v9065, %v9064
    %v9077 = vpack.c.b16 %v9067, %v9066
    %v9078 = vpack.c.b16 %v9069, %v9068
    %v9079 = vpack.c.b16 %v9071, %v9070
    %9088 = vmatprep.subr.bf16.mxu0 0
    %9089 = vmatpush1.bf16.msra.mxu0 %v9072
    %9090 = vmatprep.subr.bf16.mxu0 0
    %9091 = vmatpush1.bf16.msra.mxu0 %v9073
    %9092 = vmatprep.subr.bf16.mxu0 0
    %9093 = vmatpush1.bf16.msra.mxu0 %v9074
    %9094 = vmatprep.subr.bf16.mxu0 0
    %9095 = vmatpush1.bf16.msra.mxu0 %v9075
    %9096 = vmatprep.subr.bf16.mxu0 0
    %9097 = vmatpush1.bf16.msra.mxu0 %v9076
    %9098 = vmatprep.subr.bf16.mxu0 0
    %9099 = vmatpush1.bf16.msra.mxu0 %v9077
    %9100 = vmatprep.subr.bf16.mxu0 0
    %9101 = vmatpush1.bf16.msra.mxu0 %v9078
    %9102 = vmatprep.subr.bf16.mxu0 0
    %9103 = vmatpush1.bf16.msra.mxu0 %v9079
    %9104 = vmatprep.subr.bf16.mxu0 0
    %9105 = vmatpush1.bf16.msra.mxu0 0
    %9106 = vmatprep.subr.bf16.mxu0 0
    %9107 = vmatpush1.bf16.msra.mxu0 0
    %9108 = vmatprep.subr.bf16.mxu0 0
    %9109 = vmatpush1.bf16.msra.mxu0 0
    %9110 = vmatprep.subr.bf16.mxu0 0
    %9111 = vmatpush1.bf16.msra.mxu0 0
    %9112 = vmatprep.subr.bf16.mxu0 0
    %9113 = vmatpush1.bf16.msra.mxu0 0
    %9114 = vmatprep.subr.bf16.mxu0 0
    %9115 = vmatpush1.bf16.msra.mxu0 0
    %9116 = vmatprep.subr.bf16.mxu0 0
    %9117 = vmatpush1.bf16.msra.mxu0 0
    %9118 = vmatprep.subr.bf16.mxu0 0
    %9119 = vmatpush1.bf16.msra.mxu0 0
    %9120 = vmatprep.mubr.bf16.mxu0 0
    %9121 = vmatmul.mubr.bf16.gmra.mrb[0].mxu0 %v8890
    %v9122 = vpop.f32.mrb[0].mxu0
    %v9123 = vadd.f32 0.0, %v9122
    %v9124 = vpop.f32.mrb[0].mxu0
    %v9125 = vpop.f32.mrb[0].mxu0
    %v9126 = vadd.f32 0.0, %v9125
    %v9127 = vpop.f32.mrb[0].mxu0
    %9128 = vmatprep.mubr.bf16.mxu0 0
    %9129 = vmatmul.mubr.bf16.gmra.mrb[0].mxu0 %v8891
    %v9130 = vpop.f32.mrb[0].mxu0
    %v9131 = vadd.f32 0.0, %v9130
    %v9132 = vpop.f32.mrb[0].mxu0
    %v9133 = vpop.f32.mrb[0].mxu0
    %v9134 = vadd.f32 0.0, %v9133
    %v9135 = vpop.f32.mrb[0].mxu0
    %9136 = vdwg.mxu0
    %v9138 = vrot.slane %v9020, 7
    %v9143 = vrot.slane %v9009, 7
    %v9144 = vrot.slane %v9012, 7
    %v9145 = vsel %vm384, %v9143, %v9144
    %v9146 = vrot.slane %v9017, 7
    %v9147 = vsel %vm384, %v9144, %v9146
    %v9148 = vsel %vm384, %v9146, %v9138
    %v9153 = vsel %vm384, %v9138, %v9143
    %v9154 = vmul.f32 %v105, %v9153
    %v9155 = vmul.f32 %v106, %v9145
    %v9156 = vmul.f32 %v107, %v9147
    %v9157 = vmul.f32 %v108, %v9148
    %v9174 = vunpack.c.l.b16 %v8893
    %v9175 = vunpack.c.l.b16 %v8894
    %v9176 = vunpack.c.l.b16 %v8895
    %v9177 = vunpack.c.l.b16 %v8896
    %v9178 = vunpack.c.l.b16 %v8897
    %v9179 = vunpack.c.l.b16 %v8898
    %v9180 = vunpack.c.l.b16 %v8899
    %v9181 = vunpack.c.l.b16 %v8900
    %v9182 = vunpack.c.l.b16 %v8901
    %v9183 = vunpack.c.l.b16 %v8902
    %v9184 = vunpack.c.l.b16 %v8903
    %v9185 = vunpack.c.l.b16 %v8904
    %v9186 = vunpack.c.l.b16 %v8905
    %v9187 = vunpack.c.l.b16 %v8906
    %v9188 = vunpack.c.l.b16 %v8907
    %v9189 = vunpack.c.l.b16 %v8908
    %v9190 = vpack.c.b16 %v9175, %v9174
    %v9191 = vpack.c.b16 %v9177, %v9176
    %v9192 = vpack.c.b16 %v9179, %v9178
    %v9193 = vpack.c.b16 %v9181, %v9180
    %v9194 = vpack.c.b16 %v9183, %v9182
    %v9195 = vpack.c.b16 %v9185, %v9184
    %v9196 = vpack.c.b16 %v9187, %v9186
    %v9197 = vpack.c.b16 %v9189, %v9188
    %9206 = vmatprep.subr.bf16.mxu0 0
    %9207 = vmatpush1.bf16.msra.mxu0 %v9190
    %9208 = vmatprep.subr.bf16.mxu0 0
    %9209 = vmatpush1.bf16.msra.mxu0 %v9191
    %9210 = vmatprep.subr.bf16.mxu0 0
    %9211 = vmatpush1.bf16.msra.mxu0 %v9192
    %9212 = vmatprep.subr.bf16.mxu0 0
    %9213 = vmatpush1.bf16.msra.mxu0 %v9193
    %9214 = vmatprep.subr.bf16.mxu0 0
    %9215 = vmatpush1.bf16.msra.mxu0 %v9194
    %9216 = vmatprep.subr.bf16.mxu0 0
    %9217 = vmatpush1.bf16.msra.mxu0 %v9195
    %9218 = vmatprep.subr.bf16.mxu0 0
    %9219 = vmatpush1.bf16.msra.mxu0 %v9196
    %9220 = vmatprep.subr.bf16.mxu0 0
    %9221 = vmatpush1.bf16.msra.mxu0 %v9197
    %9222 = vmatprep.subr.bf16.mxu0 0
    %9223 = vmatpush1.bf16.msra.mxu0 0
    %9224 = vmatprep.subr.bf16.mxu0 0
    %9225 = vmatpush1.bf16.msra.mxu0 0
    %9226 = vmatprep.subr.bf16.mxu0 0
    %9227 = vmatpush1.bf16.msra.mxu0 0
    %9228 = vmatprep.subr.bf16.mxu0 0
    %9229 = vmatpush1.bf16.msra.mxu0 0
    %9230 = vmatprep.subr.bf16.mxu0 0
    %9231 = vmatpush1.bf16.msra.mxu0 0
    %9232 = vmatprep.subr.bf16.mxu0 0
    %9233 = vmatpush1.bf16.msra.mxu0 0
    %9234 = vmatprep.subr.bf16.mxu0 0
    %9235 = vmatpush1.bf16.msra.mxu0 0
    %9236 = vmatprep.subr.bf16.mxu0 0
    %9237 = vmatpush1.bf16.msra.mxu0 0
    %9238 = vmatprep.mubr.bf16.mxu0 0
    %9239 = vmatmul.mubr.bf16.gmra.mrb[0].mxu0 %v8890
    %v9240 = vpop.f32.mrb[0].mxu0
    %v9241 = vadd.f32 %v9154, %v9240
    %v9242 = vpop.f32.mrb[0].mxu0
    %v9243 = vpop.f32.mrb[0].mxu0
    %v9244 = vadd.f32 %v9155, %v9243
    %v9245 = vpop.f32.mrb[0].mxu0
    %9246 = vmatprep.mubr.bf16.mxu0 0
    %9247 = vmatmul.mubr.bf16.gmra.mrb[0].mxu0 %v8891
    %v9248 = vpop.f32.mrb[0].mxu0
    %v9249 = vadd.f32 %v9156, %v9248
    %v9250 = vpop.f32.mrb[0].mxu0
    %v9251 = vpop.f32.mrb[0].mxu0
    %v9252 = vadd.f32 %v9157, %v9251
    %v9253 = vpop.f32.mrb[0].mxu0
    %9254 = vdwg.mxu0
    %v9259 = vrot.slane %v9123, 1
    %v9260 = vrot.slane %v9126, 1
    %v9261 = vsel %vm477, %v9259, %v9260
    %v9262 = vrot.slane %v9131, 1
    %v9263 = vsel %vm477, %v9260, %v9262
    %v9264 = vrot.slane %v9134, 1
    %v9265 = vsel %vm477, %v9262, %v9264
    %v9271 = vsel %vm477, %v9264, %v9259
    %v9272 = vmul.f32 %v117, %v9261
    %v9273 = vmul.f32 %v118, %v9263
    %v9274 = vmul.f32 %v119, %v9265
    %v9275 = vmul.f32 %v120, %v9271
    %v9276 = vadd.f32 %v9241, %v9272
    %v9277 = vadd.f32 %v9244, %v9273
    %v9278 = vadd.f32 %v9249, %v9274
    %v9279 = vadd.f32 %v9252, %v9275
    %v9280 = vadd.f32 %v8886, %v9276
    %v9281 = vadd.f32 %v8887, %v9277
    %v9282 = vadd.f32 %v8888, %v9278
    %v9283 = vadd.f32 %v8889, %v9279
    %v9284 = vld [vmem:[#allocation5 + $0x14] sm:$0x1]
    %v9285 = vlaneseq
    %v9286 = vshrl.u32 %v9285, 7
    %v9287 = vsub.s32 0, %v9286
    %v9288 = vrot.slane %v9284, %v9287
    %v9289 = vadd.f32 %v9280, %v9288
    %v9290 = vadd.f32 %v9281, %v9288
    %v9291 = vadd.f32 %v9282, %v9288
    %v9292 = vadd.f32 %v9283, %v9288
    %v9293 = vmax.f32 %v9289, 0.0
    %v9294 = vmax.f32 %v9290, 0.0
    %v9295 = vmax.f32 %v9291, 0.0
    %v9296 = vmax.f32 %v9292, 0.0
    %v9297 = vpack.c.bf16 %v9294, %v9293
    %v9298 = vpack.c.bf16 %v9296, %v9295
    %s9299 = scalar_lea.vmem [#allocation2], 6144
    %v9300 = vld [vmem:[%s9299] sm:$0xf]
    %v9301 = vld [vmem:[%s9299 + $0x4] sm:$0xf]
    %v9302 = vld [vmem:[%s9299 + $0x8] sm:$0xf]
    %v9303 = vld [vmem:[%s9299 + $0xc] sm:$0xf]
    %v9304 = vld [vmem:[%s9299 + $0x10] sm:$0xf]
    %v9305 = vld [vmem:[%s9299 + $0x14] sm:$0xf]
    %v9306 = vld [vmem:[%s9299 + $0x18] sm:$0xf]
    %v9307 = vld [vmem:[%s9299 + $0x1c] sm:$0xf]
    %v9308 = vld [vmem:[%s9299 + $0x20] sm:$0xf]
    %v9309 = vld [vmem:[%s9299 + $0x24] sm:$0xf]
    %v9310 = vld [vmem:[%s9299 + $0x28] sm:$0xf]
    %v9311 = vld [vmem:[%s9299 + $0x2c] sm:$0xf]
    %v9312 = vld [vmem:[%s9299 + $0x30] sm:$0xf]
    %v9313 = vld [vmem:[%s9299 + $0x34] sm:$0xf]
    %v9314 = vld [vmem:[%s9299 + $0x38] sm:$0xf]
    %v9315 = vld [vmem:[%s9299 + $0x3c] sm:$0xf]
    %s9316 = scalar_lea.vmem [#allocation2], 6080
    %v9317 = vld [vmem:[%s9316] sm:$0xf]
    %v9318 = vld [vmem:[%s9316 + $0x4] sm:$0xf]
    %v9319 = vld [vmem:[%s9316 + $0x8] sm:$0xf]
    %v9320 = vld [vmem:[%s9316 + $0xc] sm:$0xf]
    %v9321 = vld [vmem:[%s9316 + $0x10] sm:$0xf]
    %v9322 = vld [vmem:[%s9316 + $0x14] sm:$0xf]
    %v9323 = vld [vmem:[%s9316 + $0x18] sm:$0xf]
    %v9324 = vld [vmem:[%s9316 + $0x1c] sm:$0xf]
    %v9325 = vld [vmem:[%s9316 + $0x20] sm:$0xf]
    %v9326 = vld [vmem:[%s9316 + $0x24] sm:$0xf]
    %v9327 = vld [vmem:[%s9316 + $0x28] sm:$0xf]
    %v9328 = vld [vmem:[%s9316 + $0x2c] sm:$0xf]
    %v9329 = vld [vmem:[%s9316 + $0x30] sm:$0xf]
    %v9330 = vld [vmem:[%s9316 + $0x34] sm:$0xf]
    %v9331 = vld [vmem:[%s9316 + $0x38] sm:$0xf]
    %v9332 = vld [vmem:[%s9316 + $0x3c] sm:$0xf]
    %v9349 = vunpack.c.l.b16 %v9317
    %v9350 = vunpack.c.l.b16 %v9318
    %v9351 = vunpack.c.l.b16 %v9319
    %v9352 = vunpack.c.l.b16 %v9320
    %v9353 = vunpack.c.l.b16 %v9321
    %v9354 = vunpack.c.l.b16 %v9322
    %v9355 = vunpack.c.l.b16 %v9323
    %v9356 = vunpack.c.l.b16 %v9324
    %v9357 = vunpack.c.l.b16 %v9325
    %v9358 = vunpack.c.l.b16 %v9326
    %v9359 = vunpack.c.l.b16 %v9327
    %v9360 = vunpack.c.l.b16 %v9328
    %v9361 = vunpack.c.l.b16 %v9329
    %v9362 = vunpack.c.l.b16 %v9330
    %v9363 = vunpack.c.l.b16 %v9331
    %v9364 = vunpack.c.l.b16 %v9332
    %v9365 = vpack.c.b16 %v9350, %v9349
    %v9366 = vpack.c.b16 %v9352, %v9351
    %v9367 = vpack.c.b16 %v9354, %v9353
    %v9368 = vpack.c.b16 %v9356, %v9355
    %v9369 = vpack.c.b16 %v9358, %v9357
    %v9370 = vpack.c.b16 %v9360, %v9359
    %v9371 = vpack.c.b16 %v9362, %v9361
    %v9372 = vpack.c.b16 %v9364, %v9363
    %9381 = vmatprep.subr.bf16.mxu0 0
    %9382 = vmatpush1.bf16.msra.mxu0 %v9365
    %9383 = vmatprep.subr.bf16.mxu0 0
    %9384 = vmatpush1.bf16.msra.mxu0 %v9366
    %9385 = vmatprep.subr.bf16.mxu0 0
    %9386 = vmatpush1.bf16.msra.mxu0 %v9367
    %9387 = vmatprep.subr.bf16.mxu0 0
    %9388 = vmatpush1.bf16.msra.mxu0 %v9368
    %9389 = vmatprep.subr.bf16.mxu0 0
    %9390 = vmatpush1.bf16.msra.mxu0 %v9369
    %9391 = vmatprep.subr.bf16.mxu0 0
    %9392 = vmatpush1.bf16.msra.mxu0 %v9370
    %9393 = vmatprep.subr.bf16.mxu0 0
    %9394 = vmatpush1.bf16.msra.mxu0 %v9371
    %9395 = vmatprep.subr.bf16.mxu0 0
    %9396 = vmatpush1.bf16.msra.mxu0 %v9372
    %9397 = vmatprep.subr.bf16.mxu0 0
    %9398 = vmatpush1.bf16.msra.mxu0 0
    %9399 = vmatprep.subr.bf16.mxu0 0
    %9400 = vmatpush1.bf16.msra.mxu0 0
    %9401 = vmatprep.subr.bf16.mxu0 0
    %9402 = vmatpush1.bf16.msra.mxu0 0
    %9403 = vmatprep.subr.bf16.mxu0 0
    %9404 = vmatpush1.bf16.msra.mxu0 0
    %9405 = vmatprep.subr.bf16.mxu0 0
    %9406 = vmatpush1.bf16.msra.mxu0 0
    %9407 = vmatprep.subr.bf16.mxu0 0
    %9408 = vmatpush1.bf16.msra.mxu0 0
    %9409 = vmatprep.subr.bf16.mxu0 0
    %9410 = vmatpush1.bf16.msra.mxu0 0
    %9411 = vmatprep.subr.bf16.mxu0 0
    %9412 = vmatpush1.bf16.msra.mxu0 0
    %9413 = vmatprep.mubr.bf16.mxu0 0
    %9414 = vmatmul.mubr.bf16.gmra.mrb[0].mxu0 %v9297
    %v9415 = vpop.f32.mrb[0].mxu0
    %v9416 = vadd.f32 0.0, %v9415
    %v9417 = vpop.f32.mrb[0].mxu0
    %v9418 = vpop.f32.mrb[0].mxu0
    %v9419 = vadd.f32 0.0, %v9418
    %v9420 = vpop.f32.mrb[0].mxu0
    %9421 = vmatprep.mubr.bf16.mxu0 0
    %9422 = vmatmul.mubr.bf16.gmra.mrb[0].mxu0 %v9298
    %v9423 = vpop.f32.mrb[0].mxu0
    %v9424 = vadd.f32 0.0, %v9423
    %v9425 = vpop.f32.mrb[0].mxu0
    %v9426 = vpop.f32.mrb[0].mxu0
    %v9427 = vadd.f32 0.0, %v9426
    %v9428 = vpop.f32.mrb[0].mxu0
    %9429 = vdwg.mxu0
    %s9430 = scalar_lea.vmem [#allocation2], 6208
    %v9431 = vld [vmem:[%s9430] sm:$0xf]
    %v9432 = vld [vmem:[%s9430 + $0x4] sm:$0xf]
    %v9433 = vld [vmem:[%s9430 + $0x8] sm:$0xf]
    %v9434 = vld [vmem:[%s9430 + $0xc] sm:$0xf]
    %v9435 = vld [vmem:[%s9430 + $0x10] sm:$0xf]
    %v9436 = vld [vmem:[%s9430 + $0x14] sm:$0xf]
    %v9437 = vld [vmem:[%s9430 + $0x18] sm:$0xf]
    %v9438 = vld [vmem:[%s9430 + $0x1c] sm:$0xf]
    %v9439 = vld [vmem:[%s9430 + $0x20] sm:$0xf]
    %v9440 = vld [vmem:[%s9430 + $0x24] sm:$0xf]
    %v9441 = vld [vmem:[%s9430 + $0x28] sm:$0xf]
    %v9442 = vld [vmem:[%s9430 + $0x2c] sm:$0xf]
    %v9443 = vld [vmem:[%s9430 + $0x30] sm:$0xf]
    %v9444 = vld [vmem:[%s9430 + $0x34] sm:$0xf]
    %v9445 = vld [vmem:[%s9430 + $0x38] sm:$0xf]
    %v9446 = vld [vmem:[%s9430 + $0x3c] sm:$0xf]
    %v9463 = vunpack.c.l.b16 %v9431
    %v9464 = vunpack.c.l.b16 %v9432
    %v9465 = vunpack.c.l.b16 %v9433
    %v9466 = vunpack.c.l.b16 %v9434
    %v9467 = vunpack.c.l.b16 %v9435
    %v9468 = vunpack.c.l.b16 %v9436
    %v9469 = vunpack.c.l.b16 %v9437
    %v9470 = vunpack.c.l.b16 %v9438
    %v9471 = vunpack.c.l.b16 %v9439
    %v9472 = vunpack.c.l.b16 %v9440
    %v9473 = vunpack.c.l.b16 %v9441
    %v9474 = vunpack.c.l.b16 %v9442
    %v9475 = vunpack.c.l.b16 %v9443
    %v9476 = vunpack.c.l.b16 %v9444
    %v9477 = vunpack.c.l.b16 %v9445
    %v9478 = vunpack.c.l.b16 %v9446
    %v9479 = vpack.c.b16 %v9464, %v9463
    %v9480 = vpack.c.b16 %v9466, %v9465
    %v9481 = vpack.c.b16 %v9468, %v9467
    %v9482 = vpack.c.b16 %v9470, %v9469
    %v9483 = vpack.c.b16 %v9472, %v9471
    %v9484 = vpack.c.b16 %v9474, %v9473
    %v9485 = vpack.c.b16 %v9476, %v9475
    %v9486 = vpack.c.b16 %v9478, %v9477
    %9495 = vmatprep.subr.bf16.mxu0 0
    %9496 = vmatpush1.bf16.msra.mxu0 %v9479
    %9497 = vmatprep.subr.bf16.mxu0 0
    %9498 = vmatpush1.bf16.msra.mxu0 %v9480
    %9499 = vmatprep.subr.bf16.mxu0 0
    %9500 = vmatpush1.bf16.msra.mxu0 %v9481
    %9501 = vmatprep.subr.bf16.mxu0 0
    %9502 = vmatpush1.bf16.msra.mxu0 %v9482
    %9503 = vmatprep.subr.bf16.mxu0 0
    %9504 = vmatpush1.bf16.msra.mxu0 %v9483
    %9505 = vmatprep.subr.bf16.mxu0 0
    %9506 = vmatpush1.bf16.msra.mxu0 %v9484
    %9507 = vmatprep.subr.bf16.mxu0 0
    %9508 = vmatpush1.bf16.msra.mxu0 %v9485
    %9509 = vmatprep.subr.bf16.mxu0 0
    %9510 = vmatpush1.bf16.msra.mxu0 %v9486
    %9511 = vmatprep.subr.bf16.mxu0 0
    %9512 = vmatpush1.bf16.msra.mxu0 0
    %9513 = vmatprep.subr.bf16.mxu0 0
    %9514 = vmatpush1.bf16.msra.mxu0 0
    %9515 = vmatprep.subr.bf16.mxu0 0
    %9516 = vmatpush1.bf16.msra.mxu0 0
    %9517 = vmatprep.subr.bf16.mxu0 0
    %9518 = vmatpush1.bf16.msra.mxu0 0
    %9519 = vmatprep.subr.bf16.mxu0 0
    %9520 = vmatpush1.bf16.msra.mxu0 0
    %9521 = vmatprep.subr.bf16.mxu0 0
    %9522 = vmatpush1.bf16.msra.mxu0 0
    %9523 = vmatprep.subr.bf16.mxu0 0
    %9524 = vmatpush1.bf16.msra.mxu0 0
    %9525 = vmatprep.subr.bf16.mxu0 0
    %9526 = vmatpush1.bf16.msra.mxu0 0
    %9527 = vmatprep.mubr.bf16.mxu0 0
    %9528 = vmatmul.mubr.bf16.gmra.mrb[0].mxu0 %v9297
    %v9529 = vpop.f32.mrb[0].mxu0
    %v9530 = vadd.f32 0.0, %v9529
    %v9531 = vpop.f32.mrb[0].mxu0
    %v9532 = vpop.f32.mrb[0].mxu0
    %v9533 = vadd.f32 0.0, %v9532
    %v9534 = vpop.f32.mrb[0].mxu0
    %9535 = vmatprep.mubr.bf16.mxu0 0
    %9536 = vmatmul.mubr.bf16.gmra.mrb[0].mxu0 %v9298
    %v9537 = vpop.f32.mrb[0].mxu0
    %v9538 = vadd.f32 0.0, %v9537
    %v9539 = vpop.f32.mrb[0].mxu0
    %v9540 = vpop.f32.mrb[0].mxu0
    %v9541 = vadd.f32 0.0, %v9540
    %v9542 = vpop.f32.mrb[0].mxu0
    %9543 = vdwg.mxu0
    %v9545 = vrot.slane %v9427, 7
    %v9550 = vrot.slane %v9416, 7
    %v9551 = vrot.slane %v9419, 7
    %v9552 = vsel %vm384, %v9550, %v9551
    %v9553 = vrot.slane %v9424, 7
    %v9554 = vsel %vm384, %v9551, %v9553
    %v9555 = vsel %vm384, %v9553, %v9545
    %v9560 = vsel %vm384, %v9545, %v9550
    %v9561 = vmul.f32 %v105, %v9560
    %v9562 = vmul.f32 %v106, %v9552
    %v9563 = vmul.f32 %v107, %v9554
    %v9564 = vmul.f32 %v108, %v9555
    %v9581 = vunpack.c.l.b16 %v9300
    %v9582 = vunpack.c.l.b16 %v9301
    %v9583 = vunpack.c.l.b16 %v9302
    %v9584 = vunpack.c.l.b16 %v9303
    %v9585 = vunpack.c.l.b16 %v9304
    %v9586 = vunpack.c.l.b16 %v9305
    %v9587 = vunpack.c.l.b16 %v9306
    %v9588 = vunpack.c.l.b16 %v9307
    %v9589 = vunpack.c.l.b16 %v9308
    %v9590 = vunpack.c.l.b16 %v9309
    %v9591 = vunpack.c.l.b16 %v9310
    %v9592 = vunpack.c.l.b16 %v9311
    %v9593 = vunpack.c.l.b16 %v9312
    %v9594 = vunpack.c.l.b16 %v9313
    %v9595 = vunpack.c.l.b16 %v9314
    %v9596 = vunpack.c.l.b16 %v9315
    %v9597 = vpack.c.b16 %v9582, %v9581
    %v9598 = vpack.c.b16 %v9584, %v9583
    %v9599 = vpack.c.b16 %v9586, %v9585
    %v9600 = vpack.c.b16 %v9588, %v9587
    %v9601 = vpack.c.b16 %v9590, %v9589
    %v9602 = vpack.c.b16 %v9592, %v9591
    %v9603 = vpack.c.b16 %v9594, %v9593
    %v9604 = vpack.c.b16 %v9596, %v9595
    %9613 = vmatprep.subr.bf16.mxu0 0
    %9614 = vmatpush1.bf16.msra.mxu0 %v9597
    %9615 = vmatprep.subr.bf16.mxu0 0
    %9616 = vmatpush1.bf16.msra.mxu0 %v9598
    %9617 = vmatprep.subr.bf16.mxu0 0
    %9618 = vmatpush1.bf16.msra.mxu0 %v9599
    %9619 = vmatprep.subr.bf16.mxu0 0
    %9620 = vmatpush1.bf16.msra.mxu0 %v9600
    %9621 = vmatprep.subr.bf16.mxu0 0
    %9622 = vmatpush1.bf16.msra.mxu0 %v9601
    %9623 = vmatprep.subr.bf16.mxu0 0
    %9624 = vmatpush1.bf16.msra.mxu0 %v9602
    %9625 = vmatprep.subr.bf16.mxu0 0
    %9626 = vmatpush1.bf16.msra.mxu0 %v9603
    %9627 = vmatprep.subr.bf16.mxu0 0
    %9628 = vmatpush1.bf16.msra.mxu0 %v9604
    %9629 = vmatprep.subr.bf16.mxu0 0
    %9630 = vmatpush1.bf16.msra.mxu0 0
    %9631 = vmatprep.subr.bf16.mxu0 0
    %9632 = vmatpush1.bf16.msra.mxu0 0
    %9633 = vmatprep.subr.bf16.mxu0 0
    %9634 = vmatpush1.bf16.msra.mxu0 0
    %9635 = vmatprep.subr.bf16.mxu0 0
    %9636 = vmatpush1.bf16.msra.mxu0 0
    %9637 = vmatprep.subr.bf16.mxu0 0
    %9638 = vmatpush1.bf16.msra.mxu0 0
    %9639 = vmatprep.subr.bf16.mxu0 0
    %9640 = vmatpush1.bf16.msra.mxu0 0
    %9641 = vmatprep.subr.bf16.mxu0 0
    %9642 = vmatpush1.bf16.msra.mxu0 0
    %9643 = vmatprep.subr.bf16.mxu0 0
    %9644 = vmatpush1.bf16.msra.mxu0 0
    %9645 = vmatprep.mubr.bf16.mxu0 0
    %9646 = vmatmul.mubr.bf16.gmra.mrb[0].mxu0 %v9297
    %v9647 = vpop.f32.mrb[0].mxu0
    %v9648 = vadd.f32 %v9561, %v9647
    %v9649 = vpop.f32.mrb[0].mxu0
    %v9650 = vpop.f32.mrb[0].mxu0
    %v9651 = vadd.f32 %v9562, %v9650
    %v9652 = vpop.f32.mrb[0].mxu0
    %9653 = vmatprep.mubr.bf16.mxu0 0
    %9654 = vmatmul.mubr.bf16.gmra.mrb[0].mxu0 %v9298
    %v9655 = vpop.f32.mrb[0].mxu0
    %v9656 = vadd.f32 %v9563, %v9655
    %v9657 = vpop.f32.mrb[0].mxu0
    %v9658 = vpop.f32.mrb[0].mxu0
    %v9659 = vadd.f32 %v9564, %v9658
    %v9660 = vpop.f32.mrb[0].mxu0
    %9661 = vdwg.mxu0
    %v9666 = vrot.slane %v9530, 1
    %v9667 = vrot.slane %v9533, 1
    %v9668 = vsel %vm477, %v9666, %v9667
    %v9669 = vrot.slane %v9538, 1
    %v9670 = vsel %vm477, %v9667, %v9669
    %v9671 = vrot.slane %v9541, 1
    %v9672 = vsel %vm477, %v9669, %v9671
    %v9678 = vsel %vm477, %v9671, %v9666
    %v9679 = vmul.f32 %v117, %v9668
    %v9680 = vmul.f32 %v118, %v9670
    %v9681 = vmul.f32 %v119, %v9672
    %v9682 = vmul.f32 %v120, %v9678
    %v9683 = vadd.f32 %v9648, %v9679
    %v9684 = vadd.f32 %v9651, %v9680
    %v9685 = vadd.f32 %v9656, %v9681
    %v9686 = vadd.f32 %v9659, %v9682
    %v9687 = vld [vmem:[#allocation5 + $0x15] sm:$0x1]
    %v9688 = vlaneseq
    %v9689 = vshrl.u32 %v9688, 7
    %v9690 = vsub.s32 0, %v9689
    %v9691 = vrot.slane %v9687, %v9690
    %v9692 = vadd.f32 %v9683, %v9691
    %v9693 = vadd.f32 %v9684, %v9691
    %v9694 = vadd.f32 %v9685, %v9691
    %v9695 = vadd.f32 %v9686, %v9691
    %v9696 = vmax.f32 %v9692, 0.0
    %v9697 = vmax.f32 %v9693, 0.0
    %v9698 = vmax.f32 %v9694, 0.0
    %v9699 = vmax.f32 %v9695, 0.0
    %v9700 = vpack.c.bf16 %v9697, %v9696
    %v9701 = vpack.c.bf16 %v9699, %v9698
    %s9702 = scalar_lea.vmem [#allocation2], 6272
    %v9703 = vld [vmem:[%s9702] sm:$0xf]
    %v9704 = vld [vmem:[%s9702 + $0x4] sm:$0xf]
    %v9705 = vld [vmem:[%s9702 + $0x8] sm:$0xf]
    %v9706 = vld [vmem:[%s9702 + $0xc] sm:$0xf]
    %v9707 = vld [vmem:[%s9702 + $0x10] sm:$0xf]
    %v9708 = vld [vmem:[%s9702 + $0x14] sm:$0xf]
    %v9709 = vld [vmem:[%s9702 + $0x18] sm:$0xf]
    %v9710 = vld [vmem:[%s9702 + $0x1c] sm:$0xf]
    %v9711 = vld [vmem:[%s9702 + $0x20] sm:$0xf]
    %v9712 = vld [vmem:[%s9702 + $0x24] sm:$0xf]
    %v9713 = vld [vmem:[%s9702 + $0x28] sm:$0xf]
    %v9714 = vld [vmem:[%s9702 + $0x2c] sm:$0xf]
    %v9715 = vld [vmem:[%s9702 + $0x30] sm:$0xf]
    %v9716 = vld [vmem:[%s9702 + $0x34] sm:$0xf]
    %v9717 = vld [vmem:[%s9702 + $0x38] sm:$0xf]
    %v9718 = vld [vmem:[%s9702 + $0x3c] sm:$0xf]
    %v9719 = vld [vmem:[#allocation5 + $0x16] sm:$0x1]
    %v9720 = vlaneseq
    %v9721 = vshrl.u32 %v9720, 7
    %v9722 = vsub.s32 0, %v9721
    %v9723 = vrot.slane %v9719, %v9722
    %v9740 = vunpack.c.l.b16 %v9703
    %v9741 = vunpack.c.l.b16 %v9704
    %v9742 = vunpack.c.l.b16 %v9705
    %v9743 = vunpack.c.l.b16 %v9706
    %v9744 = vunpack.c.l.b16 %v9707
    %v9745 = vunpack.c.l.b16 %v9708
    %v9746 = vunpack.c.l.b16 %v9709
    %v9747 = vunpack.c.l.b16 %v9710
    %v9748 = vunpack.c.l.b16 %v9711
    %v9749 = vunpack.c.l.b16 %v9712
    %v9750 = vunpack.c.l.b16 %v9713
    %v9751 = vunpack.c.l.b16 %v9714
    %v9752 = vunpack.c.l.b16 %v9715
    %v9753 = vunpack.c.l.b16 %v9716
    %v9754 = vunpack.c.l.b16 %v9717
    %v9755 = vunpack.c.l.b16 %v9718
    %v9756 = vpack.c.b16 %v9741, %v9740
    %v9757 = vpack.c.b16 %v9743, %v9742
    %v9758 = vpack.c.b16 %v9745, %v9744
    %v9759 = vpack.c.b16 %v9747, %v9746
    %v9760 = vpack.c.b16 %v9749, %v9748
    %v9761 = vpack.c.b16 %v9751, %v9750
    %v9762 = vpack.c.b16 %v9753, %v9752
    %v9763 = vpack.c.b16 %v9755, %v9754
    %9772 = vmatprep.subr.bf16.mxu0 0
    %9773 = vmatpush1.bf16.msra.mxu0 %v9756
    %9774 = vmatprep.subr.bf16.mxu0 0
    %9775 = vmatpush1.bf16.msra.mxu0 %v9757
    %9776 = vmatprep.subr.bf16.mxu0 0
    %9777 = vmatpush1.bf16.msra.mxu0 %v9758
    %9778 = vmatprep.subr.bf16.mxu0 0
    %9779 = vmatpush1.bf16.msra.mxu0 %v9759
    %9780 = vmatprep.subr.bf16.mxu0 0
    %9781 = vmatpush1.bf16.msra.mxu0 %v9760
    %9782 = vmatprep.subr.bf16.mxu0 0
    %9783 = vmatpush1.bf16.msra.mxu0 %v9761
    %9784 = vmatprep.subr.bf16.mxu0 0
    %9785 = vmatpush1.bf16.msra.mxu0 %v9762
    %9786 = vmatprep.subr.bf16.mxu0 0
    %9787 = vmatpush1.bf16.msra.mxu0 %v9763
    %9788 = vmatprep.subr.bf16.mxu0 0
    %9789 = vmatpush1.bf16.msra.mxu0 0
    %9790 = vmatprep.subr.bf16.mxu0 0
    %9791 = vmatpush1.bf16.msra.mxu0 0
    %9792 = vmatprep.subr.bf16.mxu0 0
    %9793 = vmatpush1.bf16.msra.mxu0 0
    %9794 = vmatprep.subr.bf16.mxu0 0
    %9795 = vmatpush1.bf16.msra.mxu0 0
    %9796 = vmatprep.subr.bf16.mxu0 0
    %9797 = vmatpush1.bf16.msra.mxu0 0
    %9798 = vmatprep.subr.bf16.mxu0 0
    %9799 = vmatpush1.bf16.msra.mxu0 0
    %9800 = vmatprep.subr.bf16.mxu0 0
    %9801 = vmatpush1.bf16.msra.mxu0 0
    %9802 = vmatprep.subr.bf16.mxu0 0
    %9803 = vmatpush1.bf16.msra.mxu0 0
    %9804 = vmatprep.mubr.bf16.mxu0 0
    %9805 = vmatmul.mubr.bf16.gmra.mrb[0].mxu0 %v9700
    %v9806 = vpop.f32.mrb[0].mxu0
    %v9807 = vadd.f32 %v9723, %v9806
    %v9808 = vpop.f32.mrb[0].mxu0
    %v9809 = vpop.f32.mrb[0].mxu0
    %v9810 = vadd.f32 %v9723, %v9809
    %v9811 = vpop.f32.mrb[0].mxu0
    %9812 = vmatprep.mubr.bf16.mxu0 0
    %9813 = vmatmul.mubr.bf16.gmra.mrb[0].mxu0 %v9701
    %v9814 = vpop.f32.mrb[0].mxu0
    %v9815 = vadd.f32 %v9723, %v9814
    %v9816 = vpop.f32.mrb[0].mxu0
    %v9817 = vpop.f32.mrb[0].mxu0
    %v9818 = vadd.f32 %v9723, %v9817
    %v9819 = vpop.f32.mrb[0].mxu0
    %9820 = vdwg.mxu0
    %v9821 = vsub.f32 0.0, %v9807
    %v9822 = vsub.f32 0.0, %v9810
    %v9823 = vsub.f32 0.0, %v9815
    %v9824 = vsub.f32 0.0, %v9818
    %v9825 = vmul.f32 %v9821, 1.442695
    %v9826 = vpow.pop %v9825
    %v9827 = vmul.f32 %v9822, 1.442695
    %v9828 = vpow.pop %v9827
    %v9829 = vmul.f32 %v9823, 1.442695
    %v9830 = vpow.pop %v9829
    %v9831 = vmul.f32 %v9824, 1.442695
    %v9832 = vpow.pop %v9831
    %v9833 = vadd.f32 %v9826, 1.0
    %v9834 = vadd.f32 %v9828, 1.0
    %v9835 = vadd.f32 %v9830, 1.0
    %v9836 = vadd.f32 %v9832, 1.0
    %v9837 = vrcp.pop %v9833
    %v9838 = vmul.f32 1.0, %v9837
    %v9839 = vrcp.pop %v9834
    %v9840 = vmul.f32 1.0, %v9839
    %v9841 = vrcp.pop %v9835
    %v9842 = vmul.f32 1.0, %v9841
    %v9843 = vrcp.pop %v9836
    %v9844 = vmul.f32 1.0, %v9843
    %9845 = vst [vmem:[#allocation7] sm:$0xff] %v9838
    %9846 = vst [vmem:[#allocation7 + $0x8] sm:$0xff] %v9840
    %9847 = vst [vmem:[#allocation7 + $0x10] sm:$0xff] %v9842
    %9848 = vst [vmem:[#allocation7 + $0x18] sm:$0xff] %v9844
    // Predicated region
    $region22: #{unet_forward.1} parent=1 // pred_check
      _
    $region23: #{unet_forward.1} parent=1 // pred_check_branch
      %9850 = sbr.rel (0) target = $region25
    $region24: #{unet_forward.1} parent=1 // pred_region
      %s9852 = ssub.s32 512, 512
      %9853 = vsyncadd [#allocation4], %s9852
      %s9854 = sshll.u32 [#allocation7], 4
      %s9855 = int_to_ptr.vmem [resolvable:$true] %s9854
      %9860 = dma.vmem_to_hbm [thread:$0]  %s9855, 512, %s3, [#allocation4], 128, 128, 8
    $region25: #{unet_forward.1} parent=1 // pred_fallthru
      _
    // Predicated region
    $region26: #{unet_forward.1} parent=1 // pred_check
      _
    $region27: #{unet_forward.1} parent=1 // pred_check_branch
      %9862 = sbr.rel (0) target = $region29
    $region28: #{unet_forward.1} parent=1 // pred_region
      %9863 = dma.done [#allocation4], 512
    $region29: #{unet_forward.1} parent=1 // pred_fallthru
      _
    %9864 = vsyncpa [#allocation3], 1
    %9865 = vsyncpa [#allocation6], 1
    %9866 = vsyncpa [#allocation4], 1

</llo_original>
